<compile_context>
chip_gen: v7x
topology: tpu7x:2x2x1
jax: 0.10.0
libtpu: 0.0.40
codegen_flags: <defaults>
</compile_context>

<pallas_src>
import functools

import numpy as np
import jax
import jax.numpy as jnp
from jax import lax
from jax.experimental import pallas as pl
from jax.experimental.pallas import tpu as pltpu

# neighbour offsets in the order produced by get_kernel() (k = 0..7)
OFFS = [(-1, -1), (-1, 0), (-1, 1), (0, -1), (0, 1), (1, -1), (1, 0), (1, 1)]
# same offsets grouped by row shift (OFFS order is preserved when iterating
# oy groups outer, ox inner) so each distinct row roll is done once.
GROUPS = ((-1, (-1, 0, 1)), (0, (-1, 1)), (1, (-1, 0, 1)))
W1 = 0.45
W2 = 0.005


def _round_up(x, m):
    return ((x + m - 1) // m) * m


# ------------------------------ the kernel ------------------------------

def par_kernel(imgs_hbm, masks_hbm, out_ref, img_buf, msk_buf, sem, *,
               dilations, num_iter, tile_rows, halo, true_h, true_w, pos_w2,
               prefetch):
    b = pl.program_id(0)
    t = pl.program_id(1)
    n_t = pl.num_programs(1)

    _nbuf, c_img, twin, wp = img_buf.shape
    k_total = 8 * len(dilations)

    row0 = pl.multiple_of(t * tile_rows, 8)

    # ---- manual DMA of the (tile + halo) row window; inputs live in HBM ----
    def img_copy(buf_slot, r0, sem_slot):
        return pltpu.make_async_copy(
            imgs_hbm.at[b, :, pl.ds(r0, twin), :], img_buf.at[buf_slot],
            sem.at[0, sem_slot])

    def msk_copy(buf_slot, r0, sem_slot):
        return pltpu.make_async_copy(
            masks_hbm.at[b, :, pl.ds(r0, twin), :], msk_buf.at[buf_slot],
            sem.at[1, sem_slot])

    if prefetch:
        # tile axis is "arbitrary" -> for a fixed batch the tiles run in order
        # on one core, so tile t-1 can prefetch tile t's window.
        slot = t % 2
        nslot = 1 - slot

        @pl.when(t == 0)
        def _():
            img_copy(slot, row0, slot).start()
            msk_copy(slot, row0, slot).start()

        @pl.when(t + 1 < n_t)
        def _():
            row1 = pl.multiple_of((t + 1) * tile_rows, 8)
            img_copy(nslot, row1, nslot).start()
            msk_copy(nslot, row1, nslot).start()
    else:
        slot = 0
        img_copy(0, row0, 0).start()
        msk_copy(0, row0, 0).start()

    ibuf = img_buf.at[slot]
    mbuf = msk_buf.at[slot]

    # only the IMAGE window is needed now; the mask wait is deferred to the
    # propagation loop so its DMA hides behind pass 1/2 + softmax.
    img_copy(slot, row0, slot).wait()

    # ---- precomputed index masks (reused by every pass & every iteration) ----
    col_ids = lax.broadcasted_iota(jnp.int32, (1, twin, wp), 2)
    row_ids = lax.broadcasted_iota(jnp.int32, (1, twin, wp), 1)
    canvas_row = row_ids + t * tile_rows          # row index in the padded canvas

    above = canvas_row < halo                     # rows above the true image
    below = canvas_row >= halo + true_h           # rows below the true image
    rpad = col_ids >= true_w                      # lane-padding columns
    left_mask = {d: col_ids < d for d in sorted(set(dilations))}

    # ---- shift helpers (XLU rolls; wrap-around stays inside the halo) ----
    def h_shift(x, s):                            # y[r] = x[r + s]
        if s == 0:
            return x
        return pltpu.roll(x, (-s) % twin, 1)

    def w_pos(x, d):                              # y[j] = x[j + d]
        # relies on >= max(dilations) replicate-padded columns past true_w,
        # so no border select is needed for rightward shifts.
        return pltpu.roll(x, (wp - d) % wp, 2)

    def w_neg(x, d):                              # y[j] = x[max(j - d, 0)]
        return jnp.where(left_mask[d], x[:, :, 0:1], pltpu.roll(x, d, 2))

    def neighbours(x):
        """K dilated neighbours in get_kernel() order; each row shift rolled once."""
        for d in dilations:
            for oy, oxs in GROUPS:
                xh = h_shift(x, oy * d)
                for ox in oxs:
                    if ox == 0:
                        yield xh
                    elif ox > 0:
                        yield w_pos(xh, d)
                    else:
                        yield w_neg(xh, d)

    img = ibuf[...]                               # (C, twin, wp)

    # ---- pass 1: std over the K neighbours via centred-diff accumulators ----
    s1 = jnp.zeros_like(img)
    s2 = jnp.zeros_like(img)
    for nb in neighbours(img):
        dlt = nb - img
        s1 = s1 + dlt
        s2 = s2 + dlt * dlt
    var = jnp.maximum((s2 - s1 * s1 * (1.0 / k_total)) * (1.0 / (k_total - 1)),
                      0.0)                        # torch.std (ddof=1)
    # ONE reciprocal per (C,H,W) pixel for 1 / ((std + eps) * w1)
    inv_std = pl.reciprocal((jnp.sqrt(var) + 1e-8) * W1)

    # ---- pass 2: per-neighbour affinity (channel mean) + K softmax ----
    aff = []
    for nb in neighbours(img):
        z = (nb - img) * inv_std
        aff.append(jnp.sum(z * z, axis=0) * (-1.0 / c_img))    # (twin, wp)

    amax = aff[0]
    for a in aff[1:]:
        amax = jnp.maximum(amax, a)
    exps = [jnp.exp(a - amax) for a in aff]
    den = exps[0]
    for e in exps[1:]:
        den = den + e
    inv_den = pl.reciprocal(den)                  # one hoisted reciprocal / pixel
    # broadcast-ready per-neighbour weights (positional softmax is a constant)
    wts = [(exps[i] * inv_den + pos_w2[i])[None, :, :] for i in range(k_total)]

    # window-row indices of the first / last TRUE image row (for border clamp)
    idx_top = jnp.clip(halo - t * tile_rows, 0, twin - 1)
    idx_bot = jnp.clip(halo + true_h - 1 - t * tile_rows, 0, twin - 1)

    # mask window is needed only now
    msk_copy(slot, row0, slot).wait()

    # ---- iterative propagation (num_iter is small & static: fully unrolled) ----
    for _ in range(num_iter):
        m = mbuf[...]                             # (Cm, twin, wp)
        # replicate-pad semantics at the TRUE image borders: cheap 1-row loads
        top_row = mbuf[:, pl.ds(idx_top, 1), :]   # (Cm, 1, wp)
        bot_row = mbuf[:, pl.ds(idx_bot, 1), :]
        m = jnp.where(above, top_row, m)
        m = jnp.where(below, bot_row, m)
        # keep the lane-padding columns equal to the true right edge so that
        # rightward shifts read correct replicate values without per-k selects
        m = jnp.where(rpad, m[:, :, true_w - 1:true_w], m)

        acc = jnp.zeros_like(m)
        for i, nb in enumerate(neighbours(m)):
            acc = acc + nb * wts[i]
        mbuf[...] = acc

    # lane-dense store of the valid tile rows
    out_ref[0] = mbuf[:, halo:halo + tile_rows, :]


# ------------------------------ glue (JAX) ------------------------------

def resize_bilinear_align_corners(x, out_h, out_w):
    """F.interpolate(mode='bilinear', align_corners=True) for NCHW input."""
    b, c, h, w = x.shape
    ys = jnp.zeros((out_h,), jnp.float32) if h == 1 else jnp.linspace(0.0, h - 1.0, out_h)
    xs = jnp.zeros((out_w,), jnp.float32) if w == 1 else jnp.linspace(0.0, w - 1.0, out_w)
    y0 = jnp.floor(ys).astype(jnp.int32)
    y1 = jnp.minimum(y0 + 1, h - 1)
    wy = (ys - y0.astype(jnp.float32))[None, None, :, None]
    x0 = jnp.floor(xs).astype(jnp.int32)
    x1 = jnp.minimum(x0 + 1, w - 1)
    wx = (xs - x0.astype(jnp.float32))[None, None, None, :]
    rows = x[:, :, y0, :] * (1.0 - wy) + x[:, :, y1, :] * wy
    return rows[:, :, :, x0] * (1.0 - wx) + rows[:, :, :, x1] * wx


def _pos_softmax_np(dilations):
    """Constant positional-affinity softmax (data-independent)."""
    sqrt2 = float(np.sqrt(2.0))
    base = np.array([sqrt2, 1, sqrt2, 1, 1, sqrt2, 1, sqrt2], dtype=np.float64)
    pos = np.concatenate([base * d for d in dilations])          # (K,)
    pos_std = pos.std(ddof=1)                                    # torch.std (unbiased)
    pa = -((pos / (pos_std + 1e-8) / W1) ** 2)
    e = np.exp(pa - pa.max())
    return (e / e.sum()).astype(np.float32)                      # (K,)


def _vmem_capacity_bytes():
    """Per-core VMEM capacity (generation-aware); conservative fallback."""
    try:
        return int(pltpu.get_tpu_info().vmem_capacity_bytes)
    except Exception:
        return 64 * 1024 * 1024


def _choose_tile_rows(h, wp, c, cm, k, halo, budget_bytes):
    """Pick output rows per tile so the live VMEM set fits the budget."""
    # rough per-window-row live set (f32): double-buffered inputs, pass-1/2
    # accumulators, K affinity/weight planes, propagation temporaries, slack.
    per_row = 4 * wp * (2 * (c + cm) + 6 * c + 3 * k + 3 * cm + 8)
    rows = max(8 + 2 * halo, budget_bytes // per_row)
    t = max(8, ((rows - 2 * halo) // 8) * 8)
    return min(t, _round_up(h, 8))


def par_forward(imgs, masks, dilations, num_iter, *, tile_rows=None):
    dilations = tuple(int(d) for d in dilations)
    num_iter = int(num_iter)
    b, c, h, w = imgs.shape
    cm = masks.shape[1]
    k = 8 * len(dilations)
    max_d = max(dilations)

    imgs = imgs.astype(jnp.float32)
    masks_r = resize_bilinear_align_corners(masks.astype(jnp.float32), h, w)

    halo = _round_up(max(1, num_iter) * max_d, 8)   # rows of context per side
    # lane-dense width with >= max_d replicate columns past the true width, so
    # positive column shifts never need a border select inside the kernel.
    wp = _round_up(max(w + max_d, 128), 128)

    vmem_cap = _vmem_capacity_bytes()
    if tile_rows is None:
        budget = max(8 << 20, int(vmem_cap * 0.30))
        t_rows = _choose_tile_rows(h, wp, c, cm, k, halo, budget)
        if b == 1:
            # keep >= 2 grid steps for megacore parts when the image is large
            t_rows = min(t_rows, max(64, _round_up(-(-h // 2), 8)))
    else:
        t_rows = min(_round_up(int(tile_rows), 8), _round_up(h, 8))
    n_t = -(-h // t_rows)
    h_out = n_t * t_rows
    twin = t_rows + 2 * halo

    # prefetch (double-buffered windows) needs the tile axis sequential; only
    # use it when the batch axis alone can still feed both v7x TensorCores.
    prefetch = (n_t >= 2) and (b >= 2)
    nbuf = 2 if prefetch else 1

    # Padded canvas: `halo` replicate rows on top, `halo + (h_out - h)` at the
    # bottom, replicate columns up to wp (>= w + max_d).  The kernel clamps at
    # the TRUE H/W borders itself for the propagated masks.
    pad_h = (halo, halo + (h_out - h))
    pad_w = (0, wp - w)
    imgs_p = jnp.pad(imgs, ((0, 0), (0, 0), pad_h, pad_w), mode="edge")
    masks_p = jnp.pad(masks_r, ((0, 0), (0, 0), pad_h, pad_w), mode="edge")

    pos_w2 = tuple(float(W2 * v) for v in _pos_softmax_np(dilations))

    kernel = functools.partial(
        par_kernel, dilations=dilations, num_iter=num_iter, tile_rows=t_rows,
        halo=halo, true_h=h, true_w=w, pos_w2=pos_w2, prefetch=prefetch)

    out = pl.pallas_call(
        kernel,
        out_shape=jax.ShapeDtypeStruct((b, cm, h_out, wp), jnp.float32),
        grid=(b, n_t),
        in_specs=[
            pl.BlockSpec(memory_space=pl.ANY),   # imgs stay in HBM, DMA'd manually
            pl.BlockSpec(memory_space=pl.ANY),   # masks stay in HBM, DMA'd manually
        ],
        out_specs=pl.BlockSpec((1, cm, t_rows, wp), lambda bi, ti: (bi, 0, ti, 0)),
        scratch_shapes=[
            pltpu.VMEM((nbuf, c, twin, wp), jnp.float32),
            pltpu.VMEM((nbuf, cm, twin, wp), jnp.float32),
            pltpu.SemaphoreType.DMA((2, nbuf)),
        ],
        compiler_params=pltpu.CompilerParams(
            dimension_semantics=(("parallel", "arbitrary") if prefetch
                                 else ("parallel", "parallel")),
            vmem_limit_bytes=int(max(32 << 20, min(vmem_cap * 0.75, 112 << 20))),
        ),
    )(imgs_p, masks_p)

    return out[:, :, :h, :w]


# -------------------------- pure-JAX reference --------------------------

def par_reference(imgs, masks, dilations, num_iter):
    b, c, h, w = imgs.shape
    masks = resize_bilinear_align_corners(masks.astype(jnp.float32), h, w)

    def neigh(x):
        outs = []
        for d in dilations:
            xp = jnp.pad(x, ((0, 0), (0, 0), (d, d), (d, d)), mode="edge")
            for (oy, ox) in OFFS:
                outs.append(xp[:, :, d + oy * d:d + oy * d + h, d + ox * d:d + ox * d + w])
        return jnp.stack(outs, axis=2)                      # (B, C, K, H, W)

    xi = neigh(imgs.astype(jnp.float32))
    diff = jnp.abs(xi - imgs[:, :, None].astype(jnp.float32))
    std = jnp.std(xi, axis=2, keepdims=True, ddof=1)
    aff = jnp.mean(-((diff / (std + 1e-8) / W1) ** 2), axis=1, keepdims=True)
    aff = jax.nn.softmax(aff, axis=2)
    pos = jnp.asarray(_pos_softmax_np(dilations))
    aff = aff + W2 * pos[None, None, :, None, None]

    m = masks
    for _ in range(num_iter):
        m = (neigh(m) * aff).sum(axis=2)
    return m


# --------------------------------- main ---------------------------------

if __name__ == "__main__":
    key = jax.random.PRNGKey(0)
    k1, k2, k3, k4, k5, k6 = jax.random.split(key, 6)

    # case 1: RGB-like images, masks at half resolution (single H tile)
    imgs = jax.random.normal(k1, (2, 3, 16, 16), dtype=jnp.float32)
    masks = jax.random.uniform(k2, (2, 4, 8, 8), dtype=jnp.float32)
    out = jax.block_until_ready(par_forward(imgs, masks, [1, 2], 2))
    ref = par_reference(imgs, masks, [1, 2], 2)
    np.testing.assert_allclose(np.asarray(out), np.asarray(ref), rtol=1e-3, atol=1e-3)
    assert out.shape == (2, 4, 16, 16)
    assert bool(jnp.all(jnp.isfinite(out)))

    # case 2: odd H/W, b=1 multi-tile path (no prefetch; true-border clamping)
    imgs2 = jax.random.normal(k3, (1, 3, 21, 20), dtype=jnp.float32)
    masks2 = jax.random.uniform(k4, (1, 2, 11, 10), dtype=jnp.float32)
    out2 = jax.block_until_ready(par_forward(imgs2, masks2, [1, 2], 2, tile_rows=8))
    ref2 = par_reference(imgs2, masks2, [1, 2], 2)
    np.testing.assert_allclose(np.asarray(out2), np.asarray(ref2), rtol=1e-3, atol=1e-3)
    assert out2.shape == (1, 2, 21, 20)
    assert bool(jnp.all(jnp.isfinite(out2)))

    # case 3: b>=2 multi-tile path (double-buffered / prefetched input DMA)
    imgs3 = jax.random.normal(k5, (2, 3, 24, 20), dtype=jnp.float32)
    masks3 = jax.random.uniform(k6, (2, 2, 12, 10), dtype=jnp.float32)
    out3 = jax.block_until_ready(par_forward(imgs3, masks3, [1, 2], 3, tile_rows=8))
    ref3 = par_reference(imgs3, masks3, [1, 2], 3)
    np.testing.assert_allclose(np.asarray(out3), np.asarray(ref3), rtol=1e-3, atol=1e-3)
    assert out3.shape == (2, 2, 24, 20)
    assert bool(jnp.all(jnp.isfinite(out3)))

    print("KERNEL_OK")
</pallas_src>

<mosaic_0001>
module attributes {stable_mosaic.version = 11 : i64} {
  func.func @par_kernel(%arg0: i32, %arg1: i32, %arg2: memref<2x3x32x128xf32, #tpu.memory_space<any>>, %arg3: memref<2x4x32x128xf32, #tpu.memory_space<any>>, %arg4: memref<1x4x16x128xf32, #tpu.memory_space<vmem>>, %arg5: memref<1x3x32x128xf32, #tpu.memory_space<vmem>>, %arg6: memref<1x4x32x128xf32, #tpu.memory_space<vmem>>, %arg7: memref<2x1x!tpu.dma_semaphore, #tpu.memory_space<semaphore_mem>>) attributes {dimension_semantics = [#tpu.dimension_semantics<parallel>, #tpu.dimension_semantics<parallel>], iteration_bounds = array<i64: 2, 1>, scalar_prefetch = 0 : i64, scratch_operands = 3 : i64, tpu.core_type = #tpu.core_type<tc>, window_params = [{}, {}, {transform_indices = @transform_2, window_bounds = array<i64: 1, 4, 16, 128>}]} {
    %c16_i32 = arith.constant 16 : i32
    %0 = arith.muli %arg1, %c16_i32 : i32
    %1 = tpu.assume_multiple %0, 8 : i32
    %c0_i32 = arith.constant 0 : i32
    %c0_i32_0 = arith.constant 0 : i32
    %c0_i32_1 = arith.constant 0 : i32
    %c0_i32_2 = arith.constant 0 : i32
    %c0_i32_3 = arith.constant 0 : i32
    %2 = tpu.memref_slice %arg2[%arg0, %c0_i32_2, %1, %c0_i32_3] : memref<2x3x32x128xf32, #tpu.memory_space<any>> -> memref<1x3x32x128xf32, #tpu.memory_space<any>>
    %3 = tpu.memref_squeeze %2 : memref<1x3x32x128xf32, #tpu.memory_space<any>> -> memref<3x32x128xf32, #tpu.memory_space<any>>
    %c0_i32_4 = arith.constant 0 : i32
    %c0_i32_5 = arith.constant 0 : i32
    %c0_i32_6 = arith.constant 0 : i32
    %4 = tpu.memref_slice %arg5[%c0_i32, %c0_i32_4, %c0_i32_5, %c0_i32_6] : memref<1x3x32x128xf32, #tpu.memory_space<vmem>> -> memref<1x3x32x128xf32, #tpu.memory_space<vmem>>
    %5 = tpu.memref_squeeze %4 : memref<1x3x32x128xf32, #tpu.memory_space<vmem>> -> memref<3x32x128xf32, #tpu.memory_space<vmem>>
    %6 = tpu.memref_slice %arg7[%c0_i32_0, %c0_i32_1] : memref<2x1x!tpu.dma_semaphore, #tpu.memory_space<semaphore_mem>> -> memref<1x1x!tpu.dma_semaphore, #tpu.memory_space<semaphore_mem>>
    %7 = tpu.memref_squeeze %6 : memref<1x1x!tpu.dma_semaphore, #tpu.memory_space<semaphore_mem>> -> memref<!tpu.dma_semaphore, #tpu.memory_space<semaphore_mem>>
    tpu.enqueue_dma source(%3 : memref<3x32x128xf32, #tpu.memory_space<any>>) target(%5 : memref<3x32x128xf32, #tpu.memory_space<vmem>>) target_semaphore(%7 : memref<!tpu.dma_semaphore, #tpu.memory_space<semaphore_mem>>)
    %c0_i32_7 = arith.constant 0 : i32
    %c1_i32 = arith.constant 1 : i32
    %c0_i32_8 = arith.constant 0 : i32
    %c0_i32_9 = arith.constant 0 : i32
    %c0_i32_10 = arith.constant 0 : i32
    %8 = tpu.memref_slice %arg3[%arg0, %c0_i32_9, %1, %c0_i32_10] : memref<2x4x32x128xf32, #tpu.memory_space<any>> -> memref<1x4x32x128xf32, #tpu.memory_space<any>>
    %9 = tpu.memref_squeeze %8 : memref<1x4x32x128xf32, #tpu.memory_space<any>> -> memref<4x32x128xf32, #tpu.memory_space<any>>
    %c0_i32_11 = arith.constant 0 : i32
    %c0_i32_12 = arith.constant 0 : i32
    %c0_i32_13 = arith.constant 0 : i32
    %10 = tpu.memref_slice %arg6[%c0_i32_7, %c0_i32_11, %c0_i32_12, %c0_i32_13] : memref<1x4x32x128xf32, #tpu.memory_space<vmem>> -> memref<1x4x32x128xf32, #tpu.memory_space<vmem>>
    %11 = tpu.memref_squeeze %10 : memref<1x4x32x128xf32, #tpu.memory_space<vmem>> -> memref<4x32x128xf32, #tpu.memory_space<vmem>>
    %12 = tpu.memref_slice %arg7[%c1_i32, %c0_i32_8] : memref<2x1x!tpu.dma_semaphore, #tpu.memory_space<semaphore_mem>> -> memref<1x1x!tpu.dma_semaphore, #tpu.memory_space<semaphore_mem>>
    %13 = tpu.memref_squeeze %12 : memref<1x1x!tpu.dma_semaphore, #tpu.memory_space<semaphore_mem>> -> memref<!tpu.dma_semaphore, #tpu.memory_space<semaphore_mem>>
    tpu.enqueue_dma source(%9 : memref<4x32x128xf32, #tpu.memory_space<any>>) target(%11 : memref<4x32x128xf32, #tpu.memory_space<vmem>>) target_semaphore(%13 : memref<!tpu.dma_semaphore, #tpu.memory_space<semaphore_mem>>)
    %c0_i32_14 = arith.constant 0 : i32
    %c0_i32_15 = arith.constant 0 : i32
    %c0_i32_16 = arith.constant 0 : i32
    %c0_i32_17 = arith.constant 0 : i32
    %c0_i32_18 = arith.constant 0 : i32
    %14 = tpu.memref_slice %arg2[%arg0, %c0_i32_17, %1, %c0_i32_18] : memref<2x3x32x128xf32, #tpu.memory_space<any>> -> memref<1x3x32x128xf32, #tpu.memory_space<any>>
    %15 = tpu.memref_squeeze %14 : memref<1x3x32x128xf32, #tpu.memory_space<any>> -> memref<3x32x128xf32, #tpu.memory_space<any>>
    %c0_i32_19 = arith.constant 0 : i32
    %c0_i32_20 = arith.constant 0 : i32
    %c0_i32_21 = arith.constant 0 : i32
    %16 = tpu.memref_slice %arg5[%c0_i32_14, %c0_i32_19, %c0_i32_20, %c0_i32_21] : memref<1x3x32x128xf32, #tpu.memory_space<vmem>> -> memref<1x3x32x128xf32, #tpu.memory_space<vmem>>
    %17 = tpu.memref_squeeze %16 : memref<1x3x32x128xf32, #tpu.memory_space<vmem>> -> memref<3x32x128xf32, #tpu.memory_space<vmem>>
    %18 = tpu.memref_slice %arg7[%c0_i32_15, %c0_i32_16] : memref<2x1x!tpu.dma_semaphore, #tpu.memory_space<semaphore_mem>> -> memref<1x1x!tpu.dma_semaphore, #tpu.memory_space<semaphore_mem>>
    %19 = tpu.memref_squeeze %18 : memref<1x1x!tpu.dma_semaphore, #tpu.memory_space<semaphore_mem>> -> memref<!tpu.dma_semaphore, #tpu.memory_space<semaphore_mem>>
    tpu.wait_dma2 semaphore(%19 : memref<!tpu.dma_semaphore, #tpu.memory_space<semaphore_mem>>) src(%15 : memref<3x32x128xf32, #tpu.memory_space<any>>) dst(%17 : memref<3x32x128xf32, #tpu.memory_space<vmem>>)
    %20 = tpu.iota {dimensions = array<i32: 2>} : vector<1x32x128xi32>
    %21 = tpu.iota {dimensions = array<i32: 1>} : vector<1x32x128xi32>
    %c16_i32_22 = arith.constant 16 : i32
    %22 = arith.muli %arg1, %c16_i32_22 : i32
    %23 = vector.broadcast %22 : i32 to vector<1x32x128xi32>
    %24 = arith.addi %21, %23 : vector<1x32x128xi32>
    %c8_i32 = arith.constant 8 : i32
    %25 = vector.broadcast %c8_i32 : i32 to vector<1x32x128xi32>
    %26 = arith.cmpi slt, %24, %25 : vector<1x32x128xi32>
    %c24_i32 = arith.constant 24 : i32
    %27 = vector.broadcast %c24_i32 : i32 to vector<1x32x128xi32>
    %28 = arith.cmpi sge, %24, %27 : vector<1x32x128xi32>
    %c16_i32_23 = arith.constant 16 : i32
    %29 = vector.broadcast %c16_i32_23 : i32 to vector<1x32x128xi32>
    %30 = arith.cmpi sge, %20, %29 : vector<1x32x128xi32>
    %c1_i32_24 = arith.constant 1 : i32
    %31 = vector.broadcast %c1_i32_24 : i32 to vector<1x32x128xi32>
    %32 = arith.cmpi slt, %20, %31 : vector<1x32x128xi32>
    %c2_i32 = arith.constant 2 : i32
    %33 = vector.broadcast %c2_i32 : i32 to vector<1x32x128xi32>
    %34 = arith.cmpi slt, %20, %33 : vector<1x32x128xi32>
    %c0 = arith.constant 0 : index
    %c0_25 = arith.constant 0 : index
    %c0_26 = arith.constant 0 : index
    %c0_27 = arith.constant 0 : index
    %35 = vector.load %arg5[%c0, %c0_25, %c0_26, %c0_27] : memref<1x3x32x128xf32, #tpu.memory_space<vmem>>, vector<1x3x32x128xf32>
    %36 = vector.shape_cast %35 : vector<1x3x32x128xf32> to vector<3x32x128xf32>
    %cst = arith.constant 0.000000e+00 : f32
    %37 = vector.broadcast %cst : f32 to vector<3x32x128xf32>
    %cst_28 = arith.constant 0.000000e+00 : f32
    %38 = vector.broadcast %cst_28 : f32 to vector<3x32x128xf32>
    %c1_i32_29 = arith.constant 1 : i32
    %39 = tpu.dynamic_rotate %36 by %c1_i32_29 dim 1 : vector<3x32x128xf32>, i32 -> vector<3x32x128xf32>
    %40 = vector.extract_strided_slice %39 {offsets = [0, 0, 0], sizes = [3, 32, 1], strides = [1, 1, 1]} : vector<3x32x128xf32> to vector<3x32x1xf32>
    %c1_i32_30 = arith.constant 1 : i32
    %41 = tpu.dynamic_rotate %39 by %c1_i32_30 dim 2 : vector<3x32x128xf32>, i32 -> vector<3x32x128xf32>
    %42 = vector.shape_cast %32 : vector<1x32x128xi1> to vector<1x32x128xi1>
    %43 = vector.broadcast %42 : vector<1x32x128xi1> to vector<3x32x128xi1>
    %44 = vector.shape_cast %40 : vector<3x32x1xf32> to vector<3x32x1xf32>
    %45 = vector.broadcast %44 : vector<3x32x1xf32> to vector<3x32x128xf32>
    %46 = arith.select %43, %45, %41 : vector<3x32x128xi1>, vector<3x32x128xf32>
    %47 = arith.subf %46, %36 : vector<3x32x128xf32>
    %48 = arith.addf %37, %47 : vector<3x32x128xf32>
    %49 = arith.mulf %47, %47 : vector<3x32x128xf32>
    %50 = arith.addf %38, %49 : vector<3x32x128xf32>
    %51 = arith.subf %39, %36 : vector<3x32x128xf32>
    %52 = arith.addf %48, %51 : vector<3x32x128xf32>
    %53 = arith.mulf %51, %51 : vector<3x32x128xf32>
    %54 = arith.addf %50, %53 : vector<3x32x128xf32>
    %c127_i32 = arith.constant 127 : i32
    %55 = tpu.dynamic_rotate %39 by %c127_i32 dim 2 : vector<3x32x128xf32>, i32 -> vector<3x32x128xf32>
    %56 = arith.subf %55, %36 : vector<3x32x128xf32>
    %57 = arith.addf %52, %56 : vector<3x32x128xf32>
    %58 = arith.mulf %56, %56 : vector<3x32x128xf32>
    %59 = arith.addf %54, %58 : vector<3x32x128xf32>
    %60 = vector.extract_strided_slice %36 {offsets = [0, 0, 0], sizes = [3, 32, 1], strides = [1, 1, 1]} : vector<3x32x128xf32> to vector<3x32x1xf32>
    %c1_i32_31 = arith.constant 1 : i32
    %61 = tpu.dynamic_rotate %36 by %c1_i32_31 dim 2 : vector<3x32x128xf32>, i32 -> vector<3x32x128xf32>
    %62 = vector.shape_cast %32 : vector<1x32x128xi1> to vector<1x32x128xi1>
    %63 = vector.broadcast %62 : vector<1x32x128xi1> to vector<3x32x128xi1>
    %64 = vector.shape_cast %60 : vector<3x32x1xf32> to vector<3x32x1xf32>
    %65 = vector.broadcast %64 : vector<3x32x1xf32> to vector<3x32x128xf32>
    %66 = arith.select %63, %65, %61 : vector<3x32x128xi1>, vector<3x32x128xf32>
    %67 = arith.subf %66, %36 : vector<3x32x128xf32>
    %68 = arith.addf %57, %67 : vector<3x32x128xf32>
    %69 = arith.mulf %67, %67 : vector<3x32x128xf32>
    %70 = arith.addf %59, %69 : vector<3x32x128xf32>
    %c127_i32_32 = arith.constant 127 : i32
    %71 = tpu.dynamic_rotate %36 by %c127_i32_32 dim 2 : vector<3x32x128xf32>, i32 -> vector<3x32x128xf32>
    %72 = arith.subf %71, %36 : vector<3x32x128xf32>
    %73 = arith.addf %68, %72 : vector<3x32x128xf32>
    %74 = arith.mulf %72, %72 : vector<3x32x128xf32>
    %75 = arith.addf %70, %74 : vector<3x32x128xf32>
    %c31_i32 = arith.constant 31 : i32
    %76 = tpu.dynamic_rotate %36 by %c31_i32 dim 1 : vector<3x32x128xf32>, i32 -> vector<3x32x128xf32>
    %77 = vector.extract_strided_slice %76 {offsets = [0, 0, 0], sizes = [3, 32, 1], strides = [1, 1, 1]} : vector<3x32x128xf32> to vector<3x32x1xf32>
    %c1_i32_33 = arith.constant 1 : i32
    %78 = tpu.dynamic_rotate %76 by %c1_i32_33 dim 2 : vector<3x32x128xf32>, i32 -> vector<3x32x128xf32>
    %79 = vector.shape_cast %32 : vector<1x32x128xi1> to vector<1x32x128xi1>
    %80 = vector.broadcast %79 : vector<1x32x128xi1> to vector<3x32x128xi1>
    %81 = vector.shape_cast %77 : vector<3x32x1xf32> to vector<3x32x1xf32>
    %82 = vector.broadcast %81 : vector<3x32x1xf32> to vector<3x32x128xf32>
    %83 = arith.select %80, %82, %78 : vector<3x32x128xi1>, vector<3x32x128xf32>
    %84 = arith.subf %83, %36 : vector<3x32x128xf32>
    %85 = arith.addf %73, %84 : vector<3x32x128xf32>
    %86 = arith.mulf %84, %84 : vector<3x32x128xf32>
    %87 = arith.addf %75, %86 : vector<3x32x128xf32>
    %88 = arith.subf %76, %36 : vector<3x32x128xf32>
    %89 = arith.addf %85, %88 : vector<3x32x128xf32>
    %90 = arith.mulf %88, %88 : vector<3x32x128xf32>
    %91 = arith.addf %87, %90 : vector<3x32x128xf32>
    %c127_i32_34 = arith.constant 127 : i32
    %92 = tpu.dynamic_rotate %76 by %c127_i32_34 dim 2 : vector<3x32x128xf32>, i32 -> vector<3x32x128xf32>
    %93 = arith.subf %92, %36 : vector<3x32x128xf32>
    %94 = arith.addf %89, %93 : vector<3x32x128xf32>
    %95 = arith.mulf %93, %93 : vector<3x32x128xf32>
    %96 = arith.addf %91, %95 : vector<3x32x128xf32>
    %c2_i32_35 = arith.constant 2 : i32
    %97 = tpu.dynamic_rotate %36 by %c2_i32_35 dim 1 : vector<3x32x128xf32>, i32 -> vector<3x32x128xf32>
    %98 = vector.extract_strided_slice %97 {offsets = [0, 0, 0], sizes = [3, 32, 1], strides = [1, 1, 1]} : vector<3x32x128xf32> to vector<3x32x1xf32>
    %c2_i32_36 = arith.constant 2 : i32
    %99 = tpu.dynamic_rotate %97 by %c2_i32_36 dim 2 : vector<3x32x128xf32>, i32 -> vector<3x32x128xf32>
    %100 = vector.shape_cast %34 : vector<1x32x128xi1> to vector<1x32x128xi1>
    %101 = vector.broadcast %100 : vector<1x32x128xi1> to vector<3x32x128xi1>
    %102 = vector.shape_cast %98 : vector<3x32x1xf32> to vector<3x32x1xf32>
    %103 = vector.broadcast %102 : vector<3x32x1xf32> to vector<3x32x128xf32>
    %104 = arith.select %101, %103, %99 : vector<3x32x128xi1>, vector<3x32x128xf32>
    %105 = arith.subf %104, %36 : vector<3x32x128xf32>
    %106 = arith.addf %94, %105 : vector<3x32x128xf32>
    %107 = arith.mulf %105, %105 : vector<3x32x128xf32>
    %108 = arith.addf %96, %107 : vector<3x32x128xf32>
    %109 = arith.subf %97, %36 : vector<3x32x128xf32>
    %110 = arith.addf %106, %109 : vector<3x32x128xf32>
    %111 = arith.mulf %109, %109 : vector<3x32x128xf32>
    %112 = arith.addf %108, %111 : vector<3x32x128xf32>
    %c126_i32 = arith.constant 126 : i32
    %113 = tpu.dynamic_rotate %97 by %c126_i32 dim 2 : vector<3x32x128xf32>, i32 -> vector<3x32x128xf32>
    %114 = arith.subf %113, %36 : vector<3x32x128xf32>
    %115 = arith.addf %110, %114 : vector<3x32x128xf32>
    %116 = arith.mulf %114, %114 : vector<3x32x128xf32>
    %117 = arith.addf %112, %116 : vector<3x32x128xf32>
    %118 = vector.extract_strided_slice %36 {offsets = [0, 0, 0], sizes = [3, 32, 1], strides = [1, 1, 1]} : vector<3x32x128xf32> to vector<3x32x1xf32>
    %c2_i32_37 = arith.constant 2 : i32
    %119 = tpu.dynamic_rotate %36 by %c2_i32_37 dim 2 : vector<3x32x128xf32>, i32 -> vector<3x32x128xf32>
    %120 = vector.shape_cast %34 : vector<1x32x128xi1> to vector<1x32x128xi1>
    %121 = vector.broadcast %120 : vector<1x32x128xi1> to vector<3x32x128xi1>
    %122 = vector.shape_cast %118 : vector<3x32x1xf32> to vector<3x32x1xf32>
    %123 = vector.broadcast %122 : vector<3x32x1xf32> to vector<3x32x128xf32>
    %124 = arith.select %121, %123, %119 : vector<3x32x128xi1>, vector<3x32x128xf32>
    %125 = arith.subf %124, %36 : vector<3x32x128xf32>
    %126 = arith.addf %115, %125 : vector<3x32x128xf32>
    %127 = arith.mulf %125, %125 : vector<3x32x128xf32>
    %128 = arith.addf %117, %127 : vector<3x32x128xf32>
    %c126_i32_38 = arith.constant 126 : i32
    %129 = tpu.dynamic_rotate %36 by %c126_i32_38 dim 2 : vector<3x32x128xf32>, i32 -> vector<3x32x128xf32>
    %130 = arith.subf %129, %36 : vector<3x32x128xf32>
    %131 = arith.addf %126, %130 : vector<3x32x128xf32>
    %132 = arith.mulf %130, %130 : vector<3x32x128xf32>
    %133 = arith.addf %128, %132 : vector<3x32x128xf32>
    %c30_i32 = arith.constant 30 : i32
    %134 = tpu.dynamic_rotate %36 by %c30_i32 dim 1 : vector<3x32x128xf32>, i32 -> vector<3x32x128xf32>
    %135 = vector.extract_strided_slice %134 {offsets = [0, 0, 0], sizes = [3, 32, 1], strides = [1, 1, 1]} : vector<3x32x128xf32> to vector<3x32x1xf32>
    %c2_i32_39 = arith.constant 2 : i32
    %136 = tpu.dynamic_rotate %134 by %c2_i32_39 dim 2 : vector<3x32x128xf32>, i32 -> vector<3x32x128xf32>
    %137 = vector.shape_cast %34 : vector<1x32x128xi1> to vector<1x32x128xi1>
    %138 = vector.broadcast %137 : vector<1x32x128xi1> to vector<3x32x128xi1>
    %139 = vector.shape_cast %135 : vector<3x32x1xf32> to vector<3x32x1xf32>
    %140 = vector.broadcast %139 : vector<3x32x1xf32> to vector<3x32x128xf32>
    %141 = arith.select %138, %140, %136 : vector<3x32x128xi1>, vector<3x32x128xf32>
    %142 = arith.subf %141, %36 : vector<3x32x128xf32>
    %143 = arith.addf %131, %142 : vector<3x32x128xf32>
    %144 = arith.mulf %142, %142 : vector<3x32x128xf32>
    %145 = arith.addf %133, %144 : vector<3x32x128xf32>
    %146 = arith.subf %134, %36 : vector<3x32x128xf32>
    %147 = arith.addf %143, %146 : vector<3x32x128xf32>
    %148 = arith.mulf %146, %146 : vector<3x32x128xf32>
    %149 = arith.addf %145, %148 : vector<3x32x128xf32>
    %c126_i32_40 = arith.constant 126 : i32
    %150 = tpu.dynamic_rotate %134 by %c126_i32_40 dim 2 : vector<3x32x128xf32>, i32 -> vector<3x32x128xf32>
    %151 = arith.subf %150, %36 : vector<3x32x128xf32>
    %152 = arith.addf %147, %151 : vector<3x32x128xf32>
    %153 = arith.mulf %151, %151 : vector<3x32x128xf32>
    %154 = arith.addf %149, %153 : vector<3x32x128xf32>
    %155 = arith.mulf %152, %152 : vector<3x32x128xf32>
    %cst_41 = arith.constant 6.250000e-02 : f32
    %156 = vector.broadcast %cst_41 : f32 to vector<3x32x128xf32>
    %157 = arith.mulf %155, %156 : vector<3x32x128xf32>
    %158 = arith.subf %154, %157 : vector<3x32x128xf32>
    %cst_42 = arith.constant 0.0666666701 : f32
    %159 = vector.broadcast %cst_42 : f32 to vector<3x32x128xf32>
    %160 = arith.mulf %158, %159 : vector<3x32x128xf32>
    %cst_43 = arith.constant 0.000000e+00 : f32
    %161 = vector.broadcast %cst_43 : f32 to vector<3x32x128xf32>
    %162 = arith.maximumf %160, %161 : vector<3x32x128xf32>
    %163 = math.sqrt %162 : vector<3x32x128xf32>
    %cst_44 = arith.constant 9.99999993E-9 : f32
    %164 = vector.broadcast %cst_44 : f32 to vector<3x32x128xf32>
    %165 = arith.addf %163, %164 : vector<3x32x128xf32>
    %cst_45 = arith.constant 4.500000e-01 : f32
    %166 = vector.broadcast %cst_45 : f32 to vector<3x32x128xf32>
    %167 = arith.mulf %165, %166 : vector<3x32x128xf32>
    %168 = tpu.reciprocal %167 : vector<3x32x128xf32> -> vector<3x32x128xf32>
    %c1_i32_46 = arith.constant 1 : i32
    %169 = tpu.dynamic_rotate %36 by %c1_i32_46 dim 1 : vector<3x32x128xf32>, i32 -> vector<3x32x128xf32>
    %170 = vector.extract_strided_slice %169 {offsets = [0, 0, 0], sizes = [3, 32, 1], strides = [1, 1, 1]} : vector<3x32x128xf32> to vector<3x32x1xf32>
    %c1_i32_47 = arith.constant 1 : i32
    %171 = tpu.dynamic_rotate %169 by %c1_i32_47 dim 2 : vector<3x32x128xf32>, i32 -> vector<3x32x128xf32>
    %172 = vector.shape_cast %32 : vector<1x32x128xi1> to vector<1x32x128xi1>
    %173 = vector.broadcast %172 : vector<1x32x128xi1> to vector<3x32x128xi1>
    %174 = vector.shape_cast %170 : vector<3x32x1xf32> to vector<3x32x1xf32>
    %175 = vector.broadcast %174 : vector<3x32x1xf32> to vector<3x32x128xf32>
    %176 = arith.select %173, %175, %171 : vector<3x32x128xi1>, vector<3x32x128xf32>
    %177 = arith.subf %176, %36 : vector<3x32x128xf32>
    %178 = arith.mulf %177, %168 : vector<3x32x128xf32>
    %179 = arith.mulf %178, %178 : vector<3x32x128xf32>
    %cst_48 = arith.constant dense<0.000000e+00> : vector<32x128xf32>
    %180 = vector.multi_reduction <add>, %179, %cst_48 [0] : vector<3x32x128xf32> to vector<32x128xf32>
    %cst_49 = arith.constant -0.333333343 : f32
    %181 = vector.broadcast %cst_49 : f32 to vector<32x128xf32>
    %182 = arith.mulf %180, %181 : vector<32x128xf32>
    %183 = arith.subf %169, %36 : vector<3x32x128xf32>
    %184 = arith.mulf %183, %168 : vector<3x32x128xf32>
    %185 = arith.mulf %184, %184 : vector<3x32x128xf32>
    %cst_50 = arith.constant dense<0.000000e+00> : vector<32x128xf32>
    %186 = vector.multi_reduction <add>, %185, %cst_50 [0] : vector<3x32x128xf32> to vector<32x128xf32>
    %cst_51 = arith.constant -0.333333343 : f32
    %187 = vector.broadcast %cst_51 : f32 to vector<32x128xf32>
    %188 = arith.mulf %186, %187 : vector<32x128xf32>
    %c127_i32_52 = arith.constant 127 : i32
    %189 = tpu.dynamic_rotate %169 by %c127_i32_52 dim 2 : vector<3x32x128xf32>, i32 -> vector<3x32x128xf32>
    %190 = arith.subf %189, %36 : vector<3x32x128xf32>
    %191 = arith.mulf %190, %168 : vector<3x32x128xf32>
    %192 = arith.mulf %191, %191 : vector<3x32x128xf32>
    %cst_53 = arith.constant dense<0.000000e+00> : vector<32x128xf32>
    %193 = vector.multi_reduction <add>, %192, %cst_53 [0] : vector<3x32x128xf32> to vector<32x128xf32>
    %cst_54 = arith.constant -0.333333343 : f32
    %194 = vector.broadcast %cst_54 : f32 to vector<32x128xf32>
    %195 = arith.mulf %193, %194 : vector<32x128xf32>
    %196 = vector.extract_strided_slice %36 {offsets = [0, 0, 0], sizes = [3, 32, 1], strides = [1, 1, 1]} : vector<3x32x128xf32> to vector<3x32x1xf32>
    %c1_i32_55 = arith.constant 1 : i32
    %197 = tpu.dynamic_rotate %36 by %c1_i32_55 dim 2 : vector<3x32x128xf32>, i32 -> vector<3x32x128xf32>
    %198 = vector.shape_cast %32 : vector<1x32x128xi1> to vector<1x32x128xi1>
    %199 = vector.broadcast %198 : vector<1x32x128xi1> to vector<3x32x128xi1>
    %200 = vector.shape_cast %196 : vector<3x32x1xf32> to vector<3x32x1xf32>
    %201 = vector.broadcast %200 : vector<3x32x1xf32> to vector<3x32x128xf32>
    %202 = arith.select %199, %201, %197 : vector<3x32x128xi1>, vector<3x32x128xf32>
    %203 = arith.subf %202, %36 : vector<3x32x128xf32>
    %204 = arith.mulf %203, %168 : vector<3x32x128xf32>
    %205 = arith.mulf %204, %204 : vector<3x32x128xf32>
    %cst_56 = arith.constant dense<0.000000e+00> : vector<32x128xf32>
    %206 = vector.multi_reduction <add>, %205, %cst_56 [0] : vector<3x32x128xf32> to vector<32x128xf32>
    %cst_57 = arith.constant -0.333333343 : f32
    %207 = vector.broadcast %cst_57 : f32 to vector<32x128xf32>
    %208 = arith.mulf %206, %207 : vector<32x128xf32>
    %c127_i32_58 = arith.constant 127 : i32
    %209 = tpu.dynamic_rotate %36 by %c127_i32_58 dim 2 : vector<3x32x128xf32>, i32 -> vector<3x32x128xf32>
    %210 = arith.subf %209, %36 : vector<3x32x128xf32>
    %211 = arith.mulf %210, %168 : vector<3x32x128xf32>
    %212 = arith.mulf %211, %211 : vector<3x32x128xf32>
    %cst_59 = arith.constant dense<0.000000e+00> : vector<32x128xf32>
    %213 = vector.multi_reduction <add>, %212, %cst_59 [0] : vector<3x32x128xf32> to vector<32x128xf32>
    %cst_60 = arith.constant -0.333333343 : f32
    %214 = vector.broadcast %cst_60 : f32 to vector<32x128xf32>
    %215 = arith.mulf %213, %214 : vector<32x128xf32>
    %c31_i32_61 = arith.constant 31 : i32
    %216 = tpu.dynamic_rotate %36 by %c31_i32_61 dim 1 : vector<3x32x128xf32>, i32 -> vector<3x32x128xf32>
    %217 = vector.extract_strided_slice %216 {offsets = [0, 0, 0], sizes = [3, 32, 1], strides = [1, 1, 1]} : vector<3x32x128xf32> to vector<3x32x1xf32>
    %c1_i32_62 = arith.constant 1 : i32
    %218 = tpu.dynamic_rotate %216 by %c1_i32_62 dim 2 : vector<3x32x128xf32>, i32 -> vector<3x32x128xf32>
    %219 = vector.shape_cast %32 : vector<1x32x128xi1> to vector<1x32x128xi1>
    %220 = vector.broadcast %219 : vector<1x32x128xi1> to vector<3x32x128xi1>
    %221 = vector.shape_cast %217 : vector<3x32x1xf32> to vector<3x32x1xf32>
    %222 = vector.broadcast %221 : vector<3x32x1xf32> to vector<3x32x128xf32>
    %223 = arith.select %220, %222, %218 : vector<3x32x128xi1>, vector<3x32x128xf32>
    %224 = arith.subf %223, %36 : vector<3x32x128xf32>
    %225 = arith.mulf %224, %168 : vector<3x32x128xf32>
    %226 = arith.mulf %225, %225 : vector<3x32x128xf32>
    %cst_63 = arith.constant dense<0.000000e+00> : vector<32x128xf32>
    %227 = vector.multi_reduction <add>, %226, %cst_63 [0] : vector<3x32x128xf32> to vector<32x128xf32>
    %cst_64 = arith.constant -0.333333343 : f32
    %228 = vector.broadcast %cst_64 : f32 to vector<32x128xf32>
    %229 = arith.mulf %227, %228 : vector<32x128xf32>
    %230 = arith.subf %216, %36 : vector<3x32x128xf32>
    %231 = arith.mulf %230, %168 : vector<3x32x128xf32>
    %232 = arith.mulf %231, %231 : vector<3x32x128xf32>
    %cst_65 = arith.constant dense<0.000000e+00> : vector<32x128xf32>
    %233 = vector.multi_reduction <add>, %232, %cst_65 [0] : vector<3x32x128xf32> to vector<32x128xf32>
    %cst_66 = arith.constant -0.333333343 : f32
    %234 = vector.broadcast %cst_66 : f32 to vector<32x128xf32>
    %235 = arith.mulf %233, %234 : vector<32x128xf32>
    %c127_i32_67 = arith.constant 127 : i32
    %236 = tpu.dynamic_rotate %216 by %c127_i32_67 dim 2 : vector<3x32x128xf32>, i32 -> vector<3x32x128xf32>
    %237 = arith.subf %236, %36 : vector<3x32x128xf32>
    %238 = arith.mulf %237, %168 : vector<3x32x128xf32>
    %239 = arith.mulf %238, %238 : vector<3x32x128xf32>
    %cst_68 = arith.constant dense<0.000000e+00> : vector<32x128xf32>
    %240 = vector.multi_reduction <add>, %239, %cst_68 [0] : vector<3x32x128xf32> to vector<32x128xf32>
    %cst_69 = arith.constant -0.333333343 : f32
    %241 = vector.broadcast %cst_69 : f32 to vector<32x128xf32>
    %242 = arith.mulf %240, %241 : vector<32x128xf32>
    %c2_i32_70 = arith.constant 2 : i32
    %243 = tpu.dynamic_rotate %36 by %c2_i32_70 dim 1 : vector<3x32x128xf32>, i32 -> vector<3x32x128xf32>
    %244 = vector.extract_strided_slice %243 {offsets = [0, 0, 0], sizes = [3, 32, 1], strides = [1, 1, 1]} : vector<3x32x128xf32> to vector<3x32x1xf32>
    %c2_i32_71 = arith.constant 2 : i32
    %245 = tpu.dynamic_rotate %243 by %c2_i32_71 dim 2 : vector<3x32x128xf32>, i32 -> vector<3x32x128xf32>
    %246 = vector.shape_cast %34 : vector<1x32x128xi1> to vector<1x32x128xi1>
    %247 = vector.broadcast %246 : vector<1x32x128xi1> to vector<3x32x128xi1>
    %248 = vector.shape_cast %244 : vector<3x32x1xf32> to vector<3x32x1xf32>
    %249 = vector.broadcast %248 : vector<3x32x1xf32> to vector<3x32x128xf32>
    %250 = arith.select %247, %249, %245 : vector<3x32x128xi1>, vector<3x32x128xf32>
    %251 = arith.subf %250, %36 : vector<3x32x128xf32>
    %252 = arith.mulf %251, %168 : vector<3x32x128xf32>
    %253 = arith.mulf %252, %252 : vector<3x32x128xf32>
    %cst_72 = arith.constant dense<0.000000e+00> : vector<32x128xf32>
    %254 = vector.multi_reduction <add>, %253, %cst_72 [0] : vector<3x32x128xf32> to vector<32x128xf32>
    %cst_73 = arith.constant -0.333333343 : f32
    %255 = vector.broadcast %cst_73 : f32 to vector<32x128xf32>
    %256 = arith.mulf %254, %255 : vector<32x128xf32>
    %257 = arith.subf %243, %36 : vector<3x32x128xf32>
    %258 = arith.mulf %257, %168 : vector<3x32x128xf32>
    %259 = arith.mulf %258, %258 : vector<3x32x128xf32>
    %cst_74 = arith.constant dense<0.000000e+00> : vector<32x128xf32>
    %260 = vector.multi_reduction <add>, %259, %cst_74 [0] : vector<3x32x128xf32> to vector<32x128xf32>
    %cst_75 = arith.constant -0.333333343 : f32
    %261 = vector.broadcast %cst_75 : f32 to vector<32x128xf32>
    %262 = arith.mulf %260, %261 : vector<32x128xf32>
    %c126_i32_76 = arith.constant 126 : i32
    %263 = tpu.dynamic_rotate %243 by %c126_i32_76 dim 2 : vector<3x32x128xf32>, i32 -> vector<3x32x128xf32>
    %264 = arith.subf %263, %36 : vector<3x32x128xf32>
    %265 = arith.mulf %264, %168 : vector<3x32x128xf32>
    %266 = arith.mulf %265, %265 : vector<3x32x128xf32>
    %cst_77 = arith.constant dense<0.000000e+00> : vector<32x128xf32>
    %267 = vector.multi_reduction <add>, %266, %cst_77 [0] : vector<3x32x128xf32> to vector<32x128xf32>
    %cst_78 = arith.constant -0.333333343 : f32
    %268 = vector.broadcast %cst_78 : f32 to vector<32x128xf32>
    %269 = arith.mulf %267, %268 : vector<32x128xf32>
    %270 = vector.extract_strided_slice %36 {offsets = [0, 0, 0], sizes = [3, 32, 1], strides = [1, 1, 1]} : vector<3x32x128xf32> to vector<3x32x1xf32>
    %c2_i32_79 = arith.constant 2 : i32
    %271 = tpu.dynamic_rotate %36 by %c2_i32_79 dim 2 : vector<3x32x128xf32>, i32 -> vector<3x32x128xf32>
    %272 = vector.shape_cast %34 : vector<1x32x128xi1> to vector<1x32x128xi1>
    %273 = vector.broadcast %272 : vector<1x32x128xi1> to vector<3x32x128xi1>
    %274 = vector.shape_cast %270 : vector<3x32x1xf32> to vector<3x32x1xf32>
    %275 = vector.broadcast %274 : vector<3x32x1xf32> to vector<3x32x128xf32>
    %276 = arith.select %273, %275, %271 : vector<3x32x128xi1>, vector<3x32x128xf32>
    %277 = arith.subf %276, %36 : vector<3x32x128xf32>
    %278 = arith.mulf %277, %168 : vector<3x32x128xf32>
    %279 = arith.mulf %278, %278 : vector<3x32x128xf32>
    %cst_80 = arith.constant dense<0.000000e+00> : vector<32x128xf32>
    %280 = vector.multi_reduction <add>, %279, %cst_80 [0] : vector<3x32x128xf32> to vector<32x128xf32>
    %cst_81 = arith.constant -0.333333343 : f32
    %281 = vector.broadcast %cst_81 : f32 to vector<32x128xf32>
    %282 = arith.mulf %280, %281 : vector<32x128xf32>
    %c126_i32_82 = arith.constant 126 : i32
    %283 = tpu.dynamic_rotate %36 by %c126_i32_82 dim 2 : vector<3x32x128xf32>, i32 -> vector<3x32x128xf32>
    %284 = arith.subf %283, %36 : vector<3x32x128xf32>
    %285 = arith.mulf %284, %168 : vector<3x32x128xf32>
    %286 = arith.mulf %285, %285 : vector<3x32x128xf32>
    %cst_83 = arith.constant dense<0.000000e+00> : vector<32x128xf32>
    %287 = vector.multi_reduction <add>, %286, %cst_83 [0] : vector<3x32x128xf32> to vector<32x128xf32>
    %cst_84 = arith.constant -0.333333343 : f32
    %288 = vector.broadcast %cst_84 : f32 to vector<32x128xf32>
    %289 = arith.mulf %287, %288 : vector<32x128xf32>
    %c30_i32_85 = arith.constant 30 : i32
    %290 = tpu.dynamic_rotate %36 by %c30_i32_85 dim 1 : vector<3x32x128xf32>, i32 -> vector<3x32x128xf32>
    %291 = vector.extract_strided_slice %290 {offsets = [0, 0, 0], sizes = [3, 32, 1], strides = [1, 1, 1]} : vector<3x32x128xf32> to vector<3x32x1xf32>
    %c2_i32_86 = arith.constant 2 : i32
    %292 = tpu.dynamic_rotate %290 by %c2_i32_86 dim 2 : vector<3x32x128xf32>, i32 -> vector<3x32x128xf32>
    %293 = vector.shape_cast %34 : vector<1x32x128xi1> to vector<1x32x128xi1>
    %294 = vector.broadcast %293 : vector<1x32x128xi1> to vector<3x32x128xi1>
    %295 = vector.shape_cast %291 : vector<3x32x1xf32> to vector<3x32x1xf32>
    %296 = vector.broadcast %295 : vector<3x32x1xf32> to vector<3x32x128xf32>
    %297 = arith.select %294, %296, %292 : vector<3x32x128xi1>, vector<3x32x128xf32>
    %298 = arith.subf %297, %36 : vector<3x32x128xf32>
    %299 = arith.mulf %298, %168 : vector<3x32x128xf32>
    %300 = arith.mulf %299, %299 : vector<3x32x128xf32>
    %cst_87 = arith.constant dense<0.000000e+00> : vector<32x128xf32>
    %301 = vector.multi_reduction <add>, %300, %cst_87 [0] : vector<3x32x128xf32> to vector<32x128xf32>
    %cst_88 = arith.constant -0.333333343 : f32
    %302 = vector.broadcast %cst_88 : f32 to vector<32x128xf32>
    %303 = arith.mulf %301, %302 : vector<32x128xf32>
    %304 = arith.subf %290, %36 : vector<3x32x128xf32>
    %305 = arith.mulf %304, %168 : vector<3x32x128xf32>
    %306 = arith.mulf %305, %305 : vector<3x32x128xf32>
    %cst_89 = arith.constant dense<0.000000e+00> : vector<32x128xf32>
    %307 = vector.multi_reduction <add>, %306, %cst_89 [0] : vector<3x32x128xf32> to vector<32x128xf32>
    %cst_90 = arith.constant -0.333333343 : f32
    %308 = vector.broadcast %cst_90 : f32 to vector<32x128xf32>
    %309 = arith.mulf %307, %308 : vector<32x128xf32>
    %c126_i32_91 = arith.constant 126 : i32
    %310 = tpu.dynamic_rotate %290 by %c126_i32_91 dim 2 : vector<3x32x128xf32>, i32 -> vector<3x32x128xf32>
    %311 = arith.subf %310, %36 : vector<3x32x128xf32>
    %312 = arith.mulf %311, %168 : vector<3x32x128xf32>
    %313 = arith.mulf %312, %312 : vector<3x32x128xf32>
    %cst_92 = arith.constant dense<0.000000e+00> : vector<32x128xf32>
    %314 = vector.multi_reduction <add>, %313, %cst_92 [0] : vector<3x32x128xf32> to vector<32x128xf32>
    %cst_93 = arith.constant -0.333333343 : f32
    %315 = vector.broadcast %cst_93 : f32 to vector<32x128xf32>
    %316 = arith.mulf %314, %315 : vector<32x128xf32>
    %317 = arith.maximumf %182, %188 : vector<32x128xf32>
    %318 = arith.maximumf %317, %195 : vector<32x128xf32>
    %319 = arith.maximumf %318, %208 : vector<32x128xf32>
    %320 = arith.maximumf %319, %215 : vector<32x128xf32>
    %321 = arith.maximumf %320, %229 : vector<32x128xf32>
    %322 = arith.maximumf %321, %235 : vector<32x128xf32>
    %323 = arith.maximumf %322, %242 : vector<32x128xf32>
    %324 = arith.maximumf %323, %256 : vector<32x128xf32>
    %325 = arith.maximumf %324, %262 : vector<32x128xf32>
    %326 = arith.maximumf %325, %269 : vector<32x128xf32>
    %327 = arith.maximumf %326, %282 : vector<32x128xf32>
    %328 = arith.maximumf %327, %289 : vector<32x128xf32>
    %329 = arith.maximumf %328, %303 : vector<32x128xf32>
    %330 = arith.maximumf %329, %309 : vector<32x128xf32>
    %331 = arith.maximumf %330, %316 : vector<32x128xf32>
    %332 = arith.subf %182, %331 : vector<32x128xf32>
    %333 = math.exp %332 : vector<32x128xf32>
    %334 = arith.subf %188, %331 : vector<32x128xf32>
    %335 = math.exp %334 : vector<32x128xf32>
    %336 = arith.subf %195, %331 : vector<32x128xf32>
    %337 = math.exp %336 : vector<32x128xf32>
    %338 = arith.subf %208, %331 : vector<32x128xf32>
    %339 = math.exp %338 : vector<32x128xf32>
    %340 = arith.subf %215, %331 : vector<32x128xf32>
    %341 = math.exp %340 : vector<32x128xf32>
    %342 = arith.subf %229, %331 : vector<32x128xf32>
    %343 = math.exp %342 : vector<32x128xf32>
    %344 = arith.subf %235, %331 : vector<32x128xf32>
    %345 = math.exp %344 : vector<32x128xf32>
    %346 = arith.subf %242, %331 : vector<32x128xf32>
    %347 = math.exp %346 : vector<32x128xf32>
    %348 = arith.subf %256, %331 : vector<32x128xf32>
    %349 = math.exp %348 : vector<32x128xf32>
    %350 = arith.subf %262, %331 : vector<32x128xf32>
    %351 = math.exp %350 : vector<32x128xf32>
    %352 = arith.subf %269, %331 : vector<32x128xf32>
    %353 = math.exp %352 : vector<32x128xf32>
    %354 = arith.subf %282, %331 : vector<32x128xf32>
    %355 = math.exp %354 : vector<32x128xf32>
    %356 = arith.subf %289, %331 : vector<32x128xf32>
    %357 = math.exp %356 : vector<32x128xf32>
    %358 = arith.subf %303, %331 : vector<32x128xf32>
    %359 = math.exp %358 : vector<32x128xf32>
    %360 = arith.subf %309, %331 : vector<32x128xf32>
    %361 = math.exp %360 : vector<32x128xf32>
    %362 = arith.subf %316, %331 : vector<32x128xf32>
    %363 = math.exp %362 : vector<32x128xf32>
    %364 = arith.addf %333, %335 : vector<32x128xf32>
    %365 = arith.addf %364, %337 : vector<32x128xf32>
    %366 = arith.addf %365, %339 : vector<32x128xf32>
    %367 = arith.addf %366, %341 : vector<32x128xf32>
    %368 = arith.addf %367, %343 : vector<32x128xf32>
    %369 = arith.addf %368, %345 : vector<32x128xf32>
    %370 = arith.addf %369, %347 : vector<32x128xf32>
    %371 = arith.addf %370, %349 : vector<32x128xf32>
    %372 = arith.addf %371, %351 : vector<32x128xf32>
    %373 = arith.addf %372, %353 : vector<32x128xf32>
    %374 = arith.addf %373, %355 : vector<32x128xf32>
    %375 = arith.addf %374, %357 : vector<32x128xf32>
    %376 = arith.addf %375, %359 : vector<32x128xf32>
    %377 = arith.addf %376, %361 : vector<32x128xf32>
    %378 = arith.addf %377, %363 : vector<32x128xf32>
    %379 = tpu.reciprocal %378 : vector<32x128xf32> -> vector<32x128xf32>
    %380 = arith.mulf %333, %379 : vector<32x128xf32>
    %cst_94 = arith.constant 6.80242351E-8 : f32
    %381 = vector.broadcast %cst_94 : f32 to vector<32x128xf32>
    %382 = arith.addf %380, %381 : vector<32x128xf32>
    %383 = vector.shape_cast %382 : vector<32x128xf32> to vector<1x32x128xf32>
    %384 = arith.mulf %335, %379 : vector<32x128xf32>
    %cst_95 = arith.constant 0.00124993199 : f32
    %385 = vector.broadcast %cst_95 : f32 to vector<32x128xf32>
    %386 = arith.addf %384, %385 : vector<32x128xf32>
    %387 = vector.shape_cast %386 : vector<32x128xf32> to vector<1x32x128xf32>
    %388 = arith.mulf %337, %379 : vector<32x128xf32>
    %cst_96 = arith.constant 6.80242351E-8 : f32
    %389 = vector.broadcast %cst_96 : f32 to vector<32x128xf32>
    %390 = arith.addf %388, %389 : vector<32x128xf32>
    %391 = vector.shape_cast %390 : vector<32x128xf32> to vector<1x32x128xf32>
    %392 = arith.mulf %339, %379 : vector<32x128xf32>
    %cst_97 = arith.constant 0.00124993199 : f32
    %393 = vector.broadcast %cst_97 : f32 to vector<32x128xf32>
    %394 = arith.addf %392, %393 : vector<32x128xf32>
    %395 = vector.shape_cast %394 : vector<32x128xf32> to vector<1x32x128xf32>
    %396 = arith.mulf %341, %379 : vector<32x128xf32>
    %cst_98 = arith.constant 0.00124993199 : f32
    %397 = vector.broadcast %cst_98 : f32 to vector<32x128xf32>
    %398 = arith.addf %396, %397 : vector<32x128xf32>
    %399 = vector.shape_cast %398 : vector<32x128xf32> to vector<1x32x128xf32>
    %400 = arith.mulf %343, %379 : vector<32x128xf32>
    %cst_99 = arith.constant 6.80242351E-8 : f32
    %401 = vector.broadcast %cst_99 : f32 to vector<32x128xf32>
    %402 = arith.addf %400, %401 : vector<32x128xf32>
    %403 = vector.shape_cast %402 : vector<32x128xf32> to vector<1x32x128xf32>
    %404 = arith.mulf %345, %379 : vector<32x128xf32>
    %cst_100 = arith.constant 0.00124993199 : f32
    %405 = vector.broadcast %cst_100 : f32 to vector<32x128xf32>
    %406 = arith.addf %404, %405 : vector<32x128xf32>
    %407 = vector.shape_cast %406 : vector<32x128xf32> to vector<1x32x128xf32>
    %408 = arith.mulf %347, %379 : vector<32x128xf32>
    %cst_101 = arith.constant 6.80242351E-8 : f32
    %409 = vector.broadcast %cst_101 : f32 to vector<32x128xf32>
    %410 = arith.addf %408, %409 : vector<32x128xf32>
    %411 = vector.shape_cast %410 : vector<32x128xf32> to vector<1x32x128xf32>
    %412 = arith.mulf %349, %379 : vector<32x128xf32>
    %cst_102 = arith.constant 1.767370e-33 : f32
    %413 = vector.broadcast %cst_102 : f32 to vector<32x128xf32>
    %414 = arith.addf %412, %413 : vector<32x128xf32>
    %415 = vector.shape_cast %414 : vector<32x128xf32> to vector<1x32x128xf32>
    %416 = arith.mulf %351, %379 : vector<32x128xf32>
    %cst_103 = arith.constant 2.01473655E-16 : f32
    %417 = vector.broadcast %cst_103 : f32 to vector<32x128xf32>
    %418 = arith.addf %416, %417 : vector<32x128xf32>
    %419 = vector.shape_cast %418 : vector<32x128xf32> to vector<1x32x128xf32>
    %420 = arith.mulf %353, %379 : vector<32x128xf32>
    %cst_104 = arith.constant 1.767370e-33 : f32
    %421 = vector.broadcast %cst_104 : f32 to vector<32x128xf32>
    %422 = arith.addf %420, %421 : vector<32x128xf32>
    %423 = vector.shape_cast %422 : vector<32x128xf32> to vector<1x32x128xf32>
    %424 = arith.mulf %355, %379 : vector<32x128xf32>
    %cst_105 = arith.constant 2.01473655E-16 : f32
    %425 = vector.broadcast %cst_105 : f32 to vector<32x128xf32>
    %426 = arith.addf %424, %425 : vector<32x128xf32>
    %427 = vector.shape_cast %426 : vector<32x128xf32> to vector<1x32x128xf32>
    %428 = arith.mulf %357, %379 : vector<32x128xf32>
    %cst_106 = arith.constant 2.01473655E-16 : f32
    %429 = vector.broadcast %cst_106 : f32 to vector<32x128xf32>
    %430 = arith.addf %428, %429 : vector<32x128xf32>
    %431 = vector.shape_cast %430 : vector<32x128xf32> to vector<1x32x128xf32>
    %432 = arith.mulf %359, %379 : vector<32x128xf32>
    %cst_107 = arith.constant 1.767370e-33 : f32
    %433 = vector.broadcast %cst_107 : f32 to vector<32x128xf32>
    %434 = arith.addf %432, %433 : vector<32x128xf32>
    %435 = vector.shape_cast %434 : vector<32x128xf32> to vector<1x32x128xf32>
    %436 = arith.mulf %361, %379 : vector<32x128xf32>
    %cst_108 = arith.constant 2.01473655E-16 : f32
    %437 = vector.broadcast %cst_108 : f32 to vector<32x128xf32>
    %438 = arith.addf %436, %437 : vector<32x128xf32>
    %439 = vector.shape_cast %438 : vector<32x128xf32> to vector<1x32x128xf32>
    %440 = arith.mulf %363, %379 : vector<32x128xf32>
    %cst_109 = arith.constant 1.767370e-33 : f32
    %441 = vector.broadcast %cst_109 : f32 to vector<32x128xf32>
    %442 = arith.addf %440, %441 : vector<32x128xf32>
    %443 = vector.shape_cast %442 : vector<32x128xf32> to vector<1x32x128xf32>
    %c16_i32_110 = arith.constant 16 : i32
    %444 = arith.muli %arg1, %c16_i32_110 : i32
    %c8_i32_111 = arith.constant 8 : i32
    %445 = arith.subi %c8_i32_111, %444 : i32
    %c0_i32_112 = arith.constant 0 : i32
    %c31_i32_113 = arith.constant 31 : i32
    %446 = arith.maxsi %c0_i32_112, %445 : i32
    %447 = arith.minsi %c31_i32_113, %446 : i32
    %c16_i32_114 = arith.constant 16 : i32
    %448 = arith.muli %arg1, %c16_i32_114 : i32
    %c23_i32 = arith.constant 23 : i32
    %449 = arith.subi %c23_i32, %448 : i32
    %c0_i32_115 = arith.constant 0 : i32
    %c31_i32_116 = arith.constant 31 : i32
    %450 = arith.maxsi %c0_i32_115, %449 : i32
    %451 = arith.minsi %c31_i32_116, %450 : i32
    %c0_i32_117 = arith.constant 0 : i32
    %c1_i32_118 = arith.constant 1 : i32
    %c0_i32_119 = arith.constant 0 : i32
    %c0_i32_120 = arith.constant 0 : i32
    %c0_i32_121 = arith.constant 0 : i32
    %452 = tpu.memref_slice %arg3[%arg0, %c0_i32_120, %1, %c0_i32_121] : memref<2x4x32x128xf32, #tpu.memory_space<any>> -> memref<1x4x32x128xf32, #tpu.memory_space<any>>
    %453 = tpu.memref_squeeze %452 : memref<1x4x32x128xf32, #tpu.memory_space<any>> -> memref<4x32x128xf32, #tpu.memory_space<any>>
    %c0_i32_122 = arith.constant 0 : i32
    %c0_i32_123 = arith.constant 0 : i32
    %c0_i32_124 = arith.constant 0 : i32
    %454 = tpu.memref_slice %arg6[%c0_i32_117, %c0_i32_122, %c0_i32_123, %c0_i32_124] : memref<1x4x32x128xf32, #tpu.memory_space<vmem>> -> memref<1x4x32x128xf32, #tpu.memory_space<vmem>>
    %455 = tpu.memref_squeeze %454 : memref<1x4x32x128xf32, #tpu.memory_space<vmem>> -> memref<4x32x128xf32, #tpu.memory_space<vmem>>
    %456 = tpu.memref_slice %arg7[%c1_i32_118, %c0_i32_119] : memref<2x1x!tpu.dma_semaphore, #tpu.memory_space<semaphore_mem>> -> memref<1x1x!tpu.dma_semaphore, #tpu.memory_space<semaphore_mem>>
    %457 = tpu.memref_squeeze %456 : memref<1x1x!tpu.dma_semaphore, #tpu.memory_space<semaphore_mem>> -> memref<!tpu.dma_semaphore, #tpu.memory_space<semaphore_mem>>
    tpu.wait_dma2 semaphore(%457 : memref<!tpu.dma_semaphore, #tpu.memory_space<semaphore_mem>>) src(%453 : memref<4x32x128xf32, #tpu.memory_space<any>>) dst(%455 : memref<4x32x128xf32, #tpu.memory_space<vmem>>)
    %c0_125 = arith.constant 0 : index
    %c0_126 = arith.constant 0 : index
    %c0_127 = arith.constant 0 : index
    %c0_128 = arith.constant 0 : index
    %458 = vector.load %arg6[%c0_125, %c0_126, %c0_127, %c0_128] : memref<1x4x32x128xf32, #tpu.memory_space<vmem>>, vector<1x4x32x128xf32>
    %459 = vector.shape_cast %458 : vector<1x4x32x128xf32> to vector<4x32x128xf32>
    %c0_i32_129 = arith.constant 0 : i32
    %c0_i32_130 = arith.constant 0 : i32
    %c0_i32_131 = arith.constant 0 : i32
    %c0_i32_132 = arith.constant 0 : i32
    %460 = tpu.memref_slice %arg6[%c0_i32_129, %c0_i32_130, %c0_i32_131, %c0_i32_132] : memref<1x4x32x128xf32, #tpu.memory_space<vmem>> -> memref<1x4x32x128xf32, #tpu.memory_space<vmem>>
    %461 = tpu.memref_squeeze %460 : memref<1x4x32x128xf32, #tpu.memory_space<vmem>> -> memref<4x32x128xf32, #tpu.memory_space<vmem>>
    %c0_133 = arith.constant 0 : index
    %462 = arith.index_cast %447 : i32 to index
    %c0_134 = arith.constant 0 : index
    %463 = vector.load %461[%c0_133, %462, %c0_134] : memref<4x32x128xf32, #tpu.memory_space<vmem>>, vector<4x1x128xf32>
    %c0_i32_135 = arith.constant 0 : i32
    %c0_i32_136 = arith.constant 0 : i32
    %c0_i32_137 = arith.constant 0 : i32
    %c0_i32_138 = arith.constant 0 : i32
    %464 = tpu.memref_slice %arg6[%c0_i32_135, %c0_i32_136, %c0_i32_137, %c0_i32_138] : memref<1x4x32x128xf32, #tpu.memory_space<vmem>> -> memref<1x4x32x128xf32, #tpu.memory_space<vmem>>
    %465 = tpu.memref_squeeze %464 : memref<1x4x32x128xf32, #tpu.memory_space<vmem>> -> memref<4x32x128xf32, #tpu.memory_space<vmem>>
    %c0_139 = arith.constant 0 : index
    %466 = arith.index_cast %451 : i32 to index
    %c0_140 = arith.constant 0 : index
    %467 = vector.load %465[%c0_139, %466, %c0_140] : memref<4x32x128xf32, #tpu.memory_space<vmem>>, vector<4x1x128xf32>
    %468 = vector.shape_cast %26 : vector<1x32x128xi1> to vector<1x32x128xi1>
    %469 = vector.broadcast %468 : vector<1x32x128xi1> to vector<4x32x128xi1>
    %470 = vector.shape_cast %463 : vector<4x1x128xf32> to vector<4x1x128xf32>
    %471 = vector.broadcast %470 : vector<4x1x128xf32> to vector<4x32x128xf32>
    %472 = arith.select %469, %471, %459 : vector<4x32x128xi1>, vector<4x32x128xf32>
    %473 = vector.shape_cast %28 : vector<1x32x128xi1> to vector<1x32x128xi1>
    %474 = vector.broadcast %473 : vector<1x32x128xi1> to vector<4x32x128xi1>
    %475 = vector.shape_cast %467 : vector<4x1x128xf32> to vector<4x1x128xf32>
    %476 = vector.broadcast %475 : vector<4x1x128xf32> to vector<4x32x128xf32>
    %477 = arith.select %474, %476, %472 : vector<4x32x128xi1>, vector<4x32x128xf32>
    %478 = vector.extract_strided_slice %477 {offsets = [0, 0, 15], sizes = [4, 32, 1], strides = [1, 1, 1]} : vector<4x32x128xf32> to vector<4x32x1xf32>
    %479 = vector.shape_cast %30 : vector<1x32x128xi1> to vector<1x32x128xi1>
    %480 = vector.broadcast %479 : vector<1x32x128xi1> to vector<4x32x128xi1>
    %481 = vector.shape_cast %478 : vector<4x32x1xf32> to vector<4x32x1xf32>
    %482 = vector.broadcast %481 : vector<4x32x1xf32> to vector<4x32x128xf32>
    %483 = arith.select %480, %482, %477 : vector<4x32x128xi1>, vector<4x32x128xf32>
    %cst_141 = arith.constant 0.000000e+00 : f32
    %484 = vector.broadcast %cst_141 : f32 to vector<4x32x128xf32>
    %c1_i32_142 = arith.constant 1 : i32
    %485 = tpu.dynamic_rotate %483 by %c1_i32_142 dim 1 : vector<4x32x128xf32>, i32 -> vector<4x32x128xf32>
    %486 = vector.extract_strided_slice %485 {offsets = [0, 0, 0], sizes = [4, 32, 1], strides = [1, 1, 1]} : vector<4x32x128xf32> to vector<4x32x1xf32>
    %c1_i32_143 = arith.constant 1 : i32
    %487 = tpu.dynamic_rotate %485 by %c1_i32_143 dim 2 : vector<4x32x128xf32>, i32 -> vector<4x32x128xf32>
    %488 = vector.shape_cast %32 : vector<1x32x128xi1> to vector<1x32x128xi1>
    %489 = vector.broadcast %488 : vector<1x32x128xi1> to vector<4x32x128xi1>
    %490 = vector.shape_cast %486 : vector<4x32x1xf32> to vector<4x32x1xf32>
    %491 = vector.broadcast %490 : vector<4x32x1xf32> to vector<4x32x128xf32>
    %492 = arith.select %489, %491, %487 : vector<4x32x128xi1>, vector<4x32x128xf32>
    %493 = vector.broadcast %383 : vector<1x32x128xf32> to vector<4x32x128xf32>
    %494 = arith.mulf %492, %493 : vector<4x32x128xf32>
    %495 = arith.addf %484, %494 : vector<4x32x128xf32>
    %496 = vector.broadcast %387 : vector<1x32x128xf32> to vector<4x32x128xf32>
    %497 = arith.mulf %485, %496 : vector<4x32x128xf32>
    %498 = arith.addf %495, %497 : vector<4x32x128xf32>
    %c127_i32_144 = arith.constant 127 : i32
    %499 = tpu.dynamic_rotate %485 by %c127_i32_144 dim 2 : vector<4x32x128xf32>, i32 -> vector<4x32x128xf32>
    %500 = vector.broadcast %391 : vector<1x32x128xf32> to vector<4x32x128xf32>
    %501 = arith.mulf %499, %500 : vector<4x32x128xf32>
    %502 = arith.addf %498, %501 : vector<4x32x128xf32>
    %503 = vector.extract_strided_slice %483 {offsets = [0, 0, 0], sizes = [4, 32, 1], strides = [1, 1, 1]} : vector<4x32x128xf32> to vector<4x32x1xf32>
    %c1_i32_145 = arith.constant 1 : i32
    %504 = tpu.dynamic_rotate %483 by %c1_i32_145 dim 2 : vector<4x32x128xf32>, i32 -> vector<4x32x128xf32>
    %505 = vector.shape_cast %32 : vector<1x32x128xi1> to vector<1x32x128xi1>
    %506 = vector.broadcast %505 : vector<1x32x128xi1> to vector<4x32x128xi1>
    %507 = vector.shape_cast %503 : vector<4x32x1xf32> to vector<4x32x1xf32>
    %508 = vector.broadcast %507 : vector<4x32x1xf32> to vector<4x32x128xf32>
    %509 = arith.select %506, %508, %504 : vector<4x32x128xi1>, vector<4x32x128xf32>
    %510 = vector.broadcast %395 : vector<1x32x128xf32> to vector<4x32x128xf32>
    %511 = arith.mulf %509, %510 : vector<4x32x128xf32>
    %512 = arith.addf %502, %511 : vector<4x32x128xf32>
    %c127_i32_146 = arith.constant 127 : i32
    %513 = tpu.dynamic_rotate %483 by %c127_i32_146 dim 2 : vector<4x32x128xf32>, i32 -> vector<4x32x128xf32>
    %514 = vector.broadcast %399 : vector<1x32x128xf32> to vector<4x32x128xf32>
    %515 = arith.mulf %513, %514 : vector<4x32x128xf32>
    %516 = arith.addf %512, %515 : vector<4x32x128xf32>
    %c31_i32_147 = arith.constant 31 : i32
    %517 = tpu.dynamic_rotate %483 by %c31_i32_147 dim 1 : vector<4x32x128xf32>, i32 -> vector<4x32x128xf32>
    %518 = vector.extract_strided_slice %517 {offsets = [0, 0, 0], sizes = [4, 32, 1], strides = [1, 1, 1]} : vector<4x32x128xf32> to vector<4x32x1xf32>
    %c1_i32_148 = arith.constant 1 : i32
    %519 = tpu.dynamic_rotate %517 by %c1_i32_148 dim 2 : vector<4x32x128xf32>, i32 -> vector<4x32x128xf32>
    %520 = vector.shape_cast %32 : vector<1x32x128xi1> to vector<1x32x128xi1>
    %521 = vector.broadcast %520 : vector<1x32x128xi1> to vector<4x32x128xi1>
    %522 = vector.shape_cast %518 : vector<4x32x1xf32> to vector<4x32x1xf32>
    %523 = vector.broadcast %522 : vector<4x32x1xf32> to vector<4x32x128xf32>
    %524 = arith.select %521, %523, %519 : vector<4x32x128xi1>, vector<4x32x128xf32>
    %525 = vector.broadcast %403 : vector<1x32x128xf32> to vector<4x32x128xf32>
    %526 = arith.mulf %524, %525 : vector<4x32x128xf32>
    %527 = arith.addf %516, %526 : vector<4x32x128xf32>
    %528 = vector.broadcast %407 : vector<1x32x128xf32> to vector<4x32x128xf32>
    %529 = arith.mulf %517, %528 : vector<4x32x128xf32>
    %530 = arith.addf %527, %529 : vector<4x32x128xf32>
    %c127_i32_149 = arith.constant 127 : i32
    %531 = tpu.dynamic_rotate %517 by %c127_i32_149 dim 2 : vector<4x32x128xf32>, i32 -> vector<4x32x128xf32>
    %532 = vector.broadcast %411 : vector<1x32x128xf32> to vector<4x32x128xf32>
    %533 = arith.mulf %531, %532 : vector<4x32x128xf32>
    %534 = arith.addf %530, %533 : vector<4x32x128xf32>
    %c2_i32_150 = arith.constant 2 : i32
    %535 = tpu.dynamic_rotate %483 by %c2_i32_150 dim 1 : vector<4x32x128xf32>, i32 -> vector<4x32x128xf32>
    %536 = vector.extract_strided_slice %535 {offsets = [0, 0, 0], sizes = [4, 32, 1], strides = [1, 1, 1]} : vector<4x32x128xf32> to vector<4x32x1xf32>
    %c2_i32_151 = arith.constant 2 : i32
    %537 = tpu.dynamic_rotate %535 by %c2_i32_151 dim 2 : vector<4x32x128xf32>, i32 -> vector<4x32x128xf32>
    %538 = vector.shape_cast %34 : vector<1x32x128xi1> to vector<1x32x128xi1>
    %539 = vector.broadcast %538 : vector<1x32x128xi1> to vector<4x32x128xi1>
    %540 = vector.shape_cast %536 : vector<4x32x1xf32> to vector<4x32x1xf32>
    %541 = vector.broadcast %540 : vector<4x32x1xf32> to vector<4x32x128xf32>
    %542 = arith.select %539, %541, %537 : vector<4x32x128xi1>, vector<4x32x128xf32>
    %543 = vector.broadcast %415 : vector<1x32x128xf32> to vector<4x32x128xf32>
    %544 = arith.mulf %542, %543 : vector<4x32x128xf32>
    %545 = arith.addf %534, %544 : vector<4x32x128xf32>
    %546 = vector.broadcast %419 : vector<1x32x128xf32> to vector<4x32x128xf32>
    %547 = arith.mulf %535, %546 : vector<4x32x128xf32>
    %548 = arith.addf %545, %547 : vector<4x32x128xf32>
    %c126_i32_152 = arith.constant 126 : i32
    %549 = tpu.dynamic_rotate %535 by %c126_i32_152 dim 2 : vector<4x32x128xf32>, i32 -> vector<4x32x128xf32>
    %550 = vector.broadcast %423 : vector<1x32x128xf32> to vector<4x32x128xf32>
    %551 = arith.mulf %549, %550 : vector<4x32x128xf32>
    %552 = arith.addf %548, %551 : vector<4x32x128xf32>
    %553 = vector.extract_strided_slice %483 {offsets = [0, 0, 0], sizes = [4, 32, 1], strides = [1, 1, 1]} : vector<4x32x128xf32> to vector<4x32x1xf32>
    %c2_i32_153 = arith.constant 2 : i32
    %554 = tpu.dynamic_rotate %483 by %c2_i32_153 dim 2 : vector<4x32x128xf32>, i32 -> vector<4x32x128xf32>
    %555 = vector.shape_cast %34 : vector<1x32x128xi1> to vector<1x32x128xi1>
    %556 = vector.broadcast %555 : vector<1x32x128xi1> to vector<4x32x128xi1>
    %557 = vector.shape_cast %553 : vector<4x32x1xf32> to vector<4x32x1xf32>
    %558 = vector.broadcast %557 : vector<4x32x1xf32> to vector<4x32x128xf32>
    %559 = arith.select %556, %558, %554 : vector<4x32x128xi1>, vector<4x32x128xf32>
    %560 = vector.broadcast %427 : vector<1x32x128xf32> to vector<4x32x128xf32>
    %561 = arith.mulf %559, %560 : vector<4x32x128xf32>
    %562 = arith.addf %552, %561 : vector<4x32x128xf32>
    %c126_i32_154 = arith.constant 126 : i32
    %563 = tpu.dynamic_rotate %483 by %c126_i32_154 dim 2 : vector<4x32x128xf32>, i32 -> vector<4x32x128xf32>
    %564 = vector.broadcast %431 : vector<1x32x128xf32> to vector<4x32x128xf32>
    %565 = arith.mulf %563, %564 : vector<4x32x128xf32>
    %566 = arith.addf %562, %565 : vector<4x32x128xf32>
    %c30_i32_155 = arith.constant 30 : i32
    %567 = tpu.dynamic_rotate %483 by %c30_i32_155 dim 1 : vector<4x32x128xf32>, i32 -> vector<4x32x128xf32>
    %568 = vector.extract_strided_slice %567 {offsets = [0, 0, 0], sizes = [4, 32, 1], strides = [1, 1, 1]} : vector<4x32x128xf32> to vector<4x32x1xf32>
    %c2_i32_156 = arith.constant 2 : i32
    %569 = tpu.dynamic_rotate %567 by %c2_i32_156 dim 2 : vector<4x32x128xf32>, i32 -> vector<4x32x128xf32>
    %570 = vector.shape_cast %34 : vector<1x32x128xi1> to vector<1x32x128xi1>
    %571 = vector.broadcast %570 : vector<1x32x128xi1> to vector<4x32x128xi1>
    %572 = vector.shape_cast %568 : vector<4x32x1xf32> to vector<4x32x1xf32>
    %573 = vector.broadcast %572 : vector<4x32x1xf32> to vector<4x32x128xf32>
    %574 = arith.select %571, %573, %569 : vector<4x32x128xi1>, vector<4x32x128xf32>
    %575 = vector.broadcast %435 : vector<1x32x128xf32> to vector<4x32x128xf32>
    %576 = arith.mulf %574, %575 : vector<4x32x128xf32>
    %577 = arith.addf %566, %576 : vector<4x32x128xf32>
    %578 = vector.broadcast %439 : vector<1x32x128xf32> to vector<4x32x128xf32>
    %579 = arith.mulf %567, %578 : vector<4x32x128xf32>
    %580 = arith.addf %577, %579 : vector<4x32x128xf32>
    %c126_i32_157 = arith.constant 126 : i32
    %581 = tpu.dynamic_rotate %567 by %c126_i32_157 dim 2 : vector<4x32x128xf32>, i32 -> vector<4x32x128xf32>
    %582 = vector.broadcast %443 : vector<1x32x128xf32> to vector<4x32x128xf32>
    %583 = arith.mulf %581, %582 : vector<4x32x128xf32>
    %584 = arith.addf %580, %583 : vector<4x32x128xf32>
    %c0_158 = arith.constant 0 : index
    %c0_159 = arith.constant 0 : index
    %c0_160 = arith.constant 0 : index
    %c0_161 = arith.constant 0 : index
    %585 = vector.load %arg6[%c0_158, %c0_159, %c0_160, %c0_161] : memref<1x4x32x128xf32, #tpu.memory_space<vmem>>, vector<1x4x32x128xf32>
    %586 = vector.shape_cast %585 : vector<1x4x32x128xf32> to vector<4x32x128xf32>
    %587 = vector.shape_cast %584 : vector<4x32x128xf32> to vector<1x4x32x128xf32>
    tpu.vector_store %arg6[%c0_158, %c0_159, %c0_160, %c0_161], %587 {strides = array<i32>} : memref<1x4x32x128xf32, #tpu.memory_space<vmem>>, vector<1x4x32x128xf32>,
    %c0_162 = arith.constant 0 : index
    %c0_163 = arith.constant 0 : index
    %c0_164 = arith.constant 0 : index
    %c0_165 = arith.constant 0 : index
    %588 = vector.load %arg6[%c0_162, %c0_163, %c0_164, %c0_165] : memref<1x4x32x128xf32, #tpu.memory_space<vmem>>, vector<1x4x32x128xf32>
    %589 = vector.shape_cast %588 : vector<1x4x32x128xf32> to vector<4x32x128xf32>
    %c0_i32_166 = arith.constant 0 : i32
    %c0_i32_167 = arith.constant 0 : i32
    %c0_i32_168 = arith.constant 0 : i32
    %c0_i32_169 = arith.constant 0 : i32
    %590 = tpu.memref_slice %arg6[%c0_i32_166, %c0_i32_167, %c0_i32_168, %c0_i32_169] : memref<1x4x32x128xf32, #tpu.memory_space<vmem>> -> memref<1x4x32x128xf32, #tpu.memory_space<vmem>>
    %591 = tpu.memref_squeeze %590 : memref<1x4x32x128xf32, #tpu.memory_space<vmem>> -> memref<4x32x128xf32, #tpu.memory_space<vmem>>
    %c0_170 = arith.constant 0 : index
    %592 = arith.index_cast %447 : i32 to index
    %c0_171 = arith.constant 0 : index
    %593 = vector.load %591[%c0_170, %592, %c0_171] : memref<4x32x128xf32, #tpu.memory_space<vmem>>, vector<4x1x128xf32>
    %c0_i32_172 = arith.constant 0 : i32
    %c0_i32_173 = arith.constant 0 : i32
    %c0_i32_174 = arith.constant 0 : i32
    %c0_i32_175 = arith.constant 0 : i32
    %594 = tpu.memref_slice %arg6[%c0_i32_172, %c0_i32_173, %c0_i32_174, %c0_i32_175] : memref<1x4x32x128xf32, #tpu.memory_space<vmem>> -> memref<1x4x32x128xf32, #tpu.memory_space<vmem>>
    %595 = tpu.memref_squeeze %594 : memref<1x4x32x128xf32, #tpu.memory_space<vmem>> -> memref<4x32x128xf32, #tpu.memory_space<vmem>>
    %c0_176 = arith.constant 0 : index
    %596 = arith.index_cast %451 : i32 to index
    %c0_177 = arith.constant 0 : index
    %597 = vector.load %595[%c0_176, %596, %c0_177] : memref<4x32x128xf32, #tpu.memory_space<vmem>>, vector<4x1x128xf32>
    %598 = vector.shape_cast %26 : vector<1x32x128xi1> to vector<1x32x128xi1>
    %599 = vector.broadcast %598 : vector<1x32x128xi1> to vector<4x32x128xi1>
    %600 = vector.shape_cast %593 : vector<4x1x128xf32> to vector<4x1x128xf32>
    %601 = vector.broadcast %600 : vector<4x1x128xf32> to vector<4x32x128xf32>
    %602 = arith.select %599, %601, %589 : vector<4x32x128xi1>, vector<4x32x128xf32>
    %603 = vector.shape_cast %28 : vector<1x32x128xi1> to vector<1x32x128xi1>
    %604 = vector.broadcast %603 : vector<1x32x128xi1> to vector<4x32x128xi1>
    %605 = vector.shape_cast %597 : vector<4x1x128xf32> to vector<4x1x128xf32>
    %606 = vector.broadcast %605 : vector<4x1x128xf32> to vector<4x32x128xf32>
    %607 = arith.select %604, %606, %602 : vector<4x32x128xi1>, vector<4x32x128xf32>
    %608 = vector.extract_strided_slice %607 {offsets = [0, 0, 15], sizes = [4, 32, 1], strides = [1, 1, 1]} : vector<4x32x128xf32> to vector<4x32x1xf32>
    %609 = vector.shape_cast %30 : vector<1x32x128xi1> to vector<1x32x128xi1>
    %610 = vector.broadcast %609 : vector<1x32x128xi1> to vector<4x32x128xi1>
    %611 = vector.shape_cast %608 : vector<4x32x1xf32> to vector<4x32x1xf32>
    %612 = vector.broadcast %611 : vector<4x32x1xf32> to vector<4x32x128xf32>
    %613 = arith.select %610, %612, %607 : vector<4x32x128xi1>, vector<4x32x128xf32>
    %cst_178 = arith.constant 0.000000e+00 : f32
    %614 = vector.broadcast %cst_178 : f32 to vector<4x32x128xf32>
    %c1_i32_179 = arith.constant 1 : i32
    %615 = tpu.dynamic_rotate %613 by %c1_i32_179 dim 1 : vector<4x32x128xf32>, i32 -> vector<4x32x128xf32>
    %616 = vector.extract_strided_slice %615 {offsets = [0, 0, 0], sizes = [4, 32, 1], strides = [1, 1, 1]} : vector<4x32x128xf32> to vector<4x32x1xf32>
    %c1_i32_180 = arith.constant 1 : i32
    %617 = tpu.dynamic_rotate %615 by %c1_i32_180 dim 2 : vector<4x32x128xf32>, i32 -> vector<4x32x128xf32>
    %618 = vector.shape_cast %32 : vector<1x32x128xi1> to vector<1x32x128xi1>
    %619 = vector.broadcast %618 : vector<1x32x128xi1> to vector<4x32x128xi1>
    %620 = vector.shape_cast %616 : vector<4x32x1xf32> to vector<4x32x1xf32>
    %621 = vector.broadcast %620 : vector<4x32x1xf32> to vector<4x32x128xf32>
    %622 = arith.select %619, %621, %617 : vector<4x32x128xi1>, vector<4x32x128xf32>
    %623 = vector.broadcast %383 : vector<1x32x128xf32> to vector<4x32x128xf32>
    %624 = arith.mulf %622, %623 : vector<4x32x128xf32>
    %625 = arith.addf %614, %624 : vector<4x32x128xf32>
    %626 = vector.broadcast %387 : vector<1x32x128xf32> to vector<4x32x128xf32>
    %627 = arith.mulf %615, %626 : vector<4x32x128xf32>
    %628 = arith.addf %625, %627 : vector<4x32x128xf32>
    %c127_i32_181 = arith.constant 127 : i32
    %629 = tpu.dynamic_rotate %615 by %c127_i32_181 dim 2 : vector<4x32x128xf32>, i32 -> vector<4x32x128xf32>
    %630 = vector.broadcast %391 : vector<1x32x128xf32> to vector<4x32x128xf32>
    %631 = arith.mulf %629, %630 : vector<4x32x128xf32>
    %632 = arith.addf %628, %631 : vector<4x32x128xf32>
    %633 = vector.extract_strided_slice %613 {offsets = [0, 0, 0], sizes = [4, 32, 1], strides = [1, 1, 1]} : vector<4x32x128xf32> to vector<4x32x1xf32>
    %c1_i32_182 = arith.constant 1 : i32
    %634 = tpu.dynamic_rotate %613 by %c1_i32_182 dim 2 : vector<4x32x128xf32>, i32 -> vector<4x32x128xf32>
    %635 = vector.shape_cast %32 : vector<1x32x128xi1> to vector<1x32x128xi1>
    %636 = vector.broadcast %635 : vector<1x32x128xi1> to vector<4x32x128xi1>
    %637 = vector.shape_cast %633 : vector<4x32x1xf32> to vector<4x32x1xf32>
    %638 = vector.broadcast %637 : vector<4x32x1xf32> to vector<4x32x128xf32>
    %639 = arith.select %636, %638, %634 : vector<4x32x128xi1>, vector<4x32x128xf32>
    %640 = vector.broadcast %395 : vector<1x32x128xf32> to vector<4x32x128xf32>
    %641 = arith.mulf %639, %640 : vector<4x32x128xf32>
    %642 = arith.addf %632, %641 : vector<4x32x128xf32>
    %c127_i32_183 = arith.constant 127 : i32
    %643 = tpu.dynamic_rotate %613 by %c127_i32_183 dim 2 : vector<4x32x128xf32>, i32 -> vector<4x32x128xf32>
    %644 = vector.broadcast %399 : vector<1x32x128xf32> to vector<4x32x128xf32>
    %645 = arith.mulf %643, %644 : vector<4x32x128xf32>
    %646 = arith.addf %642, %645 : vector<4x32x128xf32>
    %c31_i32_184 = arith.constant 31 : i32
    %647 = tpu.dynamic_rotate %613 by %c31_i32_184 dim 1 : vector<4x32x128xf32>, i32 -> vector<4x32x128xf32>
    %648 = vector.extract_strided_slice %647 {offsets = [0, 0, 0], sizes = [4, 32, 1], strides = [1, 1, 1]} : vector<4x32x128xf32> to vector<4x32x1xf32>
    %c1_i32_185 = arith.constant 1 : i32
    %649 = tpu.dynamic_rotate %647 by %c1_i32_185 dim 2 : vector<4x32x128xf32>, i32 -> vector<4x32x128xf32>
    %650 = vector.shape_cast %32 : vector<1x32x128xi1> to vector<1x32x128xi1>
    %651 = vector.broadcast %650 : vector<1x32x128xi1> to vector<4x32x128xi1>
    %652 = vector.shape_cast %648 : vector<4x32x1xf32> to vector<4x32x1xf32>
    %653 = vector.broadcast %652 : vector<4x32x1xf32> to vector<4x32x128xf32>
    %654 = arith.select %651, %653, %649 : vector<4x32x128xi1>, vector<4x32x128xf32>
    %655 = vector.broadcast %403 : vector<1x32x128xf32> to vector<4x32x128xf32>
    %656 = arith.mulf %654, %655 : vector<4x32x128xf32>
    %657 = arith.addf %646, %656 : vector<4x32x128xf32>
    %658 = vector.broadcast %407 : vector<1x32x128xf32> to vector<4x32x128xf32>
    %659 = arith.mulf %647, %658 : vector<4x32x128xf32>
    %660 = arith.addf %657, %659 : vector<4x32x128xf32>
    %c127_i32_186 = arith.constant 127 : i32
    %661 = tpu.dynamic_rotate %647 by %c127_i32_186 dim 2 : vector<4x32x128xf32>, i32 -> vector<4x32x128xf32>
    %662 = vector.broadcast %411 : vector<1x32x128xf32> to vector<4x32x128xf32>
    %663 = arith.mulf %661, %662 : vector<4x32x128xf32>
    %664 = arith.addf %660, %663 : vector<4x32x128xf32>
    %c2_i32_187 = arith.constant 2 : i32
    %665 = tpu.dynamic_rotate %613 by %c2_i32_187 dim 1 : vector<4x32x128xf32>, i32 -> vector<4x32x128xf32>
    %666 = vector.extract_strided_slice %665 {offsets = [0, 0, 0], sizes = [4, 32, 1], strides = [1, 1, 1]} : vector<4x32x128xf32> to vector<4x32x1xf32>
    %c2_i32_188 = arith.constant 2 : i32
    %667 = tpu.dynamic_rotate %665 by %c2_i32_188 dim 2 : vector<4x32x128xf32>, i32 -> vector<4x32x128xf32>
    %668 = vector.shape_cast %34 : vector<1x32x128xi1> to vector<1x32x128xi1>
    %669 = vector.broadcast %668 : vector<1x32x128xi1> to vector<4x32x128xi1>
    %670 = vector.shape_cast %666 : vector<4x32x1xf32> to vector<4x32x1xf32>
    %671 = vector.broadcast %670 : vector<4x32x1xf32> to vector<4x32x128xf32>
    %672 = arith.select %669, %671, %667 : vector<4x32x128xi1>, vector<4x32x128xf32>
    %673 = vector.broadcast %415 : vector<1x32x128xf32> to vector<4x32x128xf32>
    %674 = arith.mulf %672, %673 : vector<4x32x128xf32>
    %675 = arith.addf %664, %674 : vector<4x32x128xf32>
    %676 = vector.broadcast %419 : vector<1x32x128xf32> to vector<4x32x128xf32>
    %677 = arith.mulf %665, %676 : vector<4x32x128xf32>
    %678 = arith.addf %675, %677 : vector<4x32x128xf32>
    %c126_i32_189 = arith.constant 126 : i32
    %679 = tpu.dynamic_rotate %665 by %c126_i32_189 dim 2 : vector<4x32x128xf32>, i32 -> vector<4x32x128xf32>
    %680 = vector.broadcast %423 : vector<1x32x128xf32> to vector<4x32x128xf32>
    %681 = arith.mulf %679, %680 : vector<4x32x128xf32>
    %682 = arith.addf %678, %681 : vector<4x32x128xf32>
    %683 = vector.extract_strided_slice %613 {offsets = [0, 0, 0], sizes = [4, 32, 1], strides = [1, 1, 1]} : vector<4x32x128xf32> to vector<4x32x1xf32>
    %c2_i32_190 = arith.constant 2 : i32
    %684 = tpu.dynamic_rotate %613 by %c2_i32_190 dim 2 : vector<4x32x128xf32>, i32 -> vector<4x32x128xf32>
    %685 = vector.shape_cast %34 : vector<1x32x128xi1> to vector<1x32x128xi1>
    %686 = vector.broadcast %685 : vector<1x32x128xi1> to vector<4x32x128xi1>
    %687 = vector.shape_cast %683 : vector<4x32x1xf32> to vector<4x32x1xf32>
    %688 = vector.broadcast %687 : vector<4x32x1xf32> to vector<4x32x128xf32>
    %689 = arith.select %686, %688, %684 : vector<4x32x128xi1>, vector<4x32x128xf32>
    %690 = vector.broadcast %427 : vector<1x32x128xf32> to vector<4x32x128xf32>
    %691 = arith.mulf %689, %690 : vector<4x32x128xf32>
    %692 = arith.addf %682, %691 : vector<4x32x128xf32>
    %c126_i32_191 = arith.constant 126 : i32
    %693 = tpu.dynamic_rotate %613 by %c126_i32_191 dim 2 : vector<4x32x128xf32>, i32 -> vector<4x32x128xf32>
    %694 = vector.broadcast %431 : vector<1x32x128xf32> to vector<4x32x128xf32>
    %695 = arith.mulf %693, %694 : vector<4x32x128xf32>
    %696 = arith.addf %692, %695 : vector<4x32x128xf32>
    %c30_i32_192 = arith.constant 30 : i32
    %697 = tpu.dynamic_rotate %613 by %c30_i32_192 dim 1 : vector<4x32x128xf32>, i32 -> vector<4x32x128xf32>
    %698 = vector.extract_strided_slice %697 {offsets = [0, 0, 0], sizes = [4, 32, 1], strides = [1, 1, 1]} : vector<4x32x128xf32> to vector<4x32x1xf32>
    %c2_i32_193 = arith.constant 2 : i32
    %699 = tpu.dynamic_rotate %697 by %c2_i32_193 dim 2 : vector<4x32x128xf32>, i32 -> vector<4x32x128xf32>
    %700 = vector.shape_cast %34 : vector<1x32x128xi1> to vector<1x32x128xi1>
    %701 = vector.broadcast %700 : vector<1x32x128xi1> to vector<4x32x128xi1>
    %702 = vector.shape_cast %698 : vector<4x32x1xf32> to vector<4x32x1xf32>
    %703 = vector.broadcast %702 : vector<4x32x1xf32> to vector<4x32x128xf32>
    %704 = arith.select %701, %703, %699 : vector<4x32x128xi1>, vector<4x32x128xf32>
    %705 = vector.broadcast %435 : vector<1x32x128xf32> to vector<4x32x128xf32>
    %706 = arith.mulf %704, %705 : vector<4x32x128xf32>
    %707 = arith.addf %696, %706 : vector<4x32x128xf32>
    %708 = vector.broadcast %439 : vector<1x32x128xf32> to vector<4x32x128xf32>
    %709 = arith.mulf %697, %708 : vector<4x32x128xf32>
    %710 = arith.addf %707, %709 : vector<4x32x128xf32>
    %c126_i32_194 = arith.constant 126 : i32
    %711 = tpu.dynamic_rotate %697 by %c126_i32_194 dim 2 : vector<4x32x128xf32>, i32 -> vector<4x32x128xf32>
    %712 = vector.broadcast %443 : vector<1x32x128xf32> to vector<4x32x128xf32>
    %713 = arith.mulf %711, %712 : vector<4x32x128xf32>
    %714 = arith.addf %710, %713 : vector<4x32x128xf32>
    %c0_195 = arith.constant 0 : index
    %c0_196 = arith.constant 0 : index
    %c0_197 = arith.constant 0 : index
    %c0_198 = arith.constant 0 : index
    %715 = vector.load %arg6[%c0_195, %c0_196, %c0_197, %c0_198] : memref<1x4x32x128xf32, #tpu.memory_space<vmem>>, vector<1x4x32x128xf32>
    %716 = vector.shape_cast %715 : vector<1x4x32x128xf32> to vector<4x32x128xf32>
    %717 = vector.shape_cast %714 : vector<4x32x128xf32> to vector<1x4x32x128xf32>
    tpu.vector_store %arg6[%c0_195, %c0_196, %c0_197, %c0_198], %717 {strides = array<i32>} : memref<1x4x32x128xf32, #tpu.memory_space<vmem>>, vector<1x4x32x128xf32>,
    %c0_i32_199 = arith.constant 0 : i32
    %c0_i32_200 = arith.constant 0 : i32
    %c0_i32_201 = arith.constant 0 : i32
    %c0_i32_202 = arith.constant 0 : i32
    %718 = tpu.memref_slice %arg6[%c0_i32_199, %c0_i32_200, %c0_i32_201, %c0_i32_202] : memref<1x4x32x128xf32, #tpu.memory_space<vmem>> -> memref<1x4x32x128xf32, #tpu.memory_space<vmem>>
    %719 = tpu.memref_squeeze %718 : memref<1x4x32x128xf32, #tpu.memory_space<vmem>> -> memref<4x32x128xf32, #tpu.memory_space<vmem>>
    %c0_203 = arith.constant 0 : index
    %c8 = arith.constant 8 : index
    %c0_204 = arith.constant 0 : index
    %720 = vector.load %719[%c0_203, %c8, %c0_204] : memref<4x32x128xf32, #tpu.memory_space<vmem>>, vector<4x16x128xf32>
    %c0_205 = arith.constant 0 : index
    %c0_206 = arith.constant 0 : index
    %c0_207 = arith.constant 0 : index
    %c0_208 = arith.constant 0 : index
    %721 = vector.load %arg4[%c0_205, %c0_206, %c0_207, %c0_208] : memref<1x4x16x128xf32, #tpu.memory_space<vmem>>, vector<1x4x16x128xf32>
    %722 = vector.shape_cast %721 : vector<1x4x16x128xf32> to vector<4x16x128xf32>
    %723 = vector.shape_cast %720 : vector<4x16x128xf32> to vector<1x4x16x128xf32>
    tpu.vector_store %arg4[%c0_205, %c0_206, %c0_207, %c0_208], %723 {strides = array<i32>} : memref<1x4x16x128xf32, #tpu.memory_space<vmem>>, vector<1x4x16x128xf32>,
    return
  }
  func.func @transform_2(%arg0: i32, %arg1: i32) -> (i32, i32, i32, i32) {
    %c0_i32 = arith.constant 0 : i32
    %c0_i32_0 = arith.constant 0 : i32
    %c0_i32_1 = arith.constant 0 : i32
    return %arg0, %c0_i32, %arg1, %c0_i32_0 : i32, i32, i32, i32
  }
}

</mosaic_0001>

<llo_original>
// kernel: tpu_custom_call.1
$region0: #{tpu_custom_call.1}
  #allocation0 [shape = 'u32[]', space=smem, size = 0x4, offset = 0x4, fixed_abs, tag = 'smem constant byte address 0x4 - core index']
  #allocation1 [shape = 'u32[144,128]{1,0:T(1,128)}', space=vmem, size = 0x12000, scoped, tag = 'internal scratch']
  #allocation2 [shape = 'f32[1,3,32,128]{3,2,1,0:T(8,128)}', space=vmem, size = 0xc000, scoped, tag = 'scratch operand']
  #allocation3 [shape = 'f32[1,4,32,128]{3,2,1,0:T(8,128)}', space=vmem, size = 0x10000, scoped, tag = 'scratch operand']
  #allocation4 [shape = 's32[2]{0}', space=sflag, size = 0x8, scoped, tag = 'scratch operand']
  #allocation7 [shape = 's32[]', space=sflag, size = 0x4, offset = 0, fixed_abs, tag = 'sflag constant byte address 0x0 - dummy sync flag']
  #allocation8 [shape = 's32[]', space=sflag, size = 0x4, offset = 0, fixed_abs, tag = 'sflag constant byte address 0x0 - dummy sync flag']
  #allocation9 [shape = 'u32[]', space=smem, size = 0x4, offset = 0x44, fixed_abs, tag = 'smem constant byte address 0x44 - assertion arg 0']
  #allocation10 [shape = 'u32[]', space=smem, size = 0x4, offset = 0x48, fixed_abs, tag = 'smem constant byte address 0x48 - assertion arg 1']
  #allocation11 [shape = 's32[]', space=sflag, size = 0x4, offset = 0, fixed_abs, tag = 'sflag constant byte address 0x0 - dummy sync flag']
  #allocation12 [shape = 's32[]', space=sflag, size = 0x4, offset = 0, fixed_abs, tag = 'sflag constant byte address 0x0 - dummy sync flag']
  %s0 = inlined_call_operand.hbm [shape: f32[2,3,32,128], index: 0, kind: input, shape index: {}]
  %s1 = inlined_call_operand.hbm [shape: f32[2,4,32,128], index: 1, kind: input, shape index: {}]
  %s2 = inlined_call_operand.hbm [shape: f32[2,4,16,128], index: 2, kind: output, shape index: {}]
  %s3 = sld [smem:[#allocation0]]
  $region33: #{tpu_custom_call.1} parent=0
    _
  %s5 = ssub.s32 1, %s3
  %s6 = scalar_select 0, %s5, %s3
  $region1: #{tpu_custom_call.1} parent=0
    #allocation5 [shape = 'u8[65536]{0}', space=vmem, size = 0x10000, scoped, tag = 'output window, operand 0']
    #allocation6 [shape = 's32[2]{0}', space=sflag, size = 0x8, scoped, tag = 'scoped memory for tpu_custom_call.1']
    %7 = vsyncpa [#allocation6], 0
    %s8 = scalar_lea.sflag [#allocation6], 1
    %9 = vsyncpa %s8, 0
    loop: start=0, step=1, limit=3
    $region2: #{tpu_custom_call.1} parent=1 // loop_pre_header
      _
    $region3: #{tpu_custom_call.1} parent=1 // loop_header
      %s11 = sphi 0, %s15
      %p12 = scmp.ge.s32.totalorder %s11, 3
      %s17 = sphi 0, %s27
      %s18 = sphi 0, %s23
      %s19 = sphi 0, %s17
      %s20 = sphi 0, %s18
      %s32 = sphi 0, %s34
      %s35 = sphi 0, %s32
      %s45 = sphi 0, %s35
    $region4: #{tpu_custom_call.1} parent=1 // loop_header_branch
      %14 = sbr.rel (%p12) target = $region8
    $region5: #{tpu_custom_call.1} parent=1 // loop_body
      %s16 = ssub.s32 %s11, 1
      %s21 = sadd.s32 1, %s18
      %p22 = scmp.ge.s32.totalorder %s21, 1
      %s23 = scalar_select %p22, 0, %s21
      %s24 = sadd.s32 1, %s17
      %s25 = scalar_select %p22, %s24, %s17
      %p26 = scmp.ge.s32.totalorder %s25, 2
      %s27 = scalar_select %p26, 0, %s25
      %s28 = ssub.s32 %s17, %s27
      %s29 = ssub.s32 %s18, %s23
      %s30 = sor.u32 %s28, %s29
      %p31 = scmp.eq.s32.totalorder %s30, 0
      %s33 = sadd.s32 %s32, 1
      %s34 = scalar_select %p31, %s32, %s33
      %p36 = pneg %p31
      %p37 = scmp.eq.s32.totalorder %s11, 1
      %p38 = por %p36, %p37
      %p39 = scmp.ne.s32.totalorder %s32, %s35
      %p40 = scmp.eq.s32.totalorder %s11, 0
      %p41 = por %p39, %p40
      %p42 = scmp.ne.s32.totalorder %s32, %s35
      %p43 = scmp.eq.s32.totalorder %s16, 1
      %p44 = por %p42, %p43
      %p46 = scmp.ne.s32.totalorder %s35, %s45
      %p47 = scmp.eq.s32.totalorder %s16, 0
      %p48 = por %p46, %p47
      %p49 = scmp.lt.s32.totalorder %s11, 2
      // Predicated region
      $region9: #{tpu_custom_call.1} parent=5 // pred_check
        %p50 = pneg %p49
      $region10: #{tpu_custom_call.1} parent=5 // pred_check_branch
        %52 = sbr.rel (%p50) target = $region12
      $region11: #{tpu_custom_call.1} parent=5 // pred_region
        %p53 = pneg %p41
        %p54 = pneg %p38
        %s55 = sand.u32 %s32, 1
        %s56 = scalar_lea.sflag [#allocation6], %s55
        %s57 = sand.u32 %s32, 1
        %s58 = smul.addr %s57, 64
        %s59 = scalar_lea.vmem [#allocation5], %s58
        %s60 = smul.u32 2, %s18
        %s61 = smul.u32 %s18, 16
        %s62 = smul.u32 %s17, 96
        %s63 = sadd.s32 %s61, %s62
        %s64 = smul.addr %s63, 16
        %s65 = scalar_lea.hbm %s0, %s64
        // Predicated region
        $region13: #{tpu_custom_call.1} parent=11 // pred_check
          _
        $region14: #{tpu_custom_call.1} parent=11 // pred_check_branch
          %67 = sbr.rel target = $region16
        $region15: #{tpu_custom_call.1} parent=11 // pred_region
          %68 = sst [smem:[#allocation9]] [#allocation8]
          %69 = sst [smem:[#allocation10]] [#allocation7]
        $region16: #{tpu_custom_call.1} parent=11 // pred_fallthru
          _
        %71 = shalt.err (0)
        %s73 = sshll.u32 [#allocation2], 4
        %s74 = int_to_ptr.vmem [resolvable:$true] %s73
        %76 = dma.hbm_to_vmem [thread:$0]  %s65, 1536, %s74, [#allocation4]
        %s77 = smul.u32 %s17, 128
        %s78 = sadd.s32 %s61, %s77
        %s79 = smul.addr %s78, 16
        %s80 = scalar_lea.hbm %s1, %s79
        %s81 = scalar_lea.sflag [#allocation4], 1
        // Predicated region
        $region17: #{tpu_custom_call.1} parent=11 // pred_check
          _
        $region18: #{tpu_custom_call.1} parent=11 // pred_check_branch
          %83 = sbr.rel target = $region20
        $region19: #{tpu_custom_call.1} parent=11 // pred_region
          %84 = sst [smem:[#allocation9]] [#allocation12]
          %85 = sst [smem:[#allocation10]] [#allocation11]
        $region20: #{tpu_custom_call.1} parent=11 // pred_fallthru
          _
        %87 = shalt.err (0)
        %s89 = sshll.u32 [#allocation3], 4
        %s90 = int_to_ptr.vmem [resolvable:$true] %s89
        %92 = dma.hbm_to_vmem [thread:$0]  %s80, 2048, %s90, %s81
        %s93 = smul.u32 3, 32
        %s94 = smul.u32 %s93, 1
        %s95 = sshll.u32 %s94, 4
        %96 = dma.done [#allocation4], %s95
        %v97 = vlaneseq
        %v98 = vand.u32 %v97, 127
        %v99 = vlaneseq
        %v100 = vshrl.u32 %v99, 7
        %v101 = vadd.s32 %v100, 8
        %v102 = vadd.s32 %v100, 16
        %v103 = vadd.s32 %v100, 24
        %v104 = vstv %s61
        %v105 = vadd.s32 %v100, %v104
        %v106 = vadd.s32 %v101, %v104
        %v107 = vadd.s32 %v102, %v104
        %v108 = vadd.s32 %v103, %v104
        %vm109 = vcmp.lt.s32.totalorder %v105, 8
        %vm110 = vcmp.lt.s32.totalorder %v106, 8
        %vm111 = vcmp.lt.s32.totalorder %v107, 8
        %vm112 = vcmp.lt.s32.totalorder %v108, 8
        %vm113 = vcmp.ge.s32.totalorder %v105, 24
        %vm114 = vcmp.ge.s32.totalorder %v106, 24
        %vm115 = vcmp.ge.s32.totalorder %v107, 24
        %vm116 = vcmp.ge.s32.totalorder %v108, 24
        %vm117 = vcmp.ge.s32.totalorder %v98, 16
        %vm118 = vcmp.lt.s32.totalorder %v98, 1
        %vm119 = vcmp.lt.s32.totalorder %v98, 2
        %v120 = vld [vmem:[#allocation2] sm:$0xff]
        %v121 = vld [vmem:[#allocation2 + $0x8] sm:$0xff]
        %v122 = vld [vmem:[#allocation2 + $0x10] sm:$0xff]
        %v123 = vld [vmem:[#allocation2 + $0x18] sm:$0xff]
        %v124 = vld [vmem:[#allocation2 + $0x20] sm:$0xff]
        %v125 = vld [vmem:[#allocation2 + $0x28] sm:$0xff]
        %v126 = vld [vmem:[#allocation2 + $0x30] sm:$0xff]
        %v127 = vld [vmem:[#allocation2 + $0x38] sm:$0xff]
        %v128 = vld [vmem:[#allocation2 + $0x40] sm:$0xff]
        %v129 = vld [vmem:[#allocation2 + $0x48] sm:$0xff]
        %v130 = vld [vmem:[#allocation2 + $0x50] sm:$0xff]
        %v131 = vld [vmem:[#allocation2 + $0x58] sm:$0xff]
        %v132 = vrot.slane %v120, 7
        %v133 = vrot.slane %v124, 7
        %v134 = vrot.slane %v128, 7
        %v135 = vrot.slane %v121, 7
        %v136 = vrot.slane %v125, 7
        %v137 = vrot.slane %v129, 7
        %v138 = vrot.slane %v122, 7
        %v139 = vrot.slane %v126, 7
        %v140 = vrot.slane %v130, 7
        %v141 = vrot.slane %v123, 7
        %v142 = vrot.slane %v127, 7
        %v143 = vrot.slane %v131, 7
        %vm144 = vcmp.lt.s32.totalorder %v100, 1
        %v145 = vsel %vm144, %v138, %v141
        %v146 = vsel %vm144, %v139, %v142
        %v147 = vsel %vm144, %v140, %v143
        %v148 = vsel %vm144, %v135, %v138
        %v149 = vsel %vm144, %v136, %v139
        %v150 = vsel %vm144, %v137, %v140
        %v151 = vsel %vm144, %v132, %v135
        %v152 = vsel %vm144, %v133, %v136
        %v153 = vsel %vm144, %v134, %v137
        %v154 = vsel %vm144, %v141, %v132
        %v155 = vsel %vm144, %v142, %v133
        %v156 = vsel %vm144, %v143, %v134
        %157 = vrot.lane.b32.xlu0 %v154, 1
        %v158 = vpop.permute.xlu0 %157
        %159 = vrot.lane.b32.xlu0 %v151, 1
        %v160 = vpop.permute.xlu0 %159
        %161 = vrot.lane.b32.xlu0 %v148, 1
        %v162 = vpop.permute.xlu0 %161
        %163 = vrot.lane.b32.xlu0 %v145, 1
        %v164 = vpop.permute.xlu0 %163
        %165 = vrot.lane.b32.xlu0 %v155, 1
        %v166 = vpop.permute.xlu0 %165
        %167 = vrot.lane.b32.xlu0 %v152, 1
        %v168 = vpop.permute.xlu0 %167
        %169 = vrot.lane.b32.xlu0 %v149, 1
        %v170 = vpop.permute.xlu0 %169
        %171 = vrot.lane.b32.xlu0 %v146, 1
        %v172 = vpop.permute.xlu0 %171
        %173 = vrot.lane.b32.xlu0 %v156, 1
        %v174 = vpop.permute.xlu0 %173
        %175 = vrot.lane.b32.xlu0 %v153, 1
        %v176 = vpop.permute.xlu0 %175
        %177 = vrot.lane.b32.xlu0 %v150, 1
        %v178 = vpop.permute.xlu0 %177
        %179 = vrot.lane.b32.xlu0 %v147, 1
        %v180 = vpop.permute.xlu0 %179
        %v181 = vsel %vm118, 1, 0
        %vm182 = vcmp.eq.s32.totalorder %v181, 1
        %184 = vset.pattern.permute.xlu0 0
        %185 = vperm.xlu0 %184, %v154
        %v186 = vpop.permute.xlu0 %185
        %189 = vset.pattern.permute.xlu0 0
        %190 = vperm.xlu0 %189, %v151
        %v191 = vpop.permute.xlu0 %190
        %194 = vset.pattern.permute.xlu0 0
        %195 = vperm.xlu0 %194, %v148
        %v196 = vpop.permute.xlu0 %195
        %199 = vset.pattern.permute.xlu0 0
        %200 = vperm.xlu0 %199, %v145
        %v201 = vpop.permute.xlu0 %200
        %204 = vset.pattern.permute.xlu0 0
        %205 = vperm.xlu0 %204, %v155
        %v206 = vpop.permute.xlu0 %205
        %209 = vset.pattern.permute.xlu0 0
        %210 = vperm.xlu0 %209, %v152
        %v211 = vpop.permute.xlu0 %210
        %214 = vset.pattern.permute.xlu0 0
        %215 = vperm.xlu0 %214, %v149
        %v216 = vpop.permute.xlu0 %215
        %219 = vset.pattern.permute.xlu0 0
        %220 = vperm.xlu0 %219, %v146
        %v221 = vpop.permute.xlu0 %220
        %224 = vset.pattern.permute.xlu0 0
        %225 = vperm.xlu0 %224, %v156
        %v226 = vpop.permute.xlu0 %225
        %229 = vset.pattern.permute.xlu0 0
        %230 = vperm.xlu0 %229, %v153
        %v231 = vpop.permute.xlu0 %230
        %234 = vset.pattern.permute.xlu0 0
        %235 = vperm.xlu0 %234, %v150
        %v236 = vpop.permute.xlu0 %235
        %239 = vset.pattern.permute.xlu0 0
        %240 = vperm.xlu0 %239, %v147
        %v241 = vpop.permute.xlu0 %240
        %v243 = vsel %vm182, %v186, %v158
        %v244 = vsel %vm182, %v191, %v160
        %v245 = vsel %vm182, %v196, %v162
        %v246 = vsel %vm182, %v201, %v164
        %v247 = vsel %vm182, %v206, %v166
        %v248 = vsel %vm182, %v211, %v168
        %v249 = vsel %vm182, %v216, %v170
        %v250 = vsel %vm182, %v221, %v172
        %v251 = vsel %vm182, %v226, %v174
        %v252 = vsel %vm182, %v231, %v176
        %v253 = vsel %vm182, %v236, %v178
        %v254 = vsel %vm182, %v241, %v180
        %v255 = vsub.f32 %v243, %v120
        %v256 = vsub.f32 %v244, %v121
        %v257 = vsub.f32 %v245, %v122
        %v258 = vsub.f32 %v246, %v123
        %v259 = vsub.f32 %v247, %v124
        %v260 = vsub.f32 %v248, %v125
        %v261 = vsub.f32 %v249, %v126
        %v262 = vsub.f32 %v250, %v127
        %v263 = vsub.f32 %v251, %v128
        %v264 = vsub.f32 %v252, %v129
        %v265 = vsub.f32 %v253, %v130
        %v266 = vsub.f32 %v254, %v131
        %v267 = vadd.f32 %v255, 0.0
        %v268 = vadd.f32 %v256, 0.0
        %v269 = vadd.f32 %v257, 0.0
        %v270 = vadd.f32 %v258, 0.0
        %v271 = vadd.f32 %v259, 0.0
        %v272 = vadd.f32 %v260, 0.0
        %v273 = vadd.f32 %v261, 0.0
        %v274 = vadd.f32 %v262, 0.0
        %v275 = vadd.f32 %v263, 0.0
        %v276 = vadd.f32 %v264, 0.0
        %v277 = vadd.f32 %v265, 0.0
        %v278 = vadd.f32 %v266, 0.0
        %v279 = vmul.f32 %v255, %v255
        %v280 = vmul.f32 %v256, %v256
        %v281 = vmul.f32 %v257, %v257
        %v282 = vmul.f32 %v258, %v258
        %v283 = vmul.f32 %v259, %v259
        %v284 = vmul.f32 %v260, %v260
        %v285 = vmul.f32 %v261, %v261
        %v286 = vmul.f32 %v262, %v262
        %v287 = vmul.f32 %v263, %v263
        %v288 = vmul.f32 %v264, %v264
        %v289 = vmul.f32 %v265, %v265
        %v290 = vmul.f32 %v266, %v266
        %v291 = vadd.f32 %v279, 0.0
        %v292 = vadd.f32 %v280, 0.0
        %v293 = vadd.f32 %v281, 0.0
        %v294 = vadd.f32 %v282, 0.0
        %v295 = vadd.f32 %v283, 0.0
        %v296 = vadd.f32 %v284, 0.0
        %v297 = vadd.f32 %v285, 0.0
        %v298 = vadd.f32 %v286, 0.0
        %v299 = vadd.f32 %v287, 0.0
        %v300 = vadd.f32 %v288, 0.0
        %v301 = vadd.f32 %v289, 0.0
        %v302 = vadd.f32 %v290, 0.0
        %v303 = vsub.f32 %v154, %v120
        %v304 = vsub.f32 %v151, %v121
        %v305 = vsub.f32 %v148, %v122
        %v306 = vsub.f32 %v145, %v123
        %v307 = vsub.f32 %v155, %v124
        %v308 = vsub.f32 %v152, %v125
        %v309 = vsub.f32 %v149, %v126
        %v310 = vsub.f32 %v146, %v127
        %v311 = vsub.f32 %v156, %v128
        %v312 = vsub.f32 %v153, %v129
        %v313 = vsub.f32 %v150, %v130
        %v314 = vsub.f32 %v147, %v131
        %v315 = vadd.f32 %v267, %v303
        %v316 = vadd.f32 %v268, %v304
        %v317 = vadd.f32 %v269, %v305
        %v318 = vadd.f32 %v270, %v306
        %v319 = vadd.f32 %v271, %v307
        %v320 = vadd.f32 %v272, %v308
        %v321 = vadd.f32 %v273, %v309
        %v322 = vadd.f32 %v274, %v310
        %v323 = vadd.f32 %v275, %v311
        %v324 = vadd.f32 %v276, %v312
        %v325 = vadd.f32 %v277, %v313
        %v326 = vadd.f32 %v278, %v314
        %v327 = vmul.f32 %v303, %v303
        %v328 = vmul.f32 %v304, %v304
        %v329 = vmul.f32 %v305, %v305
        %v330 = vmul.f32 %v306, %v306
        %v331 = vmul.f32 %v307, %v307
        %v332 = vmul.f32 %v308, %v308
        %v333 = vmul.f32 %v309, %v309
        %v334 = vmul.f32 %v310, %v310
        %v335 = vmul.f32 %v311, %v311
        %v336 = vmul.f32 %v312, %v312
        %v337 = vmul.f32 %v313, %v313
        %v338 = vmul.f32 %v314, %v314
        %v339 = vadd.f32 %v291, %v327
        %v340 = vadd.f32 %v292, %v328
        %v341 = vadd.f32 %v293, %v329
        %v342 = vadd.f32 %v294, %v330
        %v343 = vadd.f32 %v295, %v331
        %v344 = vadd.f32 %v296, %v332
        %v345 = vadd.f32 %v297, %v333
        %v346 = vadd.f32 %v298, %v334
        %v347 = vadd.f32 %v299, %v335
        %v348 = vadd.f32 %v300, %v336
        %v349 = vadd.f32 %v301, %v337
        %v350 = vadd.f32 %v302, %v338
        %351 = vrot.lane.b32.xlu0 %v154, 127
        %v352 = vpop.permute.xlu0 %351
        %353 = vrot.lane.b32.xlu0 %v151, 127
        %v354 = vpop.permute.xlu0 %353
        %355 = vrot.lane.b32.xlu0 %v148, 127
        %v356 = vpop.permute.xlu0 %355
        %357 = vrot.lane.b32.xlu0 %v145, 127
        %v358 = vpop.permute.xlu0 %357
        %359 = vrot.lane.b32.xlu0 %v155, 127
        %v360 = vpop.permute.xlu0 %359
        %361 = vrot.lane.b32.xlu0 %v152, 127
        %v362 = vpop.permute.xlu0 %361
        %363 = vrot.lane.b32.xlu0 %v149, 127
        %v364 = vpop.permute.xlu0 %363
        %365 = vrot.lane.b32.xlu0 %v146, 127
        %v366 = vpop.permute.xlu0 %365
        %367 = vrot.lane.b32.xlu0 %v156, 127
        %v368 = vpop.permute.xlu0 %367
        %369 = vrot.lane.b32.xlu0 %v153, 127
        %v370 = vpop.permute.xlu0 %369
        %371 = vrot.lane.b32.xlu0 %v150, 127
        %v372 = vpop.permute.xlu0 %371
        %373 = vrot.lane.b32.xlu0 %v147, 127
        %v374 = vpop.permute.xlu0 %373
        %v375 = vsub.f32 %v352, %v120
        %v376 = vsub.f32 %v354, %v121
        %v377 = vsub.f32 %v356, %v122
        %v378 = vsub.f32 %v358, %v123
        %v379 = vsub.f32 %v360, %v124
        %v380 = vsub.f32 %v362, %v125
        %v381 = vsub.f32 %v364, %v126
        %v382 = vsub.f32 %v366, %v127
        %v383 = vsub.f32 %v368, %v128
        %v384 = vsub.f32 %v370, %v129
        %v385 = vsub.f32 %v372, %v130
        %v386 = vsub.f32 %v374, %v131
        %v387 = vadd.f32 %v315, %v375
        %v388 = vadd.f32 %v316, %v376
        %v389 = vadd.f32 %v317, %v377
        %v390 = vadd.f32 %v318, %v378
        %v391 = vadd.f32 %v319, %v379
        %v392 = vadd.f32 %v320, %v380
        %v393 = vadd.f32 %v321, %v381
        %v394 = vadd.f32 %v322, %v382
        %v395 = vadd.f32 %v323, %v383
        %v396 = vadd.f32 %v324, %v384
        %v397 = vadd.f32 %v325, %v385
        %v398 = vadd.f32 %v326, %v386
        %v399 = vmul.f32 %v375, %v375
        %v400 = vmul.f32 %v376, %v376
        %v401 = vmul.f32 %v377, %v377
        %v402 = vmul.f32 %v378, %v378
        %v403 = vmul.f32 %v379, %v379
        %v404 = vmul.f32 %v380, %v380
        %v405 = vmul.f32 %v381, %v381
        %v406 = vmul.f32 %v382, %v382
        %v407 = vmul.f32 %v383, %v383
        %v408 = vmul.f32 %v384, %v384
        %v409 = vmul.f32 %v385, %v385
        %v410 = vmul.f32 %v386, %v386
        %v411 = vadd.f32 %v339, %v399
        %v412 = vadd.f32 %v340, %v400
        %v413 = vadd.f32 %v341, %v401
        %v414 = vadd.f32 %v342, %v402
        %v415 = vadd.f32 %v343, %v403
        %v416 = vadd.f32 %v344, %v404
        %v417 = vadd.f32 %v345, %v405
        %v418 = vadd.f32 %v346, %v406
        %v419 = vadd.f32 %v347, %v407
        %v420 = vadd.f32 %v348, %v408
        %v421 = vadd.f32 %v349, %v409
        %v422 = vadd.f32 %v350, %v410
        %423 = vrot.lane.b32.xlu0 %v120, 1
        %v424 = vpop.permute.xlu0 %423
        %425 = vrot.lane.b32.xlu0 %v121, 1
        %v426 = vpop.permute.xlu0 %425
        %427 = vrot.lane.b32.xlu0 %v122, 1
        %v428 = vpop.permute.xlu0 %427
        %429 = vrot.lane.b32.xlu0 %v123, 1
        %v430 = vpop.permute.xlu0 %429
        %431 = vrot.lane.b32.xlu0 %v124, 1
        %v432 = vpop.permute.xlu0 %431
        %433 = vrot.lane.b32.xlu0 %v125, 1
        %v434 = vpop.permute.xlu0 %433
        %435 = vrot.lane.b32.xlu0 %v126, 1
        %v436 = vpop.permute.xlu0 %435
        %437 = vrot.lane.b32.xlu0 %v127, 1
        %v438 = vpop.permute.xlu0 %437
        %439 = vrot.lane.b32.xlu0 %v128, 1
        %v440 = vpop.permute.xlu0 %439
        %441 = vrot.lane.b32.xlu0 %v129, 1
        %v442 = vpop.permute.xlu0 %441
        %443 = vrot.lane.b32.xlu0 %v130, 1
        %v444 = vpop.permute.xlu0 %443
        %445 = vrot.lane.b32.xlu0 %v131, 1
        %v446 = vpop.permute.xlu0 %445
        %448 = vset.pattern.permute.xlu0 0
        %449 = vperm.xlu0 %448, %v120
        %v450 = vpop.permute.xlu0 %449
        %453 = vset.pattern.permute.xlu0 0
        %454 = vperm.xlu0 %453, %v121
        %v455 = vpop.permute.xlu0 %454
        %458 = vset.pattern.permute.xlu0 0
        %459 = vperm.xlu0 %458, %v122
        %v460 = vpop.permute.xlu0 %459
        %463 = vset.pattern.permute.xlu0 0
        %464 = vperm.xlu0 %463, %v123
        %v465 = vpop.permute.xlu0 %464
        %468 = vset.pattern.permute.xlu0 0
        %469 = vperm.xlu0 %468, %v124
        %v470 = vpop.permute.xlu0 %469
        %473 = vset.pattern.permute.xlu0 0
        %474 = vperm.xlu0 %473, %v125
        %v475 = vpop.permute.xlu0 %474
        %478 = vset.pattern.permute.xlu0 0
        %479 = vperm.xlu0 %478, %v126
        %v480 = vpop.permute.xlu0 %479
        %483 = vset.pattern.permute.xlu0 0
        %484 = vperm.xlu0 %483, %v127
        %v485 = vpop.permute.xlu0 %484
        %488 = vset.pattern.permute.xlu0 0
        %489 = vperm.xlu0 %488, %v128
        %v490 = vpop.permute.xlu0 %489
        %493 = vset.pattern.permute.xlu0 0
        %494 = vperm.xlu0 %493, %v129
        %v495 = vpop.permute.xlu0 %494
        %498 = vset.pattern.permute.xlu0 0
        %499 = vperm.xlu0 %498, %v130
        %v500 = vpop.permute.xlu0 %499
        %503 = vset.pattern.permute.xlu0 0
        %504 = vperm.xlu0 %503, %v131
        %v505 = vpop.permute.xlu0 %504
        %v507 = vsel %vm182, %v450, %v424
        %v508 = vsel %vm182, %v455, %v426
        %v509 = vsel %vm182, %v460, %v428
        %v510 = vsel %vm182, %v465, %v430
        %v511 = vsel %vm182, %v470, %v432
        %v512 = vsel %vm182, %v475, %v434
        %v513 = vsel %vm182, %v480, %v436
        %v514 = vsel %vm182, %v485, %v438
        %v515 = vsel %vm182, %v490, %v440
        %v516 = vsel %vm182, %v495, %v442
        %v517 = vsel %vm182, %v500, %v444
        %v518 = vsel %vm182, %v505, %v446
        %v519 = vsub.f32 %v507, %v120
        %v520 = vsub.f32 %v508, %v121
        %v521 = vsub.f32 %v509, %v122
        %v522 = vsub.f32 %v510, %v123
        %v523 = vsub.f32 %v511, %v124
        %v524 = vsub.f32 %v512, %v125
        %v525 = vsub.f32 %v513, %v126
        %v526 = vsub.f32 %v514, %v127
        %v527 = vsub.f32 %v515, %v128
        %v528 = vsub.f32 %v516, %v129
        %v529 = vsub.f32 %v517, %v130
        %v530 = vsub.f32 %v518, %v131
        %v531 = vadd.f32 %v387, %v519
        %v532 = vadd.f32 %v388, %v520
        %v533 = vadd.f32 %v389, %v521
        %v534 = vadd.f32 %v390, %v522
        %v535 = vadd.f32 %v391, %v523
        %v536 = vadd.f32 %v392, %v524
        %v537 = vadd.f32 %v393, %v525
        %v538 = vadd.f32 %v394, %v526
        %v539 = vadd.f32 %v395, %v527
        %v540 = vadd.f32 %v396, %v528
        %v541 = vadd.f32 %v397, %v529
        %v542 = vadd.f32 %v398, %v530
        %v543 = vmul.f32 %v519, %v519
        %v544 = vmul.f32 %v520, %v520
        %v545 = vmul.f32 %v521, %v521
        %v546 = vmul.f32 %v522, %v522
        %v547 = vmul.f32 %v523, %v523
        %v548 = vmul.f32 %v524, %v524
        %v549 = vmul.f32 %v525, %v525
        %v550 = vmul.f32 %v526, %v526
        %v551 = vmul.f32 %v527, %v527
        %v552 = vmul.f32 %v528, %v528
        %v553 = vmul.f32 %v529, %v529
        %v554 = vmul.f32 %v530, %v530
        %v555 = vadd.f32 %v411, %v543
        %v556 = vadd.f32 %v412, %v544
        %v557 = vadd.f32 %v413, %v545
        %v558 = vadd.f32 %v414, %v546
        %v559 = vadd.f32 %v415, %v547
        %v560 = vadd.f32 %v416, %v548
        %v561 = vadd.f32 %v417, %v549
        %v562 = vadd.f32 %v418, %v550
        %v563 = vadd.f32 %v419, %v551
        %v564 = vadd.f32 %v420, %v552
        %v565 = vadd.f32 %v421, %v553
        %v566 = vadd.f32 %v422, %v554
        %567 = vrot.lane.b32.xlu0 %v120, 127
        %v568 = vpop.permute.xlu0 %567
        %569 = vrot.lane.b32.xlu0 %v121, 127
        %v570 = vpop.permute.xlu0 %569
        %571 = vrot.lane.b32.xlu0 %v122, 127
        %v572 = vpop.permute.xlu0 %571
        %573 = vrot.lane.b32.xlu0 %v123, 127
        %v574 = vpop.permute.xlu0 %573
        %575 = vrot.lane.b32.xlu0 %v124, 127
        %v576 = vpop.permute.xlu0 %575
        %577 = vrot.lane.b32.xlu0 %v125, 127
        %v578 = vpop.permute.xlu0 %577
        %579 = vrot.lane.b32.xlu0 %v126, 127
        %v580 = vpop.permute.xlu0 %579
        %581 = vrot.lane.b32.xlu0 %v127, 127
        %v582 = vpop.permute.xlu0 %581
        %583 = vrot.lane.b32.xlu0 %v128, 127
        %v584 = vpop.permute.xlu0 %583
        %585 = vrot.lane.b32.xlu0 %v129, 127
        %v586 = vpop.permute.xlu0 %585
        %587 = vrot.lane.b32.xlu0 %v130, 127
        %v588 = vpop.permute.xlu0 %587
        %589 = vrot.lane.b32.xlu0 %v131, 127
        %v590 = vpop.permute.xlu0 %589
        %v591 = vsub.f32 %v568, %v120
        %v592 = vsub.f32 %v570, %v121
        %v593 = vsub.f32 %v572, %v122
        %v594 = vsub.f32 %v574, %v123
        %v595 = vsub.f32 %v576, %v124
        %v596 = vsub.f32 %v578, %v125
        %v597 = vsub.f32 %v580, %v126
        %v598 = vsub.f32 %v582, %v127
        %v599 = vsub.f32 %v584, %v128
        %v600 = vsub.f32 %v586, %v129
        %v601 = vsub.f32 %v588, %v130
        %v602 = vsub.f32 %v590, %v131
        %v603 = vadd.f32 %v531, %v591
        %v604 = vadd.f32 %v532, %v592
        %v605 = vadd.f32 %v533, %v593
        %v606 = vadd.f32 %v534, %v594
        %v607 = vadd.f32 %v535, %v595
        %v608 = vadd.f32 %v536, %v596
        %v609 = vadd.f32 %v537, %v597
        %v610 = vadd.f32 %v538, %v598
        %v611 = vadd.f32 %v539, %v599
        %v612 = vadd.f32 %v540, %v600
        %v613 = vadd.f32 %v541, %v601
        %v614 = vadd.f32 %v542, %v602
        %v615 = vmul.f32 %v591, %v591
        %v616 = vmul.f32 %v592, %v592
        %v617 = vmul.f32 %v593, %v593
        %v618 = vmul.f32 %v594, %v594
        %v619 = vmul.f32 %v595, %v595
        %v620 = vmul.f32 %v596, %v596
        %v621 = vmul.f32 %v597, %v597
        %v622 = vmul.f32 %v598, %v598
        %v623 = vmul.f32 %v599, %v599
        %v624 = vmul.f32 %v600, %v600
        %v625 = vmul.f32 %v601, %v601
        %v626 = vmul.f32 %v602, %v602
        %v627 = vadd.f32 %v555, %v615
        %v628 = vadd.f32 %v556, %v616
        %v629 = vadd.f32 %v557, %v617
        %v630 = vadd.f32 %v558, %v618
        %v631 = vadd.f32 %v559, %v619
        %v632 = vadd.f32 %v560, %v620
        %v633 = vadd.f32 %v561, %v621
        %v634 = vadd.f32 %v562, %v622
        %v635 = vadd.f32 %v563, %v623
        %v636 = vadd.f32 %v564, %v624
        %v637 = vadd.f32 %v565, %v625
        %v638 = vadd.f32 %v566, %v626
        %v639 = vrot.slane %v120, 1
        %v640 = vrot.slane %v124, 1
        %v641 = vrot.slane %v128, 1
        %v642 = vrot.slane %v121, 1
        %v643 = vrot.slane %v125, 1
        %v644 = vrot.slane %v129, 1
        %v645 = vrot.slane %v122, 1
        %v646 = vrot.slane %v126, 1
        %v647 = vrot.slane %v130, 1
        %v648 = vrot.slane %v123, 1
        %v649 = vrot.slane %v127, 1
        %v650 = vrot.slane %v131, 1
        %vm651 = vcmp.lt.s32.totalorder %v100, 7
        %v652 = vsel %vm651, %v645, %v648
        %v653 = vsel %vm651, %v646, %v649
        %v654 = vsel %vm651, %v647, %v650
        %v655 = vsel %vm651, %v642, %v645
        %v656 = vsel %vm651, %v643, %v646
        %v657 = vsel %vm651, %v644, %v647
        %v658 = vsel %vm651, %v639, %v642
        %v659 = vsel %vm651, %v640, %v643
        %v660 = vsel %vm651, %v641, %v644
        %v661 = vsel %vm651, %v648, %v639
        %v662 = vsel %vm651, %v649, %v640
        %v663 = vsel %vm651, %v650, %v641
        %664 = vrot.lane.b32.xlu0 %v658, 1
        %v665 = vpop.permute.xlu0 %664
        %666 = vrot.lane.b32.xlu0 %v655, 1
        %v667 = vpop.permute.xlu0 %666
        %668 = vrot.lane.b32.xlu0 %v652, 1
        %v669 = vpop.permute.xlu0 %668
        %670 = vrot.lane.b32.xlu0 %v661, 1
        %v671 = vpop.permute.xlu0 %670
        %672 = vrot.lane.b32.xlu0 %v659, 1
        %v673 = vpop.permute.xlu0 %672
        %674 = vrot.lane.b32.xlu0 %v656, 1
        %v675 = vpop.permute.xlu0 %674
        %676 = vrot.lane.b32.xlu0 %v653, 1
        %v677 = vpop.permute.xlu0 %676
        %678 = vrot.lane.b32.xlu0 %v662, 1
        %v679 = vpop.permute.xlu0 %678
        %680 = vrot.lane.b32.xlu0 %v660, 1
        %v681 = vpop.permute.xlu0 %680
        %682 = vrot.lane.b32.xlu0 %v657, 1
        %v683 = vpop.permute.xlu0 %682
        %684 = vrot.lane.b32.xlu0 %v654, 1
        %v685 = vpop.permute.xlu0 %684
        %686 = vrot.lane.b32.xlu0 %v663, 1
        %v687 = vpop.permute.xlu0 %686
        %689 = vset.pattern.permute.xlu0 0
        %690 = vperm.xlu0 %689, %v658
        %v691 = vpop.permute.xlu0 %690
        %694 = vset.pattern.permute.xlu0 0
        %695 = vperm.xlu0 %694, %v655
        %v696 = vpop.permute.xlu0 %695
        %699 = vset.pattern.permute.xlu0 0
        %700 = vperm.xlu0 %699, %v652
        %v701 = vpop.permute.xlu0 %700
        %704 = vset.pattern.permute.xlu0 0
        %705 = vperm.xlu0 %704, %v661
        %v706 = vpop.permute.xlu0 %705
        %709 = vset.pattern.permute.xlu0 0
        %710 = vperm.xlu0 %709, %v659
        %v711 = vpop.permute.xlu0 %710
        %714 = vset.pattern.permute.xlu0 0
        %715 = vperm.xlu0 %714, %v656
        %v716 = vpop.permute.xlu0 %715
        %719 = vset.pattern.permute.xlu0 0
        %720 = vperm.xlu0 %719, %v653
        %v721 = vpop.permute.xlu0 %720
        %724 = vset.pattern.permute.xlu0 0
        %725 = vperm.xlu0 %724, %v662
        %v726 = vpop.permute.xlu0 %725
        %729 = vset.pattern.permute.xlu0 0
        %730 = vperm.xlu0 %729, %v660
        %v731 = vpop.permute.xlu0 %730
        %734 = vset.pattern.permute.xlu0 0
        %735 = vperm.xlu0 %734, %v657
        %v736 = vpop.permute.xlu0 %735
        %739 = vset.pattern.permute.xlu0 0
        %740 = vperm.xlu0 %739, %v654
        %v741 = vpop.permute.xlu0 %740
        %744 = vset.pattern.permute.xlu0 0
        %745 = vperm.xlu0 %744, %v663
        %v746 = vpop.permute.xlu0 %745
        %v748 = vsel %vm182, %v691, %v665
        %v749 = vsel %vm182, %v696, %v667
        %v750 = vsel %vm182, %v701, %v669
        %v751 = vsel %vm182, %v706, %v671
        %v752 = vsel %vm182, %v711, %v673
        %v753 = vsel %vm182, %v716, %v675
        %v754 = vsel %vm182, %v721, %v677
        %v755 = vsel %vm182, %v726, %v679
        %v756 = vsel %vm182, %v731, %v681
        %v757 = vsel %vm182, %v736, %v683
        %v758 = vsel %vm182, %v741, %v685
        %v759 = vsel %vm182, %v746, %v687
        %v760 = vsub.f32 %v748, %v120
        %v761 = vsub.f32 %v749, %v121
        %v762 = vsub.f32 %v750, %v122
        %v763 = vsub.f32 %v751, %v123
        %v764 = vsub.f32 %v752, %v124
        %v765 = vsub.f32 %v753, %v125
        %v766 = vsub.f32 %v754, %v126
        %v767 = vsub.f32 %v755, %v127
        %v768 = vsub.f32 %v756, %v128
        %v769 = vsub.f32 %v757, %v129
        %v770 = vsub.f32 %v758, %v130
        %v771 = vsub.f32 %v759, %v131
        %v772 = vadd.f32 %v603, %v760
        %v773 = vadd.f32 %v604, %v761
        %v774 = vadd.f32 %v605, %v762
        %v775 = vadd.f32 %v606, %v763
        %v776 = vadd.f32 %v607, %v764
        %v777 = vadd.f32 %v608, %v765
        %v778 = vadd.f32 %v609, %v766
        %v779 = vadd.f32 %v610, %v767
        %v780 = vadd.f32 %v611, %v768
        %v781 = vadd.f32 %v612, %v769
        %v782 = vadd.f32 %v613, %v770
        %v783 = vadd.f32 %v614, %v771
        %v784 = vmul.f32 %v760, %v760
        %v785 = vmul.f32 %v761, %v761
        %v786 = vmul.f32 %v762, %v762
        %v787 = vmul.f32 %v763, %v763
        %v788 = vmul.f32 %v764, %v764
        %v789 = vmul.f32 %v765, %v765
        %v790 = vmul.f32 %v766, %v766
        %v791 = vmul.f32 %v767, %v767
        %v792 = vmul.f32 %v768, %v768
        %v793 = vmul.f32 %v769, %v769
        %v794 = vmul.f32 %v770, %v770
        %v795 = vmul.f32 %v771, %v771
        %v796 = vadd.f32 %v627, %v784
        %v797 = vadd.f32 %v628, %v785
        %v798 = vadd.f32 %v629, %v786
        %v799 = vadd.f32 %v630, %v787
        %v800 = vadd.f32 %v631, %v788
        %v801 = vadd.f32 %v632, %v789
        %v802 = vadd.f32 %v633, %v790
        %v803 = vadd.f32 %v634, %v791
        %v804 = vadd.f32 %v635, %v792
        %v805 = vadd.f32 %v636, %v793
        %v806 = vadd.f32 %v637, %v794
        %v807 = vadd.f32 %v638, %v795
        %v808 = vsub.f32 %v658, %v120
        %v809 = vsub.f32 %v655, %v121
        %v810 = vsub.f32 %v652, %v122
        %v811 = vsub.f32 %v661, %v123
        %v812 = vsub.f32 %v659, %v124
        %v813 = vsub.f32 %v656, %v125
        %v814 = vsub.f32 %v653, %v126
        %v815 = vsub.f32 %v662, %v127
        %v816 = vsub.f32 %v660, %v128
        %v817 = vsub.f32 %v657, %v129
        %v818 = vsub.f32 %v654, %v130
        %v819 = vsub.f32 %v663, %v131
        %v820 = vadd.f32 %v772, %v808
        %v821 = vadd.f32 %v773, %v809
        %v822 = vadd.f32 %v774, %v810
        %v823 = vadd.f32 %v775, %v811
        %v824 = vadd.f32 %v776, %v812
        %v825 = vadd.f32 %v777, %v813
        %v826 = vadd.f32 %v778, %v814
        %v827 = vadd.f32 %v779, %v815
        %v828 = vadd.f32 %v780, %v816
        %v829 = vadd.f32 %v781, %v817
        %v830 = vadd.f32 %v782, %v818
        %v831 = vadd.f32 %v783, %v819
        %v832 = vmul.f32 %v808, %v808
        %v833 = vmul.f32 %v809, %v809
        %v834 = vmul.f32 %v810, %v810
        %v835 = vmul.f32 %v811, %v811
        %v836 = vmul.f32 %v812, %v812
        %v837 = vmul.f32 %v813, %v813
        %v838 = vmul.f32 %v814, %v814
        %v839 = vmul.f32 %v815, %v815
        %v840 = vmul.f32 %v816, %v816
        %v841 = vmul.f32 %v817, %v817
        %v842 = vmul.f32 %v818, %v818
        %v843 = vmul.f32 %v819, %v819
        %v844 = vadd.f32 %v796, %v832
        %v845 = vadd.f32 %v797, %v833
        %v846 = vadd.f32 %v798, %v834
        %v847 = vadd.f32 %v799, %v835
        %v848 = vadd.f32 %v800, %v836
        %v849 = vadd.f32 %v801, %v837
        %v850 = vadd.f32 %v802, %v838
        %v851 = vadd.f32 %v803, %v839
        %v852 = vadd.f32 %v804, %v840
        %v853 = vadd.f32 %v805, %v841
        %v854 = vadd.f32 %v806, %v842
        %v855 = vadd.f32 %v807, %v843
        %856 = vrot.lane.b32.xlu0 %v658, 127
        %v857 = vpop.permute.xlu0 %856
        %858 = vrot.lane.b32.xlu0 %v655, 127
        %v859 = vpop.permute.xlu0 %858
        %860 = vrot.lane.b32.xlu0 %v652, 127
        %v861 = vpop.permute.xlu0 %860
        %862 = vrot.lane.b32.xlu0 %v661, 127
        %v863 = vpop.permute.xlu0 %862
        %864 = vrot.lane.b32.xlu0 %v659, 127
        %v865 = vpop.permute.xlu0 %864
        %866 = vrot.lane.b32.xlu0 %v656, 127
        %v867 = vpop.permute.xlu0 %866
        %868 = vrot.lane.b32.xlu0 %v653, 127
        %v869 = vpop.permute.xlu0 %868
        %870 = vrot.lane.b32.xlu0 %v662, 127
        %v871 = vpop.permute.xlu0 %870
        %872 = vrot.lane.b32.xlu0 %v660, 127
        %v873 = vpop.permute.xlu0 %872
        %874 = vrot.lane.b32.xlu0 %v657, 127
        %v875 = vpop.permute.xlu0 %874
        %876 = vrot.lane.b32.xlu0 %v654, 127
        %v877 = vpop.permute.xlu0 %876
        %878 = vrot.lane.b32.xlu0 %v663, 127
        %v879 = vpop.permute.xlu0 %878
        %v880 = vsub.f32 %v857, %v120
        %v881 = vsub.f32 %v859, %v121
        %v882 = vsub.f32 %v861, %v122
        %v883 = vsub.f32 %v863, %v123
        %v884 = vsub.f32 %v865, %v124
        %v885 = vsub.f32 %v867, %v125
        %v886 = vsub.f32 %v869, %v126
        %v887 = vsub.f32 %v871, %v127
        %v888 = vsub.f32 %v873, %v128
        %v889 = vsub.f32 %v875, %v129
        %v890 = vsub.f32 %v877, %v130
        %v891 = vsub.f32 %v879, %v131
        %v892 = vadd.f32 %v820, %v880
        %v893 = vadd.f32 %v821, %v881
        %v894 = vadd.f32 %v822, %v882
        %v895 = vadd.f32 %v823, %v883
        %v896 = vadd.f32 %v824, %v884
        %v897 = vadd.f32 %v825, %v885
        %v898 = vadd.f32 %v826, %v886
        %v899 = vadd.f32 %v827, %v887
        %v900 = vadd.f32 %v828, %v888
        %v901 = vadd.f32 %v829, %v889
        %v902 = vadd.f32 %v830, %v890
        %v903 = vadd.f32 %v831, %v891
        %v904 = vmul.f32 %v880, %v880
        %v905 = vmul.f32 %v881, %v881
        %v906 = vmul.f32 %v882, %v882
        %v907 = vmul.f32 %v883, %v883
        %v908 = vmul.f32 %v884, %v884
        %v909 = vmul.f32 %v885, %v885
        %v910 = vmul.f32 %v886, %v886
        %v911 = vmul.f32 %v887, %v887
        %v912 = vmul.f32 %v888, %v888
        %v913 = vmul.f32 %v889, %v889
        %v914 = vmul.f32 %v890, %v890
        %v915 = vmul.f32 %v891, %v891
        %v916 = vadd.f32 %v844, %v904
        %v917 = vadd.f32 %v845, %v905
        %v918 = vadd.f32 %v846, %v906
        %v919 = vadd.f32 %v847, %v907
        %v920 = vadd.f32 %v848, %v908
        %v921 = vadd.f32 %v849, %v909
        %v922 = vadd.f32 %v850, %v910
        %v923 = vadd.f32 %v851, %v911
        %v924 = vadd.f32 %v852, %v912
        %v925 = vadd.f32 %v853, %v913
        %v926 = vadd.f32 %v854, %v914
        %v927 = vadd.f32 %v855, %v915
        %v928 = vrot.slane %v120, 6
        %v929 = vrot.slane %v124, 6
        %v930 = vrot.slane %v128, 6
        %v931 = vrot.slane %v121, 6
        %v932 = vrot.slane %v125, 6
        %v933 = vrot.slane %v129, 6
        %v934 = vrot.slane %v122, 6
        %v935 = vrot.slane %v126, 6
        %v936 = vrot.slane %v130, 6
        %v937 = vrot.slane %v123, 6
        %v938 = vrot.slane %v127, 6
        %v939 = vrot.slane %v131, 6
        %vm940 = vcmp.lt.s32.totalorder %v100, 2
        %v941 = vsel %vm940, %v934, %v937
        %v942 = vsel %vm940, %v935, %v938
        %v943 = vsel %vm940, %v936, %v939
        %v944 = vsel %vm940, %v931, %v934
        %v945 = vsel %vm940, %v932, %v935
        %v946 = vsel %vm940, %v933, %v936
        %v947 = vsel %vm940, %v928, %v931
        %v948 = vsel %vm940, %v929, %v932
        %v949 = vsel %vm940, %v930, %v933
        %v950 = vsel %vm940, %v937, %v928
        %v951 = vsel %vm940, %v938, %v929
        %v952 = vsel %vm940, %v939, %v930
        %953 = vrot.lane.b32.xlu0 %v950, 2
        %v954 = vpop.permute.xlu0 %953
        %955 = vrot.lane.b32.xlu0 %v947, 2
        %v956 = vpop.permute.xlu0 %955
        %957 = vrot.lane.b32.xlu0 %v944, 2
        %v958 = vpop.permute.xlu0 %957
        %959 = vrot.lane.b32.xlu0 %v941, 2
        %v960 = vpop.permute.xlu0 %959
        %961 = vrot.lane.b32.xlu0 %v951, 2
        %v962 = vpop.permute.xlu0 %961
        %963 = vrot.lane.b32.xlu0 %v948, 2
        %v964 = vpop.permute.xlu0 %963
        %965 = vrot.lane.b32.xlu0 %v945, 2
        %v966 = vpop.permute.xlu0 %965
        %967 = vrot.lane.b32.xlu0 %v942, 2
        %v968 = vpop.permute.xlu0 %967
        %969 = vrot.lane.b32.xlu0 %v952, 2
        %v970 = vpop.permute.xlu0 %969
        %971 = vrot.lane.b32.xlu0 %v949, 2
        %v972 = vpop.permute.xlu0 %971
        %973 = vrot.lane.b32.xlu0 %v946, 2
        %v974 = vpop.permute.xlu0 %973
        %975 = vrot.lane.b32.xlu0 %v943, 2
        %v976 = vpop.permute.xlu0 %975
        %v977 = vsel %vm119, 1, 0
        %vm978 = vcmp.eq.s32.totalorder %v977, 1
        %980 = vset.pattern.permute.xlu0 0
        %981 = vperm.xlu0 %980, %v950
        %v982 = vpop.permute.xlu0 %981
        %985 = vset.pattern.permute.xlu0 0
        %986 = vperm.xlu0 %985, %v947
        %v987 = vpop.permute.xlu0 %986
        %990 = vset.pattern.permute.xlu0 0
        %991 = vperm.xlu0 %990, %v944
        %v992 = vpop.permute.xlu0 %991
        %995 = vset.pattern.permute.xlu0 0
        %996 = vperm.xlu0 %995, %v941
        %v997 = vpop.permute.xlu0 %996
        %1000 = vset.pattern.permute.xlu0 0
        %1001 = vperm.xlu0 %1000, %v951
        %v1002 = vpop.permute.xlu0 %1001
        %1005 = vset.pattern.permute.xlu0 0
        %1006 = vperm.xlu0 %1005, %v948
        %v1007 = vpop.permute.xlu0 %1006
        %1010 = vset.pattern.permute.xlu0 0
        %1011 = vperm.xlu0 %1010, %v945
        %v1012 = vpop.permute.xlu0 %1011
        %1015 = vset.pattern.permute.xlu0 0
        %1016 = vperm.xlu0 %1015, %v942
        %v1017 = vpop.permute.xlu0 %1016
        %1020 = vset.pattern.permute.xlu0 0
        %1021 = vperm.xlu0 %1020, %v952
        %v1022 = vpop.permute.xlu0 %1021
        %1025 = vset.pattern.permute.xlu0 0
        %1026 = vperm.xlu0 %1025, %v949
        %v1027 = vpop.permute.xlu0 %1026
        %1030 = vset.pattern.permute.xlu0 0
        %1031 = vperm.xlu0 %1030, %v946
        %v1032 = vpop.permute.xlu0 %1031
        %1035 = vset.pattern.permute.xlu0 0
        %1036 = vperm.xlu0 %1035, %v943
        %v1037 = vpop.permute.xlu0 %1036
        %v1039 = vsel %vm978, %v982, %v954
        %v1040 = vsel %vm978, %v987, %v956
        %v1041 = vsel %vm978, %v992, %v958
        %v1042 = vsel %vm978, %v997, %v960
        %v1043 = vsel %vm978, %v1002, %v962
        %v1044 = vsel %vm978, %v1007, %v964
        %v1045 = vsel %vm978, %v1012, %v966
        %v1046 = vsel %vm978, %v1017, %v968
        %v1047 = vsel %vm978, %v1022, %v970
        %v1048 = vsel %vm978, %v1027, %v972
        %v1049 = vsel %vm978, %v1032, %v974
        %v1050 = vsel %vm978, %v1037, %v976
        %v1051 = vsub.f32 %v1039, %v120
        %v1052 = vsub.f32 %v1040, %v121
        %v1053 = vsub.f32 %v1041, %v122
        %v1054 = vsub.f32 %v1042, %v123
        %v1055 = vsub.f32 %v1043, %v124
        %v1056 = vsub.f32 %v1044, %v125
        %v1057 = vsub.f32 %v1045, %v126
        %v1058 = vsub.f32 %v1046, %v127
        %v1059 = vsub.f32 %v1047, %v128
        %v1060 = vsub.f32 %v1048, %v129
        %v1061 = vsub.f32 %v1049, %v130
        %v1062 = vsub.f32 %v1050, %v131
        %v1063 = vadd.f32 %v892, %v1051
        %v1064 = vadd.f32 %v893, %v1052
        %v1065 = vadd.f32 %v894, %v1053
        %v1066 = vadd.f32 %v895, %v1054
        %v1067 = vadd.f32 %v896, %v1055
        %v1068 = vadd.f32 %v897, %v1056
        %v1069 = vadd.f32 %v898, %v1057
        %v1070 = vadd.f32 %v899, %v1058
        %v1071 = vadd.f32 %v900, %v1059
        %v1072 = vadd.f32 %v901, %v1060
        %v1073 = vadd.f32 %v902, %v1061
        %v1074 = vadd.f32 %v903, %v1062
        %v1075 = vmul.f32 %v1051, %v1051
        %v1076 = vmul.f32 %v1052, %v1052
        %v1077 = vmul.f32 %v1053, %v1053
        %v1078 = vmul.f32 %v1054, %v1054
        %v1079 = vmul.f32 %v1055, %v1055
        %v1080 = vmul.f32 %v1056, %v1056
        %v1081 = vmul.f32 %v1057, %v1057
        %v1082 = vmul.f32 %v1058, %v1058
        %v1083 = vmul.f32 %v1059, %v1059
        %v1084 = vmul.f32 %v1060, %v1060
        %v1085 = vmul.f32 %v1061, %v1061
        %v1086 = vmul.f32 %v1062, %v1062
        %v1087 = vadd.f32 %v916, %v1075
        %v1088 = vadd.f32 %v917, %v1076
        %v1089 = vadd.f32 %v918, %v1077
        %v1090 = vadd.f32 %v919, %v1078
        %v1091 = vadd.f32 %v920, %v1079
        %v1092 = vadd.f32 %v921, %v1080
        %v1093 = vadd.f32 %v922, %v1081
        %v1094 = vadd.f32 %v923, %v1082
        %v1095 = vadd.f32 %v924, %v1083
        %v1096 = vadd.f32 %v925, %v1084
        %v1097 = vadd.f32 %v926, %v1085
        %v1098 = vadd.f32 %v927, %v1086
        %v1099 = vsub.f32 %v950, %v120
        %v1100 = vsub.f32 %v947, %v121
        %v1101 = vsub.f32 %v944, %v122
        %v1102 = vsub.f32 %v941, %v123
        %v1103 = vsub.f32 %v951, %v124
        %v1104 = vsub.f32 %v948, %v125
        %v1105 = vsub.f32 %v945, %v126
        %v1106 = vsub.f32 %v942, %v127
        %v1107 = vsub.f32 %v952, %v128
        %v1108 = vsub.f32 %v949, %v129
        %v1109 = vsub.f32 %v946, %v130
        %v1110 = vsub.f32 %v943, %v131
        %v1111 = vadd.f32 %v1063, %v1099
        %v1112 = vadd.f32 %v1064, %v1100
        %v1113 = vadd.f32 %v1065, %v1101
        %v1114 = vadd.f32 %v1066, %v1102
        %v1115 = vadd.f32 %v1067, %v1103
        %v1116 = vadd.f32 %v1068, %v1104
        %v1117 = vadd.f32 %v1069, %v1105
        %v1118 = vadd.f32 %v1070, %v1106
        %v1119 = vadd.f32 %v1071, %v1107
        %v1120 = vadd.f32 %v1072, %v1108
        %v1121 = vadd.f32 %v1073, %v1109
        %v1122 = vadd.f32 %v1074, %v1110
        %v1123 = vmul.f32 %v1099, %v1099
        %v1124 = vmul.f32 %v1100, %v1100
        %v1125 = vmul.f32 %v1101, %v1101
        %v1126 = vmul.f32 %v1102, %v1102
        %v1127 = vmul.f32 %v1103, %v1103
        %v1128 = vmul.f32 %v1104, %v1104
        %v1129 = vmul.f32 %v1105, %v1105
        %v1130 = vmul.f32 %v1106, %v1106
        %v1131 = vmul.f32 %v1107, %v1107
        %v1132 = vmul.f32 %v1108, %v1108
        %v1133 = vmul.f32 %v1109, %v1109
        %v1134 = vmul.f32 %v1110, %v1110
        %v1135 = vadd.f32 %v1087, %v1123
        %v1136 = vadd.f32 %v1088, %v1124
        %v1137 = vadd.f32 %v1089, %v1125
        %v1138 = vadd.f32 %v1090, %v1126
        %v1139 = vadd.f32 %v1091, %v1127
        %v1140 = vadd.f32 %v1092, %v1128
        %v1141 = vadd.f32 %v1093, %v1129
        %v1142 = vadd.f32 %v1094, %v1130
        %v1143 = vadd.f32 %v1095, %v1131
        %v1144 = vadd.f32 %v1096, %v1132
        %v1145 = vadd.f32 %v1097, %v1133
        %v1146 = vadd.f32 %v1098, %v1134
        %1147 = vrot.lane.b32.xlu0 %v950, 126
        %v1148 = vpop.permute.xlu0 %1147
        %1149 = vrot.lane.b32.xlu0 %v947, 126
        %v1150 = vpop.permute.xlu0 %1149
        %1151 = vrot.lane.b32.xlu0 %v944, 126
        %v1152 = vpop.permute.xlu0 %1151
        %1153 = vrot.lane.b32.xlu0 %v941, 126
        %v1154 = vpop.permute.xlu0 %1153
        %1155 = vrot.lane.b32.xlu0 %v951, 126
        %v1156 = vpop.permute.xlu0 %1155
        %1157 = vrot.lane.b32.xlu0 %v948, 126
        %v1158 = vpop.permute.xlu0 %1157
        %1159 = vrot.lane.b32.xlu0 %v945, 126
        %v1160 = vpop.permute.xlu0 %1159
        %1161 = vrot.lane.b32.xlu0 %v942, 126
        %v1162 = vpop.permute.xlu0 %1161
        %1163 = vrot.lane.b32.xlu0 %v952, 126
        %v1164 = vpop.permute.xlu0 %1163
        %1165 = vrot.lane.b32.xlu0 %v949, 126
        %v1166 = vpop.permute.xlu0 %1165
        %1167 = vrot.lane.b32.xlu0 %v946, 126
        %v1168 = vpop.permute.xlu0 %1167
        %1169 = vrot.lane.b32.xlu0 %v943, 126
        %v1170 = vpop.permute.xlu0 %1169
        %v1171 = vsub.f32 %v1148, %v120
        %v1172 = vsub.f32 %v1150, %v121
        %v1173 = vsub.f32 %v1152, %v122
        %v1174 = vsub.f32 %v1154, %v123
        %v1175 = vsub.f32 %v1156, %v124
        %v1176 = vsub.f32 %v1158, %v125
        %v1177 = vsub.f32 %v1160, %v126
        %v1178 = vsub.f32 %v1162, %v127
        %v1179 = vsub.f32 %v1164, %v128
        %v1180 = vsub.f32 %v1166, %v129
        %v1181 = vsub.f32 %v1168, %v130
        %v1182 = vsub.f32 %v1170, %v131
        %v1183 = vadd.f32 %v1111, %v1171
        %v1184 = vadd.f32 %v1112, %v1172
        %v1185 = vadd.f32 %v1113, %v1173
        %v1186 = vadd.f32 %v1114, %v1174
        %v1187 = vadd.f32 %v1115, %v1175
        %v1188 = vadd.f32 %v1116, %v1176
        %v1189 = vadd.f32 %v1117, %v1177
        %v1190 = vadd.f32 %v1118, %v1178
        %v1191 = vadd.f32 %v1119, %v1179
        %v1192 = vadd.f32 %v1120, %v1180
        %v1193 = vadd.f32 %v1121, %v1181
        %v1194 = vadd.f32 %v1122, %v1182
        %v1195 = vmul.f32 %v1171, %v1171
        %v1196 = vmul.f32 %v1172, %v1172
        %v1197 = vmul.f32 %v1173, %v1173
        %v1198 = vmul.f32 %v1174, %v1174
        %v1199 = vmul.f32 %v1175, %v1175
        %v1200 = vmul.f32 %v1176, %v1176
        %v1201 = vmul.f32 %v1177, %v1177
        %v1202 = vmul.f32 %v1178, %v1178
        %v1203 = vmul.f32 %v1179, %v1179
        %v1204 = vmul.f32 %v1180, %v1180
        %v1205 = vmul.f32 %v1181, %v1181
        %v1206 = vmul.f32 %v1182, %v1182
        %v1207 = vadd.f32 %v1135, %v1195
        %v1208 = vadd.f32 %v1136, %v1196
        %v1209 = vadd.f32 %v1137, %v1197
        %v1210 = vadd.f32 %v1138, %v1198
        %v1211 = vadd.f32 %v1139, %v1199
        %v1212 = vadd.f32 %v1140, %v1200
        %v1213 = vadd.f32 %v1141, %v1201
        %v1214 = vadd.f32 %v1142, %v1202
        %v1215 = vadd.f32 %v1143, %v1203
        %v1216 = vadd.f32 %v1144, %v1204
        %v1217 = vadd.f32 %v1145, %v1205
        %v1218 = vadd.f32 %v1146, %v1206
        %1219 = vrot.lane.b32.xlu0 %v120, 2
        %v1220 = vpop.permute.xlu0 %1219
        %1221 = vrot.lane.b32.xlu0 %v121, 2
        %v1222 = vpop.permute.xlu0 %1221
        %1223 = vrot.lane.b32.xlu0 %v122, 2
        %v1224 = vpop.permute.xlu0 %1223
        %1225 = vrot.lane.b32.xlu0 %v123, 2
        %v1226 = vpop.permute.xlu0 %1225
        %1227 = vrot.lane.b32.xlu0 %v124, 2
        %v1228 = vpop.permute.xlu0 %1227
        %1229 = vrot.lane.b32.xlu0 %v125, 2
        %v1230 = vpop.permute.xlu0 %1229
        %1231 = vrot.lane.b32.xlu0 %v126, 2
        %v1232 = vpop.permute.xlu0 %1231
        %1233 = vrot.lane.b32.xlu0 %v127, 2
        %v1234 = vpop.permute.xlu0 %1233
        %1235 = vrot.lane.b32.xlu0 %v128, 2
        %v1236 = vpop.permute.xlu0 %1235
        %1237 = vrot.lane.b32.xlu0 %v129, 2
        %v1238 = vpop.permute.xlu0 %1237
        %1239 = vrot.lane.b32.xlu0 %v130, 2
        %v1240 = vpop.permute.xlu0 %1239
        %1241 = vrot.lane.b32.xlu0 %v131, 2
        %v1242 = vpop.permute.xlu0 %1241
        %v1243 = vsel %vm978, %v450, %v1220
        %v1244 = vsel %vm978, %v455, %v1222
        %v1245 = vsel %vm978, %v460, %v1224
        %v1246 = vsel %vm978, %v465, %v1226
        %v1247 = vsel %vm978, %v470, %v1228
        %v1248 = vsel %vm978, %v475, %v1230
        %v1249 = vsel %vm978, %v480, %v1232
        %v1250 = vsel %vm978, %v485, %v1234
        %v1251 = vsel %vm978, %v490, %v1236
        %v1252 = vsel %vm978, %v495, %v1238
        %v1253 = vsel %vm978, %v500, %v1240
        %v1254 = vsel %vm978, %v505, %v1242
        %v1255 = vsub.f32 %v1243, %v120
        %v1256 = vsub.f32 %v1244, %v121
        %v1257 = vsub.f32 %v1245, %v122
        %v1258 = vsub.f32 %v1246, %v123
        %v1259 = vsub.f32 %v1247, %v124
        %v1260 = vsub.f32 %v1248, %v125
        %v1261 = vsub.f32 %v1249, %v126
        %v1262 = vsub.f32 %v1250, %v127
        %v1263 = vsub.f32 %v1251, %v128
        %v1264 = vsub.f32 %v1252, %v129
        %v1265 = vsub.f32 %v1253, %v130
        %v1266 = vsub.f32 %v1254, %v131
        %v1267 = vadd.f32 %v1183, %v1255
        %v1268 = vadd.f32 %v1184, %v1256
        %v1269 = vadd.f32 %v1185, %v1257
        %v1270 = vadd.f32 %v1186, %v1258
        %v1271 = vadd.f32 %v1187, %v1259
        %v1272 = vadd.f32 %v1188, %v1260
        %v1273 = vadd.f32 %v1189, %v1261
        %v1274 = vadd.f32 %v1190, %v1262
        %v1275 = vadd.f32 %v1191, %v1263
        %v1276 = vadd.f32 %v1192, %v1264
        %v1277 = vadd.f32 %v1193, %v1265
        %v1278 = vadd.f32 %v1194, %v1266
        %v1279 = vmul.f32 %v1255, %v1255
        %v1280 = vmul.f32 %v1256, %v1256
        %v1281 = vmul.f32 %v1257, %v1257
        %v1282 = vmul.f32 %v1258, %v1258
        %v1283 = vmul.f32 %v1259, %v1259
        %v1284 = vmul.f32 %v1260, %v1260
        %v1285 = vmul.f32 %v1261, %v1261
        %v1286 = vmul.f32 %v1262, %v1262
        %v1287 = vmul.f32 %v1263, %v1263
        %v1288 = vmul.f32 %v1264, %v1264
        %v1289 = vmul.f32 %v1265, %v1265
        %v1290 = vmul.f32 %v1266, %v1266
        %v1291 = vadd.f32 %v1207, %v1279
        %v1292 = vadd.f32 %v1208, %v1280
        %v1293 = vadd.f32 %v1209, %v1281
        %v1294 = vadd.f32 %v1210, %v1282
        %v1295 = vadd.f32 %v1211, %v1283
        %v1296 = vadd.f32 %v1212, %v1284
        %v1297 = vadd.f32 %v1213, %v1285
        %v1298 = vadd.f32 %v1214, %v1286
        %v1299 = vadd.f32 %v1215, %v1287
        %v1300 = vadd.f32 %v1216, %v1288
        %v1301 = vadd.f32 %v1217, %v1289
        %v1302 = vadd.f32 %v1218, %v1290
        %1303 = vrot.lane.b32.xlu0 %v120, 126
        %v1304 = vpop.permute.xlu0 %1303
        %1305 = vrot.lane.b32.xlu0 %v121, 126
        %v1306 = vpop.permute.xlu0 %1305
        %1307 = vrot.lane.b32.xlu0 %v122, 126
        %v1308 = vpop.permute.xlu0 %1307
        %1309 = vrot.lane.b32.xlu0 %v123, 126
        %v1310 = vpop.permute.xlu0 %1309
        %1311 = vrot.lane.b32.xlu0 %v124, 126
        %v1312 = vpop.permute.xlu0 %1311
        %1313 = vrot.lane.b32.xlu0 %v125, 126
        %v1314 = vpop.permute.xlu0 %1313
        %1315 = vrot.lane.b32.xlu0 %v126, 126
        %v1316 = vpop.permute.xlu0 %1315
        %1317 = vrot.lane.b32.xlu0 %v127, 126
        %v1318 = vpop.permute.xlu0 %1317
        %1319 = vrot.lane.b32.xlu0 %v128, 126
        %v1320 = vpop.permute.xlu0 %1319
        %1321 = vrot.lane.b32.xlu0 %v129, 126
        %v1322 = vpop.permute.xlu0 %1321
        %1323 = vrot.lane.b32.xlu0 %v130, 126
        %v1324 = vpop.permute.xlu0 %1323
        %1325 = vrot.lane.b32.xlu0 %v131, 126
        %v1326 = vpop.permute.xlu0 %1325
        %v1327 = vsub.f32 %v1304, %v120
        %v1328 = vsub.f32 %v1306, %v121
        %v1329 = vsub.f32 %v1308, %v122
        %v1330 = vsub.f32 %v1310, %v123
        %v1331 = vsub.f32 %v1312, %v124
        %v1332 = vsub.f32 %v1314, %v125
        %v1333 = vsub.f32 %v1316, %v126
        %v1334 = vsub.f32 %v1318, %v127
        %v1335 = vsub.f32 %v1320, %v128
        %v1336 = vsub.f32 %v1322, %v129
        %v1337 = vsub.f32 %v1324, %v130
        %v1338 = vsub.f32 %v1326, %v131
        %v1339 = vadd.f32 %v1267, %v1327
        %v1340 = vadd.f32 %v1268, %v1328
        %v1341 = vadd.f32 %v1269, %v1329
        %v1342 = vadd.f32 %v1270, %v1330
        %v1343 = vadd.f32 %v1271, %v1331
        %v1344 = vadd.f32 %v1272, %v1332
        %v1345 = vadd.f32 %v1273, %v1333
        %v1346 = vadd.f32 %v1274, %v1334
        %v1347 = vadd.f32 %v1275, %v1335
        %v1348 = vadd.f32 %v1276, %v1336
        %v1349 = vadd.f32 %v1277, %v1337
        %v1350 = vadd.f32 %v1278, %v1338
        %v1351 = vmul.f32 %v1327, %v1327
        %v1352 = vmul.f32 %v1328, %v1328
        %v1353 = vmul.f32 %v1329, %v1329
        %v1354 = vmul.f32 %v1330, %v1330
        %v1355 = vmul.f32 %v1331, %v1331
        %v1356 = vmul.f32 %v1332, %v1332
        %v1357 = vmul.f32 %v1333, %v1333
        %v1358 = vmul.f32 %v1334, %v1334
        %v1359 = vmul.f32 %v1335, %v1335
        %v1360 = vmul.f32 %v1336, %v1336
        %v1361 = vmul.f32 %v1337, %v1337
        %v1362 = vmul.f32 %v1338, %v1338
        %v1363 = vadd.f32 %v1291, %v1351
        %v1364 = vadd.f32 %v1292, %v1352
        %v1365 = vadd.f32 %v1293, %v1353
        %v1366 = vadd.f32 %v1294, %v1354
        %v1367 = vadd.f32 %v1295, %v1355
        %v1368 = vadd.f32 %v1296, %v1356
        %v1369 = vadd.f32 %v1297, %v1357
        %v1370 = vadd.f32 %v1298, %v1358
        %v1371 = vadd.f32 %v1299, %v1359
        %v1372 = vadd.f32 %v1300, %v1360
        %v1373 = vadd.f32 %v1301, %v1361
        %v1374 = vadd.f32 %v1302, %v1362
        %v1375 = vrot.slane %v120, 2
        %v1376 = vrot.slane %v124, 2
        %v1377 = vrot.slane %v128, 2
        %v1378 = vrot.slane %v121, 2
        %v1379 = vrot.slane %v125, 2
        %v1380 = vrot.slane %v129, 2
        %v1381 = vrot.slane %v122, 2
        %v1382 = vrot.slane %v126, 2
        %v1383 = vrot.slane %v130, 2
        %v1384 = vrot.slane %v123, 2
        %v1385 = vrot.slane %v127, 2
        %v1386 = vrot.slane %v131, 2
        %vm1387 = vcmp.lt.s32.totalorder %v100, 6
        %v1388 = vsel %vm1387, %v1381, %v1384
        %v1389 = vsel %vm1387, %v1382, %v1385
        %v1390 = vsel %vm1387, %v1383, %v1386
        %v1391 = vsel %vm1387, %v1378, %v1381
        %v1392 = vsel %vm1387, %v1379, %v1382
        %v1393 = vsel %vm1387, %v1380, %v1383
        %v1394 = vsel %vm1387, %v1375, %v1378
        %v1395 = vsel %vm1387, %v1376, %v1379
        %v1396 = vsel %vm1387, %v1377, %v1380
        %v1397 = vsel %vm1387, %v1384, %v1375
        %v1398 = vsel %vm1387, %v1385, %v1376
        %v1399 = vsel %vm1387, %v1386, %v1377
        %1400 = vrot.lane.b32.xlu0 %v1394, 2
        %v1401 = vpop.permute.xlu0 %1400
        %1402 = vrot.lane.b32.xlu0 %v1391, 2
        %v1403 = vpop.permute.xlu0 %1402
        %1404 = vrot.lane.b32.xlu0 %v1388, 2
        %v1405 = vpop.permute.xlu0 %1404
        %1406 = vrot.lane.b32.xlu0 %v1397, 2
        %v1407 = vpop.permute.xlu0 %1406
        %1408 = vrot.lane.b32.xlu0 %v1395, 2
        %v1409 = vpop.permute.xlu0 %1408
        %1410 = vrot.lane.b32.xlu0 %v1392, 2
        %v1411 = vpop.permute.xlu0 %1410
        %1412 = vrot.lane.b32.xlu0 %v1389, 2
        %v1413 = vpop.permute.xlu0 %1412
        %1414 = vrot.lane.b32.xlu0 %v1398, 2
        %v1415 = vpop.permute.xlu0 %1414
        %1416 = vrot.lane.b32.xlu0 %v1396, 2
        %v1417 = vpop.permute.xlu0 %1416
        %1418 = vrot.lane.b32.xlu0 %v1393, 2
        %v1419 = vpop.permute.xlu0 %1418
        %1420 = vrot.lane.b32.xlu0 %v1390, 2
        %v1421 = vpop.permute.xlu0 %1420
        %1422 = vrot.lane.b32.xlu0 %v1399, 2
        %v1423 = vpop.permute.xlu0 %1422
        %1425 = vset.pattern.permute.xlu0 0
        %1426 = vperm.xlu0 %1425, %v1394
        %v1427 = vpop.permute.xlu0 %1426
        %1430 = vset.pattern.permute.xlu0 0
        %1431 = vperm.xlu0 %1430, %v1391
        %v1432 = vpop.permute.xlu0 %1431
        %1435 = vset.pattern.permute.xlu0 0
        %1436 = vperm.xlu0 %1435, %v1388
        %v1437 = vpop.permute.xlu0 %1436
        %1440 = vset.pattern.permute.xlu0 0
        %1441 = vperm.xlu0 %1440, %v1397
        %v1442 = vpop.permute.xlu0 %1441
        %1445 = vset.pattern.permute.xlu0 0
        %1446 = vperm.xlu0 %1445, %v1395
        %v1447 = vpop.permute.xlu0 %1446
        %1450 = vset.pattern.permute.xlu0 0
        %1451 = vperm.xlu0 %1450, %v1392
        %v1452 = vpop.permute.xlu0 %1451
        %1455 = vset.pattern.permute.xlu0 0
        %1456 = vperm.xlu0 %1455, %v1389
        %v1457 = vpop.permute.xlu0 %1456
        %1460 = vset.pattern.permute.xlu0 0
        %1461 = vperm.xlu0 %1460, %v1398
        %v1462 = vpop.permute.xlu0 %1461
        %1465 = vset.pattern.permute.xlu0 0
        %1466 = vperm.xlu0 %1465, %v1396
        %v1467 = vpop.permute.xlu0 %1466
        %1470 = vset.pattern.permute.xlu0 0
        %1471 = vperm.xlu0 %1470, %v1393
        %v1472 = vpop.permute.xlu0 %1471
        %1475 = vset.pattern.permute.xlu0 0
        %1476 = vperm.xlu0 %1475, %v1390
        %v1477 = vpop.permute.xlu0 %1476
        %1480 = vset.pattern.permute.xlu0 0
        %1481 = vperm.xlu0 %1480, %v1399
        %v1482 = vpop.permute.xlu0 %1481
        %v1484 = vsel %vm978, %v1427, %v1401
        %v1485 = vsel %vm978, %v1432, %v1403
        %v1486 = vsel %vm978, %v1437, %v1405
        %v1487 = vsel %vm978, %v1442, %v1407
        %v1488 = vsel %vm978, %v1447, %v1409
        %v1489 = vsel %vm978, %v1452, %v1411
        %v1490 = vsel %vm978, %v1457, %v1413
        %v1491 = vsel %vm978, %v1462, %v1415
        %v1492 = vsel %vm978, %v1467, %v1417
        %v1493 = vsel %vm978, %v1472, %v1419
        %v1494 = vsel %vm978, %v1477, %v1421
        %v1495 = vsel %vm978, %v1482, %v1423
        %v1496 = vsub.f32 %v1484, %v120
        %v1497 = vsub.f32 %v1485, %v121
        %v1498 = vsub.f32 %v1486, %v122
        %v1499 = vsub.f32 %v1487, %v123
        %v1500 = vsub.f32 %v1488, %v124
        %v1501 = vsub.f32 %v1489, %v125
        %v1502 = vsub.f32 %v1490, %v126
        %v1503 = vsub.f32 %v1491, %v127
        %v1504 = vsub.f32 %v1492, %v128
        %v1505 = vsub.f32 %v1493, %v129
        %v1506 = vsub.f32 %v1494, %v130
        %v1507 = vsub.f32 %v1495, %v131
        %v1508 = vadd.f32 %v1339, %v1496
        %v1509 = vadd.f32 %v1340, %v1497
        %v1510 = vadd.f32 %v1341, %v1498
        %v1511 = vadd.f32 %v1342, %v1499
        %v1512 = vadd.f32 %v1343, %v1500
        %v1513 = vadd.f32 %v1344, %v1501
        %v1514 = vadd.f32 %v1345, %v1502
        %v1515 = vadd.f32 %v1346, %v1503
        %v1516 = vadd.f32 %v1347, %v1504
        %v1517 = vadd.f32 %v1348, %v1505
        %v1518 = vadd.f32 %v1349, %v1506
        %v1519 = vadd.f32 %v1350, %v1507
        %v1520 = vmul.f32 %v1496, %v1496
        %v1521 = vmul.f32 %v1497, %v1497
        %v1522 = vmul.f32 %v1498, %v1498
        %v1523 = vmul.f32 %v1499, %v1499
        %v1524 = vmul.f32 %v1500, %v1500
        %v1525 = vmul.f32 %v1501, %v1501
        %v1526 = vmul.f32 %v1502, %v1502
        %v1527 = vmul.f32 %v1503, %v1503
        %v1528 = vmul.f32 %v1504, %v1504
        %v1529 = vmul.f32 %v1505, %v1505
        %v1530 = vmul.f32 %v1506, %v1506
        %v1531 = vmul.f32 %v1507, %v1507
        %v1532 = vadd.f32 %v1363, %v1520
        %v1533 = vadd.f32 %v1364, %v1521
        %v1534 = vadd.f32 %v1365, %v1522
        %v1535 = vadd.f32 %v1366, %v1523
        %v1536 = vadd.f32 %v1367, %v1524
        %v1537 = vadd.f32 %v1368, %v1525
        %v1538 = vadd.f32 %v1369, %v1526
        %v1539 = vadd.f32 %v1370, %v1527
        %v1540 = vadd.f32 %v1371, %v1528
        %v1541 = vadd.f32 %v1372, %v1529
        %v1542 = vadd.f32 %v1373, %v1530
        %v1543 = vadd.f32 %v1374, %v1531
        %v1544 = vsub.f32 %v1394, %v120
        %v1545 = vsub.f32 %v1391, %v121
        %v1546 = vsub.f32 %v1388, %v122
        %v1547 = vsub.f32 %v1397, %v123
        %v1548 = vsub.f32 %v1395, %v124
        %v1549 = vsub.f32 %v1392, %v125
        %v1550 = vsub.f32 %v1389, %v126
        %v1551 = vsub.f32 %v1398, %v127
        %v1552 = vsub.f32 %v1396, %v128
        %v1553 = vsub.f32 %v1393, %v129
        %v1554 = vsub.f32 %v1390, %v130
        %v1555 = vsub.f32 %v1399, %v131
        %v1556 = vadd.f32 %v1508, %v1544
        %v1557 = vadd.f32 %v1509, %v1545
        %v1558 = vadd.f32 %v1510, %v1546
        %v1559 = vadd.f32 %v1511, %v1547
        %v1560 = vadd.f32 %v1512, %v1548
        %v1561 = vadd.f32 %v1513, %v1549
        %v1562 = vadd.f32 %v1514, %v1550
        %v1563 = vadd.f32 %v1515, %v1551
        %v1564 = vadd.f32 %v1516, %v1552
        %v1565 = vadd.f32 %v1517, %v1553
        %v1566 = vadd.f32 %v1518, %v1554
        %v1567 = vadd.f32 %v1519, %v1555
        %v1568 = vmul.f32 %v1544, %v1544
        %v1569 = vmul.f32 %v1545, %v1545
        %v1570 = vmul.f32 %v1546, %v1546
        %v1571 = vmul.f32 %v1547, %v1547
        %v1572 = vmul.f32 %v1548, %v1548
        %v1573 = vmul.f32 %v1549, %v1549
        %v1574 = vmul.f32 %v1550, %v1550
        %v1575 = vmul.f32 %v1551, %v1551
        %v1576 = vmul.f32 %v1552, %v1552
        %v1577 = vmul.f32 %v1553, %v1553
        %v1578 = vmul.f32 %v1554, %v1554
        %v1579 = vmul.f32 %v1555, %v1555
        %v1580 = vadd.f32 %v1532, %v1568
        %v1581 = vadd.f32 %v1533, %v1569
        %v1582 = vadd.f32 %v1534, %v1570
        %v1583 = vadd.f32 %v1535, %v1571
        %v1584 = vadd.f32 %v1536, %v1572
        %v1585 = vadd.f32 %v1537, %v1573
        %v1586 = vadd.f32 %v1538, %v1574
        %v1587 = vadd.f32 %v1539, %v1575
        %v1588 = vadd.f32 %v1540, %v1576
        %v1589 = vadd.f32 %v1541, %v1577
        %v1590 = vadd.f32 %v1542, %v1578
        %v1591 = vadd.f32 %v1543, %v1579
        %1592 = vrot.lane.b32.xlu0 %v1394, 126
        %v1593 = vpop.permute.xlu0 %1592
        %1594 = vrot.lane.b32.xlu0 %v1391, 126
        %v1595 = vpop.permute.xlu0 %1594
        %1596 = vrot.lane.b32.xlu0 %v1388, 126
        %v1597 = vpop.permute.xlu0 %1596
        %1598 = vrot.lane.b32.xlu0 %v1397, 126
        %v1599 = vpop.permute.xlu0 %1598
        %1600 = vrot.lane.b32.xlu0 %v1395, 126
        %v1601 = vpop.permute.xlu0 %1600
        %1602 = vrot.lane.b32.xlu0 %v1392, 126
        %v1603 = vpop.permute.xlu0 %1602
        %1604 = vrot.lane.b32.xlu0 %v1389, 126
        %v1605 = vpop.permute.xlu0 %1604
        %1606 = vrot.lane.b32.xlu0 %v1398, 126
        %v1607 = vpop.permute.xlu0 %1606
        %1608 = vrot.lane.b32.xlu0 %v1396, 126
        %v1609 = vpop.permute.xlu0 %1608
        %1610 = vrot.lane.b32.xlu0 %v1393, 126
        %v1611 = vpop.permute.xlu0 %1610
        %1612 = vrot.lane.b32.xlu0 %v1390, 126
        %v1613 = vpop.permute.xlu0 %1612
        %1614 = vrot.lane.b32.xlu0 %v1399, 126
        %v1615 = vpop.permute.xlu0 %1614
        %v1616 = vsub.f32 %v1593, %v120
        %v1617 = vsub.f32 %v1595, %v121
        %v1618 = vsub.f32 %v1597, %v122
        %v1619 = vsub.f32 %v1599, %v123
        %v1620 = vsub.f32 %v1601, %v124
        %v1621 = vsub.f32 %v1603, %v125
        %v1622 = vsub.f32 %v1605, %v126
        %v1623 = vsub.f32 %v1607, %v127
        %v1624 = vsub.f32 %v1609, %v128
        %v1625 = vsub.f32 %v1611, %v129
        %v1626 = vsub.f32 %v1613, %v130
        %v1627 = vsub.f32 %v1615, %v131
        %v1628 = vadd.f32 %v1556, %v1616
        %v1629 = vadd.f32 %v1557, %v1617
        %v1630 = vadd.f32 %v1558, %v1618
        %v1631 = vadd.f32 %v1559, %v1619
        %v1632 = vadd.f32 %v1560, %v1620
        %v1633 = vadd.f32 %v1561, %v1621
        %v1634 = vadd.f32 %v1562, %v1622
        %v1635 = vadd.f32 %v1563, %v1623
        %v1636 = vadd.f32 %v1564, %v1624
        %v1637 = vadd.f32 %v1565, %v1625
        %v1638 = vadd.f32 %v1566, %v1626
        %v1639 = vadd.f32 %v1567, %v1627
        %v1640 = vmul.f32 %v1616, %v1616
        %v1641 = vmul.f32 %v1617, %v1617
        %v1642 = vmul.f32 %v1618, %v1618
        %v1643 = vmul.f32 %v1619, %v1619
        %v1644 = vmul.f32 %v1620, %v1620
        %v1645 = vmul.f32 %v1621, %v1621
        %v1646 = vmul.f32 %v1622, %v1622
        %v1647 = vmul.f32 %v1623, %v1623
        %v1648 = vmul.f32 %v1624, %v1624
        %v1649 = vmul.f32 %v1625, %v1625
        %v1650 = vmul.f32 %v1626, %v1626
        %v1651 = vmul.f32 %v1627, %v1627
        %v1652 = vadd.f32 %v1580, %v1640
        %v1653 = vadd.f32 %v1581, %v1641
        %v1654 = vadd.f32 %v1582, %v1642
        %v1655 = vadd.f32 %v1583, %v1643
        %v1656 = vadd.f32 %v1584, %v1644
        %v1657 = vadd.f32 %v1585, %v1645
        %v1658 = vadd.f32 %v1586, %v1646
        %v1659 = vadd.f32 %v1587, %v1647
        %v1660 = vadd.f32 %v1588, %v1648
        %v1661 = vadd.f32 %v1589, %v1649
        %v1662 = vadd.f32 %v1590, %v1650
        %v1663 = vadd.f32 %v1591, %v1651
        %v1664 = vmul.f32 %v1628, %v1628
        %v1665 = vmul.f32 %v1629, %v1629
        %v1666 = vmul.f32 %v1630, %v1630
        %v1667 = vmul.f32 %v1631, %v1631
        %v1668 = vmul.f32 %v1632, %v1632
        %v1669 = vmul.f32 %v1633, %v1633
        %v1670 = vmul.f32 %v1634, %v1634
        %v1671 = vmul.f32 %v1635, %v1635
        %v1672 = vmul.f32 %v1636, %v1636
        %v1673 = vmul.f32 %v1637, %v1637
        %v1674 = vmul.f32 %v1638, %v1638
        %v1675 = vmul.f32 %v1639, %v1639
        %v1676 = vmul.f32 %v1664, 0.0625
        %v1677 = vmul.f32 %v1665, 0.0625
        %v1678 = vmul.f32 %v1666, 0.0625
        %v1679 = vmul.f32 %v1667, 0.0625
        %v1680 = vmul.f32 %v1668, 0.0625
        %v1681 = vmul.f32 %v1669, 0.0625
        %v1682 = vmul.f32 %v1670, 0.0625
        %v1683 = vmul.f32 %v1671, 0.0625
        %v1684 = vmul.f32 %v1672, 0.0625
        %v1685 = vmul.f32 %v1673, 0.0625
        %v1686 = vmul.f32 %v1674, 0.0625
        %v1687 = vmul.f32 %v1675, 0.0625
        %v1688 = vsub.f32 %v1652, %v1676
        %v1689 = vsub.f32 %v1653, %v1677
        %v1690 = vsub.f32 %v1654, %v1678
        %v1691 = vsub.f32 %v1655, %v1679
        %v1692 = vsub.f32 %v1656, %v1680
        %v1693 = vsub.f32 %v1657, %v1681
        %v1694 = vsub.f32 %v1658, %v1682
        %v1695 = vsub.f32 %v1659, %v1683
        %v1696 = vsub.f32 %v1660, %v1684
        %v1697 = vsub.f32 %v1661, %v1685
        %v1698 = vsub.f32 %v1662, %v1686
        %v1699 = vsub.f32 %v1663, %v1687
        %v1700 = vmul.f32 %v1688, 0.06666667
        %v1701 = vmul.f32 %v1689, 0.06666667
        %v1702 = vmul.f32 %v1690, 0.06666667
        %v1703 = vmul.f32 %v1691, 0.06666667
        %v1704 = vmul.f32 %v1692, 0.06666667
        %v1705 = vmul.f32 %v1693, 0.06666667
        %v1706 = vmul.f32 %v1694, 0.06666667
        %v1707 = vmul.f32 %v1695, 0.06666667
        %v1708 = vmul.f32 %v1696, 0.06666667
        %v1709 = vmul.f32 %v1697, 0.06666667
        %v1710 = vmul.f32 %v1698, 0.06666667
        %v1711 = vmul.f32 %v1699, 0.06666667
        %v1712 = vmax.f32 %v1700, 0.0
        %v1713 = vmax.f32 %v1701, 0.0
        %v1714 = vmax.f32 %v1702, 0.0
        %v1715 = vmax.f32 %v1703, 0.0
        %v1716 = vmax.f32 %v1704, 0.0
        %v1717 = vmax.f32 %v1705, 0.0
        %v1718 = vmax.f32 %v1706, 0.0
        %v1719 = vmax.f32 %v1707, 0.0
        %v1720 = vmax.f32 %v1708, 0.0
        %v1721 = vmax.f32 %v1709, 0.0
        %v1722 = vmax.f32 %v1710, 0.0
        %v1723 = vmax.f32 %v1711, 0.0
        %v1724 = vrsqrt.pop %v1712
        %v1725 = vmul.f32 %v1712, %v1724
        %vm1726 = vcmp.eq.f32.partialorder %v1712, inf
        %v1727 = vsel %vm1726, %v1712, %v1725
        %vm1728 = vcmp.eq.f32.partialorder %v1712, 0.0
        %v1729 = vand.u32 %v1712, 2147483648
        %v1730 = vsel %vm1728, %v1729, %v1727
        %v1731 = vrsqrt.pop %v1713
        %v1732 = vmul.f32 %v1713, %v1731
        %vm1733 = vcmp.eq.f32.partialorder %v1713, inf
        %v1734 = vsel %vm1733, %v1713, %v1732
        %vm1735 = vcmp.eq.f32.partialorder %v1713, 0.0
        %v1736 = vand.u32 %v1713, 2147483648
        %v1737 = vsel %vm1735, %v1736, %v1734
        %v1738 = vrsqrt.pop %v1714
        %v1739 = vmul.f32 %v1714, %v1738
        %vm1740 = vcmp.eq.f32.partialorder %v1714, inf
        %v1741 = vsel %vm1740, %v1714, %v1739
        %vm1742 = vcmp.eq.f32.partialorder %v1714, 0.0
        %v1743 = vand.u32 %v1714, 2147483648
        %v1744 = vsel %vm1742, %v1743, %v1741
        %v1745 = vrsqrt.pop %v1715
        %v1746 = vmul.f32 %v1715, %v1745
        %vm1747 = vcmp.eq.f32.partialorder %v1715, inf
        %v1748 = vsel %vm1747, %v1715, %v1746
        %vm1749 = vcmp.eq.f32.partialorder %v1715, 0.0
        %v1750 = vand.u32 %v1715, 2147483648
        %v1751 = vsel %vm1749, %v1750, %v1748
        %v1752 = vrsqrt.pop %v1716
        %v1753 = vmul.f32 %v1716, %v1752
        %vm1754 = vcmp.eq.f32.partialorder %v1716, inf
        %v1755 = vsel %vm1754, %v1716, %v1753
        %vm1756 = vcmp.eq.f32.partialorder %v1716, 0.0
        %v1757 = vand.u32 %v1716, 2147483648
        %v1758 = vsel %vm1756, %v1757, %v1755
        %v1759 = vrsqrt.pop %v1717
        %v1760 = vmul.f32 %v1717, %v1759
        %vm1761 = vcmp.eq.f32.partialorder %v1717, inf
        %v1762 = vsel %vm1761, %v1717, %v1760
        %vm1763 = vcmp.eq.f32.partialorder %v1717, 0.0
        %v1764 = vand.u32 %v1717, 2147483648
        %v1765 = vsel %vm1763, %v1764, %v1762
        %v1766 = vrsqrt.pop %v1718
        %v1767 = vmul.f32 %v1718, %v1766
        %vm1768 = vcmp.eq.f32.partialorder %v1718, inf
        %v1769 = vsel %vm1768, %v1718, %v1767
        %vm1770 = vcmp.eq.f32.partialorder %v1718, 0.0
        %v1771 = vand.u32 %v1718, 2147483648
        %v1772 = vsel %vm1770, %v1771, %v1769
        %v1773 = vrsqrt.pop %v1719
        %v1774 = vmul.f32 %v1719, %v1773
        %vm1775 = vcmp.eq.f32.partialorder %v1719, inf
        %v1776 = vsel %vm1775, %v1719, %v1774
        %vm1777 = vcmp.eq.f32.partialorder %v1719, 0.0
        %v1778 = vand.u32 %v1719, 2147483648
        %v1779 = vsel %vm1777, %v1778, %v1776
        %v1780 = vrsqrt.pop %v1720
        %v1781 = vmul.f32 %v1720, %v1780
        %vm1782 = vcmp.eq.f32.partialorder %v1720, inf
        %v1783 = vsel %vm1782, %v1720, %v1781
        %vm1784 = vcmp.eq.f32.partialorder %v1720, 0.0
        %v1785 = vand.u32 %v1720, 2147483648
        %v1786 = vsel %vm1784, %v1785, %v1783
        %v1787 = vrsqrt.pop %v1721
        %v1788 = vmul.f32 %v1721, %v1787
        %vm1789 = vcmp.eq.f32.partialorder %v1721, inf
        %v1790 = vsel %vm1789, %v1721, %v1788
        %vm1791 = vcmp.eq.f32.partialorder %v1721, 0.0
        %v1792 = vand.u32 %v1721, 2147483648
        %v1793 = vsel %vm1791, %v1792, %v1790
        %v1794 = vrsqrt.pop %v1722
        %v1795 = vmul.f32 %v1722, %v1794
        %vm1796 = vcmp.eq.f32.partialorder %v1722, inf
        %v1797 = vsel %vm1796, %v1722, %v1795
        %vm1798 = vcmp.eq.f32.partialorder %v1722, 0.0
        %v1799 = vand.u32 %v1722, 2147483648
        %v1800 = vsel %vm1798, %v1799, %v1797
        %v1801 = vrsqrt.pop %v1723
        %v1802 = vmul.f32 %v1723, %v1801
        %vm1803 = vcmp.eq.f32.partialorder %v1723, inf
        %v1804 = vsel %vm1803, %v1723, %v1802
        %vm1805 = vcmp.eq.f32.partialorder %v1723, 0.0
        %v1806 = vand.u32 %v1723, 2147483648
        %v1807 = vsel %vm1805, %v1806, %v1804
        %v1808 = vadd.f32 %v1730, 1e-08
        %v1809 = vadd.f32 %v1737, 1e-08
        %v1810 = vadd.f32 %v1744, 1e-08
        %v1811 = vadd.f32 %v1751, 1e-08
        %v1812 = vadd.f32 %v1758, 1e-08
        %v1813 = vadd.f32 %v1765, 1e-08
        %v1814 = vadd.f32 %v1772, 1e-08
        %v1815 = vadd.f32 %v1779, 1e-08
        %v1816 = vadd.f32 %v1786, 1e-08
        %v1817 = vadd.f32 %v1793, 1e-08
        %v1818 = vadd.f32 %v1800, 1e-08
        %v1819 = vadd.f32 %v1807, 1e-08
        %v1820 = vmul.f32 %v1808, 0.45
        %v1821 = vmul.f32 %v1809, 0.45
        %v1822 = vmul.f32 %v1810, 0.45
        %v1823 = vmul.f32 %v1811, 0.45
        %v1824 = vmul.f32 %v1812, 0.45
        %v1825 = vmul.f32 %v1813, 0.45
        %v1826 = vmul.f32 %v1814, 0.45
        %v1827 = vmul.f32 %v1815, 0.45
        %v1828 = vmul.f32 %v1816, 0.45
        %v1829 = vmul.f32 %v1817, 0.45
        %v1830 = vmul.f32 %v1818, 0.45
        %v1831 = vmul.f32 %v1819, 0.45
        %v1832 = vrcp.pop %v1820
        %v1833 = vrcp.pop %v1821
        %v1834 = vrcp.pop %v1822
        %v1835 = vrcp.pop %v1823
        %v1836 = vrcp.pop %v1824
        %v1837 = vrcp.pop %v1825
        %v1838 = vrcp.pop %v1826
        %v1839 = vrcp.pop %v1827
        %v1840 = vrcp.pop %v1828
        %v1841 = vrcp.pop %v1829
        %v1842 = vrcp.pop %v1830
        %v1843 = vrcp.pop %v1831
        %v1844 = vmul.f32 %v255, %v1832
        %v1845 = vmul.f32 %v256, %v1833
        %v1846 = vmul.f32 %v257, %v1834
        %v1847 = vmul.f32 %v258, %v1835
        %v1848 = vmul.f32 %v259, %v1836
        %v1849 = vmul.f32 %v260, %v1837
        %v1850 = vmul.f32 %v261, %v1838
        %v1851 = vmul.f32 %v262, %v1839
        %v1852 = vmul.f32 %v263, %v1840
        %v1853 = vmul.f32 %v264, %v1841
        %v1854 = vmul.f32 %v265, %v1842
        %v1855 = vmul.f32 %v266, %v1843
        %v1856 = vmul.f32 %v1844, %v1844
        %v1857 = vmul.f32 %v1845, %v1845
        %v1858 = vmul.f32 %v1846, %v1846
        %v1859 = vmul.f32 %v1847, %v1847
        %v1860 = vmul.f32 %v1848, %v1848
        %v1861 = vmul.f32 %v1849, %v1849
        %v1862 = vmul.f32 %v1850, %v1850
        %v1863 = vmul.f32 %v1851, %v1851
        %v1864 = vmul.f32 %v1852, %v1852
        %v1865 = vmul.f32 %v1853, %v1853
        %v1866 = vmul.f32 %v1854, %v1854
        %v1867 = vmul.f32 %v1855, %v1855
        %v1868 = vadd.f32 %v1856, %v1860
        %v1869 = vadd.f32 %v1868, %v1864
        %v1870 = vadd.f32 %v1857, %v1861
        %v1871 = vadd.f32 %v1870, %v1865
        %v1872 = vadd.f32 %v1858, %v1862
        %v1873 = vadd.f32 %v1872, %v1866
        %v1874 = vadd.f32 %v1859, %v1863
        %v1875 = vadd.f32 %v1874, %v1867
        %v1876 = vmul.f32 %v1869, -0.33333334
        %v1877 = vmul.f32 %v1871, -0.33333334
        %v1878 = vmul.f32 %v1873, -0.33333334
        %v1879 = vmul.f32 %v1875, -0.33333334
        %v1880 = vmul.f32 %v303, %v1832
        %v1881 = vmul.f32 %v304, %v1833
        %v1882 = vmul.f32 %v305, %v1834
        %v1883 = vmul.f32 %v306, %v1835
        %v1884 = vmul.f32 %v307, %v1836
        %v1885 = vmul.f32 %v308, %v1837
        %v1886 = vmul.f32 %v309, %v1838
        %v1887 = vmul.f32 %v310, %v1839
        %v1888 = vmul.f32 %v311, %v1840
        %v1889 = vmul.f32 %v312, %v1841
        %v1890 = vmul.f32 %v313, %v1842
        %v1891 = vmul.f32 %v314, %v1843
        %v1892 = vmul.f32 %v1880, %v1880
        %v1893 = vmul.f32 %v1881, %v1881
        %v1894 = vmul.f32 %v1882, %v1882
        %v1895 = vmul.f32 %v1883, %v1883
        %v1896 = vmul.f32 %v1884, %v1884
        %v1897 = vmul.f32 %v1885, %v1885
        %v1898 = vmul.f32 %v1886, %v1886
        %v1899 = vmul.f32 %v1887, %v1887
        %v1900 = vmul.f32 %v1888, %v1888
        %v1901 = vmul.f32 %v1889, %v1889
        %v1902 = vmul.f32 %v1890, %v1890
        %v1903 = vmul.f32 %v1891, %v1891
        %v1904 = vadd.f32 %v1892, %v1896
        %v1905 = vadd.f32 %v1904, %v1900
        %v1906 = vadd.f32 %v1893, %v1897
        %v1907 = vadd.f32 %v1906, %v1901
        %v1908 = vadd.f32 %v1894, %v1898
        %v1909 = vadd.f32 %v1908, %v1902
        %v1910 = vadd.f32 %v1895, %v1899
        %v1911 = vadd.f32 %v1910, %v1903
        %v1912 = vmul.f32 %v1905, -0.33333334
        %v1913 = vmul.f32 %v1907, -0.33333334
        %v1914 = vmul.f32 %v1909, -0.33333334
        %v1915 = vmul.f32 %v1911, -0.33333334
        %v1916 = vmul.f32 %v375, %v1832
        %v1917 = vmul.f32 %v376, %v1833
        %v1918 = vmul.f32 %v377, %v1834
        %v1919 = vmul.f32 %v378, %v1835
        %v1920 = vmul.f32 %v379, %v1836
        %v1921 = vmul.f32 %v380, %v1837
        %v1922 = vmul.f32 %v381, %v1838
        %v1923 = vmul.f32 %v382, %v1839
        %v1924 = vmul.f32 %v383, %v1840
        %v1925 = vmul.f32 %v384, %v1841
        %v1926 = vmul.f32 %v385, %v1842
        %v1927 = vmul.f32 %v386, %v1843
        %v1928 = vmul.f32 %v1916, %v1916
        %v1929 = vmul.f32 %v1917, %v1917
        %v1930 = vmul.f32 %v1918, %v1918
        %v1931 = vmul.f32 %v1919, %v1919
        %v1932 = vmul.f32 %v1920, %v1920
        %v1933 = vmul.f32 %v1921, %v1921
        %v1934 = vmul.f32 %v1922, %v1922
        %v1935 = vmul.f32 %v1923, %v1923
        %v1936 = vmul.f32 %v1924, %v1924
        %v1937 = vmul.f32 %v1925, %v1925
        %v1938 = vmul.f32 %v1926, %v1926
        %v1939 = vmul.f32 %v1927, %v1927
        %v1940 = vadd.f32 %v1928, %v1932
        %v1941 = vadd.f32 %v1940, %v1936
        %v1942 = vadd.f32 %v1929, %v1933
        %v1943 = vadd.f32 %v1942, %v1937
        %v1944 = vadd.f32 %v1930, %v1934
        %v1945 = vadd.f32 %v1944, %v1938
        %v1946 = vadd.f32 %v1931, %v1935
        %v1947 = vadd.f32 %v1946, %v1939
        %v1948 = vmul.f32 %v1941, -0.33333334
        %v1949 = vmul.f32 %v1943, -0.33333334
        %v1950 = vmul.f32 %v1945, -0.33333334
        %v1951 = vmul.f32 %v1947, -0.33333334
        %v1952 = vmul.f32 %v519, %v1832
        %v1953 = vmul.f32 %v520, %v1833
        %v1954 = vmul.f32 %v521, %v1834
        %v1955 = vmul.f32 %v522, %v1835
        %v1956 = vmul.f32 %v523, %v1836
        %v1957 = vmul.f32 %v524, %v1837
        %v1958 = vmul.f32 %v525, %v1838
        %v1959 = vmul.f32 %v526, %v1839
        %v1960 = vmul.f32 %v527, %v1840
        %v1961 = vmul.f32 %v528, %v1841
        %v1962 = vmul.f32 %v529, %v1842
        %v1963 = vmul.f32 %v530, %v1843
        %v1964 = vmul.f32 %v1952, %v1952
        %v1965 = vmul.f32 %v1953, %v1953
        %v1966 = vmul.f32 %v1954, %v1954
        %v1967 = vmul.f32 %v1955, %v1955
        %v1968 = vmul.f32 %v1956, %v1956
        %v1969 = vmul.f32 %v1957, %v1957
        %v1970 = vmul.f32 %v1958, %v1958
        %v1971 = vmul.f32 %v1959, %v1959
        %v1972 = vmul.f32 %v1960, %v1960
        %v1973 = vmul.f32 %v1961, %v1961
        %v1974 = vmul.f32 %v1962, %v1962
        %v1975 = vmul.f32 %v1963, %v1963
        %v1976 = vadd.f32 %v1964, %v1968
        %v1977 = vadd.f32 %v1976, %v1972
        %v1978 = vadd.f32 %v1965, %v1969
        %v1979 = vadd.f32 %v1978, %v1973
        %v1980 = vadd.f32 %v1966, %v1970
        %v1981 = vadd.f32 %v1980, %v1974
        %v1982 = vadd.f32 %v1967, %v1971
        %v1983 = vadd.f32 %v1982, %v1975
        %v1984 = vmul.f32 %v1977, -0.33333334
        %v1985 = vmul.f32 %v1979, -0.33333334
        %v1986 = vmul.f32 %v1981, -0.33333334
        %v1987 = vmul.f32 %v1983, -0.33333334
        %v1988 = vmul.f32 %v591, %v1832
        %v1989 = vmul.f32 %v592, %v1833
        %v1990 = vmul.f32 %v593, %v1834
        %v1991 = vmul.f32 %v594, %v1835
        %v1992 = vmul.f32 %v595, %v1836
        %v1993 = vmul.f32 %v596, %v1837
        %v1994 = vmul.f32 %v597, %v1838
        %v1995 = vmul.f32 %v598, %v1839
        %v1996 = vmul.f32 %v599, %v1840
        %v1997 = vmul.f32 %v600, %v1841
        %v1998 = vmul.f32 %v601, %v1842
        %v1999 = vmul.f32 %v602, %v1843
        %v2000 = vmul.f32 %v1988, %v1988
        %v2001 = vmul.f32 %v1989, %v1989
        %v2002 = vmul.f32 %v1990, %v1990
        %v2003 = vmul.f32 %v1991, %v1991
        %v2004 = vmul.f32 %v1992, %v1992
        %v2005 = vmul.f32 %v1993, %v1993
        %v2006 = vmul.f32 %v1994, %v1994
        %v2007 = vmul.f32 %v1995, %v1995
        %v2008 = vmul.f32 %v1996, %v1996
        %v2009 = vmul.f32 %v1997, %v1997
        %v2010 = vmul.f32 %v1998, %v1998
        %v2011 = vmul.f32 %v1999, %v1999
        %v2012 = vadd.f32 %v2000, %v2004
        %v2013 = vadd.f32 %v2012, %v2008
        %v2014 = vadd.f32 %v2001, %v2005
        %v2015 = vadd.f32 %v2014, %v2009
        %v2016 = vadd.f32 %v2002, %v2006
        %v2017 = vadd.f32 %v2016, %v2010
        %v2018 = vadd.f32 %v2003, %v2007
        %v2019 = vadd.f32 %v2018, %v2011
        %v2020 = vmul.f32 %v2013, -0.33333334
        %v2021 = vmul.f32 %v2015, -0.33333334
        %v2022 = vmul.f32 %v2017, -0.33333334
        %v2023 = vmul.f32 %v2019, -0.33333334
        %v2024 = vmul.f32 %v760, %v1832
        %v2025 = vmul.f32 %v761, %v1833
        %v2026 = vmul.f32 %v762, %v1834
        %v2027 = vmul.f32 %v763, %v1835
        %v2028 = vmul.f32 %v764, %v1836
        %v2029 = vmul.f32 %v765, %v1837
        %v2030 = vmul.f32 %v766, %v1838
        %v2031 = vmul.f32 %v767, %v1839
        %v2032 = vmul.f32 %v768, %v1840
        %v2033 = vmul.f32 %v769, %v1841
        %v2034 = vmul.f32 %v770, %v1842
        %v2035 = vmul.f32 %v771, %v1843
        %v2036 = vmul.f32 %v2024, %v2024
        %v2037 = vmul.f32 %v2025, %v2025
        %v2038 = vmul.f32 %v2026, %v2026
        %v2039 = vmul.f32 %v2027, %v2027
        %v2040 = vmul.f32 %v2028, %v2028
        %v2041 = vmul.f32 %v2029, %v2029
        %v2042 = vmul.f32 %v2030, %v2030
        %v2043 = vmul.f32 %v2031, %v2031
        %v2044 = vmul.f32 %v2032, %v2032
        %v2045 = vmul.f32 %v2033, %v2033
        %v2046 = vmul.f32 %v2034, %v2034
        %v2047 = vmul.f32 %v2035, %v2035
        %v2048 = vadd.f32 %v2036, %v2040
        %v2049 = vadd.f32 %v2048, %v2044
        %v2050 = vadd.f32 %v2037, %v2041
        %v2051 = vadd.f32 %v2050, %v2045
        %v2052 = vadd.f32 %v2038, %v2042
        %v2053 = vadd.f32 %v2052, %v2046
        %v2054 = vadd.f32 %v2039, %v2043
        %v2055 = vadd.f32 %v2054, %v2047
        %v2056 = vmul.f32 %v2049, -0.33333334
        %v2057 = vmul.f32 %v2051, -0.33333334
        %v2058 = vmul.f32 %v2053, -0.33333334
        %v2059 = vmul.f32 %v2055, -0.33333334
        %v2060 = vmul.f32 %v808, %v1832
        %v2061 = vmul.f32 %v809, %v1833
        %v2062 = vmul.f32 %v810, %v1834
        %v2063 = vmul.f32 %v811, %v1835
        %v2064 = vmul.f32 %v812, %v1836
        %v2065 = vmul.f32 %v813, %v1837
        %v2066 = vmul.f32 %v814, %v1838
        %v2067 = vmul.f32 %v815, %v1839
        %v2068 = vmul.f32 %v816, %v1840
        %v2069 = vmul.f32 %v817, %v1841
        %v2070 = vmul.f32 %v818, %v1842
        %v2071 = vmul.f32 %v819, %v1843
        %v2072 = vmul.f32 %v2060, %v2060
        %v2073 = vmul.f32 %v2061, %v2061
        %v2074 = vmul.f32 %v2062, %v2062
        %v2075 = vmul.f32 %v2063, %v2063
        %v2076 = vmul.f32 %v2064, %v2064
        %v2077 = vmul.f32 %v2065, %v2065
        %v2078 = vmul.f32 %v2066, %v2066
        %v2079 = vmul.f32 %v2067, %v2067
        %v2080 = vmul.f32 %v2068, %v2068
        %v2081 = vmul.f32 %v2069, %v2069
        %v2082 = vmul.f32 %v2070, %v2070
        %v2083 = vmul.f32 %v2071, %v2071
        %v2084 = vadd.f32 %v2072, %v2076
        %v2085 = vadd.f32 %v2084, %v2080
        %v2086 = vadd.f32 %v2073, %v2077
        %v2087 = vadd.f32 %v2086, %v2081
        %v2088 = vadd.f32 %v2074, %v2078
        %v2089 = vadd.f32 %v2088, %v2082
        %v2090 = vadd.f32 %v2075, %v2079
        %v2091 = vadd.f32 %v2090, %v2083
        %v2092 = vmul.f32 %v2085, -0.33333334
        %v2093 = vmul.f32 %v2087, -0.33333334
        %v2094 = vmul.f32 %v2089, -0.33333334
        %v2095 = vmul.f32 %v2091, -0.33333334
        %v2096 = vmul.f32 %v880, %v1832
        %v2097 = vmul.f32 %v881, %v1833
        %v2098 = vmul.f32 %v882, %v1834
        %v2099 = vmul.f32 %v883, %v1835
        %v2100 = vmul.f32 %v884, %v1836
        %v2101 = vmul.f32 %v885, %v1837
        %v2102 = vmul.f32 %v886, %v1838
        %v2103 = vmul.f32 %v887, %v1839
        %v2104 = vmul.f32 %v888, %v1840
        %v2105 = vmul.f32 %v889, %v1841
        %v2106 = vmul.f32 %v890, %v1842
        %v2107 = vmul.f32 %v891, %v1843
        %v2108 = vmul.f32 %v2096, %v2096
        %v2109 = vmul.f32 %v2097, %v2097
        %v2110 = vmul.f32 %v2098, %v2098
        %v2111 = vmul.f32 %v2099, %v2099
        %v2112 = vmul.f32 %v2100, %v2100
        %v2113 = vmul.f32 %v2101, %v2101
        %v2114 = vmul.f32 %v2102, %v2102
        %v2115 = vmul.f32 %v2103, %v2103
        %v2116 = vmul.f32 %v2104, %v2104
        %v2117 = vmul.f32 %v2105, %v2105
        %v2118 = vmul.f32 %v2106, %v2106
        %v2119 = vmul.f32 %v2107, %v2107
        %v2120 = vadd.f32 %v2108, %v2112
        %v2121 = vadd.f32 %v2120, %v2116
        %v2122 = vadd.f32 %v2109, %v2113
        %v2123 = vadd.f32 %v2122, %v2117
        %v2124 = vadd.f32 %v2110, %v2114
        %v2125 = vadd.f32 %v2124, %v2118
        %v2126 = vadd.f32 %v2111, %v2115
        %v2127 = vadd.f32 %v2126, %v2119
        %v2128 = vmul.f32 %v2121, -0.33333334
        %v2129 = vmul.f32 %v2123, -0.33333334
        %v2130 = vmul.f32 %v2125, -0.33333334
        %v2131 = vmul.f32 %v2127, -0.33333334
        %v2132 = vmul.f32 %v1051, %v1832
        %v2133 = vmul.f32 %v1052, %v1833
        %v2134 = vmul.f32 %v1053, %v1834
        %v2135 = vmul.f32 %v1054, %v1835
        %v2136 = vmul.f32 %v1055, %v1836
        %v2137 = vmul.f32 %v1056, %v1837
        %v2138 = vmul.f32 %v1057, %v1838
        %v2139 = vmul.f32 %v1058, %v1839
        %v2140 = vmul.f32 %v1059, %v1840
        %v2141 = vmul.f32 %v1060, %v1841
        %v2142 = vmul.f32 %v1061, %v1842
        %v2143 = vmul.f32 %v1062, %v1843
        %v2144 = vmul.f32 %v2132, %v2132
        %v2145 = vmul.f32 %v2133, %v2133
        %v2146 = vmul.f32 %v2134, %v2134
        %v2147 = vmul.f32 %v2135, %v2135
        %v2148 = vmul.f32 %v2136, %v2136
        %v2149 = vmul.f32 %v2137, %v2137
        %v2150 = vmul.f32 %v2138, %v2138
        %v2151 = vmul.f32 %v2139, %v2139
        %v2152 = vmul.f32 %v2140, %v2140
        %v2153 = vmul.f32 %v2141, %v2141
        %v2154 = vmul.f32 %v2142, %v2142
        %v2155 = vmul.f32 %v2143, %v2143
        %v2156 = vadd.f32 %v2144, %v2148
        %v2157 = vadd.f32 %v2156, %v2152
        %v2158 = vadd.f32 %v2145, %v2149
        %v2159 = vadd.f32 %v2158, %v2153
        %v2160 = vadd.f32 %v2146, %v2150
        %v2161 = vadd.f32 %v2160, %v2154
        %v2162 = vadd.f32 %v2147, %v2151
        %v2163 = vadd.f32 %v2162, %v2155
        %v2164 = vmul.f32 %v2157, -0.33333334
        %v2165 = vmul.f32 %v2159, -0.33333334
        %v2166 = vmul.f32 %v2161, -0.33333334
        %v2167 = vmul.f32 %v2163, -0.33333334
        %v2168 = vmul.f32 %v1099, %v1832
        %v2169 = vmul.f32 %v1100, %v1833
        %v2170 = vmul.f32 %v1101, %v1834
        %v2171 = vmul.f32 %v1102, %v1835
        %v2172 = vmul.f32 %v1103, %v1836
        %v2173 = vmul.f32 %v1104, %v1837
        %v2174 = vmul.f32 %v1105, %v1838
        %v2175 = vmul.f32 %v1106, %v1839
        %v2176 = vmul.f32 %v1107, %v1840
        %v2177 = vmul.f32 %v1108, %v1841
        %v2178 = vmul.f32 %v1109, %v1842
        %v2179 = vmul.f32 %v1110, %v1843
        %v2180 = vmul.f32 %v2168, %v2168
        %v2181 = vmul.f32 %v2169, %v2169
        %v2182 = vmul.f32 %v2170, %v2170
        %v2183 = vmul.f32 %v2171, %v2171
        %v2184 = vmul.f32 %v2172, %v2172
        %v2185 = vmul.f32 %v2173, %v2173
        %v2186 = vmul.f32 %v2174, %v2174
        %v2187 = vmul.f32 %v2175, %v2175
        %v2188 = vmul.f32 %v2176, %v2176
        %v2189 = vmul.f32 %v2177, %v2177
        %v2190 = vmul.f32 %v2178, %v2178
        %v2191 = vmul.f32 %v2179, %v2179
        %v2192 = vadd.f32 %v2180, %v2184
        %v2193 = vadd.f32 %v2192, %v2188
        %v2194 = vadd.f32 %v2181, %v2185
        %v2195 = vadd.f32 %v2194, %v2189
        %v2196 = vadd.f32 %v2182, %v2186
        %v2197 = vadd.f32 %v2196, %v2190
        %v2198 = vadd.f32 %v2183, %v2187
        %v2199 = vadd.f32 %v2198, %v2191
        %v2200 = vmul.f32 %v2193, -0.33333334
        %v2201 = vmul.f32 %v2195, -0.33333334
        %v2202 = vmul.f32 %v2197, -0.33333334
        %v2203 = vmul.f32 %v2199, -0.33333334
        %v2204 = vmul.f32 %v1171, %v1832
        %v2205 = vmul.f32 %v1172, %v1833
        %v2206 = vmul.f32 %v1173, %v1834
        %v2207 = vmul.f32 %v1174, %v1835
        %v2208 = vmul.f32 %v1175, %v1836
        %v2209 = vmul.f32 %v1176, %v1837
        %v2210 = vmul.f32 %v1177, %v1838
        %v2211 = vmul.f32 %v1178, %v1839
        %v2212 = vmul.f32 %v1179, %v1840
        %v2213 = vmul.f32 %v1180, %v1841
        %v2214 = vmul.f32 %v1181, %v1842
        %v2215 = vmul.f32 %v1182, %v1843
        %v2216 = vmul.f32 %v2204, %v2204
        %v2217 = vmul.f32 %v2205, %v2205
        %v2218 = vmul.f32 %v2206, %v2206
        %v2219 = vmul.f32 %v2207, %v2207
        %v2220 = vmul.f32 %v2208, %v2208
        %v2221 = vmul.f32 %v2209, %v2209
        %v2222 = vmul.f32 %v2210, %v2210
        %v2223 = vmul.f32 %v2211, %v2211
        %v2224 = vmul.f32 %v2212, %v2212
        %v2225 = vmul.f32 %v2213, %v2213
        %v2226 = vmul.f32 %v2214, %v2214
        %v2227 = vmul.f32 %v2215, %v2215
        %v2228 = vadd.f32 %v2216, %v2220
        %v2229 = vadd.f32 %v2228, %v2224
        %v2230 = vadd.f32 %v2217, %v2221
        %v2231 = vadd.f32 %v2230, %v2225
        %v2232 = vadd.f32 %v2218, %v2222
        %v2233 = vadd.f32 %v2232, %v2226
        %v2234 = vadd.f32 %v2219, %v2223
        %v2235 = vadd.f32 %v2234, %v2227
        %v2236 = vmul.f32 %v2229, -0.33333334
        %v2237 = vmul.f32 %v2231, -0.33333334
        %v2238 = vmul.f32 %v2233, -0.33333334
        %v2239 = vmul.f32 %v2235, -0.33333334
        %v2240 = vmul.f32 %v1255, %v1832
        %v2241 = vmul.f32 %v1256, %v1833
        %v2242 = vmul.f32 %v1257, %v1834
        %v2243 = vmul.f32 %v1258, %v1835
        %v2244 = vmul.f32 %v1259, %v1836
        %v2245 = vmul.f32 %v1260, %v1837
        %v2246 = vmul.f32 %v1261, %v1838
        %v2247 = vmul.f32 %v1262, %v1839
        %v2248 = vmul.f32 %v1263, %v1840
        %v2249 = vmul.f32 %v1264, %v1841
        %v2250 = vmul.f32 %v1265, %v1842
        %v2251 = vmul.f32 %v1266, %v1843
        %v2252 = vmul.f32 %v2240, %v2240
        %v2253 = vmul.f32 %v2241, %v2241
        %v2254 = vmul.f32 %v2242, %v2242
        %v2255 = vmul.f32 %v2243, %v2243
        %v2256 = vmul.f32 %v2244, %v2244
        %v2257 = vmul.f32 %v2245, %v2245
        %v2258 = vmul.f32 %v2246, %v2246
        %v2259 = vmul.f32 %v2247, %v2247
        %v2260 = vmul.f32 %v2248, %v2248
        %v2261 = vmul.f32 %v2249, %v2249
        %v2262 = vmul.f32 %v2250, %v2250
        %v2263 = vmul.f32 %v2251, %v2251
        %v2264 = vadd.f32 %v2252, %v2256
        %v2265 = vadd.f32 %v2264, %v2260
        %v2266 = vadd.f32 %v2253, %v2257
        %v2267 = vadd.f32 %v2266, %v2261
        %v2268 = vadd.f32 %v2254, %v2258
        %v2269 = vadd.f32 %v2268, %v2262
        %v2270 = vadd.f32 %v2255, %v2259
        %v2271 = vadd.f32 %v2270, %v2263
        %v2272 = vmul.f32 %v2265, -0.33333334
        %v2273 = vmul.f32 %v2267, -0.33333334
        %v2274 = vmul.f32 %v2269, -0.33333334
        %v2275 = vmul.f32 %v2271, -0.33333334
        %v2276 = vmul.f32 %v1327, %v1832
        %v2277 = vmul.f32 %v1328, %v1833
        %v2278 = vmul.f32 %v1329, %v1834
        %v2279 = vmul.f32 %v1330, %v1835
        %v2280 = vmul.f32 %v1331, %v1836
        %v2281 = vmul.f32 %v1332, %v1837
        %v2282 = vmul.f32 %v1333, %v1838
        %v2283 = vmul.f32 %v1334, %v1839
        %v2284 = vmul.f32 %v1335, %v1840
        %v2285 = vmul.f32 %v1336, %v1841
        %v2286 = vmul.f32 %v1337, %v1842
        %v2287 = vmul.f32 %v1338, %v1843
        %v2288 = vmul.f32 %v2276, %v2276
        %v2289 = vmul.f32 %v2277, %v2277
        %v2290 = vmul.f32 %v2278, %v2278
        %v2291 = vmul.f32 %v2279, %v2279
        %v2292 = vmul.f32 %v2280, %v2280
        %v2293 = vmul.f32 %v2281, %v2281
        %v2294 = vmul.f32 %v2282, %v2282
        %v2295 = vmul.f32 %v2283, %v2283
        %v2296 = vmul.f32 %v2284, %v2284
        %v2297 = vmul.f32 %v2285, %v2285
        %v2298 = vmul.f32 %v2286, %v2286
        %v2299 = vmul.f32 %v2287, %v2287
        %v2300 = vadd.f32 %v2288, %v2292
        %v2301 = vadd.f32 %v2300, %v2296
        %v2302 = vadd.f32 %v2289, %v2293
        %v2303 = vadd.f32 %v2302, %v2297
        %v2304 = vadd.f32 %v2290, %v2294
        %v2305 = vadd.f32 %v2304, %v2298
        %v2306 = vadd.f32 %v2291, %v2295
        %v2307 = vadd.f32 %v2306, %v2299
        %v2308 = vmul.f32 %v2301, -0.33333334
        %v2309 = vmul.f32 %v2303, -0.33333334
        %v2310 = vmul.f32 %v2305, -0.33333334
        %v2311 = vmul.f32 %v2307, -0.33333334
        %v2312 = vmul.f32 %v1496, %v1832
        %v2313 = vmul.f32 %v1497, %v1833
        %v2314 = vmul.f32 %v1498, %v1834
        %v2315 = vmul.f32 %v1499, %v1835
        %v2316 = vmul.f32 %v1500, %v1836
        %v2317 = vmul.f32 %v1501, %v1837
        %v2318 = vmul.f32 %v1502, %v1838
        %v2319 = vmul.f32 %v1503, %v1839
        %v2320 = vmul.f32 %v1504, %v1840
        %v2321 = vmul.f32 %v1505, %v1841
        %v2322 = vmul.f32 %v1506, %v1842
        %v2323 = vmul.f32 %v1507, %v1843
        %v2324 = vmul.f32 %v2312, %v2312
        %v2325 = vmul.f32 %v2313, %v2313
        %v2326 = vmul.f32 %v2314, %v2314
        %v2327 = vmul.f32 %v2315, %v2315
        %v2328 = vmul.f32 %v2316, %v2316
        %v2329 = vmul.f32 %v2317, %v2317
        %v2330 = vmul.f32 %v2318, %v2318
        %v2331 = vmul.f32 %v2319, %v2319
        %v2332 = vmul.f32 %v2320, %v2320
        %v2333 = vmul.f32 %v2321, %v2321
        %v2334 = vmul.f32 %v2322, %v2322
        %v2335 = vmul.f32 %v2323, %v2323
        %v2336 = vadd.f32 %v2324, %v2328
        %v2337 = vadd.f32 %v2336, %v2332
        %v2338 = vadd.f32 %v2325, %v2329
        %v2339 = vadd.f32 %v2338, %v2333
        %v2340 = vadd.f32 %v2326, %v2330
        %v2341 = vadd.f32 %v2340, %v2334
        %v2342 = vadd.f32 %v2327, %v2331
        %v2343 = vadd.f32 %v2342, %v2335
        %v2344 = vmul.f32 %v2337, -0.33333334
        %v2345 = vmul.f32 %v2339, -0.33333334
        %v2346 = vmul.f32 %v2341, -0.33333334
        %v2347 = vmul.f32 %v2343, -0.33333334
        %v2348 = vmul.f32 %v1544, %v1832
        %v2349 = vmul.f32 %v1545, %v1833
        %v2350 = vmul.f32 %v1546, %v1834
        %v2351 = vmul.f32 %v1547, %v1835
        %v2352 = vmul.f32 %v1548, %v1836
        %v2353 = vmul.f32 %v1549, %v1837
        %v2354 = vmul.f32 %v1550, %v1838
        %v2355 = vmul.f32 %v1551, %v1839
        %v2356 = vmul.f32 %v1552, %v1840
        %v2357 = vmul.f32 %v1553, %v1841
        %v2358 = vmul.f32 %v1554, %v1842
        %v2359 = vmul.f32 %v1555, %v1843
        %v2360 = vmul.f32 %v2348, %v2348
        %v2361 = vmul.f32 %v2349, %v2349
        %v2362 = vmul.f32 %v2350, %v2350
        %v2363 = vmul.f32 %v2351, %v2351
        %v2364 = vmul.f32 %v2352, %v2352
        %v2365 = vmul.f32 %v2353, %v2353
        %v2366 = vmul.f32 %v2354, %v2354
        %v2367 = vmul.f32 %v2355, %v2355
        %v2368 = vmul.f32 %v2356, %v2356
        %v2369 = vmul.f32 %v2357, %v2357
        %v2370 = vmul.f32 %v2358, %v2358
        %v2371 = vmul.f32 %v2359, %v2359
        %v2372 = vadd.f32 %v2360, %v2364
        %v2373 = vadd.f32 %v2372, %v2368
        %v2374 = vadd.f32 %v2361, %v2365
        %v2375 = vadd.f32 %v2374, %v2369
        %v2376 = vadd.f32 %v2362, %v2366
        %v2377 = vadd.f32 %v2376, %v2370
        %v2378 = vadd.f32 %v2363, %v2367
        %v2379 = vadd.f32 %v2378, %v2371
        %v2380 = vmul.f32 %v2373, -0.33333334
        %v2381 = vmul.f32 %v2375, -0.33333334
        %v2382 = vmul.f32 %v2377, -0.33333334
        %v2383 = vmul.f32 %v2379, -0.33333334
        %v2384 = vmul.f32 %v1616, %v1832
        %v2385 = vmul.f32 %v1617, %v1833
        %v2386 = vmul.f32 %v1618, %v1834
        %v2387 = vmul.f32 %v1619, %v1835
        %v2388 = vmul.f32 %v1620, %v1836
        %v2389 = vmul.f32 %v1621, %v1837
        %v2390 = vmul.f32 %v1622, %v1838
        %v2391 = vmul.f32 %v1623, %v1839
        %v2392 = vmul.f32 %v1624, %v1840
        %v2393 = vmul.f32 %v1625, %v1841
        %v2394 = vmul.f32 %v1626, %v1842
        %v2395 = vmul.f32 %v1627, %v1843
        %v2396 = vmul.f32 %v2384, %v2384
        %v2397 = vmul.f32 %v2385, %v2385
        %v2398 = vmul.f32 %v2386, %v2386
        %v2399 = vmul.f32 %v2387, %v2387
        %v2400 = vmul.f32 %v2388, %v2388
        %v2401 = vmul.f32 %v2389, %v2389
        %v2402 = vmul.f32 %v2390, %v2390
        %v2403 = vmul.f32 %v2391, %v2391
        %v2404 = vmul.f32 %v2392, %v2392
        %v2405 = vmul.f32 %v2393, %v2393
        %v2406 = vmul.f32 %v2394, %v2394
        %v2407 = vmul.f32 %v2395, %v2395
        %v2408 = vadd.f32 %v2396, %v2400
        %v2409 = vadd.f32 %v2408, %v2404
        %v2410 = vadd.f32 %v2397, %v2401
        %v2411 = vadd.f32 %v2410, %v2405
        %v2412 = vadd.f32 %v2398, %v2402
        %v2413 = vadd.f32 %v2412, %v2406
        %v2414 = vadd.f32 %v2399, %v2403
        %v2415 = vadd.f32 %v2414, %v2407
        %v2416 = vmul.f32 %v2409, -0.33333334
        %v2417 = vmul.f32 %v2411, -0.33333334
        %v2418 = vmul.f32 %v2413, -0.33333334
        %v2419 = vmul.f32 %v2415, -0.33333334
        %v2420 = vmax.f32 %v1876, %v1912
        %v2421 = vmax.f32 %v1877, %v1913
        %v2422 = vmax.f32 %v1878, %v1914
        %v2423 = vmax.f32 %v1879, %v1915
        %v2424 = vmax.f32 %v2420, %v1948
        %v2425 = vmax.f32 %v2421, %v1949
        %v2426 = vmax.f32 %v2422, %v1950
        %v2427 = vmax.f32 %v2423, %v1951
        %v2428 = vmax.f32 %v2424, %v1984
        %v2429 = vmax.f32 %v2425, %v1985
        %v2430 = vmax.f32 %v2426, %v1986
        %v2431 = vmax.f32 %v2427, %v1987
        %v2432 = vmax.f32 %v2428, %v2020
        %v2433 = vmax.f32 %v2429, %v2021
        %v2434 = vmax.f32 %v2430, %v2022
        %v2435 = vmax.f32 %v2431, %v2023
        %v2436 = vmax.f32 %v2432, %v2056
        %v2437 = vmax.f32 %v2433, %v2057
        %v2438 = vmax.f32 %v2434, %v2058
        %v2439 = vmax.f32 %v2435, %v2059
        %v2440 = vmax.f32 %v2436, %v2092
        %v2441 = vmax.f32 %v2437, %v2093
        %v2442 = vmax.f32 %v2438, %v2094
        %v2443 = vmax.f32 %v2439, %v2095
        %v2444 = vmax.f32 %v2440, %v2128
        %v2445 = vmax.f32 %v2441, %v2129
        %v2446 = vmax.f32 %v2442, %v2130
        %v2447 = vmax.f32 %v2443, %v2131
        %v2448 = vmax.f32 %v2444, %v2164
        %v2449 = vmax.f32 %v2445, %v2165
        %v2450 = vmax.f32 %v2446, %v2166
        %v2451 = vmax.f32 %v2447, %v2167
        %v2452 = vmax.f32 %v2448, %v2200
        %v2453 = vmax.f32 %v2449, %v2201
        %v2454 = vmax.f32 %v2450, %v2202
        %v2455 = vmax.f32 %v2451, %v2203
        %v2456 = vmax.f32 %v2452, %v2236
        %v2457 = vmax.f32 %v2453, %v2237
        %v2458 = vmax.f32 %v2454, %v2238
        %v2459 = vmax.f32 %v2455, %v2239
        %v2460 = vmax.f32 %v2456, %v2272
        %v2461 = vmax.f32 %v2457, %v2273
        %v2462 = vmax.f32 %v2458, %v2274
        %v2463 = vmax.f32 %v2459, %v2275
        %v2464 = vmax.f32 %v2460, %v2308
        %v2465 = vmax.f32 %v2461, %v2309
        %v2466 = vmax.f32 %v2462, %v2310
        %v2467 = vmax.f32 %v2463, %v2311
        %v2468 = vmax.f32 %v2464, %v2344
        %v2469 = vmax.f32 %v2465, %v2345
        %v2470 = vmax.f32 %v2466, %v2346
        %v2471 = vmax.f32 %v2467, %v2347
        %v2472 = vmax.f32 %v2468, %v2380
        %v2473 = vmax.f32 %v2469, %v2381
        %v2474 = vmax.f32 %v2470, %v2382
        %v2475 = vmax.f32 %v2471, %v2383
        %v2476 = vmax.f32 %v2472, %v2416
        %v2477 = vmax.f32 %v2473, %v2417
        %v2478 = vmax.f32 %v2474, %v2418
        %v2479 = vmax.f32 %v2475, %v2419
        %v2480 = vsub.f32 %v1876, %v2476
        %v2481 = vsub.f32 %v1877, %v2477
        %v2482 = vsub.f32 %v1878, %v2478
        %v2483 = vsub.f32 %v1879, %v2479
        %v2484 = vmul.f32 %v2480, 1.442695
        %v2485 = vpow.pop %v2484
        %v2486 = vmul.f32 %v2481, 1.442695
        %v2487 = vpow.pop %v2486
        %v2488 = vmul.f32 %v2482, 1.442695
        %v2489 = vpow.pop %v2488
        %v2490 = vmul.f32 %v2483, 1.442695
        %v2491 = vpow.pop %v2490
        %v2492 = vsub.f32 %v1912, %v2476
        %v2493 = vsub.f32 %v1913, %v2477
        %v2494 = vsub.f32 %v1914, %v2478
        %v2495 = vsub.f32 %v1915, %v2479
        %v2496 = vmul.f32 %v2492, 1.442695
        %v2497 = vpow.pop %v2496
        %v2498 = vmul.f32 %v2493, 1.442695
        %v2499 = vpow.pop %v2498
        %v2500 = vmul.f32 %v2494, 1.442695
        %v2501 = vpow.pop %v2500
        %v2502 = vmul.f32 %v2495, 1.442695
        %v2503 = vpow.pop %v2502
        %v2504 = vsub.f32 %v1948, %v2476
        %v2505 = vsub.f32 %v1949, %v2477
        %v2506 = vsub.f32 %v1950, %v2478
        %v2507 = vsub.f32 %v1951, %v2479
        %v2508 = vmul.f32 %v2504, 1.442695
        %v2509 = vpow.pop %v2508
        %v2510 = vmul.f32 %v2505, 1.442695
        %v2511 = vpow.pop %v2510
        %v2512 = vmul.f32 %v2506, 1.442695
        %v2513 = vpow.pop %v2512
        %v2514 = vmul.f32 %v2507, 1.442695
        %v2515 = vpow.pop %v2514
        %v2516 = vsub.f32 %v1984, %v2476
        %v2517 = vsub.f32 %v1985, %v2477
        %v2518 = vsub.f32 %v1986, %v2478
        %v2519 = vsub.f32 %v1987, %v2479
        %v2520 = vmul.f32 %v2516, 1.442695
        %v2521 = vpow.pop %v2520
        %v2522 = vmul.f32 %v2517, 1.442695
        %v2523 = vpow.pop %v2522
        %v2524 = vmul.f32 %v2518, 1.442695
        %v2525 = vpow.pop %v2524
        %v2526 = vmul.f32 %v2519, 1.442695
        %v2527 = vpow.pop %v2526
        %v2528 = vsub.f32 %v2020, %v2476
        %v2529 = vsub.f32 %v2021, %v2477
        %v2530 = vsub.f32 %v2022, %v2478
        %v2531 = vsub.f32 %v2023, %v2479
        %v2532 = vmul.f32 %v2528, 1.442695
        %v2533 = vpow.pop %v2532
        %v2534 = vmul.f32 %v2529, 1.442695
        %v2535 = vpow.pop %v2534
        %v2536 = vmul.f32 %v2530, 1.442695
        %v2537 = vpow.pop %v2536
        %v2538 = vmul.f32 %v2531, 1.442695
        %v2539 = vpow.pop %v2538
        %v2540 = vsub.f32 %v2056, %v2476
        %v2541 = vsub.f32 %v2057, %v2477
        %v2542 = vsub.f32 %v2058, %v2478
        %v2543 = vsub.f32 %v2059, %v2479
        %v2544 = vmul.f32 %v2540, 1.442695
        %v2545 = vpow.pop %v2544
        %v2546 = vmul.f32 %v2541, 1.442695
        %v2547 = vpow.pop %v2546
        %v2548 = vmul.f32 %v2542, 1.442695
        %v2549 = vpow.pop %v2548
        %v2550 = vmul.f32 %v2543, 1.442695
        %v2551 = vpow.pop %v2550
        %v2552 = vsub.f32 %v2092, %v2476
        %v2553 = vsub.f32 %v2093, %v2477
        %v2554 = vsub.f32 %v2094, %v2478
        %v2555 = vsub.f32 %v2095, %v2479
        %v2556 = vmul.f32 %v2552, 1.442695
        %v2557 = vpow.pop %v2556
        %v2558 = vmul.f32 %v2553, 1.442695
        %v2559 = vpow.pop %v2558
        %v2560 = vmul.f32 %v2554, 1.442695
        %v2561 = vpow.pop %v2560
        %v2562 = vmul.f32 %v2555, 1.442695
        %v2563 = vpow.pop %v2562
        %v2564 = vsub.f32 %v2128, %v2476
        %v2565 = vsub.f32 %v2129, %v2477
        %v2566 = vsub.f32 %v2130, %v2478
        %v2567 = vsub.f32 %v2131, %v2479
        %v2568 = vmul.f32 %v2564, 1.442695
        %v2569 = vpow.pop %v2568
        %v2570 = vmul.f32 %v2565, 1.442695
        %v2571 = vpow.pop %v2570
        %v2572 = vmul.f32 %v2566, 1.442695
        %v2573 = vpow.pop %v2572
        %v2574 = vmul.f32 %v2567, 1.442695
        %v2575 = vpow.pop %v2574
        %v2576 = vsub.f32 %v2164, %v2476
        %v2577 = vsub.f32 %v2165, %v2477
        %v2578 = vsub.f32 %v2166, %v2478
        %v2579 = vsub.f32 %v2167, %v2479
        %v2580 = vmul.f32 %v2576, 1.442695
        %v2581 = vpow.pop %v2580
        %v2582 = vmul.f32 %v2577, 1.442695
        %v2583 = vpow.pop %v2582
        %v2584 = vmul.f32 %v2578, 1.442695
        %v2585 = vpow.pop %v2584
        %v2586 = vmul.f32 %v2579, 1.442695
        %v2587 = vpow.pop %v2586
        %v2588 = vsub.f32 %v2200, %v2476
        %v2589 = vsub.f32 %v2201, %v2477
        %v2590 = vsub.f32 %v2202, %v2478
        %v2591 = vsub.f32 %v2203, %v2479
        %v2592 = vmul.f32 %v2588, 1.442695
        %v2593 = vpow.pop %v2592
        %v2594 = vmul.f32 %v2589, 1.442695
        %v2595 = vpow.pop %v2594
        %v2596 = vmul.f32 %v2590, 1.442695
        %v2597 = vpow.pop %v2596
        %v2598 = vmul.f32 %v2591, 1.442695
        %v2599 = vpow.pop %v2598
        %v2600 = vsub.f32 %v2236, %v2476
        %v2601 = vsub.f32 %v2237, %v2477
        %v2602 = vsub.f32 %v2238, %v2478
        %v2603 = vsub.f32 %v2239, %v2479
        %v2604 = vmul.f32 %v2600, 1.442695
        %v2605 = vpow.pop %v2604
        %v2606 = vmul.f32 %v2601, 1.442695
        %v2607 = vpow.pop %v2606
        %v2608 = vmul.f32 %v2602, 1.442695
        %v2609 = vpow.pop %v2608
        %v2610 = vmul.f32 %v2603, 1.442695
        %v2611 = vpow.pop %v2610
        %v2612 = vsub.f32 %v2272, %v2476
        %v2613 = vsub.f32 %v2273, %v2477
        %v2614 = vsub.f32 %v2274, %v2478
        %v2615 = vsub.f32 %v2275, %v2479
        %v2616 = vmul.f32 %v2612, 1.442695
        %v2617 = vpow.pop %v2616
        %v2618 = vmul.f32 %v2613, 1.442695
        %v2619 = vpow.pop %v2618
        %v2620 = vmul.f32 %v2614, 1.442695
        %v2621 = vpow.pop %v2620
        %v2622 = vmul.f32 %v2615, 1.442695
        %v2623 = vpow.pop %v2622
        %v2624 = vsub.f32 %v2308, %v2476
        %v2625 = vsub.f32 %v2309, %v2477
        %v2626 = vsub.f32 %v2310, %v2478
        %v2627 = vsub.f32 %v2311, %v2479
        %v2628 = vmul.f32 %v2624, 1.442695
        %v2629 = vpow.pop %v2628
        %v2630 = vmul.f32 %v2625, 1.442695
        %v2631 = vpow.pop %v2630
        %v2632 = vmul.f32 %v2626, 1.442695
        %v2633 = vpow.pop %v2632
        %v2634 = vmul.f32 %v2627, 1.442695
        %v2635 = vpow.pop %v2634
        %v2636 = vsub.f32 %v2344, %v2476
        %v2637 = vsub.f32 %v2345, %v2477
        %v2638 = vsub.f32 %v2346, %v2478
        %v2639 = vsub.f32 %v2347, %v2479
        %v2640 = vmul.f32 %v2636, 1.442695
        %v2641 = vpow.pop %v2640
        %v2642 = vmul.f32 %v2637, 1.442695
        %v2643 = vpow.pop %v2642
        %v2644 = vmul.f32 %v2638, 1.442695
        %v2645 = vpow.pop %v2644
        %v2646 = vmul.f32 %v2639, 1.442695
        %v2647 = vpow.pop %v2646
        %v2648 = vsub.f32 %v2380, %v2476
        %v2649 = vsub.f32 %v2381, %v2477
        %v2650 = vsub.f32 %v2382, %v2478
        %v2651 = vsub.f32 %v2383, %v2479
        %v2652 = vmul.f32 %v2648, 1.442695
        %v2653 = vpow.pop %v2652
        %v2654 = vmul.f32 %v2649, 1.442695
        %v2655 = vpow.pop %v2654
        %v2656 = vmul.f32 %v2650, 1.442695
        %v2657 = vpow.pop %v2656
        %v2658 = vmul.f32 %v2651, 1.442695
        %v2659 = vpow.pop %v2658
        %v2660 = vsub.f32 %v2416, %v2476
        %v2661 = vsub.f32 %v2417, %v2477
        %v2662 = vsub.f32 %v2418, %v2478
        %v2663 = vsub.f32 %v2419, %v2479
        %v2664 = vmul.f32 %v2660, 1.442695
        %v2665 = vpow.pop %v2664
        %v2666 = vmul.f32 %v2661, 1.442695
        %v2667 = vpow.pop %v2666
        %v2668 = vmul.f32 %v2662, 1.442695
        %v2669 = vpow.pop %v2668
        %v2670 = vmul.f32 %v2663, 1.442695
        %v2671 = vpow.pop %v2670
        %v2672 = vadd.f32 %v2485, %v2497
        %v2673 = vadd.f32 %v2487, %v2499
        %v2674 = vadd.f32 %v2489, %v2501
        %v2675 = vadd.f32 %v2491, %v2503
        %v2676 = vadd.f32 %v2672, %v2509
        %v2677 = vadd.f32 %v2673, %v2511
        %v2678 = vadd.f32 %v2674, %v2513
        %v2679 = vadd.f32 %v2675, %v2515
        %v2680 = vadd.f32 %v2676, %v2521
        %v2681 = vadd.f32 %v2677, %v2523
        %v2682 = vadd.f32 %v2678, %v2525
        %v2683 = vadd.f32 %v2679, %v2527
        %v2684 = vadd.f32 %v2680, %v2533
        %v2685 = vadd.f32 %v2681, %v2535
        %v2686 = vadd.f32 %v2682, %v2537
        %v2687 = vadd.f32 %v2683, %v2539
        %v2688 = vadd.f32 %v2684, %v2545
        %v2689 = vadd.f32 %v2685, %v2547
        %v2690 = vadd.f32 %v2686, %v2549
        %v2691 = vadd.f32 %v2687, %v2551
        %v2692 = vadd.f32 %v2688, %v2557
        %v2693 = vadd.f32 %v2689, %v2559
        %v2694 = vadd.f32 %v2690, %v2561
        %v2695 = vadd.f32 %v2691, %v2563
        %v2696 = vadd.f32 %v2692, %v2569
        %v2697 = vadd.f32 %v2693, %v2571
        %v2698 = vadd.f32 %v2694, %v2573
        %v2699 = vadd.f32 %v2695, %v2575
        %v2700 = vadd.f32 %v2696, %v2581
        %v2701 = vadd.f32 %v2697, %v2583
        %v2702 = vadd.f32 %v2698, %v2585
        %v2703 = vadd.f32 %v2699, %v2587
        %v2704 = vadd.f32 %v2700, %v2593
        %v2705 = vadd.f32 %v2701, %v2595
        %v2706 = vadd.f32 %v2702, %v2597
        %v2707 = vadd.f32 %v2703, %v2599
        %v2708 = vadd.f32 %v2704, %v2605
        %v2709 = vadd.f32 %v2705, %v2607
        %v2710 = vadd.f32 %v2706, %v2609
        %v2711 = vadd.f32 %v2707, %v2611
        %v2712 = vadd.f32 %v2708, %v2617
        %v2713 = vadd.f32 %v2709, %v2619
        %v2714 = vadd.f32 %v2710, %v2621
        %v2715 = vadd.f32 %v2711, %v2623
        %v2716 = vadd.f32 %v2712, %v2629
        %v2717 = vadd.f32 %v2713, %v2631
        %v2718 = vadd.f32 %v2714, %v2633
        %v2719 = vadd.f32 %v2715, %v2635
        %v2720 = vadd.f32 %v2716, %v2641
        %v2721 = vadd.f32 %v2717, %v2643
        %v2722 = vadd.f32 %v2718, %v2645
        %v2723 = vadd.f32 %v2719, %v2647
        %v2724 = vadd.f32 %v2720, %v2653
        %v2725 = vadd.f32 %v2721, %v2655
        %v2726 = vadd.f32 %v2722, %v2657
        %v2727 = vadd.f32 %v2723, %v2659
        %v2728 = vadd.f32 %v2724, %v2665
        %v2729 = vadd.f32 %v2725, %v2667
        %v2730 = vadd.f32 %v2726, %v2669
        %v2731 = vadd.f32 %v2727, %v2671
        %v2732 = vrcp.pop %v2728
        %v2733 = vrcp.pop %v2729
        %v2734 = vrcp.pop %v2730
        %v2735 = vrcp.pop %v2731
        %v2736 = vmul.f32 %v2485, %v2732
        %v2737 = vmul.f32 %v2487, %v2733
        %v2738 = vmul.f32 %v2489, %v2734
        %v2739 = vmul.f32 %v2491, %v2735
        %v2740 = vadd.f32 %v2736, 6.8024235e-08
        %v2741 = vadd.f32 %v2737, 6.8024235e-08
        %v2742 = vadd.f32 %v2738, 6.8024235e-08
        %v2743 = vadd.f32 %v2739, 6.8024235e-08
        %v2744 = vmul.f32 %v2497, %v2732
        %v2745 = vmul.f32 %v2499, %v2733
        %v2746 = vmul.f32 %v2501, %v2734
        %v2747 = vmul.f32 %v2503, %v2735
        %v2748 = vadd.f32 %v2744, 0.001249932
        %v2749 = vadd.f32 %v2745, 0.001249932
        %v2750 = vadd.f32 %v2746, 0.001249932
        %v2751 = vadd.f32 %v2747, 0.001249932
        %v2752 = vmul.f32 %v2509, %v2732
        %v2753 = vmul.f32 %v2511, %v2733
        %v2754 = vmul.f32 %v2513, %v2734
        %v2755 = vmul.f32 %v2515, %v2735
        %v2756 = vadd.f32 %v2752, 6.8024235e-08
        %v2757 = vadd.f32 %v2753, 6.8024235e-08
        %v2758 = vadd.f32 %v2754, 6.8024235e-08
        %v2759 = vadd.f32 %v2755, 6.8024235e-08
        %v2760 = vmul.f32 %v2521, %v2732
        %v2761 = vmul.f32 %v2523, %v2733
        %v2762 = vmul.f32 %v2525, %v2734
        %v2763 = vmul.f32 %v2527, %v2735
        %v2764 = vadd.f32 %v2760, 0.001249932
        %v2765 = vadd.f32 %v2761, 0.001249932
        %v2766 = vadd.f32 %v2762, 0.001249932
        %v2767 = vadd.f32 %v2763, 0.001249932
        %v2768 = vmul.f32 %v2533, %v2732
        %v2769 = vmul.f32 %v2535, %v2733
        %v2770 = vmul.f32 %v2537, %v2734
        %v2771 = vmul.f32 %v2539, %v2735
        %v2772 = vadd.f32 %v2768, 0.001249932
        %v2773 = vadd.f32 %v2769, 0.001249932
        %v2774 = vadd.f32 %v2770, 0.001249932
        %v2775 = vadd.f32 %v2771, 0.001249932
        %v2776 = vmul.f32 %v2545, %v2732
        %v2777 = vmul.f32 %v2547, %v2733
        %v2778 = vmul.f32 %v2549, %v2734
        %v2779 = vmul.f32 %v2551, %v2735
        %v2780 = vadd.f32 %v2776, 6.8024235e-08
        %v2781 = vadd.f32 %v2777, 6.8024235e-08
        %v2782 = vadd.f32 %v2778, 6.8024235e-08
        %v2783 = vadd.f32 %v2779, 6.8024235e-08
        %v2784 = vmul.f32 %v2557, %v2732
        %v2785 = vmul.f32 %v2559, %v2733
        %v2786 = vmul.f32 %v2561, %v2734
        %v2787 = vmul.f32 %v2563, %v2735
        %v2788 = vadd.f32 %v2784, 0.001249932
        %v2789 = vadd.f32 %v2785, 0.001249932
        %v2790 = vadd.f32 %v2786, 0.001249932
        %v2791 = vadd.f32 %v2787, 0.001249932
        %v2792 = vmul.f32 %v2569, %v2732
        %v2793 = vmul.f32 %v2571, %v2733
        %v2794 = vmul.f32 %v2573, %v2734
        %v2795 = vmul.f32 %v2575, %v2735
        %v2796 = vadd.f32 %v2792, 6.8024235e-08
        %v2797 = vadd.f32 %v2793, 6.8024235e-08
        %v2798 = vadd.f32 %v2794, 6.8024235e-08
        %v2799 = vadd.f32 %v2795, 6.8024235e-08
        %v2800 = vmul.f32 %v2581, %v2732
        %v2801 = vmul.f32 %v2583, %v2733
        %v2802 = vmul.f32 %v2585, %v2734
        %v2803 = vmul.f32 %v2587, %v2735
        %v2804 = vadd.f32 %v2800, 1.76737e-33
        %v2805 = vadd.f32 %v2801, 1.76737e-33
        %v2806 = vadd.f32 %v2802, 1.76737e-33
        %v2807 = vadd.f32 %v2803, 1.76737e-33
        %v2808 = vmul.f32 %v2593, %v2732
        %v2809 = vmul.f32 %v2595, %v2733
        %v2810 = vmul.f32 %v2597, %v2734
        %v2811 = vmul.f32 %v2599, %v2735
        %v2812 = vadd.f32 %v2808, 2.0147366e-16
        %v2813 = vadd.f32 %v2809, 2.0147366e-16
        %v2814 = vadd.f32 %v2810, 2.0147366e-16
        %v2815 = vadd.f32 %v2811, 2.0147366e-16
        %v2816 = vmul.f32 %v2605, %v2732
        %v2817 = vmul.f32 %v2607, %v2733
        %v2818 = vmul.f32 %v2609, %v2734
        %v2819 = vmul.f32 %v2611, %v2735
        %v2820 = vadd.f32 %v2816, 1.76737e-33
        %v2821 = vadd.f32 %v2817, 1.76737e-33
        %v2822 = vadd.f32 %v2818, 1.76737e-33
        %v2823 = vadd.f32 %v2819, 1.76737e-33
        %v2824 = vmul.f32 %v2617, %v2732
        %v2825 = vmul.f32 %v2619, %v2733
        %v2826 = vmul.f32 %v2621, %v2734
        %v2827 = vmul.f32 %v2623, %v2735
        %v2828 = vadd.f32 %v2824, 2.0147366e-16
        %v2829 = vadd.f32 %v2825, 2.0147366e-16
        %v2830 = vadd.f32 %v2826, 2.0147366e-16
        %v2831 = vadd.f32 %v2827, 2.0147366e-16
        %v2832 = vmul.f32 %v2629, %v2732
        %v2833 = vmul.f32 %v2631, %v2733
        %v2834 = vmul.f32 %v2633, %v2734
        %v2835 = vmul.f32 %v2635, %v2735
        %v2836 = vadd.f32 %v2832, 2.0147366e-16
        %v2837 = vadd.f32 %v2833, 2.0147366e-16
        %v2838 = vadd.f32 %v2834, 2.0147366e-16
        %v2839 = vadd.f32 %v2835, 2.0147366e-16
        %v2840 = vmul.f32 %v2641, %v2732
        %v2841 = vmul.f32 %v2643, %v2733
        %v2842 = vmul.f32 %v2645, %v2734
        %v2843 = vmul.f32 %v2647, %v2735
        %v2844 = vadd.f32 %v2840, 1.76737e-33
        %v2845 = vadd.f32 %v2841, 1.76737e-33
        %v2846 = vadd.f32 %v2842, 1.76737e-33
        %v2847 = vadd.f32 %v2843, 1.76737e-33
        %v2848 = vmul.f32 %v2653, %v2732
        %v2849 = vmul.f32 %v2655, %v2733
        %v2850 = vmul.f32 %v2657, %v2734
        %v2851 = vmul.f32 %v2659, %v2735
        %v2852 = vadd.f32 %v2848, 2.0147366e-16
        %v2853 = vadd.f32 %v2849, 2.0147366e-16
        %v2854 = vadd.f32 %v2850, 2.0147366e-16
        %v2855 = vadd.f32 %v2851, 2.0147366e-16
        %v2856 = vmul.f32 %v2665, %v2732
        %v2857 = vmul.f32 %v2667, %v2733
        %v2858 = vmul.f32 %v2669, %v2734
        %v2859 = vmul.f32 %v2671, %v2735
        %v2860 = vadd.f32 %v2856, 1.76737e-33
        %v2861 = vadd.f32 %v2857, 1.76737e-33
        %v2862 = vadd.f32 %v2858, 1.76737e-33
        %v2863 = vadd.f32 %v2859, 1.76737e-33
        %s2864 = ssub.s32 8, %s61
        %p2865 = scmp.gt.s32.totalorder %s2864, 0
        %s2866 = scalar_select %p2865, %s2864, 0
        %p2867 = scmp.lt.s32.totalorder %s2866, 31
        %s2868 = scalar_select %p2867, %s2866, 31
        %s2869 = ssub.s32 23, %s61
        %p2870 = scmp.gt.s32.totalorder %s2869, 0
        %s2871 = scalar_select %p2870, %s2869, 0
        %p2872 = scmp.lt.s32.totalorder %s2871, 31
        %s2873 = scalar_select %p2872, %s2871, 31
        %s2874 = smul.u32 4, 32
        %s2875 = smul.u32 %s2874, 1
        %s2876 = sshll.u32 %s2875, 4
        %2877 = dma.done %s81, %s2876
        %v2878 = vld [vmem:[#allocation3] sm:$0xff]
        %v2879 = vld [vmem:[#allocation3 + $0x8] sm:$0xff]
        %v2880 = vld [vmem:[#allocation3 + $0x10] sm:$0xff]
        %v2881 = vld [vmem:[#allocation3 + $0x18] sm:$0xff]
        %v2882 = vld [vmem:[#allocation3 + $0x20] sm:$0xff]
        %v2883 = vld [vmem:[#allocation3 + $0x28] sm:$0xff]
        %v2884 = vld [vmem:[#allocation3 + $0x30] sm:$0xff]
        %v2885 = vld [vmem:[#allocation3 + $0x38] sm:$0xff]
        %v2886 = vld [vmem:[#allocation3 + $0x40] sm:$0xff]
        %v2887 = vld [vmem:[#allocation3 + $0x48] sm:$0xff]
        %v2888 = vld [vmem:[#allocation3 + $0x50] sm:$0xff]
        %v2889 = vld [vmem:[#allocation3 + $0x58] sm:$0xff]
        %v2890 = vld [vmem:[#allocation3 + $0x60] sm:$0xff]
        %v2891 = vld [vmem:[#allocation3 + $0x68] sm:$0xff]
        %v2892 = vld [vmem:[#allocation3 + $0x70] sm:$0xff]
        %v2893 = vld [vmem:[#allocation3 + $0x78] sm:$0xff]
        %s2894 = scalar_lea.vmem [#allocation3], %s2868
        %v2895 = vld [vmem:[%s2894] sm:$0x1]
        %v2896 = vld [vmem:[%s2894 + $0x20] sm:$0x1]
        %v2897 = vld [vmem:[%s2894 + $0x40] sm:$0x1]
        %v2898 = vld [vmem:[%s2894 + $0x60] sm:$0x1]
        %s2899 = scalar_lea.vmem [#allocation3], %s2873
        %v2900 = vld [vmem:[%s2899] sm:$0x1]
        %v2901 = vld [vmem:[%s2899 + $0x20] sm:$0x1]
        %v2902 = vld [vmem:[%s2899 + $0x40] sm:$0x1]
        %v2903 = vld [vmem:[%s2899 + $0x60] sm:$0x1]
        %v2904 = vsel %vm109, 1, 0
        %v2905 = vsel %vm110, 1, 0
        %v2906 = vsel %vm111, 1, 0
        %v2907 = vsel %vm112, 1, 0
        %vm2908 = vcmp.eq.s32.totalorder %v2904, 1
        %vm2909 = vcmp.eq.s32.totalorder %v2905, 1
        %vm2910 = vcmp.eq.s32.totalorder %v2906, 1
        %vm2911 = vcmp.eq.s32.totalorder %v2907, 1
        %v2912 = vlaneseq
        %v2913 = vshrl.u32 %v2912, 7
        %v2914 = vsub.s32 0, %v2913
        %v2915 = vrot.slane %v2895, %v2914
        %v2916 = vlaneseq
        %v2917 = vshrl.u32 %v2916, 7
        %v2918 = vsub.s32 0, %v2917
        %v2919 = vrot.slane %v2896, %v2918
        %v2920 = vlaneseq
        %v2921 = vshrl.u32 %v2920, 7
        %v2922 = vsub.s32 0, %v2921
        %v2923 = vrot.slane %v2897, %v2922
        %v2924 = vlaneseq
        %v2925 = vshrl.u32 %v2924, 7
        %v2926 = vsub.s32 0, %v2925
        %v2927 = vrot.slane %v2898, %v2926
        %v2928 = vsel %vm2908, %v2915, %v2878
        %v2929 = vsel %vm2909, %v2915, %v2879
        %v2930 = vsel %vm2910, %v2915, %v2880
        %v2931 = vsel %vm2911, %v2915, %v2881
        %v2932 = vsel %vm2908, %v2919, %v2882
        %v2933 = vsel %vm2909, %v2919, %v2883
        %v2934 = vsel %vm2910, %v2919, %v2884
        %v2935 = vsel %vm2911, %v2919, %v2885
        %v2936 = vsel %vm2908, %v2923, %v2886
        %v2937 = vsel %vm2909, %v2923, %v2887
        %v2938 = vsel %vm2910, %v2923, %v2888
        %v2939 = vsel %vm2911, %v2923, %v2889
        %v2940 = vsel %vm2908, %v2927, %v2890
        %v2941 = vsel %vm2909, %v2927, %v2891
        %v2942 = vsel %vm2910, %v2927, %v2892
        %v2943 = vsel %vm2911, %v2927, %v2893
        %v2944 = vsel %vm113, 1, 0
        %v2945 = vsel %vm114, 1, 0
        %v2946 = vsel %vm115, 1, 0
        %v2947 = vsel %vm116, 1, 0
        %vm2948 = vcmp.eq.s32.totalorder %v2944, 1
        %vm2949 = vcmp.eq.s32.totalorder %v2945, 1
        %vm2950 = vcmp.eq.s32.totalorder %v2946, 1
        %vm2951 = vcmp.eq.s32.totalorder %v2947, 1
        %v2952 = vlaneseq
        %v2953 = vshrl.u32 %v2952, 7
        %v2954 = vsub.s32 0, %v2953
        %v2955 = vrot.slane %v2900, %v2954
        %v2956 = vlaneseq
        %v2957 = vshrl.u32 %v2956, 7
        %v2958 = vsub.s32 0, %v2957
        %v2959 = vrot.slane %v2901, %v2958
        %v2960 = vlaneseq
        %v2961 = vshrl.u32 %v2960, 7
        %v2962 = vsub.s32 0, %v2961
        %v2963 = vrot.slane %v2902, %v2962
        %v2964 = vlaneseq
        %v2965 = vshrl.u32 %v2964, 7
        %v2966 = vsub.s32 0, %v2965
        %v2967 = vrot.slane %v2903, %v2966
        %v2968 = vsel %vm2948, %v2955, %v2928
        %v2969 = vsel %vm2949, %v2955, %v2929
        %v2970 = vsel %vm2950, %v2955, %v2930
        %v2971 = vsel %vm2951, %v2955, %v2931
        %v2972 = vsel %vm2948, %v2959, %v2932
        %v2973 = vsel %vm2949, %v2959, %v2933
        %v2974 = vsel %vm2950, %v2959, %v2934
        %v2975 = vsel %vm2951, %v2959, %v2935
        %v2976 = vsel %vm2948, %v2963, %v2936
        %v2977 = vsel %vm2949, %v2963, %v2937
        %v2978 = vsel %vm2950, %v2963, %v2938
        %v2979 = vsel %vm2951, %v2963, %v2939
        %v2980 = vsel %vm2948, %v2967, %v2940
        %v2981 = vsel %vm2949, %v2967, %v2941
        %v2982 = vsel %vm2950, %v2967, %v2942
        %v2983 = vsel %vm2951, %v2967, %v2943
        %v2984 = vsel %vm117, 1, 0
        %vm2985 = vcmp.eq.s32.totalorder %v2984, 1
        %2987 = vset.pattern.permute.xlu0 15
        %2988 = vperm.xlu0 %2987, %v2968
        %v2989 = vpop.permute.xlu0 %2988
        %2992 = vset.pattern.permute.xlu0 15
        %2993 = vperm.xlu0 %2992, %v2969
        %v2994 = vpop.permute.xlu0 %2993
        %2997 = vset.pattern.permute.xlu0 15
        %2998 = vperm.xlu0 %2997, %v2970
        %v2999 = vpop.permute.xlu0 %2998
        %3002 = vset.pattern.permute.xlu0 15
        %3003 = vperm.xlu0 %3002, %v2971
        %v3004 = vpop.permute.xlu0 %3003
        %3007 = vset.pattern.permute.xlu0 15
        %3008 = vperm.xlu0 %3007, %v2972
        %v3009 = vpop.permute.xlu0 %3008
        %3012 = vset.pattern.permute.xlu0 15
        %3013 = vperm.xlu0 %3012, %v2973
        %v3014 = vpop.permute.xlu0 %3013
        %3017 = vset.pattern.permute.xlu0 15
        %3018 = vperm.xlu0 %3017, %v2974
        %v3019 = vpop.permute.xlu0 %3018
        %3022 = vset.pattern.permute.xlu0 15
        %3023 = vperm.xlu0 %3022, %v2975
        %v3024 = vpop.permute.xlu0 %3023
        %3027 = vset.pattern.permute.xlu0 15
        %3028 = vperm.xlu0 %3027, %v2976
        %v3029 = vpop.permute.xlu0 %3028
        %3032 = vset.pattern.permute.xlu0 15
        %3033 = vperm.xlu0 %3032, %v2977
        %v3034 = vpop.permute.xlu0 %3033
        %3037 = vset.pattern.permute.xlu0 15
        %3038 = vperm.xlu0 %3037, %v2978
        %v3039 = vpop.permute.xlu0 %3038
        %3042 = vset.pattern.permute.xlu0 15
        %3043 = vperm.xlu0 %3042, %v2979
        %v3044 = vpop.permute.xlu0 %3043
        %3047 = vset.pattern.permute.xlu0 15
        %3048 = vperm.xlu0 %3047, %v2980
        %v3049 = vpop.permute.xlu0 %3048
        %3052 = vset.pattern.permute.xlu0 15
        %3053 = vperm.xlu0 %3052, %v2981
        %v3054 = vpop.permute.xlu0 %3053
        %3057 = vset.pattern.permute.xlu0 15
        %3058 = vperm.xlu0 %3057, %v2982
        %v3059 = vpop.permute.xlu0 %3058
        %3062 = vset.pattern.permute.xlu0 15
        %3063 = vperm.xlu0 %3062, %v2983
        %v3064 = vpop.permute.xlu0 %3063
        %v3066 = vsel %vm2985, %v2989, %v2968
        %v3067 = vsel %vm2985, %v2994, %v2969
        %v3068 = vsel %vm2985, %v2999, %v2970
        %v3069 = vsel %vm2985, %v3004, %v2971
        %v3070 = vsel %vm2985, %v3009, %v2972
        %v3071 = vsel %vm2985, %v3014, %v2973
        %v3072 = vsel %vm2985, %v3019, %v2974
        %v3073 = vsel %vm2985, %v3024, %v2975
        %v3074 = vsel %vm2985, %v3029, %v2976
        %v3075 = vsel %vm2985, %v3034, %v2977
        %v3076 = vsel %vm2985, %v3039, %v2978
        %v3077 = vsel %vm2985, %v3044, %v2979
        %v3078 = vsel %vm2985, %v3049, %v2980
        %v3079 = vsel %vm2985, %v3054, %v2981
        %v3080 = vsel %vm2985, %v3059, %v2982
        %v3081 = vsel %vm2985, %v3064, %v2983
        %v3082 = vrot.slane %v3066, 7
        %v3083 = vrot.slane %v3070, 7
        %v3084 = vrot.slane %v3074, 7
        %v3085 = vrot.slane %v3078, 7
        %v3086 = vrot.slane %v3067, 7
        %v3087 = vrot.slane %v3071, 7
        %v3088 = vrot.slane %v3075, 7
        %v3089 = vrot.slane %v3079, 7
        %v3090 = vrot.slane %v3068, 7
        %v3091 = vrot.slane %v3072, 7
        %v3092 = vrot.slane %v3076, 7
        %v3093 = vrot.slane %v3080, 7
        %v3094 = vrot.slane %v3069, 7
        %v3095 = vrot.slane %v3073, 7
        %v3096 = vrot.slane %v3077, 7
        %v3097 = vrot.slane %v3081, 7
        %v3098 = vsel %vm144, %v3090, %v3094
        %v3099 = vsel %vm144, %v3091, %v3095
        %v3100 = vsel %vm144, %v3092, %v3096
        %v3101 = vsel %vm144, %v3093, %v3097
        %v3102 = vsel %vm144, %v3086, %v3090
        %v3103 = vsel %vm144, %v3087, %v3091
        %v3104 = vsel %vm144, %v3088, %v3092
        %v3105 = vsel %vm144, %v3089, %v3093
        %v3106 = vsel %vm144, %v3082, %v3086
        %v3107 = vsel %vm144, %v3083, %v3087
        %v3108 = vsel %vm144, %v3084, %v3088
        %v3109 = vsel %vm144, %v3085, %v3089
        %v3110 = vsel %vm144, %v3094, %v3082
        %v3111 = vsel %vm144, %v3095, %v3083
        %v3112 = vsel %vm144, %v3096, %v3084
        %v3113 = vsel %vm144, %v3097, %v3085
        %3114 = vrot.lane.b32.xlu0 %v3110, 1
        %v3115 = vpop.permute.xlu0 %3114
        %3116 = vrot.lane.b32.xlu0 %v3106, 1
        %v3117 = vpop.permute.xlu0 %3116
        %3118 = vrot.lane.b32.xlu0 %v3102, 1
        %v3119 = vpop.permute.xlu0 %3118
        %3120 = vrot.lane.b32.xlu0 %v3098, 1
        %v3121 = vpop.permute.xlu0 %3120
        %3122 = vrot.lane.b32.xlu0 %v3111, 1
        %v3123 = vpop.permute.xlu0 %3122
        %3124 = vrot.lane.b32.xlu0 %v3107, 1
        %v3125 = vpop.permute.xlu0 %3124
        %3126 = vrot.lane.b32.xlu0 %v3103, 1
        %v3127 = vpop.permute.xlu0 %3126
        %3128 = vrot.lane.b32.xlu0 %v3099, 1
        %v3129 = vpop.permute.xlu0 %3128
        %3130 = vrot.lane.b32.xlu0 %v3112, 1
        %v3131 = vpop.permute.xlu0 %3130
        %3132 = vrot.lane.b32.xlu0 %v3108, 1
        %v3133 = vpop.permute.xlu0 %3132
        %3134 = vrot.lane.b32.xlu0 %v3104, 1
        %v3135 = vpop.permute.xlu0 %3134
        %3136 = vrot.lane.b32.xlu0 %v3100, 1
        %v3137 = vpop.permute.xlu0 %3136
        %3138 = vrot.lane.b32.xlu0 %v3113, 1
        %v3139 = vpop.permute.xlu0 %3138
        %3140 = vrot.lane.b32.xlu0 %v3109, 1
        %v3141 = vpop.permute.xlu0 %3140
        %3142 = vrot.lane.b32.xlu0 %v3105, 1
        %v3143 = vpop.permute.xlu0 %3142
        %3144 = vrot.lane.b32.xlu0 %v3101, 1
        %v3145 = vpop.permute.xlu0 %3144
        %3147 = vset.pattern.permute.xlu0 0
        %3148 = vperm.xlu0 %3147, %v3110
        %v3149 = vpop.permute.xlu0 %3148
        %3152 = vset.pattern.permute.xlu0 0
        %3153 = vperm.xlu0 %3152, %v3106
        %v3154 = vpop.permute.xlu0 %3153
        %3157 = vset.pattern.permute.xlu0 0
        %3158 = vperm.xlu0 %3157, %v3102
        %v3159 = vpop.permute.xlu0 %3158
        %3162 = vset.pattern.permute.xlu0 0
        %3163 = vperm.xlu0 %3162, %v3098
        %v3164 = vpop.permute.xlu0 %3163
        %3167 = vset.pattern.permute.xlu0 0
        %3168 = vperm.xlu0 %3167, %v3111
        %v3169 = vpop.permute.xlu0 %3168
        %3172 = vset.pattern.permute.xlu0 0
        %3173 = vperm.xlu0 %3172, %v3107
        %v3174 = vpop.permute.xlu0 %3173
        %3177 = vset.pattern.permute.xlu0 0
        %3178 = vperm.xlu0 %3177, %v3103
        %v3179 = vpop.permute.xlu0 %3178
        %3182 = vset.pattern.permute.xlu0 0
        %3183 = vperm.xlu0 %3182, %v3099
        %v3184 = vpop.permute.xlu0 %3183
        %3187 = vset.pattern.permute.xlu0 0
        %3188 = vperm.xlu0 %3187, %v3112
        %v3189 = vpop.permute.xlu0 %3188
        %3192 = vset.pattern.permute.xlu0 0
        %3193 = vperm.xlu0 %3192, %v3108
        %v3194 = vpop.permute.xlu0 %3193
        %3197 = vset.pattern.permute.xlu0 0
        %3198 = vperm.xlu0 %3197, %v3104
        %v3199 = vpop.permute.xlu0 %3198
        %3202 = vset.pattern.permute.xlu0 0
        %3203 = vperm.xlu0 %3202, %v3100
        %v3204 = vpop.permute.xlu0 %3203
        %3207 = vset.pattern.permute.xlu0 0
        %3208 = vperm.xlu0 %3207, %v3113
        %v3209 = vpop.permute.xlu0 %3208
        %3212 = vset.pattern.permute.xlu0 0
        %3213 = vperm.xlu0 %3212, %v3109
        %v3214 = vpop.permute.xlu0 %3213
        %3217 = vset.pattern.permute.xlu0 0
        %3218 = vperm.xlu0 %3217, %v3105
        %v3219 = vpop.permute.xlu0 %3218
        %3222 = vset.pattern.permute.xlu0 0
        %3223 = vperm.xlu0 %3222, %v3101
        %v3224 = vpop.permute.xlu0 %3223
        %v3226 = vsel %vm182, %v3149, %v3115
        %v3227 = vsel %vm182, %v3154, %v3117
        %v3228 = vsel %vm182, %v3159, %v3119
        %v3229 = vsel %vm182, %v3164, %v3121
        %v3230 = vsel %vm182, %v3169, %v3123
        %v3231 = vsel %vm182, %v3174, %v3125
        %v3232 = vsel %vm182, %v3179, %v3127
        %v3233 = vsel %vm182, %v3184, %v3129
        %v3234 = vsel %vm182, %v3189, %v3131
        %v3235 = vsel %vm182, %v3194, %v3133
        %v3236 = vsel %vm182, %v3199, %v3135
        %v3237 = vsel %vm182, %v3204, %v3137
        %v3238 = vsel %vm182, %v3209, %v3139
        %v3239 = vsel %vm182, %v3214, %v3141
        %v3240 = vsel %vm182, %v3219, %v3143
        %v3241 = vsel %vm182, %v3224, %v3145
        %v3242 = vmul.f32 %v3226, %v2740
        %v3243 = vmul.f32 %v3227, %v2741
        %v3244 = vmul.f32 %v3228, %v2742
        %v3245 = vmul.f32 %v3229, %v2743
        %v3246 = vmul.f32 %v3230, %v2740
        %v3247 = vmul.f32 %v3231, %v2741
        %v3248 = vmul.f32 %v3232, %v2742
        %v3249 = vmul.f32 %v3233, %v2743
        %v3250 = vmul.f32 %v3234, %v2740
        %v3251 = vmul.f32 %v3235, %v2741
        %v3252 = vmul.f32 %v3236, %v2742
        %v3253 = vmul.f32 %v3237, %v2743
        %v3254 = vmul.f32 %v3238, %v2740
        %v3255 = vmul.f32 %v3239, %v2741
        %v3256 = vmul.f32 %v3240, %v2742
        %v3257 = vmul.f32 %v3241, %v2743
        %v3258 = vadd.f32 %v3242, 0.0
        %v3259 = vadd.f32 %v3243, 0.0
        %v3260 = vadd.f32 %v3244, 0.0
        %v3261 = vadd.f32 %v3245, 0.0
        %v3262 = vadd.f32 %v3246, 0.0
        %v3263 = vadd.f32 %v3247, 0.0
        %v3264 = vadd.f32 %v3248, 0.0
        %v3265 = vadd.f32 %v3249, 0.0
        %v3266 = vadd.f32 %v3250, 0.0
        %v3267 = vadd.f32 %v3251, 0.0
        %v3268 = vadd.f32 %v3252, 0.0
        %v3269 = vadd.f32 %v3253, 0.0
        %v3270 = vadd.f32 %v3254, 0.0
        %v3271 = vadd.f32 %v3255, 0.0
        %v3272 = vadd.f32 %v3256, 0.0
        %v3273 = vadd.f32 %v3257, 0.0
        %v3274 = vmul.f32 %v3110, %v2748
        %v3275 = vmul.f32 %v3106, %v2749
        %v3276 = vmul.f32 %v3102, %v2750
        %v3277 = vmul.f32 %v3098, %v2751
        %v3278 = vmul.f32 %v3111, %v2748
        %v3279 = vmul.f32 %v3107, %v2749
        %v3280 = vmul.f32 %v3103, %v2750
        %v3281 = vmul.f32 %v3099, %v2751
        %v3282 = vmul.f32 %v3112, %v2748
        %v3283 = vmul.f32 %v3108, %v2749
        %v3284 = vmul.f32 %v3104, %v2750
        %v3285 = vmul.f32 %v3100, %v2751
        %v3286 = vmul.f32 %v3113, %v2748
        %v3287 = vmul.f32 %v3109, %v2749
        %v3288 = vmul.f32 %v3105, %v2750
        %v3289 = vmul.f32 %v3101, %v2751
        %v3290 = vadd.f32 %v3258, %v3274
        %v3291 = vadd.f32 %v3259, %v3275
        %v3292 = vadd.f32 %v3260, %v3276
        %v3293 = vadd.f32 %v3261, %v3277
        %v3294 = vadd.f32 %v3262, %v3278
        %v3295 = vadd.f32 %v3263, %v3279
        %v3296 = vadd.f32 %v3264, %v3280
        %v3297 = vadd.f32 %v3265, %v3281
        %v3298 = vadd.f32 %v3266, %v3282
        %v3299 = vadd.f32 %v3267, %v3283
        %v3300 = vadd.f32 %v3268, %v3284
        %v3301 = vadd.f32 %v3269, %v3285
        %v3302 = vadd.f32 %v3270, %v3286
        %v3303 = vadd.f32 %v3271, %v3287
        %v3304 = vadd.f32 %v3272, %v3288
        %v3305 = vadd.f32 %v3273, %v3289
        %3306 = vrot.lane.b32.xlu0 %v3110, 127
        %v3307 = vpop.permute.xlu0 %3306
        %3308 = vrot.lane.b32.xlu0 %v3106, 127
        %v3309 = vpop.permute.xlu0 %3308
        %3310 = vrot.lane.b32.xlu0 %v3102, 127
        %v3311 = vpop.permute.xlu0 %3310
        %3312 = vrot.lane.b32.xlu0 %v3098, 127
        %v3313 = vpop.permute.xlu0 %3312
        %3314 = vrot.lane.b32.xlu0 %v3111, 127
        %v3315 = vpop.permute.xlu0 %3314
        %3316 = vrot.lane.b32.xlu0 %v3107, 127
        %v3317 = vpop.permute.xlu0 %3316
        %3318 = vrot.lane.b32.xlu0 %v3103, 127
        %v3319 = vpop.permute.xlu0 %3318
        %3320 = vrot.lane.b32.xlu0 %v3099, 127
        %v3321 = vpop.permute.xlu0 %3320
        %3322 = vrot.lane.b32.xlu0 %v3112, 127
        %v3323 = vpop.permute.xlu0 %3322
        %3324 = vrot.lane.b32.xlu0 %v3108, 127
        %v3325 = vpop.permute.xlu0 %3324
        %3326 = vrot.lane.b32.xlu0 %v3104, 127
        %v3327 = vpop.permute.xlu0 %3326
        %3328 = vrot.lane.b32.xlu0 %v3100, 127
        %v3329 = vpop.permute.xlu0 %3328
        %3330 = vrot.lane.b32.xlu0 %v3113, 127
        %v3331 = vpop.permute.xlu0 %3330
        %3332 = vrot.lane.b32.xlu0 %v3109, 127
        %v3333 = vpop.permute.xlu0 %3332
        %3334 = vrot.lane.b32.xlu0 %v3105, 127
        %v3335 = vpop.permute.xlu0 %3334
        %3336 = vrot.lane.b32.xlu0 %v3101, 127
        %v3337 = vpop.permute.xlu0 %3336
        %v3338 = vmul.f32 %v3307, %v2756
        %v3339 = vmul.f32 %v3309, %v2757
        %v3340 = vmul.f32 %v3311, %v2758
        %v3341 = vmul.f32 %v3313, %v2759
        %v3342 = vmul.f32 %v3315, %v2756
        %v3343 = vmul.f32 %v3317, %v2757
        %v3344 = vmul.f32 %v3319, %v2758
        %v3345 = vmul.f32 %v3321, %v2759
        %v3346 = vmul.f32 %v3323, %v2756
        %v3347 = vmul.f32 %v3325, %v2757
        %v3348 = vmul.f32 %v3327, %v2758
        %v3349 = vmul.f32 %v3329, %v2759
        %v3350 = vmul.f32 %v3331, %v2756
        %v3351 = vmul.f32 %v3333, %v2757
        %v3352 = vmul.f32 %v3335, %v2758
        %v3353 = vmul.f32 %v3337, %v2759
        %v3354 = vadd.f32 %v3290, %v3338
        %v3355 = vadd.f32 %v3291, %v3339
        %v3356 = vadd.f32 %v3292, %v3340
        %v3357 = vadd.f32 %v3293, %v3341
        %v3358 = vadd.f32 %v3294, %v3342
        %v3359 = vadd.f32 %v3295, %v3343
        %v3360 = vadd.f32 %v3296, %v3344
        %v3361 = vadd.f32 %v3297, %v3345
        %v3362 = vadd.f32 %v3298, %v3346
        %v3363 = vadd.f32 %v3299, %v3347
        %v3364 = vadd.f32 %v3300, %v3348
        %v3365 = vadd.f32 %v3301, %v3349
        %v3366 = vadd.f32 %v3302, %v3350
        %v3367 = vadd.f32 %v3303, %v3351
        %v3368 = vadd.f32 %v3304, %v3352
        %v3369 = vadd.f32 %v3305, %v3353
        %3370 = vrot.lane.b32.xlu0 %v3066, 1
        %v3371 = vpop.permute.xlu0 %3370
        %3372 = vrot.lane.b32.xlu0 %v3067, 1
        %v3373 = vpop.permute.xlu0 %3372
        %3374 = vrot.lane.b32.xlu0 %v3068, 1
        %v3375 = vpop.permute.xlu0 %3374
        %3376 = vrot.lane.b32.xlu0 %v3069, 1
        %v3377 = vpop.permute.xlu0 %3376
        %3378 = vrot.lane.b32.xlu0 %v3070, 1
        %v3379 = vpop.permute.xlu0 %3378
        %3380 = vrot.lane.b32.xlu0 %v3071, 1
        %v3381 = vpop.permute.xlu0 %3380
        %3382 = vrot.lane.b32.xlu0 %v3072, 1
        %v3383 = vpop.permute.xlu0 %3382
        %3384 = vrot.lane.b32.xlu0 %v3073, 1
        %v3385 = vpop.permute.xlu0 %3384
        %3386 = vrot.lane.b32.xlu0 %v3074, 1
        %v3387 = vpop.permute.xlu0 %3386
        %3388 = vrot.lane.b32.xlu0 %v3075, 1
        %v3389 = vpop.permute.xlu0 %3388
        %3390 = vrot.lane.b32.xlu0 %v3076, 1
        %v3391 = vpop.permute.xlu0 %3390
        %3392 = vrot.lane.b32.xlu0 %v3077, 1
        %v3393 = vpop.permute.xlu0 %3392
        %3394 = vrot.lane.b32.xlu0 %v3078, 1
        %v3395 = vpop.permute.xlu0 %3394
        %3396 = vrot.lane.b32.xlu0 %v3079, 1
        %v3397 = vpop.permute.xlu0 %3396
        %3398 = vrot.lane.b32.xlu0 %v3080, 1
        %v3399 = vpop.permute.xlu0 %3398
        %3400 = vrot.lane.b32.xlu0 %v3081, 1
        %v3401 = vpop.permute.xlu0 %3400
        %3403 = vset.pattern.permute.xlu0 0
        %3404 = vperm.xlu0 %3403, %v3066
        %v3405 = vpop.permute.xlu0 %3404
        %3408 = vset.pattern.permute.xlu0 0
        %3409 = vperm.xlu0 %3408, %v3067
        %v3410 = vpop.permute.xlu0 %3409
        %3413 = vset.pattern.permute.xlu0 0
        %3414 = vperm.xlu0 %3413, %v3068
        %v3415 = vpop.permute.xlu0 %3414
        %3418 = vset.pattern.permute.xlu0 0
        %3419 = vperm.xlu0 %3418, %v3069
        %v3420 = vpop.permute.xlu0 %3419
        %3423 = vset.pattern.permute.xlu0 0
        %3424 = vperm.xlu0 %3423, %v3070
        %v3425 = vpop.permute.xlu0 %3424
        %3428 = vset.pattern.permute.xlu0 0
        %3429 = vperm.xlu0 %3428, %v3071
        %v3430 = vpop.permute.xlu0 %3429
        %3433 = vset.pattern.permute.xlu0 0
        %3434 = vperm.xlu0 %3433, %v3072
        %v3435 = vpop.permute.xlu0 %3434
        %3438 = vset.pattern.permute.xlu0 0
        %3439 = vperm.xlu0 %3438, %v3073
        %v3440 = vpop.permute.xlu0 %3439
        %3443 = vset.pattern.permute.xlu0 0
        %3444 = vperm.xlu0 %3443, %v3074
        %v3445 = vpop.permute.xlu0 %3444
        %3448 = vset.pattern.permute.xlu0 0
        %3449 = vperm.xlu0 %3448, %v3075
        %v3450 = vpop.permute.xlu0 %3449
        %3453 = vset.pattern.permute.xlu0 0
        %3454 = vperm.xlu0 %3453, %v3076
        %v3455 = vpop.permute.xlu0 %3454
        %3458 = vset.pattern.permute.xlu0 0
        %3459 = vperm.xlu0 %3458, %v3077
        %v3460 = vpop.permute.xlu0 %3459
        %3463 = vset.pattern.permute.xlu0 0
        %3464 = vperm.xlu0 %3463, %v3078
        %v3465 = vpop.permute.xlu0 %3464
        %3468 = vset.pattern.permute.xlu0 0
        %3469 = vperm.xlu0 %3468, %v3079
        %v3470 = vpop.permute.xlu0 %3469
        %3473 = vset.pattern.permute.xlu0 0
        %3474 = vperm.xlu0 %3473, %v3080
        %v3475 = vpop.permute.xlu0 %3474
        %3478 = vset.pattern.permute.xlu0 0
        %3479 = vperm.xlu0 %3478, %v3081
        %v3480 = vpop.permute.xlu0 %3479
        %v3482 = vsel %vm182, %v3405, %v3371
        %v3483 = vsel %vm182, %v3410, %v3373
        %v3484 = vsel %vm182, %v3415, %v3375
        %v3485 = vsel %vm182, %v3420, %v3377
        %v3486 = vsel %vm182, %v3425, %v3379
        %v3487 = vsel %vm182, %v3430, %v3381
        %v3488 = vsel %vm182, %v3435, %v3383
        %v3489 = vsel %vm182, %v3440, %v3385
        %v3490 = vsel %vm182, %v3445, %v3387
        %v3491 = vsel %vm182, %v3450, %v3389
        %v3492 = vsel %vm182, %v3455, %v3391
        %v3493 = vsel %vm182, %v3460, %v3393
        %v3494 = vsel %vm182, %v3465, %v3395
        %v3495 = vsel %vm182, %v3470, %v3397
        %v3496 = vsel %vm182, %v3475, %v3399
        %v3497 = vsel %vm182, %v3480, %v3401
        %v3498 = vmul.f32 %v3482, %v2764
        %v3499 = vmul.f32 %v3483, %v2765
        %v3500 = vmul.f32 %v3484, %v2766
        %v3501 = vmul.f32 %v3485, %v2767
        %v3502 = vmul.f32 %v3486, %v2764
        %v3503 = vmul.f32 %v3487, %v2765
        %v3504 = vmul.f32 %v3488, %v2766
        %v3505 = vmul.f32 %v3489, %v2767
        %v3506 = vmul.f32 %v3490, %v2764
        %v3507 = vmul.f32 %v3491, %v2765
        %v3508 = vmul.f32 %v3492, %v2766
        %v3509 = vmul.f32 %v3493, %v2767
        %v3510 = vmul.f32 %v3494, %v2764
        %v3511 = vmul.f32 %v3495, %v2765
        %v3512 = vmul.f32 %v3496, %v2766
        %v3513 = vmul.f32 %v3497, %v2767
        %v3514 = vadd.f32 %v3354, %v3498
        %v3515 = vadd.f32 %v3355, %v3499
        %v3516 = vadd.f32 %v3356, %v3500
        %v3517 = vadd.f32 %v3357, %v3501
        %v3518 = vadd.f32 %v3358, %v3502
        %v3519 = vadd.f32 %v3359, %v3503
        %v3520 = vadd.f32 %v3360, %v3504
        %v3521 = vadd.f32 %v3361, %v3505
        %v3522 = vadd.f32 %v3362, %v3506
        %v3523 = vadd.f32 %v3363, %v3507
        %v3524 = vadd.f32 %v3364, %v3508
        %v3525 = vadd.f32 %v3365, %v3509
        %v3526 = vadd.f32 %v3366, %v3510
        %v3527 = vadd.f32 %v3367, %v3511
        %v3528 = vadd.f32 %v3368, %v3512
        %v3529 = vadd.f32 %v3369, %v3513
        %3530 = vrot.lane.b32.xlu0 %v3066, 127
        %v3531 = vpop.permute.xlu0 %3530
        %3532 = vrot.lane.b32.xlu0 %v3067, 127
        %v3533 = vpop.permute.xlu0 %3532
        %3534 = vrot.lane.b32.xlu0 %v3068, 127
        %v3535 = vpop.permute.xlu0 %3534
        %3536 = vrot.lane.b32.xlu0 %v3069, 127
        %v3537 = vpop.permute.xlu0 %3536
        %3538 = vrot.lane.b32.xlu0 %v3070, 127
        %v3539 = vpop.permute.xlu0 %3538
        %3540 = vrot.lane.b32.xlu0 %v3071, 127
        %v3541 = vpop.permute.xlu0 %3540
        %3542 = vrot.lane.b32.xlu0 %v3072, 127
        %v3543 = vpop.permute.xlu0 %3542
        %3544 = vrot.lane.b32.xlu0 %v3073, 127
        %v3545 = vpop.permute.xlu0 %3544
        %3546 = vrot.lane.b32.xlu0 %v3074, 127
        %v3547 = vpop.permute.xlu0 %3546
        %3548 = vrot.lane.b32.xlu0 %v3075, 127
        %v3549 = vpop.permute.xlu0 %3548
        %3550 = vrot.lane.b32.xlu0 %v3076, 127
        %v3551 = vpop.permute.xlu0 %3550
        %3552 = vrot.lane.b32.xlu0 %v3077, 127
        %v3553 = vpop.permute.xlu0 %3552
        %3554 = vrot.lane.b32.xlu0 %v3078, 127
        %v3555 = vpop.permute.xlu0 %3554
        %3556 = vrot.lane.b32.xlu0 %v3079, 127
        %v3557 = vpop.permute.xlu0 %3556
        %3558 = vrot.lane.b32.xlu0 %v3080, 127
        %v3559 = vpop.permute.xlu0 %3558
        %3560 = vrot.lane.b32.xlu0 %v3081, 127
        %v3561 = vpop.permute.xlu0 %3560
        %v3562 = vmul.f32 %v3531, %v2772
        %v3563 = vmul.f32 %v3533, %v2773
        %v3564 = vmul.f32 %v3535, %v2774
        %v3565 = vmul.f32 %v3537, %v2775
        %v3566 = vmul.f32 %v3539, %v2772
        %v3567 = vmul.f32 %v3541, %v2773
        %v3568 = vmul.f32 %v3543, %v2774
        %v3569 = vmul.f32 %v3545, %v2775
        %v3570 = vmul.f32 %v3547, %v2772
        %v3571 = vmul.f32 %v3549, %v2773
        %v3572 = vmul.f32 %v3551, %v2774
        %v3573 = vmul.f32 %v3553, %v2775
        %v3574 = vmul.f32 %v3555, %v2772
        %v3575 = vmul.f32 %v3557, %v2773
        %v3576 = vmul.f32 %v3559, %v2774
        %v3577 = vmul.f32 %v3561, %v2775
        %v3578 = vadd.f32 %v3514, %v3562
        %v3579 = vadd.f32 %v3515, %v3563
        %v3580 = vadd.f32 %v3516, %v3564
        %v3581 = vadd.f32 %v3517, %v3565
        %v3582 = vadd.f32 %v3518, %v3566
        %v3583 = vadd.f32 %v3519, %v3567
        %v3584 = vadd.f32 %v3520, %v3568
        %v3585 = vadd.f32 %v3521, %v3569
        %v3586 = vadd.f32 %v3522, %v3570
        %v3587 = vadd.f32 %v3523, %v3571
        %v3588 = vadd.f32 %v3524, %v3572
        %v3589 = vadd.f32 %v3525, %v3573
        %v3590 = vadd.f32 %v3526, %v3574
        %v3591 = vadd.f32 %v3527, %v3575
        %v3592 = vadd.f32 %v3528, %v3576
        %v3593 = vadd.f32 %v3529, %v3577
        %v3594 = vrot.slane %v3066, 1
        %v3595 = vrot.slane %v3070, 1
        %v3596 = vrot.slane %v3074, 1
        %v3597 = vrot.slane %v3078, 1
        %v3598 = vrot.slane %v3067, 1
        %v3599 = vrot.slane %v3071, 1
        %v3600 = vrot.slane %v3075, 1
        %v3601 = vrot.slane %v3079, 1
        %v3602 = vrot.slane %v3068, 1
        %v3603 = vrot.slane %v3072, 1
        %v3604 = vrot.slane %v3076, 1
        %v3605 = vrot.slane %v3080, 1
        %v3606 = vrot.slane %v3069, 1
        %v3607 = vrot.slane %v3073, 1
        %v3608 = vrot.slane %v3077, 1
        %v3609 = vrot.slane %v3081, 1
        %v3610 = vsel %vm651, %v3602, %v3606
        %v3611 = vsel %vm651, %v3603, %v3607
        %v3612 = vsel %vm651, %v3604, %v3608
        %v3613 = vsel %vm651, %v3605, %v3609
        %v3614 = vsel %vm651, %v3598, %v3602
        %v3615 = vsel %vm651, %v3599, %v3603
        %v3616 = vsel %vm651, %v3600, %v3604
        %v3617 = vsel %vm651, %v3601, %v3605
        %v3618 = vsel %vm651, %v3594, %v3598
        %v3619 = vsel %vm651, %v3595, %v3599
        %v3620 = vsel %vm651, %v3596, %v3600
        %v3621 = vsel %vm651, %v3597, %v3601
        %v3622 = vsel %vm651, %v3606, %v3594
        %v3623 = vsel %vm651, %v3607, %v3595
        %v3624 = vsel %vm651, %v3608, %v3596
        %v3625 = vsel %vm651, %v3609, %v3597
        %3626 = vrot.lane.b32.xlu0 %v3618, 1
        %v3627 = vpop.permute.xlu0 %3626
        %3628 = vrot.lane.b32.xlu0 %v3614, 1
        %v3629 = vpop.permute.xlu0 %3628
        %3630 = vrot.lane.b32.xlu0 %v3610, 1
        %v3631 = vpop.permute.xlu0 %3630
        %3632 = vrot.lane.b32.xlu0 %v3622, 1
        %v3633 = vpop.permute.xlu0 %3632
        %3634 = vrot.lane.b32.xlu0 %v3619, 1
        %v3635 = vpop.permute.xlu0 %3634
        %3636 = vrot.lane.b32.xlu0 %v3615, 1
        %v3637 = vpop.permute.xlu0 %3636
        %3638 = vrot.lane.b32.xlu0 %v3611, 1
        %v3639 = vpop.permute.xlu0 %3638
        %3640 = vrot.lane.b32.xlu0 %v3623, 1
        %v3641 = vpop.permute.xlu0 %3640
        %3642 = vrot.lane.b32.xlu0 %v3620, 1
        %v3643 = vpop.permute.xlu0 %3642
        %3644 = vrot.lane.b32.xlu0 %v3616, 1
        %v3645 = vpop.permute.xlu0 %3644
        %3646 = vrot.lane.b32.xlu0 %v3612, 1
        %v3647 = vpop.permute.xlu0 %3646
        %3648 = vrot.lane.b32.xlu0 %v3624, 1
        %v3649 = vpop.permute.xlu0 %3648
        %3650 = vrot.lane.b32.xlu0 %v3621, 1
        %v3651 = vpop.permute.xlu0 %3650
        %3652 = vrot.lane.b32.xlu0 %v3617, 1
        %v3653 = vpop.permute.xlu0 %3652
        %3654 = vrot.lane.b32.xlu0 %v3613, 1
        %v3655 = vpop.permute.xlu0 %3654
        %3656 = vrot.lane.b32.xlu0 %v3625, 1
        %v3657 = vpop.permute.xlu0 %3656
        %3659 = vset.pattern.permute.xlu0 0
        %3660 = vperm.xlu0 %3659, %v3618
        %v3661 = vpop.permute.xlu0 %3660
        %3664 = vset.pattern.permute.xlu0 0
        %3665 = vperm.xlu0 %3664, %v3614
        %v3666 = vpop.permute.xlu0 %3665
        %3669 = vset.pattern.permute.xlu0 0
        %3670 = vperm.xlu0 %3669, %v3610
        %v3671 = vpop.permute.xlu0 %3670
        %3674 = vset.pattern.permute.xlu0 0
        %3675 = vperm.xlu0 %3674, %v3622
        %v3676 = vpop.permute.xlu0 %3675
        %3679 = vset.pattern.permute.xlu0 0
        %3680 = vperm.xlu0 %3679, %v3619
        %v3681 = vpop.permute.xlu0 %3680
        %3684 = vset.pattern.permute.xlu0 0
        %3685 = vperm.xlu0 %3684, %v3615
        %v3686 = vpop.permute.xlu0 %3685
        %3689 = vset.pattern.permute.xlu0 0
        %3690 = vperm.xlu0 %3689, %v3611
        %v3691 = vpop.permute.xlu0 %3690
        %3694 = vset.pattern.permute.xlu0 0
        %3695 = vperm.xlu0 %3694, %v3623
        %v3696 = vpop.permute.xlu0 %3695
        %3699 = vset.pattern.permute.xlu0 0
        %3700 = vperm.xlu0 %3699, %v3620
        %v3701 = vpop.permute.xlu0 %3700
        %3704 = vset.pattern.permute.xlu0 0
        %3705 = vperm.xlu0 %3704, %v3616
        %v3706 = vpop.permute.xlu0 %3705
        %3709 = vset.pattern.permute.xlu0 0
        %3710 = vperm.xlu0 %3709, %v3612
        %v3711 = vpop.permute.xlu0 %3710
        %3714 = vset.pattern.permute.xlu0 0
        %3715 = vperm.xlu0 %3714, %v3624
        %v3716 = vpop.permute.xlu0 %3715
        %3719 = vset.pattern.permute.xlu0 0
        %3720 = vperm.xlu0 %3719, %v3621
        %v3721 = vpop.permute.xlu0 %3720
        %3724 = vset.pattern.permute.xlu0 0
        %3725 = vperm.xlu0 %3724, %v3617
        %v3726 = vpop.permute.xlu0 %3725
        %3729 = vset.pattern.permute.xlu0 0
        %3730 = vperm.xlu0 %3729, %v3613
        %v3731 = vpop.permute.xlu0 %3730
        %3734 = vset.pattern.permute.xlu0 0
        %3735 = vperm.xlu0 %3734, %v3625
        %v3736 = vpop.permute.xlu0 %3735
        %v3738 = vsel %vm182, %v3661, %v3627
        %v3739 = vsel %vm182, %v3666, %v3629
        %v3740 = vsel %vm182, %v3671, %v3631
        %v3741 = vsel %vm182, %v3676, %v3633
        %v3742 = vsel %vm182, %v3681, %v3635
        %v3743 = vsel %vm182, %v3686, %v3637
        %v3744 = vsel %vm182, %v3691, %v3639
        %v3745 = vsel %vm182, %v3696, %v3641
        %v3746 = vsel %vm182, %v3701, %v3643
        %v3747 = vsel %vm182, %v3706, %v3645
        %v3748 = vsel %vm182, %v3711, %v3647
        %v3749 = vsel %vm182, %v3716, %v3649
        %v3750 = vsel %vm182, %v3721, %v3651
        %v3751 = vsel %vm182, %v3726, %v3653
        %v3752 = vsel %vm182, %v3731, %v3655
        %v3753 = vsel %vm182, %v3736, %v3657
        %v3754 = vmul.f32 %v3738, %v2780
        %v3755 = vmul.f32 %v3739, %v2781
        %v3756 = vmul.f32 %v3740, %v2782
        %v3757 = vmul.f32 %v3741, %v2783
        %v3758 = vmul.f32 %v3742, %v2780
        %v3759 = vmul.f32 %v3743, %v2781
        %v3760 = vmul.f32 %v3744, %v2782
        %v3761 = vmul.f32 %v3745, %v2783
        %v3762 = vmul.f32 %v3746, %v2780
        %v3763 = vmul.f32 %v3747, %v2781
        %v3764 = vmul.f32 %v3748, %v2782
        %v3765 = vmul.f32 %v3749, %v2783
        %v3766 = vmul.f32 %v3750, %v2780
        %v3767 = vmul.f32 %v3751, %v2781
        %v3768 = vmul.f32 %v3752, %v2782
        %v3769 = vmul.f32 %v3753, %v2783
        %v3770 = vadd.f32 %v3578, %v3754
        %v3771 = vadd.f32 %v3579, %v3755
        %v3772 = vadd.f32 %v3580, %v3756
        %v3773 = vadd.f32 %v3581, %v3757
        %v3774 = vadd.f32 %v3582, %v3758
        %v3775 = vadd.f32 %v3583, %v3759
        %v3776 = vadd.f32 %v3584, %v3760
        %v3777 = vadd.f32 %v3585, %v3761
        %v3778 = vadd.f32 %v3586, %v3762
        %v3779 = vadd.f32 %v3587, %v3763
        %v3780 = vadd.f32 %v3588, %v3764
        %v3781 = vadd.f32 %v3589, %v3765
        %v3782 = vadd.f32 %v3590, %v3766
        %v3783 = vadd.f32 %v3591, %v3767
        %v3784 = vadd.f32 %v3592, %v3768
        %v3785 = vadd.f32 %v3593, %v3769
        %v3786 = vmul.f32 %v3618, %v2788
        %v3787 = vmul.f32 %v3614, %v2789
        %v3788 = vmul.f32 %v3610, %v2790
        %v3789 = vmul.f32 %v3622, %v2791
        %v3790 = vmul.f32 %v3619, %v2788
        %v3791 = vmul.f32 %v3615, %v2789
        %v3792 = vmul.f32 %v3611, %v2790
        %v3793 = vmul.f32 %v3623, %v2791
        %v3794 = vmul.f32 %v3620, %v2788
        %v3795 = vmul.f32 %v3616, %v2789
        %v3796 = vmul.f32 %v3612, %v2790
        %v3797 = vmul.f32 %v3624, %v2791
        %v3798 = vmul.f32 %v3621, %v2788
        %v3799 = vmul.f32 %v3617, %v2789
        %v3800 = vmul.f32 %v3613, %v2790
        %v3801 = vmul.f32 %v3625, %v2791
        %v3802 = vadd.f32 %v3770, %v3786
        %v3803 = vadd.f32 %v3771, %v3787
        %v3804 = vadd.f32 %v3772, %v3788
        %v3805 = vadd.f32 %v3773, %v3789
        %v3806 = vadd.f32 %v3774, %v3790
        %v3807 = vadd.f32 %v3775, %v3791
        %v3808 = vadd.f32 %v3776, %v3792
        %v3809 = vadd.f32 %v3777, %v3793
        %v3810 = vadd.f32 %v3778, %v3794
        %v3811 = vadd.f32 %v3779, %v3795
        %v3812 = vadd.f32 %v3780, %v3796
        %v3813 = vadd.f32 %v3781, %v3797
        %v3814 = vadd.f32 %v3782, %v3798
        %v3815 = vadd.f32 %v3783, %v3799
        %v3816 = vadd.f32 %v3784, %v3800
        %v3817 = vadd.f32 %v3785, %v3801
        %3818 = vrot.lane.b32.xlu0 %v3618, 127
        %v3819 = vpop.permute.xlu0 %3818
        %3820 = vrot.lane.b32.xlu0 %v3614, 127
        %v3821 = vpop.permute.xlu0 %3820
        %3822 = vrot.lane.b32.xlu0 %v3610, 127
        %v3823 = vpop.permute.xlu0 %3822
        %3824 = vrot.lane.b32.xlu0 %v3622, 127
        %v3825 = vpop.permute.xlu0 %3824
        %3826 = vrot.lane.b32.xlu0 %v3619, 127
        %v3827 = vpop.permute.xlu0 %3826
        %3828 = vrot.lane.b32.xlu0 %v3615, 127
        %v3829 = vpop.permute.xlu0 %3828
        %3830 = vrot.lane.b32.xlu0 %v3611, 127
        %v3831 = vpop.permute.xlu0 %3830
        %3832 = vrot.lane.b32.xlu0 %v3623, 127
        %v3833 = vpop.permute.xlu0 %3832
        %3834 = vrot.lane.b32.xlu0 %v3620, 127
        %v3835 = vpop.permute.xlu0 %3834
        %3836 = vrot.lane.b32.xlu0 %v3616, 127
        %v3837 = vpop.permute.xlu0 %3836
        %3838 = vrot.lane.b32.xlu0 %v3612, 127
        %v3839 = vpop.permute.xlu0 %3838
        %3840 = vrot.lane.b32.xlu0 %v3624, 127
        %v3841 = vpop.permute.xlu0 %3840
        %3842 = vrot.lane.b32.xlu0 %v3621, 127
        %v3843 = vpop.permute.xlu0 %3842
        %3844 = vrot.lane.b32.xlu0 %v3617, 127
        %v3845 = vpop.permute.xlu0 %3844
        %3846 = vrot.lane.b32.xlu0 %v3613, 127
        %v3847 = vpop.permute.xlu0 %3846
        %3848 = vrot.lane.b32.xlu0 %v3625, 127
        %v3849 = vpop.permute.xlu0 %3848
        %v3850 = vmul.f32 %v3819, %v2796
        %v3851 = vmul.f32 %v3821, %v2797
        %v3852 = vmul.f32 %v3823, %v2798
        %v3853 = vmul.f32 %v3825, %v2799
        %v3854 = vmul.f32 %v3827, %v2796
        %v3855 = vmul.f32 %v3829, %v2797
        %v3856 = vmul.f32 %v3831, %v2798
        %v3857 = vmul.f32 %v3833, %v2799
        %v3858 = vmul.f32 %v3835, %v2796
        %v3859 = vmul.f32 %v3837, %v2797
        %v3860 = vmul.f32 %v3839, %v2798
        %v3861 = vmul.f32 %v3841, %v2799
        %v3862 = vmul.f32 %v3843, %v2796
        %v3863 = vmul.f32 %v3845, %v2797
        %v3864 = vmul.f32 %v3847, %v2798
        %v3865 = vmul.f32 %v3849, %v2799
        %v3866 = vadd.f32 %v3802, %v3850
        %v3867 = vadd.f32 %v3803, %v3851
        %v3868 = vadd.f32 %v3804, %v3852
        %v3869 = vadd.f32 %v3805, %v3853
        %v3870 = vadd.f32 %v3806, %v3854
        %v3871 = vadd.f32 %v3807, %v3855
        %v3872 = vadd.f32 %v3808, %v3856
        %v3873 = vadd.f32 %v3809, %v3857
        %v3874 = vadd.f32 %v3810, %v3858
        %v3875 = vadd.f32 %v3811, %v3859
        %v3876 = vadd.f32 %v3812, %v3860
        %v3877 = vadd.f32 %v3813, %v3861
        %v3878 = vadd.f32 %v3814, %v3862
        %v3879 = vadd.f32 %v3815, %v3863
        %v3880 = vadd.f32 %v3816, %v3864
        %v3881 = vadd.f32 %v3817, %v3865
        %v3882 = vrot.slane %v3066, 6
        %v3883 = vrot.slane %v3070, 6
        %v3884 = vrot.slane %v3074, 6
        %v3885 = vrot.slane %v3078, 6
        %v3886 = vrot.slane %v3067, 6
        %v3887 = vrot.slane %v3071, 6
        %v3888 = vrot.slane %v3075, 6
        %v3889 = vrot.slane %v3079, 6
        %v3890 = vrot.slane %v3068, 6
        %v3891 = vrot.slane %v3072, 6
        %v3892 = vrot.slane %v3076, 6
        %v3893 = vrot.slane %v3080, 6
        %v3894 = vrot.slane %v3069, 6
        %v3895 = vrot.slane %v3073, 6
        %v3896 = vrot.slane %v3077, 6
        %v3897 = vrot.slane %v3081, 6
        %v3898 = vsel %vm940, %v3890, %v3894
        %v3899 = vsel %vm940, %v3891, %v3895
        %v3900 = vsel %vm940, %v3892, %v3896
        %v3901 = vsel %vm940, %v3893, %v3897
        %v3902 = vsel %vm940, %v3886, %v3890
        %v3903 = vsel %vm940, %v3887, %v3891
        %v3904 = vsel %vm940, %v3888, %v3892
        %v3905 = vsel %vm940, %v3889, %v3893
        %v3906 = vsel %vm940, %v3882, %v3886
        %v3907 = vsel %vm940, %v3883, %v3887
        %v3908 = vsel %vm940, %v3884, %v3888
        %v3909 = vsel %vm940, %v3885, %v3889
        %v3910 = vsel %vm940, %v3894, %v3882
        %v3911 = vsel %vm940, %v3895, %v3883
        %v3912 = vsel %vm940, %v3896, %v3884
        %v3913 = vsel %vm940, %v3897, %v3885
        %3914 = vrot.lane.b32.xlu0 %v3910, 2
        %v3915 = vpop.permute.xlu0 %3914
        %3916 = vrot.lane.b32.xlu0 %v3906, 2
        %v3917 = vpop.permute.xlu0 %3916
        %3918 = vrot.lane.b32.xlu0 %v3902, 2
        %v3919 = vpop.permute.xlu0 %3918
        %3920 = vrot.lane.b32.xlu0 %v3898, 2
        %v3921 = vpop.permute.xlu0 %3920
        %3922 = vrot.lane.b32.xlu0 %v3911, 2
        %v3923 = vpop.permute.xlu0 %3922
        %3924 = vrot.lane.b32.xlu0 %v3907, 2
        %v3925 = vpop.permute.xlu0 %3924
        %3926 = vrot.lane.b32.xlu0 %v3903, 2
        %v3927 = vpop.permute.xlu0 %3926
        %3928 = vrot.lane.b32.xlu0 %v3899, 2
        %v3929 = vpop.permute.xlu0 %3928
        %3930 = vrot.lane.b32.xlu0 %v3912, 2
        %v3931 = vpop.permute.xlu0 %3930
        %3932 = vrot.lane.b32.xlu0 %v3908, 2
        %v3933 = vpop.permute.xlu0 %3932
        %3934 = vrot.lane.b32.xlu0 %v3904, 2
        %v3935 = vpop.permute.xlu0 %3934
        %3936 = vrot.lane.b32.xlu0 %v3900, 2
        %v3937 = vpop.permute.xlu0 %3936
        %3938 = vrot.lane.b32.xlu0 %v3913, 2
        %v3939 = vpop.permute.xlu0 %3938
        %3940 = vrot.lane.b32.xlu0 %v3909, 2
        %v3941 = vpop.permute.xlu0 %3940
        %3942 = vrot.lane.b32.xlu0 %v3905, 2
        %v3943 = vpop.permute.xlu0 %3942
        %3944 = vrot.lane.b32.xlu0 %v3901, 2
        %v3945 = vpop.permute.xlu0 %3944
        %3947 = vset.pattern.permute.xlu0 0
        %3948 = vperm.xlu0 %3947, %v3910
        %v3949 = vpop.permute.xlu0 %3948
        %3952 = vset.pattern.permute.xlu0 0
        %3953 = vperm.xlu0 %3952, %v3906
        %v3954 = vpop.permute.xlu0 %3953
        %3957 = vset.pattern.permute.xlu0 0
        %3958 = vperm.xlu0 %3957, %v3902
        %v3959 = vpop.permute.xlu0 %3958
        %3962 = vset.pattern.permute.xlu0 0
        %3963 = vperm.xlu0 %3962, %v3898
        %v3964 = vpop.permute.xlu0 %3963
        %3967 = vset.pattern.permute.xlu0 0
        %3968 = vperm.xlu0 %3967, %v3911
        %v3969 = vpop.permute.xlu0 %3968
        %3972 = vset.pattern.permute.xlu0 0
        %3973 = vperm.xlu0 %3972, %v3907
        %v3974 = vpop.permute.xlu0 %3973
        %3977 = vset.pattern.permute.xlu0 0
        %3978 = vperm.xlu0 %3977, %v3903
        %v3979 = vpop.permute.xlu0 %3978
        %3982 = vset.pattern.permute.xlu0 0
        %3983 = vperm.xlu0 %3982, %v3899
        %v3984 = vpop.permute.xlu0 %3983
        %3987 = vset.pattern.permute.xlu0 0
        %3988 = vperm.xlu0 %3987, %v3912
        %v3989 = vpop.permute.xlu0 %3988
        %3992 = vset.pattern.permute.xlu0 0
        %3993 = vperm.xlu0 %3992, %v3908
        %v3994 = vpop.permute.xlu0 %3993
        %3997 = vset.pattern.permute.xlu0 0
        %3998 = vperm.xlu0 %3997, %v3904
        %v3999 = vpop.permute.xlu0 %3998
        %4002 = vset.pattern.permute.xlu0 0
        %4003 = vperm.xlu0 %4002, %v3900
        %v4004 = vpop.permute.xlu0 %4003
        %4007 = vset.pattern.permute.xlu0 0
        %4008 = vperm.xlu0 %4007, %v3913
        %v4009 = vpop.permute.xlu0 %4008
        %4012 = vset.pattern.permute.xlu0 0
        %4013 = vperm.xlu0 %4012, %v3909
        %v4014 = vpop.permute.xlu0 %4013
        %4017 = vset.pattern.permute.xlu0 0
        %4018 = vperm.xlu0 %4017, %v3905
        %v4019 = vpop.permute.xlu0 %4018
        %4022 = vset.pattern.permute.xlu0 0
        %4023 = vperm.xlu0 %4022, %v3901
        %v4024 = vpop.permute.xlu0 %4023
        %v4026 = vsel %vm978, %v3949, %v3915
        %v4027 = vsel %vm978, %v3954, %v3917
        %v4028 = vsel %vm978, %v3959, %v3919
        %v4029 = vsel %vm978, %v3964, %v3921
        %v4030 = vsel %vm978, %v3969, %v3923
        %v4031 = vsel %vm978, %v3974, %v3925
        %v4032 = vsel %vm978, %v3979, %v3927
        %v4033 = vsel %vm978, %v3984, %v3929
        %v4034 = vsel %vm978, %v3989, %v3931
        %v4035 = vsel %vm978, %v3994, %v3933
        %v4036 = vsel %vm978, %v3999, %v3935
        %v4037 = vsel %vm978, %v4004, %v3937
        %v4038 = vsel %vm978, %v4009, %v3939
        %v4039 = vsel %vm978, %v4014, %v3941
        %v4040 = vsel %vm978, %v4019, %v3943
        %v4041 = vsel %vm978, %v4024, %v3945
        %v4042 = vmul.f32 %v4026, %v2804
        %v4043 = vmul.f32 %v4027, %v2805
        %v4044 = vmul.f32 %v4028, %v2806
        %v4045 = vmul.f32 %v4029, %v2807
        %v4046 = vmul.f32 %v4030, %v2804
        %v4047 = vmul.f32 %v4031, %v2805
        %v4048 = vmul.f32 %v4032, %v2806
        %v4049 = vmul.f32 %v4033, %v2807
        %v4050 = vmul.f32 %v4034, %v2804
        %v4051 = vmul.f32 %v4035, %v2805
        %v4052 = vmul.f32 %v4036, %v2806
        %v4053 = vmul.f32 %v4037, %v2807
        %v4054 = vmul.f32 %v4038, %v2804
        %v4055 = vmul.f32 %v4039, %v2805
        %v4056 = vmul.f32 %v4040, %v2806
        %v4057 = vmul.f32 %v4041, %v2807
        %v4058 = vadd.f32 %v3866, %v4042
        %v4059 = vadd.f32 %v3867, %v4043
        %v4060 = vadd.f32 %v3868, %v4044
        %v4061 = vadd.f32 %v3869, %v4045
        %v4062 = vadd.f32 %v3870, %v4046
        %v4063 = vadd.f32 %v3871, %v4047
        %v4064 = vadd.f32 %v3872, %v4048
        %v4065 = vadd.f32 %v3873, %v4049
        %v4066 = vadd.f32 %v3874, %v4050
        %v4067 = vadd.f32 %v3875, %v4051
        %v4068 = vadd.f32 %v3876, %v4052
        %v4069 = vadd.f32 %v3877, %v4053
        %v4070 = vadd.f32 %v3878, %v4054
        %v4071 = vadd.f32 %v3879, %v4055
        %v4072 = vadd.f32 %v3880, %v4056
        %v4073 = vadd.f32 %v3881, %v4057
        %v4074 = vmul.f32 %v3910, %v2812
        %v4075 = vmul.f32 %v3906, %v2813
        %v4076 = vmul.f32 %v3902, %v2814
        %v4077 = vmul.f32 %v3898, %v2815
        %v4078 = vmul.f32 %v3911, %v2812
        %v4079 = vmul.f32 %v3907, %v2813
        %v4080 = vmul.f32 %v3903, %v2814
        %v4081 = vmul.f32 %v3899, %v2815
        %v4082 = vmul.f32 %v3912, %v2812
        %v4083 = vmul.f32 %v3908, %v2813
        %v4084 = vmul.f32 %v3904, %v2814
        %v4085 = vmul.f32 %v3900, %v2815
        %v4086 = vmul.f32 %v3913, %v2812
        %v4087 = vmul.f32 %v3909, %v2813
        %v4088 = vmul.f32 %v3905, %v2814
        %v4089 = vmul.f32 %v3901, %v2815
        %v4090 = vadd.f32 %v4058, %v4074
        %v4091 = vadd.f32 %v4059, %v4075
        %v4092 = vadd.f32 %v4060, %v4076
        %v4093 = vadd.f32 %v4061, %v4077
        %v4094 = vadd.f32 %v4062, %v4078
        %v4095 = vadd.f32 %v4063, %v4079
        %v4096 = vadd.f32 %v4064, %v4080
        %v4097 = vadd.f32 %v4065, %v4081
        %v4098 = vadd.f32 %v4066, %v4082
        %v4099 = vadd.f32 %v4067, %v4083
        %v4100 = vadd.f32 %v4068, %v4084
        %v4101 = vadd.f32 %v4069, %v4085
        %v4102 = vadd.f32 %v4070, %v4086
        %v4103 = vadd.f32 %v4071, %v4087
        %v4104 = vadd.f32 %v4072, %v4088
        %v4105 = vadd.f32 %v4073, %v4089
        %4106 = vrot.lane.b32.xlu0 %v3910, 126
        %v4107 = vpop.permute.xlu0 %4106
        %4108 = vrot.lane.b32.xlu0 %v3906, 126
        %v4109 = vpop.permute.xlu0 %4108
        %4110 = vrot.lane.b32.xlu0 %v3902, 126
        %v4111 = vpop.permute.xlu0 %4110
        %4112 = vrot.lane.b32.xlu0 %v3898, 126
        %v4113 = vpop.permute.xlu0 %4112
        %4114 = vrot.lane.b32.xlu0 %v3911, 126
        %v4115 = vpop.permute.xlu0 %4114
        %4116 = vrot.lane.b32.xlu0 %v3907, 126
        %v4117 = vpop.permute.xlu0 %4116
        %4118 = vrot.lane.b32.xlu0 %v3903, 126
        %v4119 = vpop.permute.xlu0 %4118
        %4120 = vrot.lane.b32.xlu0 %v3899, 126
        %v4121 = vpop.permute.xlu0 %4120
        %4122 = vrot.lane.b32.xlu0 %v3912, 126
        %v4123 = vpop.permute.xlu0 %4122
        %4124 = vrot.lane.b32.xlu0 %v3908, 126
        %v4125 = vpop.permute.xlu0 %4124
        %4126 = vrot.lane.b32.xlu0 %v3904, 126
        %v4127 = vpop.permute.xlu0 %4126
        %4128 = vrot.lane.b32.xlu0 %v3900, 126
        %v4129 = vpop.permute.xlu0 %4128
        %4130 = vrot.lane.b32.xlu0 %v3913, 126
        %v4131 = vpop.permute.xlu0 %4130
        %4132 = vrot.lane.b32.xlu0 %v3909, 126
        %v4133 = vpop.permute.xlu0 %4132
        %4134 = vrot.lane.b32.xlu0 %v3905, 126
        %v4135 = vpop.permute.xlu0 %4134
        %4136 = vrot.lane.b32.xlu0 %v3901, 126
        %v4137 = vpop.permute.xlu0 %4136
        %v4138 = vmul.f32 %v4107, %v2820
        %v4139 = vmul.f32 %v4109, %v2821
        %v4140 = vmul.f32 %v4111, %v2822
        %v4141 = vmul.f32 %v4113, %v2823
        %v4142 = vmul.f32 %v4115, %v2820
        %v4143 = vmul.f32 %v4117, %v2821
        %v4144 = vmul.f32 %v4119, %v2822
        %v4145 = vmul.f32 %v4121, %v2823
        %v4146 = vmul.f32 %v4123, %v2820
        %v4147 = vmul.f32 %v4125, %v2821
        %v4148 = vmul.f32 %v4127, %v2822
        %v4149 = vmul.f32 %v4129, %v2823
        %v4150 = vmul.f32 %v4131, %v2820
        %v4151 = vmul.f32 %v4133, %v2821
        %v4152 = vmul.f32 %v4135, %v2822
        %v4153 = vmul.f32 %v4137, %v2823
        %v4154 = vadd.f32 %v4090, %v4138
        %v4155 = vadd.f32 %v4091, %v4139
        %v4156 = vadd.f32 %v4092, %v4140
        %v4157 = vadd.f32 %v4093, %v4141
        %v4158 = vadd.f32 %v4094, %v4142
        %v4159 = vadd.f32 %v4095, %v4143
        %v4160 = vadd.f32 %v4096, %v4144
        %v4161 = vadd.f32 %v4097, %v4145
        %v4162 = vadd.f32 %v4098, %v4146
        %v4163 = vadd.f32 %v4099, %v4147
        %v4164 = vadd.f32 %v4100, %v4148
        %v4165 = vadd.f32 %v4101, %v4149
        %v4166 = vadd.f32 %v4102, %v4150
        %v4167 = vadd.f32 %v4103, %v4151
        %v4168 = vadd.f32 %v4104, %v4152
        %v4169 = vadd.f32 %v4105, %v4153
        %4170 = vrot.lane.b32.xlu0 %v3066, 2
        %v4171 = vpop.permute.xlu0 %4170
        %4172 = vrot.lane.b32.xlu0 %v3067, 2
        %v4173 = vpop.permute.xlu0 %4172
        %4174 = vrot.lane.b32.xlu0 %v3068, 2
        %v4175 = vpop.permute.xlu0 %4174
        %4176 = vrot.lane.b32.xlu0 %v3069, 2
        %v4177 = vpop.permute.xlu0 %4176
        %4178 = vrot.lane.b32.xlu0 %v3070, 2
        %v4179 = vpop.permute.xlu0 %4178
        %4180 = vrot.lane.b32.xlu0 %v3071, 2
        %v4181 = vpop.permute.xlu0 %4180
        %4182 = vrot.lane.b32.xlu0 %v3072, 2
        %v4183 = vpop.permute.xlu0 %4182
        %4184 = vrot.lane.b32.xlu0 %v3073, 2
        %v4185 = vpop.permute.xlu0 %4184
        %4186 = vrot.lane.b32.xlu0 %v3074, 2
        %v4187 = vpop.permute.xlu0 %4186
        %4188 = vrot.lane.b32.xlu0 %v3075, 2
        %v4189 = vpop.permute.xlu0 %4188
        %4190 = vrot.lane.b32.xlu0 %v3076, 2
        %v4191 = vpop.permute.xlu0 %4190
        %4192 = vrot.lane.b32.xlu0 %v3077, 2
        %v4193 = vpop.permute.xlu0 %4192
        %4194 = vrot.lane.b32.xlu0 %v3078, 2
        %v4195 = vpop.permute.xlu0 %4194
        %4196 = vrot.lane.b32.xlu0 %v3079, 2
        %v4197 = vpop.permute.xlu0 %4196
        %4198 = vrot.lane.b32.xlu0 %v3080, 2
        %v4199 = vpop.permute.xlu0 %4198
        %4200 = vrot.lane.b32.xlu0 %v3081, 2
        %v4201 = vpop.permute.xlu0 %4200
        %v4202 = vsel %vm978, %v3405, %v4171
        %v4203 = vsel %vm978, %v3410, %v4173
        %v4204 = vsel %vm978, %v3415, %v4175
        %v4205 = vsel %vm978, %v3420, %v4177
        %v4206 = vsel %vm978, %v3425, %v4179
        %v4207 = vsel %vm978, %v3430, %v4181
        %v4208 = vsel %vm978, %v3435, %v4183
        %v4209 = vsel %vm978, %v3440, %v4185
        %v4210 = vsel %vm978, %v3445, %v4187
        %v4211 = vsel %vm978, %v3450, %v4189
        %v4212 = vsel %vm978, %v3455, %v4191
        %v4213 = vsel %vm978, %v3460, %v4193
        %v4214 = vsel %vm978, %v3465, %v4195
        %v4215 = vsel %vm978, %v3470, %v4197
        %v4216 = vsel %vm978, %v3475, %v4199
        %v4217 = vsel %vm978, %v3480, %v4201
        %v4218 = vmul.f32 %v4202, %v2828
        %v4219 = vmul.f32 %v4203, %v2829
        %v4220 = vmul.f32 %v4204, %v2830
        %v4221 = vmul.f32 %v4205, %v2831
        %v4222 = vmul.f32 %v4206, %v2828
        %v4223 = vmul.f32 %v4207, %v2829
        %v4224 = vmul.f32 %v4208, %v2830
        %v4225 = vmul.f32 %v4209, %v2831
        %v4226 = vmul.f32 %v4210, %v2828
        %v4227 = vmul.f32 %v4211, %v2829
        %v4228 = vmul.f32 %v4212, %v2830
        %v4229 = vmul.f32 %v4213, %v2831
        %v4230 = vmul.f32 %v4214, %v2828
        %v4231 = vmul.f32 %v4215, %v2829
        %v4232 = vmul.f32 %v4216, %v2830
        %v4233 = vmul.f32 %v4217, %v2831
        %v4234 = vadd.f32 %v4154, %v4218
        %v4235 = vadd.f32 %v4155, %v4219
        %v4236 = vadd.f32 %v4156, %v4220
        %v4237 = vadd.f32 %v4157, %v4221
        %v4238 = vadd.f32 %v4158, %v4222
        %v4239 = vadd.f32 %v4159, %v4223
        %v4240 = vadd.f32 %v4160, %v4224
        %v4241 = vadd.f32 %v4161, %v4225
        %v4242 = vadd.f32 %v4162, %v4226
        %v4243 = vadd.f32 %v4163, %v4227
        %v4244 = vadd.f32 %v4164, %v4228
        %v4245 = vadd.f32 %v4165, %v4229
        %v4246 = vadd.f32 %v4166, %v4230
        %v4247 = vadd.f32 %v4167, %v4231
        %v4248 = vadd.f32 %v4168, %v4232
        %v4249 = vadd.f32 %v4169, %v4233
        %4250 = vrot.lane.b32.xlu0 %v3066, 126
        %v4251 = vpop.permute.xlu0 %4250
        %4252 = vrot.lane.b32.xlu0 %v3067, 126
        %v4253 = vpop.permute.xlu0 %4252
        %4254 = vrot.lane.b32.xlu0 %v3068, 126
        %v4255 = vpop.permute.xlu0 %4254
        %4256 = vrot.lane.b32.xlu0 %v3069, 126
        %v4257 = vpop.permute.xlu0 %4256
        %4258 = vrot.lane.b32.xlu0 %v3070, 126
        %v4259 = vpop.permute.xlu0 %4258
        %4260 = vrot.lane.b32.xlu0 %v3071, 126
        %v4261 = vpop.permute.xlu0 %4260
        %4262 = vrot.lane.b32.xlu0 %v3072, 126
        %v4263 = vpop.permute.xlu0 %4262
        %4264 = vrot.lane.b32.xlu0 %v3073, 126
        %v4265 = vpop.permute.xlu0 %4264
        %4266 = vrot.lane.b32.xlu0 %v3074, 126
        %v4267 = vpop.permute.xlu0 %4266
        %4268 = vrot.lane.b32.xlu0 %v3075, 126
        %v4269 = vpop.permute.xlu0 %4268
        %4270 = vrot.lane.b32.xlu0 %v3076, 126
        %v4271 = vpop.permute.xlu0 %4270
        %4272 = vrot.lane.b32.xlu0 %v3077, 126
        %v4273 = vpop.permute.xlu0 %4272
        %4274 = vrot.lane.b32.xlu0 %v3078, 126
        %v4275 = vpop.permute.xlu0 %4274
        %4276 = vrot.lane.b32.xlu0 %v3079, 126
        %v4277 = vpop.permute.xlu0 %4276
        %4278 = vrot.lane.b32.xlu0 %v3080, 126
        %v4279 = vpop.permute.xlu0 %4278
        %4280 = vrot.lane.b32.xlu0 %v3081, 126
        %v4281 = vpop.permute.xlu0 %4280
        %v4282 = vmul.f32 %v4251, %v2836
        %v4283 = vmul.f32 %v4253, %v2837
        %v4284 = vmul.f32 %v4255, %v2838
        %v4285 = vmul.f32 %v4257, %v2839
        %v4286 = vmul.f32 %v4259, %v2836
        %v4287 = vmul.f32 %v4261, %v2837
        %v4288 = vmul.f32 %v4263, %v2838
        %v4289 = vmul.f32 %v4265, %v2839
        %v4290 = vmul.f32 %v4267, %v2836
        %v4291 = vmul.f32 %v4269, %v2837
        %v4292 = vmul.f32 %v4271, %v2838
        %v4293 = vmul.f32 %v4273, %v2839
        %v4294 = vmul.f32 %v4275, %v2836
        %v4295 = vmul.f32 %v4277, %v2837
        %v4296 = vmul.f32 %v4279, %v2838
        %v4297 = vmul.f32 %v4281, %v2839
        %v4298 = vadd.f32 %v4234, %v4282
        %v4299 = vadd.f32 %v4235, %v4283
        %v4300 = vadd.f32 %v4236, %v4284
        %v4301 = vadd.f32 %v4237, %v4285
        %v4302 = vadd.f32 %v4238, %v4286
        %v4303 = vadd.f32 %v4239, %v4287
        %v4304 = vadd.f32 %v4240, %v4288
        %v4305 = vadd.f32 %v4241, %v4289
        %v4306 = vadd.f32 %v4242, %v4290
        %v4307 = vadd.f32 %v4243, %v4291
        %v4308 = vadd.f32 %v4244, %v4292
        %v4309 = vadd.f32 %v4245, %v4293
        %v4310 = vadd.f32 %v4246, %v4294
        %v4311 = vadd.f32 %v4247, %v4295
        %v4312 = vadd.f32 %v4248, %v4296
        %v4313 = vadd.f32 %v4249, %v4297
        %v4314 = vrot.slane %v3066, 2
        %v4315 = vrot.slane %v3070, 2
        %v4316 = vrot.slane %v3074, 2
        %v4317 = vrot.slane %v3078, 2
        %v4318 = vrot.slane %v3067, 2
        %v4319 = vrot.slane %v3071, 2
        %v4320 = vrot.slane %v3075, 2
        %v4321 = vrot.slane %v3079, 2
        %v4322 = vrot.slane %v3068, 2
        %v4323 = vrot.slane %v3072, 2
        %v4324 = vrot.slane %v3076, 2
        %v4325 = vrot.slane %v3080, 2
        %v4326 = vrot.slane %v3069, 2
        %v4327 = vrot.slane %v3073, 2
        %v4328 = vrot.slane %v3077, 2
        %v4329 = vrot.slane %v3081, 2
        %v4330 = vsel %vm1387, %v4322, %v4326
        %v4331 = vsel %vm1387, %v4323, %v4327
        %v4332 = vsel %vm1387, %v4324, %v4328
        %v4333 = vsel %vm1387, %v4325, %v4329
        %v4334 = vsel %vm1387, %v4318, %v4322
        %v4335 = vsel %vm1387, %v4319, %v4323
        %v4336 = vsel %vm1387, %v4320, %v4324
        %v4337 = vsel %vm1387, %v4321, %v4325
        %v4338 = vsel %vm1387, %v4314, %v4318
        %v4339 = vsel %vm1387, %v4315, %v4319
        %v4340 = vsel %vm1387, %v4316, %v4320
        %v4341 = vsel %vm1387, %v4317, %v4321
        %v4342 = vsel %vm1387, %v4326, %v4314
        %v4343 = vsel %vm1387, %v4327, %v4315
        %v4344 = vsel %vm1387, %v4328, %v4316
        %v4345 = vsel %vm1387, %v4329, %v4317
        %4346 = vrot.lane.b32.xlu0 %v4338, 2
        %v4347 = vpop.permute.xlu0 %4346
        %4348 = vrot.lane.b32.xlu0 %v4334, 2
        %v4349 = vpop.permute.xlu0 %4348
        %4350 = vrot.lane.b32.xlu0 %v4330, 2
        %v4351 = vpop.permute.xlu0 %4350
        %4352 = vrot.lane.b32.xlu0 %v4342, 2
        %v4353 = vpop.permute.xlu0 %4352
        %4354 = vrot.lane.b32.xlu0 %v4339, 2
        %v4355 = vpop.permute.xlu0 %4354
        %4356 = vrot.lane.b32.xlu0 %v4335, 2
        %v4357 = vpop.permute.xlu0 %4356
        %4358 = vrot.lane.b32.xlu0 %v4331, 2
        %v4359 = vpop.permute.xlu0 %4358
        %4360 = vrot.lane.b32.xlu0 %v4343, 2
        %v4361 = vpop.permute.xlu0 %4360
        %4362 = vrot.lane.b32.xlu0 %v4340, 2
        %v4363 = vpop.permute.xlu0 %4362
        %4364 = vrot.lane.b32.xlu0 %v4336, 2
        %v4365 = vpop.permute.xlu0 %4364
        %4366 = vrot.lane.b32.xlu0 %v4332, 2
        %v4367 = vpop.permute.xlu0 %4366
        %4368 = vrot.lane.b32.xlu0 %v4344, 2
        %v4369 = vpop.permute.xlu0 %4368
        %4370 = vrot.lane.b32.xlu0 %v4341, 2
        %v4371 = vpop.permute.xlu0 %4370
        %4372 = vrot.lane.b32.xlu0 %v4337, 2
        %v4373 = vpop.permute.xlu0 %4372
        %4374 = vrot.lane.b32.xlu0 %v4333, 2
        %v4375 = vpop.permute.xlu0 %4374
        %4376 = vrot.lane.b32.xlu0 %v4345, 2
        %v4377 = vpop.permute.xlu0 %4376
        %4379 = vset.pattern.permute.xlu0 0
        %4380 = vperm.xlu0 %4379, %v4338
        %v4381 = vpop.permute.xlu0 %4380
        %4384 = vset.pattern.permute.xlu0 0
        %4385 = vperm.xlu0 %4384, %v4334
        %v4386 = vpop.permute.xlu0 %4385
        %4389 = vset.pattern.permute.xlu0 0
        %4390 = vperm.xlu0 %4389, %v4330
        %v4391 = vpop.permute.xlu0 %4390
        %4394 = vset.pattern.permute.xlu0 0
        %4395 = vperm.xlu0 %4394, %v4342
        %v4396 = vpop.permute.xlu0 %4395
        %4399 = vset.pattern.permute.xlu0 0
        %4400 = vperm.xlu0 %4399, %v4339
        %v4401 = vpop.permute.xlu0 %4400
        %4404 = vset.pattern.permute.xlu0 0
        %4405 = vperm.xlu0 %4404, %v4335
        %v4406 = vpop.permute.xlu0 %4405
        %4409 = vset.pattern.permute.xlu0 0
        %4410 = vperm.xlu0 %4409, %v4331
        %v4411 = vpop.permute.xlu0 %4410
        %4414 = vset.pattern.permute.xlu0 0
        %4415 = vperm.xlu0 %4414, %v4343
        %v4416 = vpop.permute.xlu0 %4415
        %4419 = vset.pattern.permute.xlu0 0
        %4420 = vperm.xlu0 %4419, %v4340
        %v4421 = vpop.permute.xlu0 %4420
        %4424 = vset.pattern.permute.xlu0 0
        %4425 = vperm.xlu0 %4424, %v4336
        %v4426 = vpop.permute.xlu0 %4425
        %4429 = vset.pattern.permute.xlu0 0
        %4430 = vperm.xlu0 %4429, %v4332
        %v4431 = vpop.permute.xlu0 %4430
        %4434 = vset.pattern.permute.xlu0 0
        %4435 = vperm.xlu0 %4434, %v4344
        %v4436 = vpop.permute.xlu0 %4435
        %4439 = vset.pattern.permute.xlu0 0
        %4440 = vperm.xlu0 %4439, %v4341
        %v4441 = vpop.permute.xlu0 %4440
        %4444 = vset.pattern.permute.xlu0 0
        %4445 = vperm.xlu0 %4444, %v4337
        %v4446 = vpop.permute.xlu0 %4445
        %4449 = vset.pattern.permute.xlu0 0
        %4450 = vperm.xlu0 %4449, %v4333
        %v4451 = vpop.permute.xlu0 %4450
        %4454 = vset.pattern.permute.xlu0 0
        %4455 = vperm.xlu0 %4454, %v4345
        %v4456 = vpop.permute.xlu0 %4455
        %v4458 = vsel %vm978, %v4381, %v4347
        %v4459 = vsel %vm978, %v4386, %v4349
        %v4460 = vsel %vm978, %v4391, %v4351
        %v4461 = vsel %vm978, %v4396, %v4353
        %v4462 = vsel %vm978, %v4401, %v4355
        %v4463 = vsel %vm978, %v4406, %v4357
        %v4464 = vsel %vm978, %v4411, %v4359
        %v4465 = vsel %vm978, %v4416, %v4361
        %v4466 = vsel %vm978, %v4421, %v4363
        %v4467 = vsel %vm978, %v4426, %v4365
        %v4468 = vsel %vm978, %v4431, %v4367
        %v4469 = vsel %vm978, %v4436, %v4369
        %v4470 = vsel %vm978, %v4441, %v4371
        %v4471 = vsel %vm978, %v4446, %v4373
        %v4472 = vsel %vm978, %v4451, %v4375
        %v4473 = vsel %vm978, %v4456, %v4377
        %v4474 = vmul.f32 %v4458, %v2844
        %v4475 = vmul.f32 %v4459, %v2845
        %v4476 = vmul.f32 %v4460, %v2846
        %v4477 = vmul.f32 %v4461, %v2847
        %v4478 = vmul.f32 %v4462, %v2844
        %v4479 = vmul.f32 %v4463, %v2845
        %v4480 = vmul.f32 %v4464, %v2846
        %v4481 = vmul.f32 %v4465, %v2847
        %v4482 = vmul.f32 %v4466, %v2844
        %v4483 = vmul.f32 %v4467, %v2845
        %v4484 = vmul.f32 %v4468, %v2846
        %v4485 = vmul.f32 %v4469, %v2847
        %v4486 = vmul.f32 %v4470, %v2844
        %v4487 = vmul.f32 %v4471, %v2845
        %v4488 = vmul.f32 %v4472, %v2846
        %v4489 = vmul.f32 %v4473, %v2847
        %v4490 = vadd.f32 %v4298, %v4474
        %v4491 = vadd.f32 %v4299, %v4475
        %v4492 = vadd.f32 %v4300, %v4476
        %v4493 = vadd.f32 %v4301, %v4477
        %v4494 = vadd.f32 %v4302, %v4478
        %v4495 = vadd.f32 %v4303, %v4479
        %v4496 = vadd.f32 %v4304, %v4480
        %v4497 = vadd.f32 %v4305, %v4481
        %v4498 = vadd.f32 %v4306, %v4482
        %v4499 = vadd.f32 %v4307, %v4483
        %v4500 = vadd.f32 %v4308, %v4484
        %v4501 = vadd.f32 %v4309, %v4485
        %v4502 = vadd.f32 %v4310, %v4486
        %v4503 = vadd.f32 %v4311, %v4487
        %v4504 = vadd.f32 %v4312, %v4488
        %v4505 = vadd.f32 %v4313, %v4489
        %v4506 = vmul.f32 %v4338, %v2852
        %v4507 = vmul.f32 %v4334, %v2853
        %v4508 = vmul.f32 %v4330, %v2854
        %v4509 = vmul.f32 %v4342, %v2855
        %v4510 = vmul.f32 %v4339, %v2852
        %v4511 = vmul.f32 %v4335, %v2853
        %v4512 = vmul.f32 %v4331, %v2854
        %v4513 = vmul.f32 %v4343, %v2855
        %v4514 = vmul.f32 %v4340, %v2852
        %v4515 = vmul.f32 %v4336, %v2853
        %v4516 = vmul.f32 %v4332, %v2854
        %v4517 = vmul.f32 %v4344, %v2855
        %v4518 = vmul.f32 %v4341, %v2852
        %v4519 = vmul.f32 %v4337, %v2853
        %v4520 = vmul.f32 %v4333, %v2854
        %v4521 = vmul.f32 %v4345, %v2855
        %v4522 = vadd.f32 %v4490, %v4506
        %v4523 = vadd.f32 %v4491, %v4507
        %v4524 = vadd.f32 %v4492, %v4508
        %v4525 = vadd.f32 %v4493, %v4509
        %v4526 = vadd.f32 %v4494, %v4510
        %v4527 = vadd.f32 %v4495, %v4511
        %v4528 = vadd.f32 %v4496, %v4512
        %v4529 = vadd.f32 %v4497, %v4513
        %v4530 = vadd.f32 %v4498, %v4514
        %v4531 = vadd.f32 %v4499, %v4515
        %v4532 = vadd.f32 %v4500, %v4516
        %v4533 = vadd.f32 %v4501, %v4517
        %v4534 = vadd.f32 %v4502, %v4518
        %v4535 = vadd.f32 %v4503, %v4519
        %v4536 = vadd.f32 %v4504, %v4520
        %v4537 = vadd.f32 %v4505, %v4521
        %4538 = vrot.lane.b32.xlu0 %v4338, 126
        %v4539 = vpop.permute.xlu0 %4538
        %4540 = vrot.lane.b32.xlu0 %v4334, 126
        %v4541 = vpop.permute.xlu0 %4540
        %4542 = vrot.lane.b32.xlu0 %v4330, 126
        %v4543 = vpop.permute.xlu0 %4542
        %4544 = vrot.lane.b32.xlu0 %v4342, 126
        %v4545 = vpop.permute.xlu0 %4544
        %4546 = vrot.lane.b32.xlu0 %v4339, 126
        %v4547 = vpop.permute.xlu0 %4546
        %4548 = vrot.lane.b32.xlu0 %v4335, 126
        %v4549 = vpop.permute.xlu0 %4548
        %4550 = vrot.lane.b32.xlu0 %v4331, 126
        %v4551 = vpop.permute.xlu0 %4550
        %4552 = vrot.lane.b32.xlu0 %v4343, 126
        %v4553 = vpop.permute.xlu0 %4552
        %4554 = vrot.lane.b32.xlu0 %v4340, 126
        %v4555 = vpop.permute.xlu0 %4554
        %4556 = vrot.lane.b32.xlu0 %v4336, 126
        %v4557 = vpop.permute.xlu0 %4556
        %4558 = vrot.lane.b32.xlu0 %v4332, 126
        %v4559 = vpop.permute.xlu0 %4558
        %4560 = vrot.lane.b32.xlu0 %v4344, 126
        %v4561 = vpop.permute.xlu0 %4560
        %4562 = vrot.lane.b32.xlu0 %v4341, 126
        %v4563 = vpop.permute.xlu0 %4562
        %4564 = vrot.lane.b32.xlu0 %v4337, 126
        %v4565 = vpop.permute.xlu0 %4564
        %4566 = vrot.lane.b32.xlu0 %v4333, 126
        %v4567 = vpop.permute.xlu0 %4566
        %4568 = vrot.lane.b32.xlu0 %v4345, 126
        %v4569 = vpop.permute.xlu0 %4568
        %v4570 = vmul.f32 %v4539, %v2860
        %v4571 = vmul.f32 %v4541, %v2861
        %v4572 = vmul.f32 %v4543, %v2862
        %v4573 = vmul.f32 %v4545, %v2863
        %v4574 = vmul.f32 %v4547, %v2860
        %v4575 = vmul.f32 %v4549, %v2861
        %v4576 = vmul.f32 %v4551, %v2862
        %v4577 = vmul.f32 %v4553, %v2863
        %v4578 = vmul.f32 %v4555, %v2860
        %v4579 = vmul.f32 %v4557, %v2861
        %v4580 = vmul.f32 %v4559, %v2862
        %v4581 = vmul.f32 %v4561, %v2863
        %v4582 = vmul.f32 %v4563, %v2860
        %v4583 = vmul.f32 %v4565, %v2861
        %v4584 = vmul.f32 %v4567, %v2862
        %v4585 = vmul.f32 %v4569, %v2863
        %v4586 = vadd.f32 %v4522, %v4570
        %v4587 = vadd.f32 %v4523, %v4571
        %v4588 = vadd.f32 %v4524, %v4572
        %v4589 = vadd.f32 %v4525, %v4573
        %v4590 = vadd.f32 %v4526, %v4574
        %v4591 = vadd.f32 %v4527, %v4575
        %v4592 = vadd.f32 %v4528, %v4576
        %v4593 = vadd.f32 %v4529, %v4577
        %v4594 = vadd.f32 %v4530, %v4578
        %v4595 = vadd.f32 %v4531, %v4579
        %v4596 = vadd.f32 %v4532, %v4580
        %v4597 = vadd.f32 %v4533, %v4581
        %v4598 = vadd.f32 %v4534, %v4582
        %v4599 = vadd.f32 %v4535, %v4583
        %v4600 = vadd.f32 %v4536, %v4584
        %v4601 = vadd.f32 %v4537, %v4585
        %4602 = vst [vmem:[#allocation3] sm:$0xff] %v4586
        %4603 = vst [vmem:[#allocation3 + $0x8] sm:$0xff] %v4587
        %4604 = vst [vmem:[#allocation3 + $0x10] sm:$0xff] %v4588
        %4605 = vst [vmem:[#allocation3 + $0x18] sm:$0xff] %v4589
        %4606 = vst [vmem:[#allocation3 + $0x20] sm:$0xff] %v4590
        %4607 = vst [vmem:[#allocation3 + $0x28] sm:$0xff] %v4591
        %4608 = vst [vmem:[#allocation3 + $0x30] sm:$0xff] %v4592
        %4609 = vst [vmem:[#allocation3 + $0x38] sm:$0xff] %v4593
        %4610 = vst [vmem:[#allocation3 + $0x40] sm:$0xff] %v4594
        %4611 = vst [vmem:[#allocation3 + $0x48] sm:$0xff] %v4595
        %4612 = vst [vmem:[#allocation3 + $0x50] sm:$0xff] %v4596
        %4613 = vst [vmem:[#allocation3 + $0x58] sm:$0xff] %v4597
        %4614 = vst [vmem:[#allocation3 + $0x60] sm:$0xff] %v4598
        %4615 = vst [vmem:[#allocation3 + $0x68] sm:$0xff] %v4599
        %4616 = vst [vmem:[#allocation3 + $0x70] sm:$0xff] %v4600
        %4617 = vst [vmem:[#allocation3 + $0x78] sm:$0xff] %v4601
        %v4618 = vld [vmem:[#allocation3] sm:$0xff]
        %v4619 = vld [vmem:[#allocation3 + $0x8] sm:$0xff]
        %v4620 = vld [vmem:[#allocation3 + $0x10] sm:$0xff]
        %v4621 = vld [vmem:[#allocation3 + $0x18] sm:$0xff]
        %v4622 = vld [vmem:[#allocation3 + $0x20] sm:$0xff]
        %v4623 = vld [vmem:[#allocation3 + $0x28] sm:$0xff]
        %v4624 = vld [vmem:[#allocation3 + $0x30] sm:$0xff]
        %v4625 = vld [vmem:[#allocation3 + $0x38] sm:$0xff]
        %v4626 = vld [vmem:[#allocation3 + $0x40] sm:$0xff]
        %v4627 = vld [vmem:[#allocation3 + $0x48] sm:$0xff]
        %v4628 = vld [vmem:[#allocation3 + $0x50] sm:$0xff]
        %v4629 = vld [vmem:[#allocation3 + $0x58] sm:$0xff]
        %v4630 = vld [vmem:[#allocation3 + $0x60] sm:$0xff]
        %v4631 = vld [vmem:[#allocation3 + $0x68] sm:$0xff]
        %v4632 = vld [vmem:[#allocation3 + $0x70] sm:$0xff]
        %v4633 = vld [vmem:[#allocation3 + $0x78] sm:$0xff]
        %v4634 = vld [vmem:[%s2894] sm:$0x1]
        %v4635 = vld [vmem:[%s2894 + $0x20] sm:$0x1]
        %v4636 = vld [vmem:[%s2894 + $0x40] sm:$0x1]
        %v4637 = vld [vmem:[%s2894 + $0x60] sm:$0x1]
        %v4638 = vld [vmem:[%s2899] sm:$0x1]
        %v4639 = vld [vmem:[%s2899 + $0x20] sm:$0x1]
        %v4640 = vld [vmem:[%s2899 + $0x40] sm:$0x1]
        %v4641 = vld [vmem:[%s2899 + $0x60] sm:$0x1]
        %v4642 = vlaneseq
        %v4643 = vshrl.u32 %v4642, 7
        %v4644 = vsub.s32 0, %v4643
        %v4645 = vrot.slane %v4634, %v4644
        %v4646 = vlaneseq
        %v4647 = vshrl.u32 %v4646, 7
        %v4648 = vsub.s32 0, %v4647
        %v4649 = vrot.slane %v4635, %v4648
        %v4650 = vlaneseq
        %v4651 = vshrl.u32 %v4650, 7
        %v4652 = vsub.s32 0, %v4651
        %v4653 = vrot.slane %v4636, %v4652
        %v4654 = vlaneseq
        %v4655 = vshrl.u32 %v4654, 7
        %v4656 = vsub.s32 0, %v4655
        %v4657 = vrot.slane %v4637, %v4656
        %v4658 = vsel %vm2908, %v4645, %v4618
        %v4659 = vsel %vm2909, %v4645, %v4619
        %v4660 = vsel %vm2910, %v4645, %v4620
        %v4661 = vsel %vm2911, %v4645, %v4621
        %v4662 = vsel %vm2908, %v4649, %v4622
        %v4663 = vsel %vm2909, %v4649, %v4623
        %v4664 = vsel %vm2910, %v4649, %v4624
        %v4665 = vsel %vm2911, %v4649, %v4625
        %v4666 = vsel %vm2908, %v4653, %v4626
        %v4667 = vsel %vm2909, %v4653, %v4627
        %v4668 = vsel %vm2910, %v4653, %v4628
        %v4669 = vsel %vm2911, %v4653, %v4629
        %v4670 = vsel %vm2908, %v4657, %v4630
        %v4671 = vsel %vm2909, %v4657, %v4631
        %v4672 = vsel %vm2910, %v4657, %v4632
        %v4673 = vsel %vm2911, %v4657, %v4633
        %v4674 = vlaneseq
        %v4675 = vshrl.u32 %v4674, 7
        %v4676 = vsub.s32 0, %v4675
        %v4677 = vrot.slane %v4638, %v4676
        %v4678 = vlaneseq
        %v4679 = vshrl.u32 %v4678, 7
        %v4680 = vsub.s32 0, %v4679
        %v4681 = vrot.slane %v4639, %v4680
        %v4682 = vlaneseq
        %v4683 = vshrl.u32 %v4682, 7
        %v4684 = vsub.s32 0, %v4683
        %v4685 = vrot.slane %v4640, %v4684
        %v4686 = vlaneseq
        %v4687 = vshrl.u32 %v4686, 7
        %v4688 = vsub.s32 0, %v4687
        %v4689 = vrot.slane %v4641, %v4688
        %v4690 = vsel %vm2948, %v4677, %v4658
        %v4691 = vsel %vm2949, %v4677, %v4659
        %v4692 = vsel %vm2950, %v4677, %v4660
        %v4693 = vsel %vm2951, %v4677, %v4661
        %v4694 = vsel %vm2948, %v4681, %v4662
        %v4695 = vsel %vm2949, %v4681, %v4663
        %v4696 = vsel %vm2950, %v4681, %v4664
        %v4697 = vsel %vm2951, %v4681, %v4665
        %v4698 = vsel %vm2948, %v4685, %v4666
        %v4699 = vsel %vm2949, %v4685, %v4667
        %v4700 = vsel %vm2950, %v4685, %v4668
        %v4701 = vsel %vm2951, %v4685, %v4669
        %v4702 = vsel %vm2948, %v4689, %v4670
        %v4703 = vsel %vm2949, %v4689, %v4671
        %v4704 = vsel %vm2950, %v4689, %v4672
        %v4705 = vsel %vm2951, %v4689, %v4673
        %4707 = vset.pattern.permute.xlu0 15
        %4708 = vperm.xlu0 %4707, %v4690
        %v4709 = vpop.permute.xlu0 %4708
        %4712 = vset.pattern.permute.xlu0 15
        %4713 = vperm.xlu0 %4712, %v4691
        %v4714 = vpop.permute.xlu0 %4713
        %4717 = vset.pattern.permute.xlu0 15
        %4718 = vperm.xlu0 %4717, %v4692
        %v4719 = vpop.permute.xlu0 %4718
        %4722 = vset.pattern.permute.xlu0 15
        %4723 = vperm.xlu0 %4722, %v4693
        %v4724 = vpop.permute.xlu0 %4723
        %4727 = vset.pattern.permute.xlu0 15
        %4728 = vperm.xlu0 %4727, %v4694
        %v4729 = vpop.permute.xlu0 %4728
        %4732 = vset.pattern.permute.xlu0 15
        %4733 = vperm.xlu0 %4732, %v4695
        %v4734 = vpop.permute.xlu0 %4733
        %4737 = vset.pattern.permute.xlu0 15
        %4738 = vperm.xlu0 %4737, %v4696
        %v4739 = vpop.permute.xlu0 %4738
        %4742 = vset.pattern.permute.xlu0 15
        %4743 = vperm.xlu0 %4742, %v4697
        %v4744 = vpop.permute.xlu0 %4743
        %4747 = vset.pattern.permute.xlu0 15
        %4748 = vperm.xlu0 %4747, %v4698
        %v4749 = vpop.permute.xlu0 %4748
        %4752 = vset.pattern.permute.xlu0 15
        %4753 = vperm.xlu0 %4752, %v4699
        %v4754 = vpop.permute.xlu0 %4753
        %4757 = vset.pattern.permute.xlu0 15
        %4758 = vperm.xlu0 %4757, %v4700
        %v4759 = vpop.permute.xlu0 %4758
        %4762 = vset.pattern.permute.xlu0 15
        %4763 = vperm.xlu0 %4762, %v4701
        %v4764 = vpop.permute.xlu0 %4763
        %4767 = vset.pattern.permute.xlu0 15
        %4768 = vperm.xlu0 %4767, %v4702
        %v4769 = vpop.permute.xlu0 %4768
        %4772 = vset.pattern.permute.xlu0 15
        %4773 = vperm.xlu0 %4772, %v4703
        %v4774 = vpop.permute.xlu0 %4773
        %4777 = vset.pattern.permute.xlu0 15
        %4778 = vperm.xlu0 %4777, %v4704
        %v4779 = vpop.permute.xlu0 %4778
        %4782 = vset.pattern.permute.xlu0 15
        %4783 = vperm.xlu0 %4782, %v4705
        %v4784 = vpop.permute.xlu0 %4783
        %v4786 = vsel %vm2985, %v4709, %v4690
        %v4787 = vsel %vm2985, %v4714, %v4691
        %v4788 = vsel %vm2985, %v4719, %v4692
        %v4789 = vsel %vm2985, %v4724, %v4693
        %v4790 = vsel %vm2985, %v4729, %v4694
        %v4791 = vsel %vm2985, %v4734, %v4695
        %v4792 = vsel %vm2985, %v4739, %v4696
        %v4793 = vsel %vm2985, %v4744, %v4697
        %v4794 = vsel %vm2985, %v4749, %v4698
        %v4795 = vsel %vm2985, %v4754, %v4699
        %v4796 = vsel %vm2985, %v4759, %v4700
        %v4797 = vsel %vm2985, %v4764, %v4701
        %v4798 = vsel %vm2985, %v4769, %v4702
        %v4799 = vsel %vm2985, %v4774, %v4703
        %v4800 = vsel %vm2985, %v4779, %v4704
        %v4801 = vsel %vm2985, %v4784, %v4705
        %v4802 = vrot.slane %v4786, 7
        %v4803 = vrot.slane %v4790, 7
        %v4804 = vrot.slane %v4794, 7
        %v4805 = vrot.slane %v4798, 7
        %v4806 = vrot.slane %v4787, 7
        %v4807 = vrot.slane %v4791, 7
        %v4808 = vrot.slane %v4795, 7
        %v4809 = vrot.slane %v4799, 7
        %v4810 = vrot.slane %v4788, 7
        %v4811 = vrot.slane %v4792, 7
        %v4812 = vrot.slane %v4796, 7
        %v4813 = vrot.slane %v4800, 7
        %v4814 = vrot.slane %v4789, 7
        %v4815 = vrot.slane %v4793, 7
        %v4816 = vrot.slane %v4797, 7
        %v4817 = vrot.slane %v4801, 7
        %v4818 = vsel %vm144, %v4810, %v4814
        %v4819 = vsel %vm144, %v4811, %v4815
        %v4820 = vsel %vm144, %v4812, %v4816
        %v4821 = vsel %vm144, %v4813, %v4817
        %v4822 = vsel %vm144, %v4806, %v4810
        %v4823 = vsel %vm144, %v4807, %v4811
        %v4824 = vsel %vm144, %v4808, %v4812
        %v4825 = vsel %vm144, %v4809, %v4813
        %v4826 = vsel %vm144, %v4802, %v4806
        %v4827 = vsel %vm144, %v4803, %v4807
        %v4828 = vsel %vm144, %v4804, %v4808
        %v4829 = vsel %vm144, %v4805, %v4809
        %v4830 = vsel %vm144, %v4814, %v4802
        %v4831 = vsel %vm144, %v4815, %v4803
        %v4832 = vsel %vm144, %v4816, %v4804
        %v4833 = vsel %vm144, %v4817, %v4805
        %4834 = vrot.lane.b32.xlu0 %v4830, 1
        %v4835 = vpop.permute.xlu0 %4834
        %4836 = vrot.lane.b32.xlu0 %v4826, 1
        %v4837 = vpop.permute.xlu0 %4836
        %4838 = vrot.lane.b32.xlu0 %v4822, 1
        %v4839 = vpop.permute.xlu0 %4838
        %4840 = vrot.lane.b32.xlu0 %v4818, 1
        %v4841 = vpop.permute.xlu0 %4840
        %4842 = vrot.lane.b32.xlu0 %v4831, 1
        %v4843 = vpop.permute.xlu0 %4842
        %4844 = vrot.lane.b32.xlu0 %v4827, 1
        %v4845 = vpop.permute.xlu0 %4844
        %4846 = vrot.lane.b32.xlu0 %v4823, 1
        %v4847 = vpop.permute.xlu0 %4846
        %4848 = vrot.lane.b32.xlu0 %v4819, 1
        %v4849 = vpop.permute.xlu0 %4848
        %4850 = vrot.lane.b32.xlu0 %v4832, 1
        %v4851 = vpop.permute.xlu0 %4850
        %4852 = vrot.lane.b32.xlu0 %v4828, 1
        %v4853 = vpop.permute.xlu0 %4852
        %4854 = vrot.lane.b32.xlu0 %v4824, 1
        %v4855 = vpop.permute.xlu0 %4854
        %4856 = vrot.lane.b32.xlu0 %v4820, 1
        %v4857 = vpop.permute.xlu0 %4856
        %4858 = vrot.lane.b32.xlu0 %v4833, 1
        %v4859 = vpop.permute.xlu0 %4858
        %4860 = vrot.lane.b32.xlu0 %v4829, 1
        %v4861 = vpop.permute.xlu0 %4860
        %4862 = vrot.lane.b32.xlu0 %v4825, 1
        %v4863 = vpop.permute.xlu0 %4862
        %4864 = vrot.lane.b32.xlu0 %v4821, 1
        %v4865 = vpop.permute.xlu0 %4864
        %4867 = vset.pattern.permute.xlu0 0
        %4868 = vperm.xlu0 %4867, %v4830
        %v4869 = vpop.permute.xlu0 %4868
        %4872 = vset.pattern.permute.xlu0 0
        %4873 = vperm.xlu0 %4872, %v4826
        %v4874 = vpop.permute.xlu0 %4873
        %4877 = vset.pattern.permute.xlu0 0
        %4878 = vperm.xlu0 %4877, %v4822
        %v4879 = vpop.permute.xlu0 %4878
        %4882 = vset.pattern.permute.xlu0 0
        %4883 = vperm.xlu0 %4882, %v4818
        %v4884 = vpop.permute.xlu0 %4883
        %4887 = vset.pattern.permute.xlu0 0
        %4888 = vperm.xlu0 %4887, %v4831
        %v4889 = vpop.permute.xlu0 %4888
        %4892 = vset.pattern.permute.xlu0 0
        %4893 = vperm.xlu0 %4892, %v4827
        %v4894 = vpop.permute.xlu0 %4893
        %4897 = vset.pattern.permute.xlu0 0
        %4898 = vperm.xlu0 %4897, %v4823
        %v4899 = vpop.permute.xlu0 %4898
        %4902 = vset.pattern.permute.xlu0 0
        %4903 = vperm.xlu0 %4902, %v4819
        %v4904 = vpop.permute.xlu0 %4903
        %4907 = vset.pattern.permute.xlu0 0
        %4908 = vperm.xlu0 %4907, %v4832
        %v4909 = vpop.permute.xlu0 %4908
        %4912 = vset.pattern.permute.xlu0 0
        %4913 = vperm.xlu0 %4912, %v4828
        %v4914 = vpop.permute.xlu0 %4913
        %4917 = vset.pattern.permute.xlu0 0
        %4918 = vperm.xlu0 %4917, %v4824
        %v4919 = vpop.permute.xlu0 %4918
        %4922 = vset.pattern.permute.xlu0 0
        %4923 = vperm.xlu0 %4922, %v4820
        %v4924 = vpop.permute.xlu0 %4923
        %4927 = vset.pattern.permute.xlu0 0
        %4928 = vperm.xlu0 %4927, %v4833
        %v4929 = vpop.permute.xlu0 %4928
        %4932 = vset.pattern.permute.xlu0 0
        %4933 = vperm.xlu0 %4932, %v4829
        %v4934 = vpop.permute.xlu0 %4933
        %4937 = vset.pattern.permute.xlu0 0
        %4938 = vperm.xlu0 %4937, %v4825
        %v4939 = vpop.permute.xlu0 %4938
        %4942 = vset.pattern.permute.xlu0 0
        %4943 = vperm.xlu0 %4942, %v4821
        %v4944 = vpop.permute.xlu0 %4943
        %v4946 = vsel %vm182, %v4869, %v4835
        %v4947 = vsel %vm182, %v4874, %v4837
        %v4948 = vsel %vm182, %v4879, %v4839
        %v4949 = vsel %vm182, %v4884, %v4841
        %v4950 = vsel %vm182, %v4889, %v4843
        %v4951 = vsel %vm182, %v4894, %v4845
        %v4952 = vsel %vm182, %v4899, %v4847
        %v4953 = vsel %vm182, %v4904, %v4849
        %v4954 = vsel %vm182, %v4909, %v4851
        %v4955 = vsel %vm182, %v4914, %v4853
        %v4956 = vsel %vm182, %v4919, %v4855
        %v4957 = vsel %vm182, %v4924, %v4857
        %v4958 = vsel %vm182, %v4929, %v4859
        %v4959 = vsel %vm182, %v4934, %v4861
        %v4960 = vsel %vm182, %v4939, %v4863
        %v4961 = vsel %vm182, %v4944, %v4865
        %v4962 = vmul.f32 %v4946, %v2740
        %v4963 = vmul.f32 %v4947, %v2741
        %v4964 = vmul.f32 %v4948, %v2742
        %v4965 = vmul.f32 %v4949, %v2743
        %v4966 = vmul.f32 %v4950, %v2740
        %v4967 = vmul.f32 %v4951, %v2741
        %v4968 = vmul.f32 %v4952, %v2742
        %v4969 = vmul.f32 %v4953, %v2743
        %v4970 = vmul.f32 %v4954, %v2740
        %v4971 = vmul.f32 %v4955, %v2741
        %v4972 = vmul.f32 %v4956, %v2742
        %v4973 = vmul.f32 %v4957, %v2743
        %v4974 = vmul.f32 %v4958, %v2740
        %v4975 = vmul.f32 %v4959, %v2741
        %v4976 = vmul.f32 %v4960, %v2742
        %v4977 = vmul.f32 %v4961, %v2743
        %v4978 = vadd.f32 %v4962, 0.0
        %v4979 = vadd.f32 %v4963, 0.0
        %v4980 = vadd.f32 %v4964, 0.0
        %v4981 = vadd.f32 %v4965, 0.0
        %v4982 = vadd.f32 %v4966, 0.0
        %v4983 = vadd.f32 %v4967, 0.0
        %v4984 = vadd.f32 %v4968, 0.0
        %v4985 = vadd.f32 %v4969, 0.0
        %v4986 = vadd.f32 %v4970, 0.0
        %v4987 = vadd.f32 %v4971, 0.0
        %v4988 = vadd.f32 %v4972, 0.0
        %v4989 = vadd.f32 %v4973, 0.0
        %v4990 = vadd.f32 %v4974, 0.0
        %v4991 = vadd.f32 %v4975, 0.0
        %v4992 = vadd.f32 %v4976, 0.0
        %v4993 = vadd.f32 %v4977, 0.0
        %v4994 = vmul.f32 %v4830, %v2748
        %v4995 = vmul.f32 %v4826, %v2749
        %v4996 = vmul.f32 %v4822, %v2750
        %v4997 = vmul.f32 %v4818, %v2751
        %v4998 = vmul.f32 %v4831, %v2748
        %v4999 = vmul.f32 %v4827, %v2749
        %v5000 = vmul.f32 %v4823, %v2750
        %v5001 = vmul.f32 %v4819, %v2751
        %v5002 = vmul.f32 %v4832, %v2748
        %v5003 = vmul.f32 %v4828, %v2749
        %v5004 = vmul.f32 %v4824, %v2750
        %v5005 = vmul.f32 %v4820, %v2751
        %v5006 = vmul.f32 %v4833, %v2748
        %v5007 = vmul.f32 %v4829, %v2749
        %v5008 = vmul.f32 %v4825, %v2750
        %v5009 = vmul.f32 %v4821, %v2751
        %v5010 = vadd.f32 %v4978, %v4994
        %v5011 = vadd.f32 %v4979, %v4995
        %v5012 = vadd.f32 %v4980, %v4996
        %v5013 = vadd.f32 %v4981, %v4997
        %v5014 = vadd.f32 %v4982, %v4998
        %v5015 = vadd.f32 %v4983, %v4999
        %v5016 = vadd.f32 %v4984, %v5000
        %v5017 = vadd.f32 %v4985, %v5001
        %v5018 = vadd.f32 %v4986, %v5002
        %v5019 = vadd.f32 %v4987, %v5003
        %v5020 = vadd.f32 %v4988, %v5004
        %v5021 = vadd.f32 %v4989, %v5005
        %v5022 = vadd.f32 %v4990, %v5006
        %v5023 = vadd.f32 %v4991, %v5007
        %v5024 = vadd.f32 %v4992, %v5008
        %v5025 = vadd.f32 %v4993, %v5009
        %5026 = vrot.lane.b32.xlu0 %v4830, 127
        %v5027 = vpop.permute.xlu0 %5026
        %5028 = vrot.lane.b32.xlu0 %v4826, 127
        %v5029 = vpop.permute.xlu0 %5028
        %5030 = vrot.lane.b32.xlu0 %v4822, 127
        %v5031 = vpop.permute.xlu0 %5030
        %5032 = vrot.lane.b32.xlu0 %v4818, 127
        %v5033 = vpop.permute.xlu0 %5032
        %5034 = vrot.lane.b32.xlu0 %v4831, 127
        %v5035 = vpop.permute.xlu0 %5034
        %5036 = vrot.lane.b32.xlu0 %v4827, 127
        %v5037 = vpop.permute.xlu0 %5036
        %5038 = vrot.lane.b32.xlu0 %v4823, 127
        %v5039 = vpop.permute.xlu0 %5038
        %5040 = vrot.lane.b32.xlu0 %v4819, 127
        %v5041 = vpop.permute.xlu0 %5040
        %5042 = vrot.lane.b32.xlu0 %v4832, 127
        %v5043 = vpop.permute.xlu0 %5042
        %5044 = vrot.lane.b32.xlu0 %v4828, 127
        %v5045 = vpop.permute.xlu0 %5044
        %5046 = vrot.lane.b32.xlu0 %v4824, 127
        %v5047 = vpop.permute.xlu0 %5046
        %5048 = vrot.lane.b32.xlu0 %v4820, 127
        %v5049 = vpop.permute.xlu0 %5048
        %5050 = vrot.lane.b32.xlu0 %v4833, 127
        %v5051 = vpop.permute.xlu0 %5050
        %5052 = vrot.lane.b32.xlu0 %v4829, 127
        %v5053 = vpop.permute.xlu0 %5052
        %5054 = vrot.lane.b32.xlu0 %v4825, 127
        %v5055 = vpop.permute.xlu0 %5054
        %5056 = vrot.lane.b32.xlu0 %v4821, 127
        %v5057 = vpop.permute.xlu0 %5056
        %v5058 = vmul.f32 %v5027, %v2756
        %v5059 = vmul.f32 %v5029, %v2757
        %v5060 = vmul.f32 %v5031, %v2758
        %v5061 = vmul.f32 %v5033, %v2759
        %v5062 = vmul.f32 %v5035, %v2756
        %v5063 = vmul.f32 %v5037, %v2757
        %v5064 = vmul.f32 %v5039, %v2758
        %v5065 = vmul.f32 %v5041, %v2759
        %v5066 = vmul.f32 %v5043, %v2756
        %v5067 = vmul.f32 %v5045, %v2757
        %v5068 = vmul.f32 %v5047, %v2758
        %v5069 = vmul.f32 %v5049, %v2759
        %v5070 = vmul.f32 %v5051, %v2756
        %v5071 = vmul.f32 %v5053, %v2757
        %v5072 = vmul.f32 %v5055, %v2758
        %v5073 = vmul.f32 %v5057, %v2759
        %v5074 = vadd.f32 %v5010, %v5058
        %v5075 = vadd.f32 %v5011, %v5059
        %v5076 = vadd.f32 %v5012, %v5060
        %v5077 = vadd.f32 %v5013, %v5061
        %v5078 = vadd.f32 %v5014, %v5062
        %v5079 = vadd.f32 %v5015, %v5063
        %v5080 = vadd.f32 %v5016, %v5064
        %v5081 = vadd.f32 %v5017, %v5065
        %v5082 = vadd.f32 %v5018, %v5066
        %v5083 = vadd.f32 %v5019, %v5067
        %v5084 = vadd.f32 %v5020, %v5068
        %v5085 = vadd.f32 %v5021, %v5069
        %v5086 = vadd.f32 %v5022, %v5070
        %v5087 = vadd.f32 %v5023, %v5071
        %v5088 = vadd.f32 %v5024, %v5072
        %v5089 = vadd.f32 %v5025, %v5073
        %5090 = vrot.lane.b32.xlu0 %v4786, 1
        %v5091 = vpop.permute.xlu0 %5090
        %5092 = vrot.lane.b32.xlu0 %v4787, 1
        %v5093 = vpop.permute.xlu0 %5092
        %5094 = vrot.lane.b32.xlu0 %v4788, 1
        %v5095 = vpop.permute.xlu0 %5094
        %5096 = vrot.lane.b32.xlu0 %v4789, 1
        %v5097 = vpop.permute.xlu0 %5096
        %5098 = vrot.lane.b32.xlu0 %v4790, 1
        %v5099 = vpop.permute.xlu0 %5098
        %5100 = vrot.lane.b32.xlu0 %v4791, 1
        %v5101 = vpop.permute.xlu0 %5100
        %5102 = vrot.lane.b32.xlu0 %v4792, 1
        %v5103 = vpop.permute.xlu0 %5102
        %5104 = vrot.lane.b32.xlu0 %v4793, 1
        %v5105 = vpop.permute.xlu0 %5104
        %5106 = vrot.lane.b32.xlu0 %v4794, 1
        %v5107 = vpop.permute.xlu0 %5106
        %5108 = vrot.lane.b32.xlu0 %v4795, 1
        %v5109 = vpop.permute.xlu0 %5108
        %5110 = vrot.lane.b32.xlu0 %v4796, 1
        %v5111 = vpop.permute.xlu0 %5110
        %5112 = vrot.lane.b32.xlu0 %v4797, 1
        %v5113 = vpop.permute.xlu0 %5112
        %5114 = vrot.lane.b32.xlu0 %v4798, 1
        %v5115 = vpop.permute.xlu0 %5114
        %5116 = vrot.lane.b32.xlu0 %v4799, 1
        %v5117 = vpop.permute.xlu0 %5116
        %5118 = vrot.lane.b32.xlu0 %v4800, 1
        %v5119 = vpop.permute.xlu0 %5118
        %5120 = vrot.lane.b32.xlu0 %v4801, 1
        %v5121 = vpop.permute.xlu0 %5120
        %5123 = vset.pattern.permute.xlu0 0
        %5124 = vperm.xlu0 %5123, %v4786
        %v5125 = vpop.permute.xlu0 %5124
        %5128 = vset.pattern.permute.xlu0 0
        %5129 = vperm.xlu0 %5128, %v4787
        %v5130 = vpop.permute.xlu0 %5129
        %5133 = vset.pattern.permute.xlu0 0
        %5134 = vperm.xlu0 %5133, %v4788
        %v5135 = vpop.permute.xlu0 %5134
        %5138 = vset.pattern.permute.xlu0 0
        %5139 = vperm.xlu0 %5138, %v4789
        %v5140 = vpop.permute.xlu0 %5139
        %5143 = vset.pattern.permute.xlu0 0
        %5144 = vperm.xlu0 %5143, %v4790
        %v5145 = vpop.permute.xlu0 %5144
        %5148 = vset.pattern.permute.xlu0 0
        %5149 = vperm.xlu0 %5148, %v4791
        %v5150 = vpop.permute.xlu0 %5149
        %5153 = vset.pattern.permute.xlu0 0
        %5154 = vperm.xlu0 %5153, %v4792
        %v5155 = vpop.permute.xlu0 %5154
        %5158 = vset.pattern.permute.xlu0 0
        %5159 = vperm.xlu0 %5158, %v4793
        %v5160 = vpop.permute.xlu0 %5159
        %5163 = vset.pattern.permute.xlu0 0
        %5164 = vperm.xlu0 %5163, %v4794
        %v5165 = vpop.permute.xlu0 %5164
        %5168 = vset.pattern.permute.xlu0 0
        %5169 = vperm.xlu0 %5168, %v4795
        %v5170 = vpop.permute.xlu0 %5169
        %5173 = vset.pattern.permute.xlu0 0
        %5174 = vperm.xlu0 %5173, %v4796
        %v5175 = vpop.permute.xlu0 %5174
        %5178 = vset.pattern.permute.xlu0 0
        %5179 = vperm.xlu0 %5178, %v4797
        %v5180 = vpop.permute.xlu0 %5179
        %5183 = vset.pattern.permute.xlu0 0
        %5184 = vperm.xlu0 %5183, %v4798
        %v5185 = vpop.permute.xlu0 %5184
        %5188 = vset.pattern.permute.xlu0 0
        %5189 = vperm.xlu0 %5188, %v4799
        %v5190 = vpop.permute.xlu0 %5189
        %5193 = vset.pattern.permute.xlu0 0
        %5194 = vperm.xlu0 %5193, %v4800
        %v5195 = vpop.permute.xlu0 %5194
        %5198 = vset.pattern.permute.xlu0 0
        %5199 = vperm.xlu0 %5198, %v4801
        %v5200 = vpop.permute.xlu0 %5199
        %v5202 = vsel %vm182, %v5125, %v5091
        %v5203 = vsel %vm182, %v5130, %v5093
        %v5204 = vsel %vm182, %v5135, %v5095
        %v5205 = vsel %vm182, %v5140, %v5097
        %v5206 = vsel %vm182, %v5145, %v5099
        %v5207 = vsel %vm182, %v5150, %v5101
        %v5208 = vsel %vm182, %v5155, %v5103
        %v5209 = vsel %vm182, %v5160, %v5105
        %v5210 = vsel %vm182, %v5165, %v5107
        %v5211 = vsel %vm182, %v5170, %v5109
        %v5212 = vsel %vm182, %v5175, %v5111
        %v5213 = vsel %vm182, %v5180, %v5113
        %v5214 = vsel %vm182, %v5185, %v5115
        %v5215 = vsel %vm182, %v5190, %v5117
        %v5216 = vsel %vm182, %v5195, %v5119
        %v5217 = vsel %vm182, %v5200, %v5121
        %v5218 = vmul.f32 %v5202, %v2764
        %v5219 = vmul.f32 %v5203, %v2765
        %v5220 = vmul.f32 %v5204, %v2766
        %v5221 = vmul.f32 %v5205, %v2767
        %v5222 = vmul.f32 %v5206, %v2764
        %v5223 = vmul.f32 %v5207, %v2765
        %v5224 = vmul.f32 %v5208, %v2766
        %v5225 = vmul.f32 %v5209, %v2767
        %v5226 = vmul.f32 %v5210, %v2764
        %v5227 = vmul.f32 %v5211, %v2765
        %v5228 = vmul.f32 %v5212, %v2766
        %v5229 = vmul.f32 %v5213, %v2767
        %v5230 = vmul.f32 %v5214, %v2764
        %v5231 = vmul.f32 %v5215, %v2765
        %v5232 = vmul.f32 %v5216, %v2766
        %v5233 = vmul.f32 %v5217, %v2767
        %v5234 = vadd.f32 %v5074, %v5218
        %v5235 = vadd.f32 %v5075, %v5219
        %v5236 = vadd.f32 %v5076, %v5220
        %v5237 = vadd.f32 %v5077, %v5221
        %v5238 = vadd.f32 %v5078, %v5222
        %v5239 = vadd.f32 %v5079, %v5223
        %v5240 = vadd.f32 %v5080, %v5224
        %v5241 = vadd.f32 %v5081, %v5225
        %v5242 = vadd.f32 %v5082, %v5226
        %v5243 = vadd.f32 %v5083, %v5227
        %v5244 = vadd.f32 %v5084, %v5228
        %v5245 = vadd.f32 %v5085, %v5229
        %v5246 = vadd.f32 %v5086, %v5230
        %v5247 = vadd.f32 %v5087, %v5231
        %v5248 = vadd.f32 %v5088, %v5232
        %v5249 = vadd.f32 %v5089, %v5233
        %5250 = vrot.lane.b32.xlu0 %v4786, 127
        %v5251 = vpop.permute.xlu0 %5250
        %5252 = vrot.lane.b32.xlu0 %v4787, 127
        %v5253 = vpop.permute.xlu0 %5252
        %5254 = vrot.lane.b32.xlu0 %v4788, 127
        %v5255 = vpop.permute.xlu0 %5254
        %5256 = vrot.lane.b32.xlu0 %v4789, 127
        %v5257 = vpop.permute.xlu0 %5256
        %5258 = vrot.lane.b32.xlu0 %v4790, 127
        %v5259 = vpop.permute.xlu0 %5258
        %5260 = vrot.lane.b32.xlu0 %v4791, 127
        %v5261 = vpop.permute.xlu0 %5260
        %5262 = vrot.lane.b32.xlu0 %v4792, 127
        %v5263 = vpop.permute.xlu0 %5262
        %5264 = vrot.lane.b32.xlu0 %v4793, 127
        %v5265 = vpop.permute.xlu0 %5264
        %5266 = vrot.lane.b32.xlu0 %v4794, 127
        %v5267 = vpop.permute.xlu0 %5266
        %5268 = vrot.lane.b32.xlu0 %v4795, 127
        %v5269 = vpop.permute.xlu0 %5268
        %5270 = vrot.lane.b32.xlu0 %v4796, 127
        %v5271 = vpop.permute.xlu0 %5270
        %5272 = vrot.lane.b32.xlu0 %v4797, 127
        %v5273 = vpop.permute.xlu0 %5272
        %5274 = vrot.lane.b32.xlu0 %v4798, 127
        %v5275 = vpop.permute.xlu0 %5274
        %5276 = vrot.lane.b32.xlu0 %v4799, 127
        %v5277 = vpop.permute.xlu0 %5276
        %5278 = vrot.lane.b32.xlu0 %v4800, 127
        %v5279 = vpop.permute.xlu0 %5278
        %5280 = vrot.lane.b32.xlu0 %v4801, 127
        %v5281 = vpop.permute.xlu0 %5280
        %v5282 = vmul.f32 %v5251, %v2772
        %v5283 = vmul.f32 %v5253, %v2773
        %v5284 = vmul.f32 %v5255, %v2774
        %v5285 = vmul.f32 %v5257, %v2775
        %v5286 = vmul.f32 %v5259, %v2772
        %v5287 = vmul.f32 %v5261, %v2773
        %v5288 = vmul.f32 %v5263, %v2774
        %v5289 = vmul.f32 %v5265, %v2775
        %v5290 = vmul.f32 %v5267, %v2772
        %v5291 = vmul.f32 %v5269, %v2773
        %v5292 = vmul.f32 %v5271, %v2774
        %v5293 = vmul.f32 %v5273, %v2775
        %v5294 = vmul.f32 %v5275, %v2772
        %v5295 = vmul.f32 %v5277, %v2773
        %v5296 = vmul.f32 %v5279, %v2774
        %v5297 = vmul.f32 %v5281, %v2775
        %v5298 = vadd.f32 %v5234, %v5282
        %v5299 = vadd.f32 %v5235, %v5283
        %v5300 = vadd.f32 %v5236, %v5284
        %v5301 = vadd.f32 %v5237, %v5285
        %v5302 = vadd.f32 %v5238, %v5286
        %v5303 = vadd.f32 %v5239, %v5287
        %v5304 = vadd.f32 %v5240, %v5288
        %v5305 = vadd.f32 %v5241, %v5289
        %v5306 = vadd.f32 %v5242, %v5290
        %v5307 = vadd.f32 %v5243, %v5291
        %v5308 = vadd.f32 %v5244, %v5292
        %v5309 = vadd.f32 %v5245, %v5293
        %v5310 = vadd.f32 %v5246, %v5294
        %v5311 = vadd.f32 %v5247, %v5295
        %v5312 = vadd.f32 %v5248, %v5296
        %v5313 = vadd.f32 %v5249, %v5297
        %v5314 = vrot.slane %v4786, 1
        %v5315 = vrot.slane %v4790, 1
        %v5316 = vrot.slane %v4794, 1
        %v5317 = vrot.slane %v4798, 1
        %v5318 = vrot.slane %v4787, 1
        %v5319 = vrot.slane %v4791, 1
        %v5320 = vrot.slane %v4795, 1
        %v5321 = vrot.slane %v4799, 1
        %v5322 = vrot.slane %v4788, 1
        %v5323 = vrot.slane %v4792, 1
        %v5324 = vrot.slane %v4796, 1
        %v5325 = vrot.slane %v4800, 1
        %v5326 = vrot.slane %v4789, 1
        %v5327 = vrot.slane %v4793, 1
        %v5328 = vrot.slane %v4797, 1
        %v5329 = vrot.slane %v4801, 1
        %v5330 = vsel %vm651, %v5322, %v5326
        %v5331 = vsel %vm651, %v5323, %v5327
        %v5332 = vsel %vm651, %v5324, %v5328
        %v5333 = vsel %vm651, %v5325, %v5329
        %v5334 = vsel %vm651, %v5318, %v5322
        %v5335 = vsel %vm651, %v5319, %v5323
        %v5336 = vsel %vm651, %v5320, %v5324
        %v5337 = vsel %vm651, %v5321, %v5325
        %v5338 = vsel %vm651, %v5314, %v5318
        %v5339 = vsel %vm651, %v5315, %v5319
        %v5340 = vsel %vm651, %v5316, %v5320
        %v5341 = vsel %vm651, %v5317, %v5321
        %v5342 = vsel %vm651, %v5326, %v5314
        %v5343 = vsel %vm651, %v5327, %v5315
        %v5344 = vsel %vm651, %v5328, %v5316
        %v5345 = vsel %vm651, %v5329, %v5317
        %5346 = vrot.lane.b32.xlu0 %v5338, 1
        %v5347 = vpop.permute.xlu0 %5346
        %5348 = vrot.lane.b32.xlu0 %v5334, 1
        %v5349 = vpop.permute.xlu0 %5348
        %5350 = vrot.lane.b32.xlu0 %v5330, 1
        %v5351 = vpop.permute.xlu0 %5350
        %5352 = vrot.lane.b32.xlu0 %v5342, 1
        %v5353 = vpop.permute.xlu0 %5352
        %5354 = vrot.lane.b32.xlu0 %v5339, 1
        %v5355 = vpop.permute.xlu0 %5354
        %5356 = vrot.lane.b32.xlu0 %v5335, 1
        %v5357 = vpop.permute.xlu0 %5356
        %5358 = vrot.lane.b32.xlu0 %v5331, 1
        %v5359 = vpop.permute.xlu0 %5358
        %5360 = vrot.lane.b32.xlu0 %v5343, 1
        %v5361 = vpop.permute.xlu0 %5360
        %5362 = vrot.lane.b32.xlu0 %v5340, 1
        %v5363 = vpop.permute.xlu0 %5362
        %5364 = vrot.lane.b32.xlu0 %v5336, 1
        %v5365 = vpop.permute.xlu0 %5364
        %5366 = vrot.lane.b32.xlu0 %v5332, 1
        %v5367 = vpop.permute.xlu0 %5366
        %5368 = vrot.lane.b32.xlu0 %v5344, 1
        %v5369 = vpop.permute.xlu0 %5368
        %5370 = vrot.lane.b32.xlu0 %v5341, 1
        %v5371 = vpop.permute.xlu0 %5370
        %5372 = vrot.lane.b32.xlu0 %v5337, 1
        %v5373 = vpop.permute.xlu0 %5372
        %5374 = vrot.lane.b32.xlu0 %v5333, 1
        %v5375 = vpop.permute.xlu0 %5374
        %5376 = vrot.lane.b32.xlu0 %v5345, 1
        %v5377 = vpop.permute.xlu0 %5376
        %5379 = vset.pattern.permute.xlu0 0
        %5380 = vperm.xlu0 %5379, %v5338
        %v5381 = vpop.permute.xlu0 %5380
        %5384 = vset.pattern.permute.xlu0 0
        %5385 = vperm.xlu0 %5384, %v5334
        %v5386 = vpop.permute.xlu0 %5385
        %5389 = vset.pattern.permute.xlu0 0
        %5390 = vperm.xlu0 %5389, %v5330
        %v5391 = vpop.permute.xlu0 %5390
        %5394 = vset.pattern.permute.xlu0 0
        %5395 = vperm.xlu0 %5394, %v5342
        %v5396 = vpop.permute.xlu0 %5395
        %5399 = vset.pattern.permute.xlu0 0
        %5400 = vperm.xlu0 %5399, %v5339
        %v5401 = vpop.permute.xlu0 %5400
        %5404 = vset.pattern.permute.xlu0 0
        %5405 = vperm.xlu0 %5404, %v5335
        %v5406 = vpop.permute.xlu0 %5405
        %5409 = vset.pattern.permute.xlu0 0
        %5410 = vperm.xlu0 %5409, %v5331
        %v5411 = vpop.permute.xlu0 %5410
        %5414 = vset.pattern.permute.xlu0 0
        %5415 = vperm.xlu0 %5414, %v5343
        %v5416 = vpop.permute.xlu0 %5415
        %5419 = vset.pattern.permute.xlu0 0
        %5420 = vperm.xlu0 %5419, %v5340
        %v5421 = vpop.permute.xlu0 %5420
        %5424 = vset.pattern.permute.xlu0 0
        %5425 = vperm.xlu0 %5424, %v5336
        %v5426 = vpop.permute.xlu0 %5425
        %5429 = vset.pattern.permute.xlu0 0
        %5430 = vperm.xlu0 %5429, %v5332
        %v5431 = vpop.permute.xlu0 %5430
        %5434 = vset.pattern.permute.xlu0 0
        %5435 = vperm.xlu0 %5434, %v5344
        %v5436 = vpop.permute.xlu0 %5435
        %5439 = vset.pattern.permute.xlu0 0
        %5440 = vperm.xlu0 %5439, %v5341
        %v5441 = vpop.permute.xlu0 %5440
        %5444 = vset.pattern.permute.xlu0 0
        %5445 = vperm.xlu0 %5444, %v5337
        %v5446 = vpop.permute.xlu0 %5445
        %5449 = vset.pattern.permute.xlu0 0
        %5450 = vperm.xlu0 %5449, %v5333
        %v5451 = vpop.permute.xlu0 %5450
        %5454 = vset.pattern.permute.xlu0 0
        %5455 = vperm.xlu0 %5454, %v5345
        %v5456 = vpop.permute.xlu0 %5455
        %v5458 = vsel %vm182, %v5381, %v5347
        %v5459 = vsel %vm182, %v5386, %v5349
        %v5460 = vsel %vm182, %v5391, %v5351
        %v5461 = vsel %vm182, %v5396, %v5353
        %v5462 = vsel %vm182, %v5401, %v5355
        %v5463 = vsel %vm182, %v5406, %v5357
        %v5464 = vsel %vm182, %v5411, %v5359
        %v5465 = vsel %vm182, %v5416, %v5361
        %v5466 = vsel %vm182, %v5421, %v5363
        %v5467 = vsel %vm182, %v5426, %v5365
        %v5468 = vsel %vm182, %v5431, %v5367
        %v5469 = vsel %vm182, %v5436, %v5369
        %v5470 = vsel %vm182, %v5441, %v5371
        %v5471 = vsel %vm182, %v5446, %v5373
        %v5472 = vsel %vm182, %v5451, %v5375
        %v5473 = vsel %vm182, %v5456, %v5377
        %v5474 = vmul.f32 %v5458, %v2780
        %v5475 = vmul.f32 %v5459, %v2781
        %v5476 = vmul.f32 %v5460, %v2782
        %v5477 = vmul.f32 %v5461, %v2783
        %v5478 = vmul.f32 %v5462, %v2780
        %v5479 = vmul.f32 %v5463, %v2781
        %v5480 = vmul.f32 %v5464, %v2782
        %v5481 = vmul.f32 %v5465, %v2783
        %v5482 = vmul.f32 %v5466, %v2780
        %v5483 = vmul.f32 %v5467, %v2781
        %v5484 = vmul.f32 %v5468, %v2782
        %v5485 = vmul.f32 %v5469, %v2783
        %v5486 = vmul.f32 %v5470, %v2780
        %v5487 = vmul.f32 %v5471, %v2781
        %v5488 = vmul.f32 %v5472, %v2782
        %v5489 = vmul.f32 %v5473, %v2783
        %v5490 = vadd.f32 %v5298, %v5474
        %v5491 = vadd.f32 %v5299, %v5475
        %v5492 = vadd.f32 %v5300, %v5476
        %v5493 = vadd.f32 %v5301, %v5477
        %v5494 = vadd.f32 %v5302, %v5478
        %v5495 = vadd.f32 %v5303, %v5479
        %v5496 = vadd.f32 %v5304, %v5480
        %v5497 = vadd.f32 %v5305, %v5481
        %v5498 = vadd.f32 %v5306, %v5482
        %v5499 = vadd.f32 %v5307, %v5483
        %v5500 = vadd.f32 %v5308, %v5484
        %v5501 = vadd.f32 %v5309, %v5485
        %v5502 = vadd.f32 %v5310, %v5486
        %v5503 = vadd.f32 %v5311, %v5487
        %v5504 = vadd.f32 %v5312, %v5488
        %v5505 = vadd.f32 %v5313, %v5489
        %v5506 = vmul.f32 %v5338, %v2788
        %v5507 = vmul.f32 %v5334, %v2789
        %v5508 = vmul.f32 %v5330, %v2790
        %v5509 = vmul.f32 %v5342, %v2791
        %v5510 = vmul.f32 %v5339, %v2788
        %v5511 = vmul.f32 %v5335, %v2789
        %v5512 = vmul.f32 %v5331, %v2790
        %v5513 = vmul.f32 %v5343, %v2791
        %v5514 = vmul.f32 %v5340, %v2788
        %v5515 = vmul.f32 %v5336, %v2789
        %v5516 = vmul.f32 %v5332, %v2790
        %v5517 = vmul.f32 %v5344, %v2791
        %v5518 = vmul.f32 %v5341, %v2788
        %v5519 = vmul.f32 %v5337, %v2789
        %v5520 = vmul.f32 %v5333, %v2790
        %v5521 = vmul.f32 %v5345, %v2791
        %v5522 = vadd.f32 %v5490, %v5506
        %v5523 = vadd.f32 %v5491, %v5507
        %v5524 = vadd.f32 %v5492, %v5508
        %v5525 = vadd.f32 %v5493, %v5509
        %v5526 = vadd.f32 %v5494, %v5510
        %v5527 = vadd.f32 %v5495, %v5511
        %v5528 = vadd.f32 %v5496, %v5512
        %v5529 = vadd.f32 %v5497, %v5513
        %v5530 = vadd.f32 %v5498, %v5514
        %v5531 = vadd.f32 %v5499, %v5515
        %v5532 = vadd.f32 %v5500, %v5516
        %v5533 = vadd.f32 %v5501, %v5517
        %v5534 = vadd.f32 %v5502, %v5518
        %v5535 = vadd.f32 %v5503, %v5519
        %v5536 = vadd.f32 %v5504, %v5520
        %v5537 = vadd.f32 %v5505, %v5521
        %5538 = vrot.lane.b32.xlu0 %v5338, 127
        %v5539 = vpop.permute.xlu0 %5538
        %5540 = vrot.lane.b32.xlu0 %v5334, 127
        %v5541 = vpop.permute.xlu0 %5540
        %5542 = vrot.lane.b32.xlu0 %v5330, 127
        %v5543 = vpop.permute.xlu0 %5542
        %5544 = vrot.lane.b32.xlu0 %v5342, 127
        %v5545 = vpop.permute.xlu0 %5544
        %5546 = vrot.lane.b32.xlu0 %v5339, 127
        %v5547 = vpop.permute.xlu0 %5546
        %5548 = vrot.lane.b32.xlu0 %v5335, 127
        %v5549 = vpop.permute.xlu0 %5548
        %5550 = vrot.lane.b32.xlu0 %v5331, 127
        %v5551 = vpop.permute.xlu0 %5550
        %5552 = vrot.lane.b32.xlu0 %v5343, 127
        %v5553 = vpop.permute.xlu0 %5552
        %5554 = vrot.lane.b32.xlu0 %v5340, 127
        %v5555 = vpop.permute.xlu0 %5554
        %5556 = vrot.lane.b32.xlu0 %v5336, 127
        %v5557 = vpop.permute.xlu0 %5556
        %5558 = vrot.lane.b32.xlu0 %v5332, 127
        %v5559 = vpop.permute.xlu0 %5558
        %5560 = vrot.lane.b32.xlu0 %v5344, 127
        %v5561 = vpop.permute.xlu0 %5560
        %5562 = vrot.lane.b32.xlu0 %v5341, 127
        %v5563 = vpop.permute.xlu0 %5562
        %5564 = vrot.lane.b32.xlu0 %v5337, 127
        %v5565 = vpop.permute.xlu0 %5564
        %5566 = vrot.lane.b32.xlu0 %v5333, 127
        %v5567 = vpop.permute.xlu0 %5566
        %5568 = vrot.lane.b32.xlu0 %v5345, 127
        %v5569 = vpop.permute.xlu0 %5568
        %v5570 = vmul.f32 %v5539, %v2796
        %v5571 = vmul.f32 %v5541, %v2797
        %v5572 = vmul.f32 %v5543, %v2798
        %v5573 = vmul.f32 %v5545, %v2799
        %v5574 = vmul.f32 %v5547, %v2796
        %v5575 = vmul.f32 %v5549, %v2797
        %v5576 = vmul.f32 %v5551, %v2798
        %v5577 = vmul.f32 %v5553, %v2799
        %v5578 = vmul.f32 %v5555, %v2796
        %v5579 = vmul.f32 %v5557, %v2797
        %v5580 = vmul.f32 %v5559, %v2798
        %v5581 = vmul.f32 %v5561, %v2799
        %v5582 = vmul.f32 %v5563, %v2796
        %v5583 = vmul.f32 %v5565, %v2797
        %v5584 = vmul.f32 %v5567, %v2798
        %v5585 = vmul.f32 %v5569, %v2799
        %v5586 = vadd.f32 %v5522, %v5570
        %v5587 = vadd.f32 %v5523, %v5571
        %v5588 = vadd.f32 %v5524, %v5572
        %v5589 = vadd.f32 %v5525, %v5573
        %v5590 = vadd.f32 %v5526, %v5574
        %v5591 = vadd.f32 %v5527, %v5575
        %v5592 = vadd.f32 %v5528, %v5576
        %v5593 = vadd.f32 %v5529, %v5577
        %v5594 = vadd.f32 %v5530, %v5578
        %v5595 = vadd.f32 %v5531, %v5579
        %v5596 = vadd.f32 %v5532, %v5580
        %v5597 = vadd.f32 %v5533, %v5581
        %v5598 = vadd.f32 %v5534, %v5582
        %v5599 = vadd.f32 %v5535, %v5583
        %v5600 = vadd.f32 %v5536, %v5584
        %v5601 = vadd.f32 %v5537, %v5585
        %v5602 = vrot.slane %v4786, 6
        %v5603 = vrot.slane %v4790, 6
        %v5604 = vrot.slane %v4794, 6
        %v5605 = vrot.slane %v4798, 6
        %v5606 = vrot.slane %v4787, 6
        %v5607 = vrot.slane %v4791, 6
        %v5608 = vrot.slane %v4795, 6
        %v5609 = vrot.slane %v4799, 6
        %v5610 = vrot.slane %v4788, 6
        %v5611 = vrot.slane %v4792, 6
        %v5612 = vrot.slane %v4796, 6
        %v5613 = vrot.slane %v4800, 6
        %v5614 = vrot.slane %v4789, 6
        %v5615 = vrot.slane %v4793, 6
        %v5616 = vrot.slane %v4797, 6
        %v5617 = vrot.slane %v4801, 6
        %v5618 = vsel %vm940, %v5610, %v5614
        %v5619 = vsel %vm940, %v5611, %v5615
        %v5620 = vsel %vm940, %v5612, %v5616
        %v5621 = vsel %vm940, %v5613, %v5617
        %v5622 = vsel %vm940, %v5606, %v5610
        %v5623 = vsel %vm940, %v5607, %v5611
        %v5624 = vsel %vm940, %v5608, %v5612
        %v5625 = vsel %vm940, %v5609, %v5613
        %v5626 = vsel %vm940, %v5602, %v5606
        %v5627 = vsel %vm940, %v5603, %v5607
        %v5628 = vsel %vm940, %v5604, %v5608
        %v5629 = vsel %vm940, %v5605, %v5609
        %v5630 = vsel %vm940, %v5614, %v5602
        %v5631 = vsel %vm940, %v5615, %v5603
        %v5632 = vsel %vm940, %v5616, %v5604
        %v5633 = vsel %vm940, %v5617, %v5605
        %5634 = vrot.lane.b32.xlu0 %v5630, 2
        %v5635 = vpop.permute.xlu0 %5634
        %5636 = vrot.lane.b32.xlu0 %v5626, 2
        %v5637 = vpop.permute.xlu0 %5636
        %5638 = vrot.lane.b32.xlu0 %v5622, 2
        %v5639 = vpop.permute.xlu0 %5638
        %5640 = vrot.lane.b32.xlu0 %v5618, 2
        %v5641 = vpop.permute.xlu0 %5640
        %5642 = vrot.lane.b32.xlu0 %v5631, 2
        %v5643 = vpop.permute.xlu0 %5642
        %5644 = vrot.lane.b32.xlu0 %v5627, 2
        %v5645 = vpop.permute.xlu0 %5644
        %5646 = vrot.lane.b32.xlu0 %v5623, 2
        %v5647 = vpop.permute.xlu0 %5646
        %5648 = vrot.lane.b32.xlu0 %v5619, 2
        %v5649 = vpop.permute.xlu0 %5648
        %5650 = vrot.lane.b32.xlu0 %v5632, 2
        %v5651 = vpop.permute.xlu0 %5650
        %5652 = vrot.lane.b32.xlu0 %v5628, 2
        %v5653 = vpop.permute.xlu0 %5652
        %5654 = vrot.lane.b32.xlu0 %v5624, 2
        %v5655 = vpop.permute.xlu0 %5654
        %5656 = vrot.lane.b32.xlu0 %v5620, 2
        %v5657 = vpop.permute.xlu0 %5656
        %5658 = vrot.lane.b32.xlu0 %v5633, 2
        %v5659 = vpop.permute.xlu0 %5658
        %5660 = vrot.lane.b32.xlu0 %v5629, 2
        %v5661 = vpop.permute.xlu0 %5660
        %5662 = vrot.lane.b32.xlu0 %v5625, 2
        %v5663 = vpop.permute.xlu0 %5662
        %5664 = vrot.lane.b32.xlu0 %v5621, 2
        %v5665 = vpop.permute.xlu0 %5664
        %5667 = vset.pattern.permute.xlu0 0
        %5668 = vperm.xlu0 %5667, %v5630
        %v5669 = vpop.permute.xlu0 %5668
        %5672 = vset.pattern.permute.xlu0 0
        %5673 = vperm.xlu0 %5672, %v5626
        %v5674 = vpop.permute.xlu0 %5673
        %5677 = vset.pattern.permute.xlu0 0
        %5678 = vperm.xlu0 %5677, %v5622
        %v5679 = vpop.permute.xlu0 %5678
        %5682 = vset.pattern.permute.xlu0 0
        %5683 = vperm.xlu0 %5682, %v5618
        %v5684 = vpop.permute.xlu0 %5683
        %5687 = vset.pattern.permute.xlu0 0
        %5688 = vperm.xlu0 %5687, %v5631
        %v5689 = vpop.permute.xlu0 %5688
        %5692 = vset.pattern.permute.xlu0 0
        %5693 = vperm.xlu0 %5692, %v5627
        %v5694 = vpop.permute.xlu0 %5693
        %5697 = vset.pattern.permute.xlu0 0
        %5698 = vperm.xlu0 %5697, %v5623
        %v5699 = vpop.permute.xlu0 %5698
        %5702 = vset.pattern.permute.xlu0 0
        %5703 = vperm.xlu0 %5702, %v5619
        %v5704 = vpop.permute.xlu0 %5703
        %5707 = vset.pattern.permute.xlu0 0
        %5708 = vperm.xlu0 %5707, %v5632
        %v5709 = vpop.permute.xlu0 %5708
        %5712 = vset.pattern.permute.xlu0 0
        %5713 = vperm.xlu0 %5712, %v5628
        %v5714 = vpop.permute.xlu0 %5713
        %5717 = vset.pattern.permute.xlu0 0
        %5718 = vperm.xlu0 %5717, %v5624
        %v5719 = vpop.permute.xlu0 %5718
        %5722 = vset.pattern.permute.xlu0 0
        %5723 = vperm.xlu0 %5722, %v5620
        %v5724 = vpop.permute.xlu0 %5723
        %5727 = vset.pattern.permute.xlu0 0
        %5728 = vperm.xlu0 %5727, %v5633
        %v5729 = vpop.permute.xlu0 %5728
        %5732 = vset.pattern.permute.xlu0 0
        %5733 = vperm.xlu0 %5732, %v5629
        %v5734 = vpop.permute.xlu0 %5733
        %5737 = vset.pattern.permute.xlu0 0
        %5738 = vperm.xlu0 %5737, %v5625
        %v5739 = vpop.permute.xlu0 %5738
        %5742 = vset.pattern.permute.xlu0 0
        %5743 = vperm.xlu0 %5742, %v5621
        %v5744 = vpop.permute.xlu0 %5743
        %v5746 = vsel %vm978, %v5669, %v5635
        %v5747 = vsel %vm978, %v5674, %v5637
        %v5748 = vsel %vm978, %v5679, %v5639
        %v5749 = vsel %vm978, %v5684, %v5641
        %v5750 = vsel %vm978, %v5689, %v5643
        %v5751 = vsel %vm978, %v5694, %v5645
        %v5752 = vsel %vm978, %v5699, %v5647
        %v5753 = vsel %vm978, %v5704, %v5649
        %v5754 = vsel %vm978, %v5709, %v5651
        %v5755 = vsel %vm978, %v5714, %v5653
        %v5756 = vsel %vm978, %v5719, %v5655
        %v5757 = vsel %vm978, %v5724, %v5657
        %v5758 = vsel %vm978, %v5729, %v5659
        %v5759 = vsel %vm978, %v5734, %v5661
        %v5760 = vsel %vm978, %v5739, %v5663
        %v5761 = vsel %vm978, %v5744, %v5665
        %v5762 = vmul.f32 %v5746, %v2804
        %v5763 = vmul.f32 %v5747, %v2805
        %v5764 = vmul.f32 %v5748, %v2806
        %v5765 = vmul.f32 %v5749, %v2807
        %v5766 = vmul.f32 %v5750, %v2804
        %v5767 = vmul.f32 %v5751, %v2805
        %v5768 = vmul.f32 %v5752, %v2806
        %v5769 = vmul.f32 %v5753, %v2807
        %v5770 = vmul.f32 %v5754, %v2804
        %v5771 = vmul.f32 %v5755, %v2805
        %v5772 = vmul.f32 %v5756, %v2806
        %v5773 = vmul.f32 %v5757, %v2807
        %v5774 = vmul.f32 %v5758, %v2804
        %v5775 = vmul.f32 %v5759, %v2805
        %v5776 = vmul.f32 %v5760, %v2806
        %v5777 = vmul.f32 %v5761, %v2807
        %v5778 = vadd.f32 %v5586, %v5762
        %v5779 = vadd.f32 %v5587, %v5763
        %v5780 = vadd.f32 %v5588, %v5764
        %v5781 = vadd.f32 %v5589, %v5765
        %v5782 = vadd.f32 %v5590, %v5766
        %v5783 = vadd.f32 %v5591, %v5767
        %v5784 = vadd.f32 %v5592, %v5768
        %v5785 = vadd.f32 %v5593, %v5769
        %v5786 = vadd.f32 %v5594, %v5770
        %v5787 = vadd.f32 %v5595, %v5771
        %v5788 = vadd.f32 %v5596, %v5772
        %v5789 = vadd.f32 %v5597, %v5773
        %v5790 = vadd.f32 %v5598, %v5774
        %v5791 = vadd.f32 %v5599, %v5775
        %v5792 = vadd.f32 %v5600, %v5776
        %v5793 = vadd.f32 %v5601, %v5777
        %v5794 = vmul.f32 %v5630, %v2812
        %v5795 = vmul.f32 %v5626, %v2813
        %v5796 = vmul.f32 %v5622, %v2814
        %v5797 = vmul.f32 %v5618, %v2815
        %v5798 = vmul.f32 %v5631, %v2812
        %v5799 = vmul.f32 %v5627, %v2813
        %v5800 = vmul.f32 %v5623, %v2814
        %v5801 = vmul.f32 %v5619, %v2815
        %v5802 = vmul.f32 %v5632, %v2812
        %v5803 = vmul.f32 %v5628, %v2813
        %v5804 = vmul.f32 %v5624, %v2814
        %v5805 = vmul.f32 %v5620, %v2815
        %v5806 = vmul.f32 %v5633, %v2812
        %v5807 = vmul.f32 %v5629, %v2813
        %v5808 = vmul.f32 %v5625, %v2814
        %v5809 = vmul.f32 %v5621, %v2815
        %v5810 = vadd.f32 %v5778, %v5794
        %v5811 = vadd.f32 %v5779, %v5795
        %v5812 = vadd.f32 %v5780, %v5796
        %v5813 = vadd.f32 %v5781, %v5797
        %v5814 = vadd.f32 %v5782, %v5798
        %v5815 = vadd.f32 %v5783, %v5799
        %v5816 = vadd.f32 %v5784, %v5800
        %v5817 = vadd.f32 %v5785, %v5801
        %v5818 = vadd.f32 %v5786, %v5802
        %v5819 = vadd.f32 %v5787, %v5803
        %v5820 = vadd.f32 %v5788, %v5804
        %v5821 = vadd.f32 %v5789, %v5805
        %v5822 = vadd.f32 %v5790, %v5806
        %v5823 = vadd.f32 %v5791, %v5807
        %v5824 = vadd.f32 %v5792, %v5808
        %v5825 = vadd.f32 %v5793, %v5809
        %5826 = vrot.lane.b32.xlu0 %v5630, 126
        %v5827 = vpop.permute.xlu0 %5826
        %5828 = vrot.lane.b32.xlu0 %v5626, 126
        %v5829 = vpop.permute.xlu0 %5828
        %5830 = vrot.lane.b32.xlu0 %v5622, 126
        %v5831 = vpop.permute.xlu0 %5830
        %5832 = vrot.lane.b32.xlu0 %v5618, 126
        %v5833 = vpop.permute.xlu0 %5832
        %5834 = vrot.lane.b32.xlu0 %v5631, 126
        %v5835 = vpop.permute.xlu0 %5834
        %5836 = vrot.lane.b32.xlu0 %v5627, 126
        %v5837 = vpop.permute.xlu0 %5836
        %5838 = vrot.lane.b32.xlu0 %v5623, 126
        %v5839 = vpop.permute.xlu0 %5838
        %5840 = vrot.lane.b32.xlu0 %v5619, 126
        %v5841 = vpop.permute.xlu0 %5840
        %5842 = vrot.lane.b32.xlu0 %v5632, 126
        %v5843 = vpop.permute.xlu0 %5842
        %5844 = vrot.lane.b32.xlu0 %v5628, 126
        %v5845 = vpop.permute.xlu0 %5844
        %5846 = vrot.lane.b32.xlu0 %v5624, 126
        %v5847 = vpop.permute.xlu0 %5846
        %5848 = vrot.lane.b32.xlu0 %v5620, 126
        %v5849 = vpop.permute.xlu0 %5848
        %5850 = vrot.lane.b32.xlu0 %v5633, 126
        %v5851 = vpop.permute.xlu0 %5850
        %5852 = vrot.lane.b32.xlu0 %v5629, 126
        %v5853 = vpop.permute.xlu0 %5852
        %5854 = vrot.lane.b32.xlu0 %v5625, 126
        %v5855 = vpop.permute.xlu0 %5854
        %5856 = vrot.lane.b32.xlu0 %v5621, 126
        %v5857 = vpop.permute.xlu0 %5856
        %v5858 = vmul.f32 %v5827, %v2820
        %v5859 = vmul.f32 %v5829, %v2821
        %v5860 = vmul.f32 %v5831, %v2822
        %v5861 = vmul.f32 %v5833, %v2823
        %v5862 = vmul.f32 %v5835, %v2820
        %v5863 = vmul.f32 %v5837, %v2821
        %v5864 = vmul.f32 %v5839, %v2822
        %v5865 = vmul.f32 %v5841, %v2823
        %v5866 = vmul.f32 %v5843, %v2820
        %v5867 = vmul.f32 %v5845, %v2821
        %v5868 = vmul.f32 %v5847, %v2822
        %v5869 = vmul.f32 %v5849, %v2823
        %v5870 = vmul.f32 %v5851, %v2820
        %v5871 = vmul.f32 %v5853, %v2821
        %v5872 = vmul.f32 %v5855, %v2822
        %v5873 = vmul.f32 %v5857, %v2823
        %v5874 = vadd.f32 %v5810, %v5858
        %v5875 = vadd.f32 %v5811, %v5859
        %v5876 = vadd.f32 %v5812, %v5860
        %v5877 = vadd.f32 %v5813, %v5861
        %v5878 = vadd.f32 %v5814, %v5862
        %v5879 = vadd.f32 %v5815, %v5863
        %v5880 = vadd.f32 %v5816, %v5864
        %v5881 = vadd.f32 %v5817, %v5865
        %v5882 = vadd.f32 %v5818, %v5866
        %v5883 = vadd.f32 %v5819, %v5867
        %v5884 = vadd.f32 %v5820, %v5868
        %v5885 = vadd.f32 %v5821, %v5869
        %v5886 = vadd.f32 %v5822, %v5870
        %v5887 = vadd.f32 %v5823, %v5871
        %v5888 = vadd.f32 %v5824, %v5872
        %v5889 = vadd.f32 %v5825, %v5873
        %5890 = vrot.lane.b32.xlu0 %v4786, 2
        %v5891 = vpop.permute.xlu0 %5890
        %5892 = vrot.lane.b32.xlu0 %v4787, 2
        %v5893 = vpop.permute.xlu0 %5892
        %5894 = vrot.lane.b32.xlu0 %v4788, 2
        %v5895 = vpop.permute.xlu0 %5894
        %5896 = vrot.lane.b32.xlu0 %v4789, 2
        %v5897 = vpop.permute.xlu0 %5896
        %5898 = vrot.lane.b32.xlu0 %v4790, 2
        %v5899 = vpop.permute.xlu0 %5898
        %5900 = vrot.lane.b32.xlu0 %v4791, 2
        %v5901 = vpop.permute.xlu0 %5900
        %5902 = vrot.lane.b32.xlu0 %v4792, 2
        %v5903 = vpop.permute.xlu0 %5902
        %5904 = vrot.lane.b32.xlu0 %v4793, 2
        %v5905 = vpop.permute.xlu0 %5904
        %5906 = vrot.lane.b32.xlu0 %v4794, 2
        %v5907 = vpop.permute.xlu0 %5906
        %5908 = vrot.lane.b32.xlu0 %v4795, 2
        %v5909 = vpop.permute.xlu0 %5908
        %5910 = vrot.lane.b32.xlu0 %v4796, 2
        %v5911 = vpop.permute.xlu0 %5910
        %5912 = vrot.lane.b32.xlu0 %v4797, 2
        %v5913 = vpop.permute.xlu0 %5912
        %5914 = vrot.lane.b32.xlu0 %v4798, 2
        %v5915 = vpop.permute.xlu0 %5914
        %5916 = vrot.lane.b32.xlu0 %v4799, 2
        %v5917 = vpop.permute.xlu0 %5916
        %5918 = vrot.lane.b32.xlu0 %v4800, 2
        %v5919 = vpop.permute.xlu0 %5918
        %5920 = vrot.lane.b32.xlu0 %v4801, 2
        %v5921 = vpop.permute.xlu0 %5920
        %v5922 = vsel %vm978, %v5125, %v5891
        %v5923 = vsel %vm978, %v5130, %v5893
        %v5924 = vsel %vm978, %v5135, %v5895
        %v5925 = vsel %vm978, %v5140, %v5897
        %v5926 = vsel %vm978, %v5145, %v5899
        %v5927 = vsel %vm978, %v5150, %v5901
        %v5928 = vsel %vm978, %v5155, %v5903
        %v5929 = vsel %vm978, %v5160, %v5905
        %v5930 = vsel %vm978, %v5165, %v5907
        %v5931 = vsel %vm978, %v5170, %v5909
        %v5932 = vsel %vm978, %v5175, %v5911
        %v5933 = vsel %vm978, %v5180, %v5913
        %v5934 = vsel %vm978, %v5185, %v5915
        %v5935 = vsel %vm978, %v5190, %v5917
        %v5936 = vsel %vm978, %v5195, %v5919
        %v5937 = vsel %vm978, %v5200, %v5921
        %v5938 = vmul.f32 %v5922, %v2828
        %v5939 = vmul.f32 %v5923, %v2829
        %v5940 = vmul.f32 %v5924, %v2830
        %v5941 = vmul.f32 %v5925, %v2831
        %v5942 = vmul.f32 %v5926, %v2828
        %v5943 = vmul.f32 %v5927, %v2829
        %v5944 = vmul.f32 %v5928, %v2830
        %v5945 = vmul.f32 %v5929, %v2831
        %v5946 = vmul.f32 %v5930, %v2828
        %v5947 = vmul.f32 %v5931, %v2829
        %v5948 = vmul.f32 %v5932, %v2830
        %v5949 = vmul.f32 %v5933, %v2831
        %v5950 = vmul.f32 %v5934, %v2828
        %v5951 = vmul.f32 %v5935, %v2829
        %v5952 = vmul.f32 %v5936, %v2830
        %v5953 = vmul.f32 %v5937, %v2831
        %v5954 = vadd.f32 %v5874, %v5938
        %v5955 = vadd.f32 %v5875, %v5939
        %v5956 = vadd.f32 %v5876, %v5940
        %v5957 = vadd.f32 %v5877, %v5941
        %v5958 = vadd.f32 %v5878, %v5942
        %v5959 = vadd.f32 %v5879, %v5943
        %v5960 = vadd.f32 %v5880, %v5944
        %v5961 = vadd.f32 %v5881, %v5945
        %v5962 = vadd.f32 %v5882, %v5946
        %v5963 = vadd.f32 %v5883, %v5947
        %v5964 = vadd.f32 %v5884, %v5948
        %v5965 = vadd.f32 %v5885, %v5949
        %v5966 = vadd.f32 %v5886, %v5950
        %v5967 = vadd.f32 %v5887, %v5951
        %v5968 = vadd.f32 %v5888, %v5952
        %v5969 = vadd.f32 %v5889, %v5953
        %5970 = vrot.lane.b32.xlu0 %v4786, 126
        %v5971 = vpop.permute.xlu0 %5970
        %5972 = vrot.lane.b32.xlu0 %v4787, 126
        %v5973 = vpop.permute.xlu0 %5972
        %5974 = vrot.lane.b32.xlu0 %v4788, 126
        %v5975 = vpop.permute.xlu0 %5974
        %5976 = vrot.lane.b32.xlu0 %v4789, 126
        %v5977 = vpop.permute.xlu0 %5976
        %5978 = vrot.lane.b32.xlu0 %v4790, 126
        %v5979 = vpop.permute.xlu0 %5978
        %5980 = vrot.lane.b32.xlu0 %v4791, 126
        %v5981 = vpop.permute.xlu0 %5980
        %5982 = vrot.lane.b32.xlu0 %v4792, 126
        %v5983 = vpop.permute.xlu0 %5982
        %5984 = vrot.lane.b32.xlu0 %v4793, 126
        %v5985 = vpop.permute.xlu0 %5984
        %5986 = vrot.lane.b32.xlu0 %v4794, 126
        %v5987 = vpop.permute.xlu0 %5986
        %5988 = vrot.lane.b32.xlu0 %v4795, 126
        %v5989 = vpop.permute.xlu0 %5988
        %5990 = vrot.lane.b32.xlu0 %v4796, 126
        %v5991 = vpop.permute.xlu0 %5990
        %5992 = vrot.lane.b32.xlu0 %v4797, 126
        %v5993 = vpop.permute.xlu0 %5992
        %5994 = vrot.lane.b32.xlu0 %v4798, 126
        %v5995 = vpop.permute.xlu0 %5994
        %5996 = vrot.lane.b32.xlu0 %v4799, 126
        %v5997 = vpop.permute.xlu0 %5996
        %5998 = vrot.lane.b32.xlu0 %v4800, 126
        %v5999 = vpop.permute.xlu0 %5998
        %6000 = vrot.lane.b32.xlu0 %v4801, 126
        %v6001 = vpop.permute.xlu0 %6000
        %v6002 = vmul.f32 %v5971, %v2836
        %v6003 = vmul.f32 %v5973, %v2837
        %v6004 = vmul.f32 %v5975, %v2838
        %v6005 = vmul.f32 %v5977, %v2839
        %v6006 = vmul.f32 %v5979, %v2836
        %v6007 = vmul.f32 %v5981, %v2837
        %v6008 = vmul.f32 %v5983, %v2838
        %v6009 = vmul.f32 %v5985, %v2839
        %v6010 = vmul.f32 %v5987, %v2836
        %v6011 = vmul.f32 %v5989, %v2837
        %v6012 = vmul.f32 %v5991, %v2838
        %v6013 = vmul.f32 %v5993, %v2839
        %v6014 = vmul.f32 %v5995, %v2836
        %v6015 = vmul.f32 %v5997, %v2837
        %v6016 = vmul.f32 %v5999, %v2838
        %v6017 = vmul.f32 %v6001, %v2839
        %v6018 = vadd.f32 %v5954, %v6002
        %v6019 = vadd.f32 %v5955, %v6003
        %v6020 = vadd.f32 %v5956, %v6004
        %v6021 = vadd.f32 %v5957, %v6005
        %v6022 = vadd.f32 %v5958, %v6006
        %v6023 = vadd.f32 %v5959, %v6007
        %v6024 = vadd.f32 %v5960, %v6008
        %v6025 = vadd.f32 %v5961, %v6009
        %v6026 = vadd.f32 %v5962, %v6010
        %v6027 = vadd.f32 %v5963, %v6011
        %v6028 = vadd.f32 %v5964, %v6012
        %v6029 = vadd.f32 %v5965, %v6013
        %v6030 = vadd.f32 %v5966, %v6014
        %v6031 = vadd.f32 %v5967, %v6015
        %v6032 = vadd.f32 %v5968, %v6016
        %v6033 = vadd.f32 %v5969, %v6017
        %v6034 = vrot.slane %v4786, 2
        %v6035 = vrot.slane %v4790, 2
        %v6036 = vrot.slane %v4794, 2
        %v6037 = vrot.slane %v4798, 2
        %v6038 = vrot.slane %v4787, 2
        %v6039 = vrot.slane %v4791, 2
        %v6040 = vrot.slane %v4795, 2
        %v6041 = vrot.slane %v4799, 2
        %v6042 = vrot.slane %v4788, 2
        %v6043 = vrot.slane %v4792, 2
        %v6044 = vrot.slane %v4796, 2
        %v6045 = vrot.slane %v4800, 2
        %v6046 = vrot.slane %v4789, 2
        %v6047 = vrot.slane %v4793, 2
        %v6048 = vrot.slane %v4797, 2
        %v6049 = vrot.slane %v4801, 2
        %v6050 = vsel %vm1387, %v6042, %v6046
        %v6051 = vsel %vm1387, %v6043, %v6047
        %v6052 = vsel %vm1387, %v6044, %v6048
        %v6053 = vsel %vm1387, %v6045, %v6049
        %v6054 = vsel %vm1387, %v6038, %v6042
        %v6055 = vsel %vm1387, %v6039, %v6043
        %v6056 = vsel %vm1387, %v6040, %v6044
        %v6057 = vsel %vm1387, %v6041, %v6045
        %v6058 = vsel %vm1387, %v6034, %v6038
        %v6059 = vsel %vm1387, %v6035, %v6039
        %v6060 = vsel %vm1387, %v6036, %v6040
        %v6061 = vsel %vm1387, %v6037, %v6041
        %v6062 = vsel %vm1387, %v6046, %v6034
        %v6063 = vsel %vm1387, %v6047, %v6035
        %v6064 = vsel %vm1387, %v6048, %v6036
        %v6065 = vsel %vm1387, %v6049, %v6037
        %6066 = vrot.lane.b32.xlu0 %v6058, 2
        %v6067 = vpop.permute.xlu0 %6066
        %6068 = vrot.lane.b32.xlu0 %v6054, 2
        %v6069 = vpop.permute.xlu0 %6068
        %6070 = vrot.lane.b32.xlu0 %v6050, 2
        %v6071 = vpop.permute.xlu0 %6070
        %6072 = vrot.lane.b32.xlu0 %v6062, 2
        %v6073 = vpop.permute.xlu0 %6072
        %6074 = vrot.lane.b32.xlu0 %v6059, 2
        %v6075 = vpop.permute.xlu0 %6074
        %6076 = vrot.lane.b32.xlu0 %v6055, 2
        %v6077 = vpop.permute.xlu0 %6076
        %6078 = vrot.lane.b32.xlu0 %v6051, 2
        %v6079 = vpop.permute.xlu0 %6078
        %6080 = vrot.lane.b32.xlu0 %v6063, 2
        %v6081 = vpop.permute.xlu0 %6080
        %6082 = vrot.lane.b32.xlu0 %v6060, 2
        %v6083 = vpop.permute.xlu0 %6082
        %6084 = vrot.lane.b32.xlu0 %v6056, 2
        %v6085 = vpop.permute.xlu0 %6084
        %6086 = vrot.lane.b32.xlu0 %v6052, 2
        %v6087 = vpop.permute.xlu0 %6086
        %6088 = vrot.lane.b32.xlu0 %v6064, 2
        %v6089 = vpop.permute.xlu0 %6088
        %6090 = vrot.lane.b32.xlu0 %v6061, 2
        %v6091 = vpop.permute.xlu0 %6090
        %6092 = vrot.lane.b32.xlu0 %v6057, 2
        %v6093 = vpop.permute.xlu0 %6092
        %6094 = vrot.lane.b32.xlu0 %v6053, 2
        %v6095 = vpop.permute.xlu0 %6094
        %6096 = vrot.lane.b32.xlu0 %v6065, 2
        %v6097 = vpop.permute.xlu0 %6096
        %6099 = vset.pattern.permute.xlu0 0
        %6100 = vperm.xlu0 %6099, %v6058
        %v6101 = vpop.permute.xlu0 %6100
        %6104 = vset.pattern.permute.xlu0 0
        %6105 = vperm.xlu0 %6104, %v6054
        %v6106 = vpop.permute.xlu0 %6105
        %6109 = vset.pattern.permute.xlu0 0
        %6110 = vperm.xlu0 %6109, %v6050
        %v6111 = vpop.permute.xlu0 %6110
        %6114 = vset.pattern.permute.xlu0 0
        %6115 = vperm.xlu0 %6114, %v6062
        %v6116 = vpop.permute.xlu0 %6115
        %6119 = vset.pattern.permute.xlu0 0
        %6120 = vperm.xlu0 %6119, %v6059
        %v6121 = vpop.permute.xlu0 %6120
        %6124 = vset.pattern.permute.xlu0 0
        %6125 = vperm.xlu0 %6124, %v6055
        %v6126 = vpop.permute.xlu0 %6125
        %6129 = vset.pattern.permute.xlu0 0
        %6130 = vperm.xlu0 %6129, %v6051
        %v6131 = vpop.permute.xlu0 %6130
        %6134 = vset.pattern.permute.xlu0 0
        %6135 = vperm.xlu0 %6134, %v6063
        %v6136 = vpop.permute.xlu0 %6135
        %6139 = vset.pattern.permute.xlu0 0
        %6140 = vperm.xlu0 %6139, %v6060
        %v6141 = vpop.permute.xlu0 %6140
        %6144 = vset.pattern.permute.xlu0 0
        %6145 = vperm.xlu0 %6144, %v6056
        %v6146 = vpop.permute.xlu0 %6145
        %6149 = vset.pattern.permute.xlu0 0
        %6150 = vperm.xlu0 %6149, %v6052
        %v6151 = vpop.permute.xlu0 %6150
        %6154 = vset.pattern.permute.xlu0 0
        %6155 = vperm.xlu0 %6154, %v6064
        %v6156 = vpop.permute.xlu0 %6155
        %6159 = vset.pattern.permute.xlu0 0
        %6160 = vperm.xlu0 %6159, %v6061
        %v6161 = vpop.permute.xlu0 %6160
        %6164 = vset.pattern.permute.xlu0 0
        %6165 = vperm.xlu0 %6164, %v6057
        %v6166 = vpop.permute.xlu0 %6165
        %6169 = vset.pattern.permute.xlu0 0
        %6170 = vperm.xlu0 %6169, %v6053
        %v6171 = vpop.permute.xlu0 %6170
        %6174 = vset.pattern.permute.xlu0 0
        %6175 = vperm.xlu0 %6174, %v6065
        %v6176 = vpop.permute.xlu0 %6175
        %v6178 = vsel %vm978, %v6101, %v6067
        %v6179 = vsel %vm978, %v6106, %v6069
        %v6180 = vsel %vm978, %v6111, %v6071
        %v6181 = vsel %vm978, %v6116, %v6073
        %v6182 = vsel %vm978, %v6121, %v6075
        %v6183 = vsel %vm978, %v6126, %v6077
        %v6184 = vsel %vm978, %v6131, %v6079
        %v6185 = vsel %vm978, %v6136, %v6081
        %v6186 = vsel %vm978, %v6141, %v6083
        %v6187 = vsel %vm978, %v6146, %v6085
        %v6188 = vsel %vm978, %v6151, %v6087
        %v6189 = vsel %vm978, %v6156, %v6089
        %v6190 = vsel %vm978, %v6161, %v6091
        %v6191 = vsel %vm978, %v6166, %v6093
        %v6192 = vsel %vm978, %v6171, %v6095
        %v6193 = vsel %vm978, %v6176, %v6097
        %v6194 = vmul.f32 %v6178, %v2844
        %v6195 = vmul.f32 %v6179, %v2845
        %v6196 = vmul.f32 %v6180, %v2846
        %v6197 = vmul.f32 %v6181, %v2847
        %v6198 = vmul.f32 %v6182, %v2844
        %v6199 = vmul.f32 %v6183, %v2845
        %v6200 = vmul.f32 %v6184, %v2846
        %v6201 = vmul.f32 %v6185, %v2847
        %v6202 = vmul.f32 %v6186, %v2844
        %v6203 = vmul.f32 %v6187, %v2845
        %v6204 = vmul.f32 %v6188, %v2846
        %v6205 = vmul.f32 %v6189, %v2847
        %v6206 = vmul.f32 %v6190, %v2844
        %v6207 = vmul.f32 %v6191, %v2845
        %v6208 = vmul.f32 %v6192, %v2846
        %v6209 = vmul.f32 %v6193, %v2847
        %v6210 = vadd.f32 %v6018, %v6194
        %v6211 = vadd.f32 %v6019, %v6195
        %v6212 = vadd.f32 %v6020, %v6196
        %v6213 = vadd.f32 %v6021, %v6197
        %v6214 = vadd.f32 %v6022, %v6198
        %v6215 = vadd.f32 %v6023, %v6199
        %v6216 = vadd.f32 %v6024, %v6200
        %v6217 = vadd.f32 %v6025, %v6201
        %v6218 = vadd.f32 %v6026, %v6202
        %v6219 = vadd.f32 %v6027, %v6203
        %v6220 = vadd.f32 %v6028, %v6204
        %v6221 = vadd.f32 %v6029, %v6205
        %v6222 = vadd.f32 %v6030, %v6206
        %v6223 = vadd.f32 %v6031, %v6207
        %v6224 = vadd.f32 %v6032, %v6208
        %v6225 = vadd.f32 %v6033, %v6209
        %v6226 = vmul.f32 %v6058, %v2852
        %v6227 = vmul.f32 %v6054, %v2853
        %v6228 = vmul.f32 %v6050, %v2854
        %v6229 = vmul.f32 %v6062, %v2855
        %v6230 = vmul.f32 %v6059, %v2852
        %v6231 = vmul.f32 %v6055, %v2853
        %v6232 = vmul.f32 %v6051, %v2854
        %v6233 = vmul.f32 %v6063, %v2855
        %v6234 = vmul.f32 %v6060, %v2852
        %v6235 = vmul.f32 %v6056, %v2853
        %v6236 = vmul.f32 %v6052, %v2854
        %v6237 = vmul.f32 %v6064, %v2855
        %v6238 = vmul.f32 %v6061, %v2852
        %v6239 = vmul.f32 %v6057, %v2853
        %v6240 = vmul.f32 %v6053, %v2854
        %v6241 = vmul.f32 %v6065, %v2855
        %v6242 = vadd.f32 %v6210, %v6226
        %v6243 = vadd.f32 %v6211, %v6227
        %v6244 = vadd.f32 %v6212, %v6228
        %v6245 = vadd.f32 %v6213, %v6229
        %v6246 = vadd.f32 %v6214, %v6230
        %v6247 = vadd.f32 %v6215, %v6231
        %v6248 = vadd.f32 %v6216, %v6232
        %v6249 = vadd.f32 %v6217, %v6233
        %v6250 = vadd.f32 %v6218, %v6234
        %v6251 = vadd.f32 %v6219, %v6235
        %v6252 = vadd.f32 %v6220, %v6236
        %v6253 = vadd.f32 %v6221, %v6237
        %v6254 = vadd.f32 %v6222, %v6238
        %v6255 = vadd.f32 %v6223, %v6239
        %v6256 = vadd.f32 %v6224, %v6240
        %v6257 = vadd.f32 %v6225, %v6241
        %6258 = vrot.lane.b32.xlu0 %v6058, 126
        %v6259 = vpop.permute.xlu0 %6258
        %6260 = vrot.lane.b32.xlu0 %v6054, 126
        %v6261 = vpop.permute.xlu0 %6260
        %6262 = vrot.lane.b32.xlu0 %v6050, 126
        %v6263 = vpop.permute.xlu0 %6262
        %6264 = vrot.lane.b32.xlu0 %v6062, 126
        %v6265 = vpop.permute.xlu0 %6264
        %6266 = vrot.lane.b32.xlu0 %v6059, 126
        %v6267 = vpop.permute.xlu0 %6266
        %6268 = vrot.lane.b32.xlu0 %v6055, 126
        %v6269 = vpop.permute.xlu0 %6268
        %6270 = vrot.lane.b32.xlu0 %v6051, 126
        %v6271 = vpop.permute.xlu0 %6270
        %6272 = vrot.lane.b32.xlu0 %v6063, 126
        %v6273 = vpop.permute.xlu0 %6272
        %6274 = vrot.lane.b32.xlu0 %v6060, 126
        %v6275 = vpop.permute.xlu0 %6274
        %6276 = vrot.lane.b32.xlu0 %v6056, 126
        %v6277 = vpop.permute.xlu0 %6276
        %6278 = vrot.lane.b32.xlu0 %v6052, 126
        %v6279 = vpop.permute.xlu0 %6278
        %6280 = vrot.lane.b32.xlu0 %v6064, 126
        %v6281 = vpop.permute.xlu0 %6280
        %6282 = vrot.lane.b32.xlu0 %v6061, 126
        %v6283 = vpop.permute.xlu0 %6282
        %6284 = vrot.lane.b32.xlu0 %v6057, 126
        %v6285 = vpop.permute.xlu0 %6284
        %6286 = vrot.lane.b32.xlu0 %v6053, 126
        %v6287 = vpop.permute.xlu0 %6286
        %6288 = vrot.lane.b32.xlu0 %v6065, 126
        %v6289 = vpop.permute.xlu0 %6288
        %v6290 = vmul.f32 %v6259, %v2860
        %v6291 = vmul.f32 %v6261, %v2861
        %v6292 = vmul.f32 %v6263, %v2862
        %v6293 = vmul.f32 %v6265, %v2863
        %v6294 = vmul.f32 %v6267, %v2860
        %v6295 = vmul.f32 %v6269, %v2861
        %v6296 = vmul.f32 %v6271, %v2862
        %v6297 = vmul.f32 %v6273, %v2863
        %v6298 = vmul.f32 %v6275, %v2860
        %v6299 = vmul.f32 %v6277, %v2861
        %v6300 = vmul.f32 %v6279, %v2862
        %v6301 = vmul.f32 %v6281, %v2863
        %v6302 = vmul.f32 %v6283, %v2860
        %v6303 = vmul.f32 %v6285, %v2861
        %v6304 = vmul.f32 %v6287, %v2862
        %v6305 = vmul.f32 %v6289, %v2863
        %v6306 = vadd.f32 %v6242, %v6290
        %v6307 = vadd.f32 %v6243, %v6291
        %v6308 = vadd.f32 %v6244, %v6292
        %v6309 = vadd.f32 %v6245, %v6293
        %v6310 = vadd.f32 %v6246, %v6294
        %v6311 = vadd.f32 %v6247, %v6295
        %v6312 = vadd.f32 %v6248, %v6296
        %v6313 = vadd.f32 %v6249, %v6297
        %v6314 = vadd.f32 %v6250, %v6298
        %v6315 = vadd.f32 %v6251, %v6299
        %v6316 = vadd.f32 %v6252, %v6300
        %v6317 = vadd.f32 %v6253, %v6301
        %v6318 = vadd.f32 %v6254, %v6302
        %v6319 = vadd.f32 %v6255, %v6303
        %v6320 = vadd.f32 %v6256, %v6304
        %v6321 = vadd.f32 %v6257, %v6305
        %6322 = vst [vmem:[#allocation3] sm:$0xff] %v6306
        %6323 = vst [vmem:[#allocation3 + $0x8] sm:$0xff] %v6307
        %6324 = vst [vmem:[#allocation3 + $0x10] sm:$0xff] %v6308
        %6325 = vst [vmem:[#allocation3 + $0x18] sm:$0xff] %v6309
        %6326 = vst [vmem:[#allocation3 + $0x20] sm:$0xff] %v6310
        %6327 = vst [vmem:[#allocation3 + $0x28] sm:$0xff] %v6311
        %6328 = vst [vmem:[#allocation3 + $0x30] sm:$0xff] %v6312
        %6329 = vst [vmem:[#allocation3 + $0x38] sm:$0xff] %v6313
        %6330 = vst [vmem:[#allocation3 + $0x40] sm:$0xff] %v6314
        %6331 = vst [vmem:[#allocation3 + $0x48] sm:$0xff] %v6315
        %6332 = vst [vmem:[#allocation3 + $0x50] sm:$0xff] %v6316
        %6333 = vst [vmem:[#allocation3 + $0x58] sm:$0xff] %v6317
        %6334 = vst [vmem:[#allocation3 + $0x60] sm:$0xff] %v6318
        %6335 = vst [vmem:[#allocation3 + $0x68] sm:$0xff] %v6319
        %6336 = vst [vmem:[#allocation3 + $0x70] sm:$0xff] %v6320
        %6337 = vst [vmem:[#allocation3 + $0x78] sm:$0xff] %v6321
        %v6338 = vld [vmem:[#allocation3 + $0x8] sm:$0xff]
        %v6339 = vld [vmem:[#allocation3 + $0x10] sm:$0xff]
        %v6340 = vld [vmem:[#allocation3 + $0x28] sm:$0xff]
        %v6341 = vld [vmem:[#allocation3 + $0x30] sm:$0xff]
        %v6342 = vld [vmem:[#allocation3 + $0x48] sm:$0xff]
        %v6343 = vld [vmem:[#allocation3 + $0x50] sm:$0xff]
        %v6344 = vld [vmem:[#allocation3 + $0x68] sm:$0xff]
        %v6345 = vld [vmem:[#allocation3 + $0x70] sm:$0xff]
        %6346 = vst [vmem:[%s59] sm:$0xff] %v6338
        %6347 = vst [vmem:[%s59 + $0x8] sm:$0xff] %v6339
        %6348 = vst [vmem:[%s59 + $0x10] sm:$0xff] %v6340
        %6349 = vst [vmem:[%s59 + $0x18] sm:$0xff] %v6341
        %6350 = vst [vmem:[%s59 + $0x20] sm:$0xff] %v6342
        %6351 = vst [vmem:[%s59 + $0x28] sm:$0xff] %v6343
        %6352 = vst [vmem:[%s59 + $0x30] sm:$0xff] %v6344
        %6353 = vst [vmem:[%s59 + $0x38] sm:$0xff] %v6345
        %s6354 = sand.u32 %s32, 1
        %s6355 = scalar_lea.sflag [#allocation6], %s6354
        %s6356 = sand.u32 %s32, 1
        %s6357 = smul.addr %s6356, 64
        %s6358 = scalar_lea.vmem [#allocation5], %s6357
        // Predicated region
        $region21: #{tpu_custom_call.1} parent=11 // pred_check
          %p6359 = pneg %p38
        $region22: #{tpu_custom_call.1} parent=11 // pred_check_branch
          %6361 = sbr.rel (%p6359) target = $region24
        $region23: #{tpu_custom_call.1} parent=11 // pred_region
          %s6362 = smul.u32 2, %s18
          %s6364 = ssub.s32 1024, 1024
          %6365 = vsyncadd %s6355, %s6364
          %s6366 = smul.addr %s17, 8
          %s6367 = sadd.s32 %s6362, %s6366
          %s6368 = smul.addr %s6367, 128
          %s6369 = scalar_lea.hbm %s2, %s6368
          %s6370 = sshll.u32 %s6358, 4
          %s6371 = int_to_ptr.vmem [resolvable:$true] %s6370
          %6376 = dma.vmem_to_hbm [thread:$0]  %s6371, 1024, %s6369, %s6355, 128, 128, 8
        $region24: #{tpu_custom_call.1} parent=11 // pred_fallthru
          _
      $region12: #{tpu_custom_call.1} parent=5 // pred_fallthru
        _
      %p6377 = scmp.le.s32.totalorder 1, %s11
      // Predicated region
      $region25: #{tpu_custom_call.1} parent=5 // pred_check
        %p6378 = pneg %p6377
      $region26: #{tpu_custom_call.1} parent=5 // pred_check_branch
        %6380 = sbr.rel (%p6378) target = $region28
      $region27: #{tpu_custom_call.1} parent=5 // pred_region
        %s6381 = ssub.s32 %s11, 1
        // Predicated region
        $region29: #{tpu_custom_call.1} parent=27 // pred_check
          %p6382 = pneg %p44
        $region30: #{tpu_custom_call.1} parent=27 // pred_check_branch
          %6384 = sbr.rel (%p6382) target = $region32
        $region31: #{tpu_custom_call.1} parent=27 // pred_region
          %s6385 = sand.u32 %s35, 1
          %s6386 = scalar_lea.sflag [#allocation6], %s6385
          %s6387 = sand.u32 %s35, 1
          %s6388 = smul.addr %s6387, 64
          %s6389 = scalar_lea.vmem [#allocation5], %s6388
          %6390 = dma.done %s6386, 1024
        $region32: #{tpu_custom_call.1} parent=27 // pred_fallthru
          _
      $region28: #{tpu_custom_call.1} parent=5 // pred_fallthru
        _
    $region6: #{tpu_custom_call.1} parent=1 // loop_footer
      %s15 = sadd.s32 1, %s11
    $region7: #{tpu_custom_call.1} parent=1 // loop_footer_branch
      %10 = sbr.rel target = $region3
    $region8: #{tpu_custom_call.1} parent=1 // loop_exit
      _
    %6391 = vsyncpa [#allocation6], 1
    %s6392 = scalar_lea.sflag [#allocation6], 1
    %6393 = vsyncpa %s6392, 1
  %6394 = vsyncmov [#allocation4]
  %s6395 = vpop.sfrf %6394
  %p6396 = scmp.eq.s32.totalorder %s6395, 0
  %p6397 = pneg %p6396
  %6399 = shalt.err (%p6397)
  %s6400 = scalar_lea.sflag [#allocation4], 1
  %6401 = vsyncmov %s6400
  %s6402 = vpop.sfrf %6401
  %p6403 = scmp.eq.s32.totalorder %s6402, 0
  %p6404 = pneg %p6403
  %6406 = shalt.err (%p6404)

</llo_original>
